<compile_context>
chip_gen: v6e
topology: v6e:2x2x1
jax: 0.10.0
libtpu: 0.0.40
codegen_flags: <defaults>
</compile_context>

<pallas_src>
import functools

import jax
import jax.numpy as jnp
from jax.experimental import pallas as pl
from jax.experimental.pallas import tpu as pltpu

IN_DIM = 28 * 28      # 784
H1 = 512
H2 = 256
LATENT = 32

D_PAD = 896           # 7 * 128  (lane-dense padding of 784)
L_PAD = 128           # lane-dense padding of the 32-wide latent


def _ae_kernel(x_ref,
               w1_ref, b1_ref, w2_ref, b2_ref, w3_ref, b3_ref,
               w4_ref, b4_ref, w5_ref, b5_ref, w6_ref, b6_ref,
               enc_ref, dec_ref):
    x = x_ref[...]                                            # bf16 [tb, 896]

    # Encoder: 896(pad of 784) -> 512 -> 256 -> 128(pad of 32)
    h = jnp.dot(x, w1_ref[...], preferred_element_type=jnp.float32) + b1_ref[...]
    h = jnp.maximum(h, 0.0).astype(jnp.bfloat16)
    h = jnp.dot(h, w2_ref[...], preferred_element_type=jnp.float32) + b2_ref[...]
    h = jnp.maximum(h, 0.0).astype(jnp.bfloat16)
    enc = jnp.dot(h, w3_ref[...], preferred_element_type=jnp.float32) + b3_ref[...]
    enc_ref[...] = enc.astype(enc_ref.dtype)

    # Decoder: 128(pad of 32) -> 256 -> 512 -> 896(pad of 784)
    h = jnp.dot(enc.astype(jnp.bfloat16), w4_ref[...],
                preferred_element_type=jnp.float32) + b4_ref[...]
    h = jnp.maximum(h, 0.0).astype(jnp.bfloat16)
    h = jnp.dot(h, w5_ref[...], preferred_element_type=jnp.float32) + b5_ref[...]
    h = jnp.maximum(h, 0.0).astype(jnp.bfloat16)
    dec = jnp.dot(h, w6_ref[...], preferred_element_type=jnp.float32) + b6_ref[...]
    dec_ref[...] = dec.astype(dec_ref.dtype)


def _full_spec(shape):
    # Whole-array block, constant block index across the batch grid axis.
    return pl.BlockSpec(shape, lambda i: tuple(0 for _ in shape))


def _pad2d(a, rows, cols):
    r, c = a.shape
    return jnp.pad(a, ((0, rows - r), (0, cols - c)))


@functools.partial(jax.jit, static_argnames=("block_b",))
def ae_forward(x, params, block_b=256):
    """x: [B, 784] float32. Returns (encoded [B, 32], decoded [B, 784])."""
    B, D = x.shape
    assert D == IN_DIM

    # Pad batch to a multiple of the tile and features to a lane-dense width.
    B_pad = ((B + block_b - 1) // block_b) * block_b
    x_p = jnp.pad(x, ((0, B_pad - B), (0, D_PAD - D))).astype(jnp.bfloat16)

    (w1, b1), (w2, b2), (w3, b3), (w4, b4), (w5, b5), (w6, b6) = params
    # Zero-padding along contracted dims / padded output cols keeps the math
    # exact: padded x cols hit zero w1 rows, padded enc cols are exactly 0
    # (zero w3 cols + zero b3 pad) and hit zero w4 rows.
    padded = [
        (_pad2d(w1, D_PAD, H1).astype(jnp.bfloat16), b1),
        (w2.astype(jnp.bfloat16), b2),
        (_pad2d(w3, H2, L_PAD).astype(jnp.bfloat16), _pad2d(b3, 1, L_PAD)),
        (_pad2d(w4, L_PAD, H2).astype(jnp.bfloat16), b4),
        (w5.astype(jnp.bfloat16), b5),
        (_pad2d(w6, H1, D_PAD).astype(jnp.bfloat16), _pad2d(b6, 1, D_PAD)),
    ]

    x_spec = pl.BlockSpec((block_b, D_PAD), lambda i: (i, 0))
    enc_spec = pl.BlockSpec((block_b, L_PAD), lambda i: (i, 0))
    dec_spec = pl.BlockSpec((block_b, D_PAD), lambda i: (i, 0))

    in_specs = [x_spec]
    flat_args = [x_p]
    for w, b in padded:
        in_specs.append(_full_spec(w.shape))
        in_specs.append(_full_spec(b.shape))
        flat_args.extend([w, b])

    enc_pad, dec_pad = pl.pallas_call(
        _ae_kernel,
        out_shape=(
            jax.ShapeDtypeStruct((B_pad, L_PAD), jnp.float32),
            jax.ShapeDtypeStruct((B_pad, D_PAD), jnp.float32),
        ),
        grid_spec=pltpu.PrefetchScalarGridSpec(
            num_scalar_prefetch=0,
            grid=(B_pad // block_b,),
            in_specs=in_specs,
            out_specs=[enc_spec, dec_spec],
        ),
        compiler_params=pltpu.CompilerParams(
            dimension_semantics=("parallel",),
            vmem_limit_bytes=40 << 20,   # fits v7x's 64 MiB physical VMEM
        ),
    )(*flat_args)

    return enc_pad[:B, :LATENT], dec_pad[:B, :IN_DIM]


def init_params(key):
    """Deterministic init matching nn.Linear shapes (uniform +/- 1/sqrt(fan_in)).

    Weights are stored as [in, out] (transposed vs PyTorch) so y = x @ W + b."""
    dims = [(IN_DIM, H1), (H1, H2), (H2, LATENT),
            (LATENT, H2), (H2, H1), (H1, IN_DIM)]
    params = []
    for (fan_in, fan_out) in dims:
        key, kw, kb = jax.random.split(key, 3)
        bound = 1.0 / jnp.sqrt(jnp.float32(fan_in))
        w = jax.random.uniform(kw, (fan_in, fan_out), jnp.float32, -bound, bound)
        b = jax.random.uniform(kb, (1, fan_out), jnp.float32, -bound, bound)
        params.append((w, b))
    return params


def ae_forward_ref(x, params):
    """Pure-JAX reference using the same bf16-operand / f32-accumulate math."""
    def lin(h, w, b):
        return jnp.dot(h.astype(jnp.bfloat16), w.astype(jnp.bfloat16),
                       preferred_element_type=jnp.float32) + b

    (w1, b1), (w2, b2), (w3, b3), (w4, b4), (w5, b5), (w6, b6) = params
    h = jnp.maximum(lin(x, w1, b1), 0.0)
    h = jnp.maximum(lin(h, w2, b2), 0.0)
    enc = lin(h, w3, b3)
    h = jnp.maximum(lin(enc, w4, b4), 0.0)
    h = jnp.maximum(lin(h, w5, b5), 0.0)
    dec = lin(h, w6, b6)
    return enc, dec


if __name__ == "__main__":
    key = jax.random.PRNGKey(0)
    key, kx = jax.random.split(key)

    # Non-multiple of the 256-row tile to exercise the padding / slicing path;
    # pads to 512 rows -> 2 grid steps (lets v7x shard across its 2 TCs).
    B = 300
    x = jax.random.normal(kx, (B, IN_DIM), jnp.float32)
    params = init_params(key)

    enc, dec = ae_forward(x, params, block_b=256)
    jax.block_until_ready((enc, dec))

    enc_ref, dec_ref = ae_forward_ref(x, params)
    assert enc.shape == (B, LATENT) and dec.shape == (B, IN_DIM)
    assert jnp.allclose(enc, enc_ref, atol=1e-2, rtol=1e-2)
    assert jnp.allclose(dec, dec_ref, atol=1e-2, rtol=1e-2)

    print("KERNEL_OK")
</pallas_src>

<mosaic_0001>
module attributes {stable_mosaic.version = 11 : i64} {
  func.func @_ae_kernel(%arg0: i32, %arg1: memref<256x896xbf16, #tpu.memory_space<vmem>>, %arg2: memref<896x512xbf16, #tpu.memory_space<vmem>>, %arg3: memref<1x512xf32, #tpu.memory_space<vmem>>, %arg4: memref<512x256xbf16, #tpu.memory_space<vmem>>, %arg5: memref<1x256xf32, #tpu.memory_space<vmem>>, %arg6: memref<256x128xbf16, #tpu.memory_space<vmem>>, %arg7: memref<1x128xf32, #tpu.memory_space<vmem>>, %arg8: memref<128x256xbf16, #tpu.memory_space<vmem>>, %arg9: memref<1x256xf32, #tpu.memory_space<vmem>>, %arg10: memref<256x512xbf16, #tpu.memory_space<vmem>>, %arg11: memref<1x512xf32, #tpu.memory_space<vmem>>, %arg12: memref<512x896xbf16, #tpu.memory_space<vmem>>, %arg13: memref<1x896xf32, #tpu.memory_space<vmem>>, %arg14: memref<256x128xf32, #tpu.memory_space<vmem>>, %arg15: memref<256x896xf32, #tpu.memory_space<vmem>>) attributes {dimension_semantics = [#tpu.dimension_semantics<parallel>], iteration_bounds = array<i64: 2>, scalar_prefetch = 0 : i64, scratch_operands = 0 : i64, tpu.core_type = #tpu.core_type<tc>, window_params = [{transform_indices = @transform_0, window_bounds = array<i64: 256, 896>}, {pipeline_mode = #tpu.pipeline_mode<synchronous>, transform_indices = @transform_1, window_bounds = array<i64: 896, 512>}, {pipeline_mode = #tpu.pipeline_mode<synchronous>, transform_indices = @transform_2, window_bounds = array<i64: 1, 512>}, {pipeline_mode = #tpu.pipeline_mode<synchronous>, transform_indices = @transform_3, window_bounds = array<i64: 512, 256>}, {pipeline_mode = #tpu.pipeline_mode<synchronous>, transform_indices = @transform_4, window_bounds = array<i64: 1, 256>}, {pipeline_mode = #tpu.pipeline_mode<synchronous>, transform_indices = @transform_5, window_bounds = array<i64: 256, 128>}, {pipeline_mode = #tpu.pipeline_mode<synchronous>, transform_indices = @transform_6, window_bounds = array<i64: 1, 128>}, {pipeline_mode = #tpu.pipeline_mode<synchronous>, transform_indices = @transform_7, window_bounds = array<i64: 128, 256>}, {pipeline_mode = #tpu.pipeline_mode<synchronous>, transform_indices = @transform_8, window_bounds = array<i64: 1, 256>}, {pipeline_mode = #tpu.pipeline_mode<synchronous>, transform_indices = @transform_9, window_bounds = array<i64: 256, 512>}, {pipeline_mode = #tpu.pipeline_mode<synchronous>, transform_indices = @transform_10, window_bounds = array<i64: 1, 512>}, {pipeline_mode = #tpu.pipeline_mode<synchronous>, transform_indices = @transform_11, window_bounds = array<i64: 512, 896>}, {pipeline_mode = #tpu.pipeline_mode<synchronous>, transform_indices = @transform_12, window_bounds = array<i64: 1, 896>}, {transform_indices = @transform_13, window_bounds = array<i64: 256, 128>}, {transform_indices = @transform_14, window_bounds = array<i64: 256, 896>}]} {
    %c0 = arith.constant 0 : index
    %c0_0 = arith.constant 0 : index
    %0 = vector.load %arg1[%c0, %c0_0] : memref<256x896xbf16, #tpu.memory_space<vmem>>, vector<256x896xbf16>
    %c0_1 = arith.constant 0 : index
    %c0_2 = arith.constant 0 : index
    %1 = vector.load %arg2[%c0_1, %c0_2] : memref<896x512xbf16, #tpu.memory_space<vmem>>, vector<896x512xbf16>
    %cst = arith.constant dense<0.000000e+00> : vector<256x512xf32>
    %2 = tpu.matmul %0, %1, %cst {dimension_numbers = #tpu.dot_dimension_numbers<[1], [0], [0], [1], [0, 0, 1, 1], [], []>} : vector<256x896xbf16>, vector<896x512xbf16>, vector<256x512xf32> -> vector<256x512xf32>
    %c0_3 = arith.constant 0 : index
    %c0_4 = arith.constant 0 : index
    %3 = vector.load %arg3[%c0_3, %c0_4] : memref<1x512xf32, #tpu.memory_space<vmem>>, vector<1x512xf32>
    %4 = vector.broadcast %3 : vector<1x512xf32> to vector<256x512xf32>
    %5 = arith.addf %2, %4 : vector<256x512xf32>
    %cst_5 = arith.constant 0.000000e+00 : f32
    %6 = vector.broadcast %cst_5 : f32 to vector<256x512xf32>
    %7 = arith.maximumf %5, %6 : vector<256x512xf32>
    %8 = arith.truncf %7 : vector<256x512xf32> to vector<256x512xbf16>
    %c0_6 = arith.constant 0 : index
    %c0_7 = arith.constant 0 : index
    %9 = vector.load %arg4[%c0_6, %c0_7] : memref<512x256xbf16, #tpu.memory_space<vmem>>, vector<512x256xbf16>
    %cst_8 = arith.constant dense<0.000000e+00> : vector<256x256xf32>
    %10 = tpu.matmul %8, %9, %cst_8 {dimension_numbers = #tpu.dot_dimension_numbers<[1], [0], [0], [1], [0, 0, 1, 1], [], []>} : vector<256x512xbf16>, vector<512x256xbf16>, vector<256x256xf32> -> vector<256x256xf32>
    %c0_9 = arith.constant 0 : index
    %c0_10 = arith.constant 0 : index
    %11 = vector.load %arg5[%c0_9, %c0_10] : memref<1x256xf32, #tpu.memory_space<vmem>>, vector<1x256xf32>
    %12 = vector.broadcast %11 : vector<1x256xf32> to vector<256x256xf32>
    %13 = arith.addf %10, %12 : vector<256x256xf32>
    %cst_11 = arith.constant 0.000000e+00 : f32
    %14 = vector.broadcast %cst_11 : f32 to vector<256x256xf32>
    %15 = arith.maximumf %13, %14 : vector<256x256xf32>
    %16 = arith.truncf %15 : vector<256x256xf32> to vector<256x256xbf16>
    %c0_12 = arith.constant 0 : index
    %c0_13 = arith.constant 0 : index
    %17 = vector.load %arg6[%c0_12, %c0_13] : memref<256x128xbf16, #tpu.memory_space<vmem>>, vector<256x128xbf16>
    %cst_14 = arith.constant dense<0.000000e+00> : vector<256x128xf32>
    %18 = tpu.matmul %16, %17, %cst_14 {dimension_numbers = #tpu.dot_dimension_numbers<[1], [0], [0], [1], [0, 0, 1, 1], [], []>} : vector<256x256xbf16>, vector<256x128xbf16>, vector<256x128xf32> -> vector<256x128xf32>
    %c0_15 = arith.constant 0 : index
    %c0_16 = arith.constant 0 : index
    %19 = vector.load %arg7[%c0_15, %c0_16] : memref<1x128xf32, #tpu.memory_space<vmem>>, vector<1x128xf32>
    %20 = vector.broadcast %19 : vector<1x128xf32> to vector<256x128xf32>
    %21 = arith.addf %18, %20 : vector<256x128xf32>
    %c0_17 = arith.constant 0 : index
    %c0_18 = arith.constant 0 : index
    %22 = vector.load %arg14[%c0_17, %c0_18] : memref<256x128xf32, #tpu.memory_space<vmem>>, vector<256x128xf32>
    tpu.vector_store %arg14[%c0_17, %c0_18], %21 {strides = array<i32>} : memref<256x128xf32, #tpu.memory_space<vmem>>, vector<256x128xf32>,
    %23 = arith.truncf %21 : vector<256x128xf32> to vector<256x128xbf16>
    %c0_19 = arith.constant 0 : index
    %c0_20 = arith.constant 0 : index
    %24 = vector.load %arg8[%c0_19, %c0_20] : memref<128x256xbf16, #tpu.memory_space<vmem>>, vector<128x256xbf16>
    %cst_21 = arith.constant dense<0.000000e+00> : vector<256x256xf32>
    %25 = tpu.matmul %23, %24, %cst_21 {dimension_numbers = #tpu.dot_dimension_numbers<[1], [0], [0], [1], [0, 0, 1, 1], [], []>} : vector<256x128xbf16>, vector<128x256xbf16>, vector<256x256xf32> -> vector<256x256xf32>
    %c0_22 = arith.constant 0 : index
    %c0_23 = arith.constant 0 : index
    %26 = vector.load %arg9[%c0_22, %c0_23] : memref<1x256xf32, #tpu.memory_space<vmem>>, vector<1x256xf32>
    %27 = vector.broadcast %26 : vector<1x256xf32> to vector<256x256xf32>
    %28 = arith.addf %25, %27 : vector<256x256xf32>
    %cst_24 = arith.constant 0.000000e+00 : f32
    %29 = vector.broadcast %cst_24 : f32 to vector<256x256xf32>
    %30 = arith.maximumf %28, %29 : vector<256x256xf32>
    %31 = arith.truncf %30 : vector<256x256xf32> to vector<256x256xbf16>
    %c0_25 = arith.constant 0 : index
    %c0_26 = arith.constant 0 : index
    %32 = vector.load %arg10[%c0_25, %c0_26] : memref<256x512xbf16, #tpu.memory_space<vmem>>, vector<256x512xbf16>
    %cst_27 = arith.constant dense<0.000000e+00> : vector<256x512xf32>
    %33 = tpu.matmul %31, %32, %cst_27 {dimension_numbers = #tpu.dot_dimension_numbers<[1], [0], [0], [1], [0, 0, 1, 1], [], []>} : vector<256x256xbf16>, vector<256x512xbf16>, vector<256x512xf32> -> vector<256x512xf32>
    %c0_28 = arith.constant 0 : index
    %c0_29 = arith.constant 0 : index
    %34 = vector.load %arg11[%c0_28, %c0_29] : memref<1x512xf32, #tpu.memory_space<vmem>>, vector<1x512xf32>
    %35 = vector.broadcast %34 : vector<1x512xf32> to vector<256x512xf32>
    %36 = arith.addf %33, %35 : vector<256x512xf32>
    %cst_30 = arith.constant 0.000000e+00 : f32
    %37 = vector.broadcast %cst_30 : f32 to vector<256x512xf32>
    %38 = arith.maximumf %36, %37 : vector<256x512xf32>
    %39 = arith.truncf %38 : vector<256x512xf32> to vector<256x512xbf16>
    %c0_31 = arith.constant 0 : index
    %c0_32 = arith.constant 0 : index
    %40 = vector.load %arg12[%c0_31, %c0_32] : memref<512x896xbf16, #tpu.memory_space<vmem>>, vector<512x896xbf16>
    %cst_33 = arith.constant dense<0.000000e+00> : vector<256x896xf32>
    %41 = tpu.matmul %39, %40, %cst_33 {dimension_numbers = #tpu.dot_dimension_numbers<[1], [0], [0], [1], [0, 0, 1, 1], [], []>} : vector<256x512xbf16>, vector<512x896xbf16>, vector<256x896xf32> -> vector<256x896xf32>
    %c0_34 = arith.constant 0 : index
    %c0_35 = arith.constant 0 : index
    %42 = vector.load %arg13[%c0_34, %c0_35] : memref<1x896xf32, #tpu.memory_space<vmem>>, vector<1x896xf32>
    %43 = vector.broadcast %42 : vector<1x896xf32> to vector<256x896xf32>
    %44 = arith.addf %41, %43 : vector<256x896xf32>
    %c0_36 = arith.constant 0 : index
    %c0_37 = arith.constant 0 : index
    %45 = vector.load %arg15[%c0_36, %c0_37] : memref<256x896xf32, #tpu.memory_space<vmem>>, vector<256x896xf32>
    tpu.vector_store %arg15[%c0_36, %c0_37], %44 {strides = array<i32>} : memref<256x896xf32, #tpu.memory_space<vmem>>, vector<256x896xf32>,
    return
  }
  func.func @transform_0(%arg0: i32) -> (i32, i32) {
    %c0_i32 = arith.constant 0 : i32
    %c0_i32_0 = arith.constant 0 : i32
    return %arg0, %c0_i32 : i32, i32
  }
  func.func @transform_1(%arg0: i32) -> (i32, i32) {
    %c0_i32 = arith.constant 0 : i32
    %c0_i32_0 = arith.constant 0 : i32
    %c0_i32_1 = arith.constant 0 : i32
    return %c0_i32, %c0_i32_0 : i32, i32
  }
  func.func @transform_2(%arg0: i32) -> (i32, i32) {
    %c0_i32 = arith.constant 0 : i32
    %c0_i32_0 = arith.constant 0 : i32
    %c0_i32_1 = arith.constant 0 : i32
    return %c0_i32, %c0_i32_0 : i32, i32
  }
  func.func @transform_3(%arg0: i32) -> (i32, i32) {
    %c0_i32 = arith.constant 0 : i32
    %c0_i32_0 = arith.constant 0 : i32
    %c0_i32_1 = arith.constant 0 : i32
    return %c0_i32, %c0_i32_0 : i32, i32
  }
  func.func @transform_4(%arg0: i32) -> (i32, i32) {
    %c0_i32 = arith.constant 0 : i32
    %c0_i32_0 = arith.constant 0 : i32
    %c0_i32_1 = arith.constant 0 : i32
    return %c0_i32, %c0_i32_0 : i32, i32
  }
  func.func @transform_5(%arg0: i32) -> (i32, i32) {
    %c0_i32 = arith.constant 0 : i32
    %c0_i32_0 = arith.constant 0 : i32
    %c0_i32_1 = arith.constant 0 : i32
    return %c0_i32, %c0_i32_0 : i32, i32
  }
  func.func @transform_6(%arg0: i32) -> (i32, i32) {
    %c0_i32 = arith.constant 0 : i32
    %c0_i32_0 = arith.constant 0 : i32
    %c0_i32_1 = arith.constant 0 : i32
    return %c0_i32, %c0_i32_0 : i32, i32
  }
  func.func @transform_7(%arg0: i32) -> (i32, i32) {
    %c0_i32 = arith.constant 0 : i32
    %c0_i32_0 = arith.constant 0 : i32
    %c0_i32_1 = arith.constant 0 : i32
    return %c0_i32, %c0_i32_0 : i32, i32
  }
  func.func @transform_8(%arg0: i32) -> (i32, i32) {
    %c0_i32 = arith.constant 0 : i32
    %c0_i32_0 = arith.constant 0 : i32
    %c0_i32_1 = arith.constant 0 : i32
    return %c0_i32, %c0_i32_0 : i32, i32
  }
  func.func @transform_9(%arg0: i32) -> (i32, i32) {
    %c0_i32 = arith.constant 0 : i32
    %c0_i32_0 = arith.constant 0 : i32
    %c0_i32_1 = arith.constant 0 : i32
    return %c0_i32, %c0_i32_0 : i32, i32
  }
  func.func @transform_10(%arg0: i32) -> (i32, i32) {
    %c0_i32 = arith.constant 0 : i32
    %c0_i32_0 = arith.constant 0 : i32
    %c0_i32_1 = arith.constant 0 : i32
    return %c0_i32, %c0_i32_0 : i32, i32
  }
  func.func @transform_11(%arg0: i32) -> (i32, i32) {
    %c0_i32 = arith.constant 0 : i32
    %c0_i32_0 = arith.constant 0 : i32
    %c0_i32_1 = arith.constant 0 : i32
    return %c0_i32, %c0_i32_0 : i32, i32
  }
  func.func @transform_12(%arg0: i32) -> (i32, i32) {
    %c0_i32 = arith.constant 0 : i32
    %c0_i32_0 = arith.constant 0 : i32
    %c0_i32_1 = arith.constant 0 : i32
    return %c0_i32, %c0_i32_0 : i32, i32
  }
  func.func @transform_13(%arg0: i32) -> (i32, i32) {
    %c0_i32 = arith.constant 0 : i32
    %c0_i32_0 = arith.constant 0 : i32
    return %arg0, %c0_i32 : i32, i32
  }
  func.func @transform_14(%arg0: i32) -> (i32, i32) {
    %c0_i32 = arith.constant 0 : i32
    %c0_i32_0 = arith.constant 0 : i32
    return %arg0, %c0_i32 : i32, i32
  }
}

</mosaic_0001>

<llo_original>
// kernel: ae_forward.1
$region0: #{ae_forward.1}
  #allocation0 [shape = 'u32[]', space=smem, size = 0x4, offset = 0x4, fixed_abs, tag = 'smem constant byte address 0x4 - core index']
  #allocation1 [shape = 'u32[144,128]{1,0:T(1,128)}', space=vmem, size = 0x12000, scoped, tag = 'internal scratch']
  %s0 = inlined_call_operand.vmem [shape: bf16[512,896], index: 0, kind: input, shape index: {}]
  %s1 = inlined_call_operand.vmem [shape: bf16[896,512], index: 1, kind: input, shape index: {}]
  %s2 = inlined_call_operand.vmem [shape: f32[1,512], index: 2, kind: input, shape index: {}]
  %s3 = inlined_call_operand.vmem [shape: bf16[512,256], index: 3, kind: input, shape index: {}]
  %s4 = inlined_call_operand.vmem [shape: f32[1,256], index: 4, kind: input, shape index: {}]
  %s5 = inlined_call_operand.vmem [shape: bf16[256,128], index: 5, kind: input, shape index: {}]
  %s6 = inlined_call_operand.vmem [shape: f32[1,128], index: 6, kind: input, shape index: {}]
  %s7 = inlined_call_operand.vmem [shape: bf16[128,256], index: 7, kind: input, shape index: {}]
  %s8 = inlined_call_operand.vmem [shape: f32[1,256], index: 8, kind: input, shape index: {}]
  %s9 = inlined_call_operand.vmem [shape: bf16[256,512], index: 9, kind: input, shape index: {}]
  %s10 = inlined_call_operand.vmem [shape: f32[1,512], index: 10, kind: input, shape index: {}]
  %s11 = inlined_call_operand.vmem [shape: bf16[512,896], index: 11, kind: input, shape index: {}]
  %s12 = inlined_call_operand.vmem [shape: f32[1,896], index: 12, kind: input, shape index: {}]
  %s13 = inlined_call_operand.vmem [shape: f32[512,128], index: 13, kind: output, shape index: {0}]
  %s14 = inlined_call_operand.vmem [shape: f32[512,896], index: 14, kind: output, shape index: {1}]
  %15 = xla_tuple %s13, %s14
  %s16 = sld [smem:[#allocation0]]
  $region93: #{ae_forward.1} parent=0
    _
  %s18 = ssub.s32 1, %s16
  %s19 = scalar_select 0, %s18, %s16
  loop: start=0, step=1, limit=4
  $region2: #{ae_forward.1} parent=0 // loop_pre_header
    _
  $region3: #{ae_forward.1} parent=0 // loop_header
    %s21 = sphi 0, %s25
    %p22 = scmp.ge.s32.totalorder %s21, 4
    %s31 = sphi 0, %s33
    %s34 = sphi 0, %s31
    %s35 = sphi 0, %s34
    %s51 = sphi 0, %s35
    %s55 = sphi 0, %s55
    %s57 = sphi 0, %s55
    %s58 = sphi 0, %s57
    %s72 = sphi 0, %s58
    %s76 = sphi 0, %s76
    %s78 = sphi 0, %s76
    %s79 = sphi 0, %s78
    %s93 = sphi 0, %s79
    %s97 = sphi 0, %s97
    %s99 = sphi 0, %s97
    %s100 = sphi 0, %s99
    %s114 = sphi 0, %s100
    %s118 = sphi 0, %s118
    %s120 = sphi 0, %s118
    %s121 = sphi 0, %s120
    %s135 = sphi 0, %s121
    %s139 = sphi 0, %s139
    %s141 = sphi 0, %s139
    %s142 = sphi 0, %s141
    %s156 = sphi 0, %s142
    %s160 = sphi 0, %s160
    %s162 = sphi 0, %s160
    %s163 = sphi 0, %s162
    %s177 = sphi 0, %s163
    %s181 = sphi 0, %s181
    %s183 = sphi 0, %s181
    %s184 = sphi 0, %s183
    %s198 = sphi 0, %s184
    %s202 = sphi 0, %s202
    %s204 = sphi 0, %s202
    %s205 = sphi 0, %s204
    %s219 = sphi 0, %s205
    %s223 = sphi 0, %s223
    %s225 = sphi 0, %s223
    %s226 = sphi 0, %s225
    %s240 = sphi 0, %s226
    %s244 = sphi 0, %s244
    %s246 = sphi 0, %s244
    %s247 = sphi 0, %s246
    %s261 = sphi 0, %s247
    %s265 = sphi 0, %s265
    %s267 = sphi 0, %s265
    %s268 = sphi 0, %s267
    %s282 = sphi 0, %s268
    %s286 = sphi 0, %s286
    %s288 = sphi 0, %s286
    %s289 = sphi 0, %s288
    %s303 = sphi 0, %s289
    %s309 = sphi 0, %s311
    %s312 = sphi 0, %s309
    %s313 = sphi 0, %s312
    %s329 = sphi 0, %s313
    %s335 = sphi 0, %s337
    %s338 = sphi 0, %s335
    %s339 = sphi 0, %s338
    %s355 = sphi 0, %s339
  $region4: #{ae_forward.1} parent=0 // loop_header_branch
    %24 = sbr.rel (%p22) target = $region8
  $region5: #{ae_forward.1} parent=0 // loop_body
    %s26 = ssub.s32 %s21, 1
    %s27 = ssub.s32 %s21, 2
    %s28 = sadd.s32 %s21, 1
    %s29 = ssub.s32 %s21, %s28
    %p30 = scmp.eq.s32.totalorder %s29, 0
    %s32 = sadd.s32 %s31, 1
    %s33 = scalar_select %p30, %s31, %s32
    %p36 = pneg %p30
    %p37 = scmp.eq.s32.totalorder %s21, 1
    %p38 = por %p36, %p37
    %p39 = scmp.ne.s32.totalorder %s31, %s34
    %p40 = scmp.eq.s32.totalorder %s21, 0
    %p41 = por %p39, %p40
    %p42 = scmp.ne.s32.totalorder %s31, %s34
    %p43 = scmp.eq.s32.totalorder %s26, 1
    %p44 = por %p42, %p43
    %p45 = scmp.ne.s32.totalorder %s34, %s35
    %p46 = scmp.eq.s32.totalorder %s26, 0
    %p47 = por %p45, %p46
    %p48 = scmp.ne.s32.totalorder %s34, %s35
    %p49 = scmp.eq.s32.totalorder %s27, 1
    %p50 = por %p48, %p49
    %p52 = scmp.ne.s32.totalorder %s35, %s51
    %p53 = scmp.eq.s32.totalorder %s27, 0
    %p54 = por %p52, %p53
    %s56 = sadd.s32 %s55, 1
    %p59 = scmp.eq.s32.totalorder %s21, 1
    %p60 = scmp.ne.s32.totalorder %s55, %s57
    %p61 = scmp.eq.s32.totalorder %s21, 0
    %p62 = por %p60, %p61
    %p63 = scmp.ne.s32.totalorder %s55, %s57
    %p64 = scmp.eq.s32.totalorder %s26, 1
    %p65 = por %p63, %p64
    %p66 = scmp.ne.s32.totalorder %s57, %s58
    %p67 = scmp.eq.s32.totalorder %s26, 0
    %p68 = por %p66, %p67
    %p69 = scmp.ne.s32.totalorder %s57, %s58
    %p70 = scmp.eq.s32.totalorder %s27, 1
    %p71 = por %p69, %p70
    %p73 = scmp.ne.s32.totalorder %s58, %s72
    %p74 = scmp.eq.s32.totalorder %s27, 0
    %p75 = por %p73, %p74
    %s77 = sadd.s32 %s76, 1
    %p80 = scmp.eq.s32.totalorder %s21, 1
    %p81 = scmp.ne.s32.totalorder %s76, %s78
    %p82 = scmp.eq.s32.totalorder %s21, 0
    %p83 = por %p81, %p82
    %p84 = scmp.ne.s32.totalorder %s76, %s78
    %p85 = scmp.eq.s32.totalorder %s26, 1
    %p86 = por %p84, %p85
    %p87 = scmp.ne.s32.totalorder %s78, %s79
    %p88 = scmp.eq.s32.totalorder %s26, 0
    %p89 = por %p87, %p88
    %p90 = scmp.ne.s32.totalorder %s78, %s79
    %p91 = scmp.eq.s32.totalorder %s27, 1
    %p92 = por %p90, %p91
    %p94 = scmp.ne.s32.totalorder %s79, %s93
    %p95 = scmp.eq.s32.totalorder %s27, 0
    %p96 = por %p94, %p95
    %s98 = sadd.s32 %s97, 1
    %p101 = scmp.eq.s32.totalorder %s21, 1
    %p102 = scmp.ne.s32.totalorder %s97, %s99
    %p103 = scmp.eq.s32.totalorder %s21, 0
    %p104 = por %p102, %p103
    %p105 = scmp.ne.s32.totalorder %s97, %s99
    %p106 = scmp.eq.s32.totalorder %s26, 1
    %p107 = por %p105, %p106
    %p108 = scmp.ne.s32.totalorder %s99, %s100
    %p109 = scmp.eq.s32.totalorder %s26, 0
    %p110 = por %p108, %p109
    %p111 = scmp.ne.s32.totalorder %s99, %s100
    %p112 = scmp.eq.s32.totalorder %s27, 1
    %p113 = por %p111, %p112
    %p115 = scmp.ne.s32.totalorder %s100, %s114
    %p116 = scmp.eq.s32.totalorder %s27, 0
    %p117 = por %p115, %p116
    %s119 = sadd.s32 %s118, 1
    %p122 = scmp.eq.s32.totalorder %s21, 1
    %p123 = scmp.ne.s32.totalorder %s118, %s120
    %p124 = scmp.eq.s32.totalorder %s21, 0
    %p125 = por %p123, %p124
    %p126 = scmp.ne.s32.totalorder %s118, %s120
    %p127 = scmp.eq.s32.totalorder %s26, 1
    %p128 = por %p126, %p127
    %p129 = scmp.ne.s32.totalorder %s120, %s121
    %p130 = scmp.eq.s32.totalorder %s26, 0
    %p131 = por %p129, %p130
    %p132 = scmp.ne.s32.totalorder %s120, %s121
    %p133 = scmp.eq.s32.totalorder %s27, 1
    %p134 = por %p132, %p133
    %p136 = scmp.ne.s32.totalorder %s121, %s135
    %p137 = scmp.eq.s32.totalorder %s27, 0
    %p138 = por %p136, %p137
    %s140 = sadd.s32 %s139, 1
    %p143 = scmp.eq.s32.totalorder %s21, 1
    %p144 = scmp.ne.s32.totalorder %s139, %s141
    %p145 = scmp.eq.s32.totalorder %s21, 0
    %p146 = por %p144, %p145
    %p147 = scmp.ne.s32.totalorder %s139, %s141
    %p148 = scmp.eq.s32.totalorder %s26, 1
    %p149 = por %p147, %p148
    %p150 = scmp.ne.s32.totalorder %s141, %s142
    %p151 = scmp.eq.s32.totalorder %s26, 0
    %p152 = por %p150, %p151
    %p153 = scmp.ne.s32.totalorder %s141, %s142
    %p154 = scmp.eq.s32.totalorder %s27, 1
    %p155 = por %p153, %p154
    %p157 = scmp.ne.s32.totalorder %s142, %s156
    %p158 = scmp.eq.s32.totalorder %s27, 0
    %p159 = por %p157, %p158
    %s161 = sadd.s32 %s160, 1
    %p164 = scmp.eq.s32.totalorder %s21, 1
    %p165 = scmp.ne.s32.totalorder %s160, %s162
    %p166 = scmp.eq.s32.totalorder %s21, 0
    %p167 = por %p165, %p166
    %p168 = scmp.ne.s32.totalorder %s160, %s162
    %p169 = scmp.eq.s32.totalorder %s26, 1
    %p170 = por %p168, %p169
    %p171 = scmp.ne.s32.totalorder %s162, %s163
    %p172 = scmp.eq.s32.totalorder %s26, 0
    %p173 = por %p171, %p172
    %p174 = scmp.ne.s32.totalorder %s162, %s163
    %p175 = scmp.eq.s32.totalorder %s27, 1
    %p176 = por %p174, %p175
    %p178 = scmp.ne.s32.totalorder %s163, %s177
    %p179 = scmp.eq.s32.totalorder %s27, 0
    %p180 = por %p178, %p179
    %s182 = sadd.s32 %s181, 1
    %p185 = scmp.eq.s32.totalorder %s21, 1
    %p186 = scmp.ne.s32.totalorder %s181, %s183
    %p187 = scmp.eq.s32.totalorder %s21, 0
    %p188 = por %p186, %p187
    %p189 = scmp.ne.s32.totalorder %s181, %s183
    %p190 = scmp.eq.s32.totalorder %s26, 1
    %p191 = por %p189, %p190
    %p192 = scmp.ne.s32.totalorder %s183, %s184
    %p193 = scmp.eq.s32.totalorder %s26, 0
    %p194 = por %p192, %p193
    %p195 = scmp.ne.s32.totalorder %s183, %s184
    %p196 = scmp.eq.s32.totalorder %s27, 1
    %p197 = por %p195, %p196
    %p199 = scmp.ne.s32.totalorder %s184, %s198
    %p200 = scmp.eq.s32.totalorder %s27, 0
    %p201 = por %p199, %p200
    %s203 = sadd.s32 %s202, 1
    %p206 = scmp.eq.s32.totalorder %s21, 1
    %p207 = scmp.ne.s32.totalorder %s202, %s204
    %p208 = scmp.eq.s32.totalorder %s21, 0
    %p209 = por %p207, %p208
    %p210 = scmp.ne.s32.totalorder %s202, %s204
    %p211 = scmp.eq.s32.totalorder %s26, 1
    %p212 = por %p210, %p211
    %p213 = scmp.ne.s32.totalorder %s204, %s205
    %p214 = scmp.eq.s32.totalorder %s26, 0
    %p215 = por %p213, %p214
    %p216 = scmp.ne.s32.totalorder %s204, %s205
    %p217 = scmp.eq.s32.totalorder %s27, 1
    %p218 = por %p216, %p217
    %p220 = scmp.ne.s32.totalorder %s205, %s219
    %p221 = scmp.eq.s32.totalorder %s27, 0
    %p222 = por %p220, %p221
    %s224 = sadd.s32 %s223, 1
    %p227 = scmp.eq.s32.totalorder %s21, 1
    %p228 = scmp.ne.s32.totalorder %s223, %s225
    %p229 = scmp.eq.s32.totalorder %s21, 0
    %p230 = por %p228, %p229
    %p231 = scmp.ne.s32.totalorder %s223, %s225
    %p232 = scmp.eq.s32.totalorder %s26, 1
    %p233 = por %p231, %p232
    %p234 = scmp.ne.s32.totalorder %s225, %s226
    %p235 = scmp.eq.s32.totalorder %s26, 0
    %p236 = por %p234, %p235
    %p237 = scmp.ne.s32.totalorder %s225, %s226
    %p238 = scmp.eq.s32.totalorder %s27, 1
    %p239 = por %p237, %p238
    %p241 = scmp.ne.s32.totalorder %s226, %s240
    %p242 = scmp.eq.s32.totalorder %s27, 0
    %p243 = por %p241, %p242
    %s245 = sadd.s32 %s244, 1
    %p248 = scmp.eq.s32.totalorder %s21, 1
    %p249 = scmp.ne.s32.totalorder %s244, %s246
    %p250 = scmp.eq.s32.totalorder %s21, 0
    %p251 = por %p249, %p250
    %p252 = scmp.ne.s32.totalorder %s244, %s246
    %p253 = scmp.eq.s32.totalorder %s26, 1
    %p254 = por %p252, %p253
    %p255 = scmp.ne.s32.totalorder %s246, %s247
    %p256 = scmp.eq.s32.totalorder %s26, 0
    %p257 = por %p255, %p256
    %p258 = scmp.ne.s32.totalorder %s246, %s247
    %p259 = scmp.eq.s32.totalorder %s27, 1
    %p260 = por %p258, %p259
    %p262 = scmp.ne.s32.totalorder %s247, %s261
    %p263 = scmp.eq.s32.totalorder %s27, 0
    %p264 = por %p262, %p263
    %s266 = sadd.s32 %s265, 1
    %p269 = scmp.eq.s32.totalorder %s21, 1
    %p270 = scmp.ne.s32.totalorder %s265, %s267
    %p271 = scmp.eq.s32.totalorder %s21, 0
    %p272 = por %p270, %p271
    %p273 = scmp.ne.s32.totalorder %s265, %s267
    %p274 = scmp.eq.s32.totalorder %s26, 1
    %p275 = por %p273, %p274
    %p276 = scmp.ne.s32.totalorder %s267, %s268
    %p277 = scmp.eq.s32.totalorder %s26, 0
    %p278 = por %p276, %p277
    %p279 = scmp.ne.s32.totalorder %s267, %s268
    %p280 = scmp.eq.s32.totalorder %s27, 1
    %p281 = por %p279, %p280
    %p283 = scmp.ne.s32.totalorder %s268, %s282
    %p284 = scmp.eq.s32.totalorder %s27, 0
    %p285 = por %p283, %p284
    %s287 = sadd.s32 %s286, 1
    %p290 = scmp.eq.s32.totalorder %s21, 1
    %p291 = scmp.ne.s32.totalorder %s286, %s288
    %p292 = scmp.eq.s32.totalorder %s21, 0
    %p293 = por %p291, %p292
    %p294 = scmp.ne.s32.totalorder %s286, %s288
    %p295 = scmp.eq.s32.totalorder %s26, 1
    %p296 = por %p294, %p295
    %p297 = scmp.ne.s32.totalorder %s288, %s289
    %p298 = scmp.eq.s32.totalorder %s26, 0
    %p299 = por %p297, %p298
    %p300 = scmp.ne.s32.totalorder %s288, %s289
    %p301 = scmp.eq.s32.totalorder %s27, 1
    %p302 = por %p300, %p301
    %p304 = scmp.ne.s32.totalorder %s289, %s303
    %p305 = scmp.eq.s32.totalorder %s27, 0
    %p306 = por %p304, %p305
    %s307 = ssub.s32 %s21, %s28
    %p308 = scmp.eq.s32.totalorder %s307, 0
    %s310 = sadd.s32 %s309, 1
    %s311 = scalar_select %p308, %s309, %s310
    %p314 = pneg %p308
    %p315 = scmp.eq.s32.totalorder %s21, 1
    %p316 = por %p314, %p315
    %p317 = scmp.ne.s32.totalorder %s309, %s312
    %p318 = scmp.eq.s32.totalorder %s21, 0
    %p319 = por %p317, %p318
    %p320 = scmp.ne.s32.totalorder %s309, %s312
    %p321 = scmp.eq.s32.totalorder %s26, 1
    %p322 = por %p320, %p321
    %p323 = scmp.ne.s32.totalorder %s312, %s313
    %p324 = scmp.eq.s32.totalorder %s26, 0
    %p325 = por %p323, %p324
    %p326 = scmp.ne.s32.totalorder %s312, %s313
    %p327 = scmp.eq.s32.totalorder %s27, 1
    %p328 = por %p326, %p327
    %p330 = scmp.ne.s32.totalorder %s313, %s329
    %p331 = scmp.eq.s32.totalorder %s27, 0
    %p332 = por %p330, %p331
    %s333 = ssub.s32 %s21, %s28
    %p334 = scmp.eq.s32.totalorder %s333, 0
    %s336 = sadd.s32 %s335, 1
    %s337 = scalar_select %p334, %s335, %s336
    %p340 = pneg %p334
    %p341 = scmp.eq.s32.totalorder %s21, 1
    %p342 = por %p340, %p341
    %p343 = scmp.ne.s32.totalorder %s335, %s338
    %p344 = scmp.eq.s32.totalorder %s21, 0
    %p345 = por %p343, %p344
    %p346 = scmp.ne.s32.totalorder %s335, %s338
    %p347 = scmp.eq.s32.totalorder %s26, 1
    %p348 = por %p346, %p347
    %p349 = scmp.ne.s32.totalorder %s338, %s339
    %p350 = scmp.eq.s32.totalorder %s26, 0
    %p351 = por %p349, %p350
    %p352 = scmp.ne.s32.totalorder %s338, %s339
    %p353 = scmp.eq.s32.totalorder %s27, 1
    %p354 = por %p352, %p353
    %p356 = scmp.ne.s32.totalorder %s339, %s355
    %p357 = scmp.eq.s32.totalorder %s27, 0
    %p358 = por %p356, %p357
    %p359 = scmp.le.s32.totalorder 1, %s21
    %p360 = scmp.lt.s32.totalorder %s21, 3
    %p361 = pnand %p359, %p360
    %p362 = pneg %p361
    // Predicated region
    $region9: #{ae_forward.1} parent=5 // pred_check
      _
    $region10: #{ae_forward.1} parent=5 // pred_check_branch
      %364 = sbr.rel (%p361) target = $region12
    $region11: #{ae_forward.1} parent=5 // pred_region
      %s365 = ssub.s32 %s21, 1
      // Predicated region
      $region13: #{ae_forward.1} parent=11 // pred_check
        %p366 = pneg %p68
      $region14: #{ae_forward.1} parent=11 // pred_check_branch
        %368 = sbr.rel (%p366) target = $region16
      $region15: #{ae_forward.1} parent=11 // pred_region
        _
      $region16: #{ae_forward.1} parent=11 // pred_fallthru
        _
      // Predicated region
      $region17: #{ae_forward.1} parent=11 // pred_check
        %p369 = pneg %p89
      $region18: #{ae_forward.1} parent=11 // pred_check_branch
        %371 = sbr.rel (%p369) target = $region20
      $region19: #{ae_forward.1} parent=11 // pred_region
        _
      $region20: #{ae_forward.1} parent=11 // pred_fallthru
        _
      // Predicated region
      $region21: #{ae_forward.1} parent=11 // pred_check
        %p372 = pneg %p110
      $region22: #{ae_forward.1} parent=11 // pred_check_branch
        %374 = sbr.rel (%p372) target = $region24
      $region23: #{ae_forward.1} parent=11 // pred_region
        _
      $region24: #{ae_forward.1} parent=11 // pred_fallthru
        _
      // Predicated region
      $region25: #{ae_forward.1} parent=11 // pred_check
        %p375 = pneg %p131
      $region26: #{ae_forward.1} parent=11 // pred_check_branch
        %377 = sbr.rel (%p375) target = $region28
      $region27: #{ae_forward.1} parent=11 // pred_region
        _
      $region28: #{ae_forward.1} parent=11 // pred_fallthru
        _
      // Predicated region
      $region29: #{ae_forward.1} parent=11 // pred_check
        %p378 = pneg %p152
      $region30: #{ae_forward.1} parent=11 // pred_check_branch
        %380 = sbr.rel (%p378) target = $region32
      $region31: #{ae_forward.1} parent=11 // pred_region
        _
      $region32: #{ae_forward.1} parent=11 // pred_fallthru
        _
      // Predicated region
      $region33: #{ae_forward.1} parent=11 // pred_check
        %p381 = pneg %p173
      $region34: #{ae_forward.1} parent=11 // pred_check_branch
        %383 = sbr.rel (%p381) target = $region36
      $region35: #{ae_forward.1} parent=11 // pred_region
        _
      $region36: #{ae_forward.1} parent=11 // pred_fallthru
        _
      // Predicated region
      $region37: #{ae_forward.1} parent=11 // pred_check
        %p384 = pneg %p194
      $region38: #{ae_forward.1} parent=11 // pred_check_branch
        %386 = sbr.rel (%p384) target = $region40
      $region39: #{ae_forward.1} parent=11 // pred_region
        _
      $region40: #{ae_forward.1} parent=11 // pred_fallthru
        _
      // Predicated region
      $region41: #{ae_forward.1} parent=11 // pred_check
        %p387 = pneg %p215
      $region42: #{ae_forward.1} parent=11 // pred_check_branch
        %389 = sbr.rel (%p387) target = $region44
      $region43: #{ae_forward.1} parent=11 // pred_region
        _
      $region44: #{ae_forward.1} parent=11 // pred_fallthru
        _
      // Predicated region
      $region45: #{ae_forward.1} parent=11 // pred_check
        %p390 = pneg %p236
      $region46: #{ae_forward.1} parent=11 // pred_check_branch
        %392 = sbr.rel (%p390) target = $region48
      $region47: #{ae_forward.1} parent=11 // pred_region
        _
      $region48: #{ae_forward.1} parent=11 // pred_fallthru
        _
      // Predicated region
      $region49: #{ae_forward.1} parent=11 // pred_check
        %p393 = pneg %p257
      $region50: #{ae_forward.1} parent=11 // pred_check_branch
        %395 = sbr.rel (%p393) target = $region52
      $region51: #{ae_forward.1} parent=11 // pred_region
        _
      $region52: #{ae_forward.1} parent=11 // pred_fallthru
        _
      // Predicated region
      $region53: #{ae_forward.1} parent=11 // pred_check
        %p396 = pneg %p278
      $region54: #{ae_forward.1} parent=11 // pred_check_branch
        %398 = sbr.rel (%p396) target = $region56
      $region55: #{ae_forward.1} parent=11 // pred_region
        _
      $region56: #{ae_forward.1} parent=11 // pred_fallthru
        _
      // Predicated region
      $region57: #{ae_forward.1} parent=11 // pred_check
        %p399 = pneg %p299
      $region58: #{ae_forward.1} parent=11 // pred_check_branch
        %401 = sbr.rel (%p399) target = $region60
      $region59: #{ae_forward.1} parent=11 // pred_region
        _
      $region60: #{ae_forward.1} parent=11 // pred_fallthru
        _
    $region12: #{ae_forward.1} parent=5 // pred_fallthru
      _
    %p402 = scmp.lt.s32.totalorder %s21, 2
    // Predicated region
    $region61: #{ae_forward.1} parent=5 // pred_check
      %p403 = pneg %p402
    $region62: #{ae_forward.1} parent=5 // pred_check_branch
      %405 = sbr.rel (%p403) target = $region64
    $region63: #{ae_forward.1} parent=5 // pred_region
      // Predicated region
      $region65: #{ae_forward.1} parent=63 // pred_check
        %p406 = pneg %p41
      $region66: #{ae_forward.1} parent=63 // pred_check_branch
        %408 = sbr.rel (%p406) target = $region68
      $region67: #{ae_forward.1} parent=63 // pred_region
        %s409 = smul.u32 32, %s21
        %p410 = scmp.lt.s32.totalorder %s409, 63
        %s411 = scalar_select %p410, %s409, 63
        %s412 = smul.addr %s411, 7
        %s413 = smul.addr %s412, 4
        %s414 = scalar_lea.vmem %s0, %s413
        %s415 = smul.u32 32, %s21
      $region68: #{ae_forward.1} parent=63 // pred_fallthru
        _
    $region64: #{ae_forward.1} parent=5 // pred_fallthru
      _
    %p416 = scmp.le.s32.totalorder 1, %s21
    %p417 = scmp.lt.s32.totalorder %s21, 3
    %p418 = pnand %p416, %p417
    %p419 = pneg %p418
    // Predicated region
    $region69: #{ae_forward.1} parent=5 // pred_check
      _
    $region70: #{ae_forward.1} parent=5 // pred_check_branch
      %421 = sbr.rel (%p418) target = $region72
    $region71: #{ae_forward.1} parent=5 // pred_region
      %s422 = ssub.s32 %s21, 1
      %s423 = smul.u32 32, %s26
      %p424 = scmp.lt.s32.totalorder %s423, 63
      %s425 = scalar_select %p424, %s423, 63
      %s426 = smul.addr %s425, 7
      %s427 = smul.addr %s426, 4
      %s428 = scalar_lea.vmem %s0, %s427
      %p429 = pneg %p47
      %p430 = pneg %p44
      %p431 = pneg %p68
      %p432 = pneg %p65
      %p433 = pneg %p89
      %p434 = pneg %p86
      %p435 = pneg %p110
      %p436 = pneg %p107
      %p437 = pneg %p131
      %p438 = pneg %p128
      %p439 = pneg %p152
      %p440 = pneg %p149
      %p441 = pneg %p173
      %p442 = pneg %p170
      %p443 = pneg %p194
      %p444 = pneg %p191
      %p445 = pneg %p215
      %p446 = pneg %p212
      %p447 = pneg %p236
      %p448 = pneg %p233
      %p449 = pneg %p257
      %p450 = pneg %p254
      %p451 = pneg %p278
      %p452 = pneg %p275
      %p453 = pneg %p299
      %p454 = pneg %p296
      %p455 = pneg %p325
      %p456 = pneg %p322
      %s457 = smul.u32 32, %s26
      %p458 = scmp.lt.s32.totalorder %s457, 63
      %s459 = scalar_select %p458, %s457, 63
      %s460 = smul.addr %s459, 8
      %s461 = scalar_lea.vmem %s13, %s460
      %p462 = pneg %p351
      %p463 = pneg %p348
      %s464 = smul.u32 32, %s26
      %p465 = scmp.lt.s32.totalorder %s464, 63
      %s466 = scalar_select %p465, %s464, 63
      %s467 = smul.addr %s466, 7
      %s468 = smul.addr %s467, 8
      %s469 = scalar_lea.vmem %s14, %s468
      %s470 = smul.u32 32, %s26
      %p471 = scmp.lt.s32.totalorder %s470, 63
      %s472 = scalar_select %p471, %s470, 63
      %s473 = smul.addr %s472, 7
      %s474 = smul.addr %s473, 4
      %s475 = scalar_lea.vmem %s0, %s474
      %s476 = smul.u32 32, %s26
      %s477 = smul.u32 32, %s26
      %p478 = scmp.lt.s32.totalorder %s477, 63
      %s479 = scalar_select %p478, %s477, 63
      %s480 = smul.addr %s479, 8
      %s481 = scalar_lea.vmem %s13, %s480
      %s482 = smul.u32 32, %s26
      %s483 = smul.u32 32, %s26
      %p484 = scmp.lt.s32.totalorder %s483, 63
      %s485 = scalar_select %p484, %s483, 63
      %s486 = smul.addr %s485, 7
      %s487 = smul.addr %s486, 8
      %s488 = scalar_lea.vmem %s14, %s487
      %s489 = smul.u32 32, %s26
      %v491 = vld [vmem:[%s475] sm:$0xff]
      %v492 = vld [vmem:[%s475 + $0x8] sm:$0xff]
      %v493 = vld [vmem:[%s475 + $0x10] sm:$0xff]
      %v494 = vld [vmem:[%s475 + $0x18] sm:$0xf]
      %v495 = vld [vmem:[%s475 + $0x1c] sm:$0xff]
      %v496 = vld [vmem:[%s475 + $0x24] sm:$0xff]
      %v497 = vld [vmem:[%s475 + $0x2c] sm:$0xff]
      %v498 = vld [vmem:[%s475 + $0x34] sm:$0xf]
      %v499 = vld [vmem:[%s475 + $0x38] sm:$0xff]
      %v500 = vld [vmem:[%s475 + $0x40] sm:$0xff]
      %v501 = vld [vmem:[%s475 + $0x48] sm:$0xff]
      %v502 = vld [vmem:[%s475 + $0x50] sm:$0xf]
      %v503 = vld [vmem:[%s475 + $0x54] sm:$0xff]
      %v504 = vld [vmem:[%s475 + $0x5c] sm:$0xff]
      %v505 = vld [vmem:[%s475 + $0x64] sm:$0xff]
      %v506 = vld [vmem:[%s475 + $0x6c] sm:$0xf]
      %v507 = vld [vmem:[%s475 + $0x70] sm:$0xff]
      %v508 = vld [vmem:[%s475 + $0x78] sm:$0xff]
      %v509 = vld [vmem:[%s475 + $0x80] sm:$0xff]
      %v510 = vld [vmem:[%s475 + $0x88] sm:$0xf]
      %v511 = vld [vmem:[%s475 + $0x8c] sm:$0xff]
      %v512 = vld [vmem:[%s475 + $0x94] sm:$0xff]
      %v513 = vld [vmem:[%s475 + $0x9c] sm:$0xff]
      %v514 = vld [vmem:[%s475 + $0xa4] sm:$0xf]
      %v515 = vld [vmem:[%s475 + $0xa8] sm:$0xff]
      %v516 = vld [vmem:[%s475 + $0xb0] sm:$0xff]
      %v517 = vld [vmem:[%s475 + $0xb8] sm:$0xff]
      %v518 = vld [vmem:[%s475 + $0xc0] sm:$0xf]
      %v519 = vld [vmem:[%s475 + $0xc4] sm:$0xff]
      %v520 = vld [vmem:[%s475 + $0xcc] sm:$0xff]
      %v521 = vld [vmem:[%s475 + $0xd4] sm:$0xff]
      %v522 = vld [vmem:[%s475 + $0xdc] sm:$0xf]
      %v523 = vld [vmem:[%s475 + $0xe0] sm:$0xff]
      %v524 = vld [vmem:[%s475 + $0xe8] sm:$0xff]
      %v525 = vld [vmem:[%s475 + $0xf0] sm:$0xff]
      %v526 = vld [vmem:[%s475 + $0xf8] sm:$0xf]
      %v527 = vld [vmem:[%s475 + $0xfc] sm:$0xff]
      %v528 = vld [vmem:[%s475 + $0x104] sm:$0xff]
      %v529 = vld [vmem:[%s475 + $0x10c] sm:$0xff]
      %v530 = vld [vmem:[%s475 + $0x114] sm:$0xf]
      %v531 = vld [vmem:[%s475 + $0x118] sm:$0xff]
      %v532 = vld [vmem:[%s475 + $0x120] sm:$0xff]
      %v533 = vld [vmem:[%s475 + $0x128] sm:$0xff]
      %v534 = vld [vmem:[%s475 + $0x130] sm:$0xf]
      %v535 = vld [vmem:[%s475 + $0x134] sm:$0xff]
      %v536 = vld [vmem:[%s475 + $0x13c] sm:$0xff]
      %v537 = vld [vmem:[%s475 + $0x144] sm:$0xff]
      %v538 = vld [vmem:[%s475 + $0x14c] sm:$0xf]
      %v539 = vld [vmem:[%s475 + $0x150] sm:$0xff]
      %v540 = vld [vmem:[%s475 + $0x158] sm:$0xff]
      %v541 = vld [vmem:[%s475 + $0x160] sm:$0xff]
      %v542 = vld [vmem:[%s475 + $0x168] sm:$0xf]
      %v543 = vld [vmem:[%s475 + $0x16c] sm:$0xff]
      %v544 = vld [vmem:[%s475 + $0x174] sm:$0xff]
      %v545 = vld [vmem:[%s475 + $0x17c] sm:$0xff]
      %v546 = vld [vmem:[%s475 + $0x184] sm:$0xf]
      %v547 = vld [vmem:[%s475 + $0x188] sm:$0xff]
      %v548 = vld [vmem:[%s475 + $0x190] sm:$0xff]
      %v549 = vld [vmem:[%s475 + $0x198] sm:$0xff]
      %v550 = vld [vmem:[%s475 + $0x1a0] sm:$0xf]
      %v551 = vld [vmem:[%s475 + $0x1a4] sm:$0xff]
      %v552 = vld [vmem:[%s475 + $0x1ac] sm:$0xff]
      %v553 = vld [vmem:[%s475 + $0x1b4] sm:$0xff]
      %v554 = vld [vmem:[%s475 + $0x1bc] sm:$0xf]
      %v555 = vld [vmem:[%s475 + $0x1c0] sm:$0xff]
      %v556 = vld [vmem:[%s475 + $0x1c8] sm:$0xff]
      %v557 = vld [vmem:[%s475 + $0x1d0] sm:$0xff]
      %v558 = vld [vmem:[%s475 + $0x1d8] sm:$0xf]
      %v559 = vld [vmem:[%s475 + $0x1dc] sm:$0xff]
      %v560 = vld [vmem:[%s475 + $0x1e4] sm:$0xff]
      %v561 = vld [vmem:[%s475 + $0x1ec] sm:$0xff]
      %v562 = vld [vmem:[%s475 + $0x1f4] sm:$0xf]
      %v563 = vld [vmem:[%s475 + $0x1f8] sm:$0xff]
      %v564 = vld [vmem:[%s475 + $0x200] sm:$0xff]
      %v565 = vld [vmem:[%s475 + $0x208] sm:$0xff]
      %v566 = vld [vmem:[%s475 + $0x210] sm:$0xf]
      %v567 = vld [vmem:[%s475 + $0x214] sm:$0xff]
      %v568 = vld [vmem:[%s475 + $0x21c] sm:$0xff]
      %v569 = vld [vmem:[%s475 + $0x224] sm:$0xff]
      %v570 = vld [vmem:[%s475 + $0x22c] sm:$0xf]
      %v571 = vld [vmem:[%s475 + $0x230] sm:$0xff]
      %v572 = vld [vmem:[%s475 + $0x238] sm:$0xff]
      %v573 = vld [vmem:[%s475 + $0x240] sm:$0xff]
      %v574 = vld [vmem:[%s475 + $0x248] sm:$0xf]
      %v575 = vld [vmem:[%s475 + $0x24c] sm:$0xff]
      %v576 = vld [vmem:[%s475 + $0x254] sm:$0xff]
      %v577 = vld [vmem:[%s475 + $0x25c] sm:$0xff]
      %v578 = vld [vmem:[%s475 + $0x264] sm:$0xf]
      %v579 = vld [vmem:[%s475 + $0x268] sm:$0xff]
      %v580 = vld [vmem:[%s475 + $0x270] sm:$0xff]
      %v581 = vld [vmem:[%s475 + $0x278] sm:$0xff]
      %v582 = vld [vmem:[%s475 + $0x280] sm:$0xf]
      %v583 = vld [vmem:[%s475 + $0x284] sm:$0xff]
      %v584 = vld [vmem:[%s475 + $0x28c] sm:$0xff]
      %v585 = vld [vmem:[%s475 + $0x294] sm:$0xff]
      %v586 = vld [vmem:[%s475 + $0x29c] sm:$0xf]
      %v587 = vld [vmem:[%s475 + $0x2a0] sm:$0xff]
      %v588 = vld [vmem:[%s475 + $0x2a8] sm:$0xff]
      %v589 = vld [vmem:[%s475 + $0x2b0] sm:$0xff]
      %v590 = vld [vmem:[%s475 + $0x2b8] sm:$0xf]
      %v591 = vld [vmem:[%s475 + $0x2bc] sm:$0xff]
      %v592 = vld [vmem:[%s475 + $0x2c4] sm:$0xff]
      %v593 = vld [vmem:[%s475 + $0x2cc] sm:$0xff]
      %v594 = vld [vmem:[%s475 + $0x2d4] sm:$0xf]
      %v595 = vld [vmem:[%s475 + $0x2d8] sm:$0xff]
      %v596 = vld [vmem:[%s475 + $0x2e0] sm:$0xff]
      %v597 = vld [vmem:[%s475 + $0x2e8] sm:$0xff]
      %v598 = vld [vmem:[%s475 + $0x2f0] sm:$0xf]
      %v599 = vld [vmem:[%s475 + $0x2f4] sm:$0xff]
      %v600 = vld [vmem:[%s475 + $0x2fc] sm:$0xff]
      %v601 = vld [vmem:[%s475 + $0x304] sm:$0xff]
      %v602 = vld [vmem:[%s475 + $0x30c] sm:$0xf]
      %v603 = vld [vmem:[%s475 + $0x310] sm:$0xff]
      %v604 = vld [vmem:[%s475 + $0x318] sm:$0xff]
      %v605 = vld [vmem:[%s475 + $0x320] sm:$0xff]
      %v606 = vld [vmem:[%s475 + $0x328] sm:$0xf]
      %v607 = vld [vmem:[%s475 + $0x32c] sm:$0xff]
      %v608 = vld [vmem:[%s475 + $0x334] sm:$0xff]
      %v609 = vld [vmem:[%s475 + $0x33c] sm:$0xff]
      %v610 = vld [vmem:[%s475 + $0x344] sm:$0xf]
      %v611 = vld [vmem:[%s475 + $0x348] sm:$0xff]
      %v612 = vld [vmem:[%s475 + $0x350] sm:$0xff]
      %v613 = vld [vmem:[%s475 + $0x358] sm:$0xff]
      %v614 = vld [vmem:[%s475 + $0x360] sm:$0xf]
      %v615 = vld [vmem:[%s475 + $0x364] sm:$0xff]
      %v616 = vld [vmem:[%s475 + $0x36c] sm:$0xff]
      %v617 = vld [vmem:[%s475 + $0x374] sm:$0xff]
      %v618 = vld [vmem:[%s475 + $0x37c] sm:$0xf]
      %v619 = vld [vmem:[%s1] sm:$0xff]
      %v620 = vld [vmem:[%s1 + $0x8] sm:$0xff]
      %v621 = vld [vmem:[%s1 + $0x10] sm:$0xff]
      %v622 = vld [vmem:[%s1 + $0x18] sm:$0xff]
      %v623 = vld [vmem:[%s1 + $0x20] sm:$0xff]
      %v624 = vld [vmem:[%s1 + $0x28] sm:$0xff]
      %v625 = vld [vmem:[%s1 + $0x30] sm:$0xff]
      %v626 = vld [vmem:[%s1 + $0x38] sm:$0xff]
      %v627 = vld [vmem:[%s1 + $0x40] sm:$0xff]
      %v628 = vld [vmem:[%s1 + $0x48] sm:$0xff]
      %v629 = vld [vmem:[%s1 + $0x50] sm:$0xff]
      %v630 = vld [vmem:[%s1 + $0x58] sm:$0xff]
      %v631 = vld [vmem:[%s1 + $0x60] sm:$0xff]
      %v632 = vld [vmem:[%s1 + $0x68] sm:$0xff]
      %v633 = vld [vmem:[%s1 + $0x70] sm:$0xff]
      %v634 = vld [vmem:[%s1 + $0x78] sm:$0xff]
      %v635 = vld [vmem:[%s1 + $0x80] sm:$0xff]
      %v636 = vld [vmem:[%s1 + $0x88] sm:$0xff]
      %v637 = vld [vmem:[%s1 + $0x90] sm:$0xff]
      %v638 = vld [vmem:[%s1 + $0x98] sm:$0xff]
      %v639 = vld [vmem:[%s1 + $0xa0] sm:$0xff]
      %v640 = vld [vmem:[%s1 + $0xa8] sm:$0xff]
      %v641 = vld [vmem:[%s1 + $0xb0] sm:$0xff]
      %v642 = vld [vmem:[%s1 + $0xb8] sm:$0xff]
      %v643 = vld [vmem:[%s1 + $0xc0] sm:$0xff]
      %v644 = vld [vmem:[%s1 + $0xc8] sm:$0xff]
      %v645 = vld [vmem:[%s1 + $0xd0] sm:$0xff]
      %v646 = vld [vmem:[%s1 + $0xd8] sm:$0xff]
      %v647 = vld [vmem:[%s1 + $0xe0] sm:$0xff]
      %v648 = vld [vmem:[%s1 + $0xe8] sm:$0xff]
      %v649 = vld [vmem:[%s1 + $0xf0] sm:$0xff]
      %v650 = vld [vmem:[%s1 + $0xf8] sm:$0xff]
      %v651 = vld [vmem:[%s1 + $0x100] sm:$0xff]
      %v652 = vld [vmem:[%s1 + $0x108] sm:$0xff]
      %v653 = vld [vmem:[%s1 + $0x110] sm:$0xff]
      %v654 = vld [vmem:[%s1 + $0x118] sm:$0xff]
      %v655 = vld [vmem:[%s1 + $0x120] sm:$0xff]
      %v656 = vld [vmem:[%s1 + $0x128] sm:$0xff]
      %v657 = vld [vmem:[%s1 + $0x130] sm:$0xff]
      %v658 = vld [vmem:[%s1 + $0x138] sm:$0xff]
      %v659 = vld [vmem:[%s1 + $0x140] sm:$0xff]
      %v660 = vld [vmem:[%s1 + $0x148] sm:$0xff]
      %v661 = vld [vmem:[%s1 + $0x150] sm:$0xff]
      %v662 = vld [vmem:[%s1 + $0x158] sm:$0xff]
      %v663 = vld [vmem:[%s1 + $0x160] sm:$0xff]
      %v664 = vld [vmem:[%s1 + $0x168] sm:$0xff]
      %v665 = vld [vmem:[%s1 + $0x170] sm:$0xff]
      %v666 = vld [vmem:[%s1 + $0x178] sm:$0xff]
      %v667 = vld [vmem:[%s1 + $0x180] sm:$0xff]
      %v668 = vld [vmem:[%s1 + $0x188] sm:$0xff]
      %v669 = vld [vmem:[%s1 + $0x190] sm:$0xff]
      %v670 = vld [vmem:[%s1 + $0x198] sm:$0xff]
      %v671 = vld [vmem:[%s1 + $0x1a0] sm:$0xff]
      %v672 = vld [vmem:[%s1 + $0x1a8] sm:$0xff]
      %v673 = vld [vmem:[%s1 + $0x1b0] sm:$0xff]
      %v674 = vld [vmem:[%s1 + $0x1b8] sm:$0xff]
      %v675 = vld [vmem:[%s1 + $0x1c0] sm:$0xff]
      %v676 = vld [vmem:[%s1 + $0x1c8] sm:$0xff]
      %v677 = vld [vmem:[%s1 + $0x1d0] sm:$0xff]
      %v678 = vld [vmem:[%s1 + $0x1d8] sm:$0xff]
      %v679 = vld [vmem:[%s1 + $0x1e0] sm:$0xff]
      %v680 = vld [vmem:[%s1 + $0x1e8] sm:$0xff]
      %v681 = vld [vmem:[%s1 + $0x1f0] sm:$0xff]
      %v682 = vld [vmem:[%s1 + $0x1f8] sm:$0xff]
      %v683 = vld [vmem:[%s1 + $0x200] sm:$0xff]
      %v684 = vld [vmem:[%s1 + $0x208] sm:$0xff]
      %v685 = vld [vmem:[%s1 + $0x210] sm:$0xff]
      %v686 = vld [vmem:[%s1 + $0x218] sm:$0xff]
      %v687 = vld [vmem:[%s1 + $0x220] sm:$0xff]
      %v688 = vld [vmem:[%s1 + $0x228] sm:$0xff]
      %v689 = vld [vmem:[%s1 + $0x230] sm:$0xff]
      %v690 = vld [vmem:[%s1 + $0x238] sm:$0xff]
      %v691 = vld [vmem:[%s1 + $0x240] sm:$0xff]
      %v692 = vld [vmem:[%s1 + $0x248] sm:$0xff]
      %v693 = vld [vmem:[%s1 + $0x250] sm:$0xff]
      %v694 = vld [vmem:[%s1 + $0x258] sm:$0xff]
      %v695 = vld [vmem:[%s1 + $0x260] sm:$0xff]
      %v696 = vld [vmem:[%s1 + $0x268] sm:$0xff]
      %v697 = vld [vmem:[%s1 + $0x270] sm:$0xff]
      %v698 = vld [vmem:[%s1 + $0x278] sm:$0xff]
      %v699 = vld [vmem:[%s1 + $0x280] sm:$0xff]
      %v700 = vld [vmem:[%s1 + $0x288] sm:$0xff]
      %v701 = vld [vmem:[%s1 + $0x290] sm:$0xff]
      %v702 = vld [vmem:[%s1 + $0x298] sm:$0xff]
      %v703 = vld [vmem:[%s1 + $0x2a0] sm:$0xff]
      %v704 = vld [vmem:[%s1 + $0x2a8] sm:$0xff]
      %v705 = vld [vmem:[%s1 + $0x2b0] sm:$0xff]
      %v706 = vld [vmem:[%s1 + $0x2b8] sm:$0xff]
      %v707 = vld [vmem:[%s1 + $0x2c0] sm:$0xff]
      %v708 = vld [vmem:[%s1 + $0x2c8] sm:$0xff]
      %v709 = vld [vmem:[%s1 + $0x2d0] sm:$0xff]
      %v710 = vld [vmem:[%s1 + $0x2d8] sm:$0xff]
      %v711 = vld [vmem:[%s1 + $0x2e0] sm:$0xff]
      %v712 = vld [vmem:[%s1 + $0x2e8] sm:$0xff]
      %v713 = vld [vmem:[%s1 + $0x2f0] sm:$0xff]
      %v714 = vld [vmem:[%s1 + $0x2f8] sm:$0xff]
      %v715 = vld [vmem:[%s1 + $0x300] sm:$0xff]
      %v716 = vld [vmem:[%s1 + $0x308] sm:$0xff]
      %v717 = vld [vmem:[%s1 + $0x310] sm:$0xff]
      %v718 = vld [vmem:[%s1 + $0x318] sm:$0xff]
      %v719 = vld [vmem:[%s1 + $0x320] sm:$0xff]
      %v720 = vld [vmem:[%s1 + $0x328] sm:$0xff]
      %v721 = vld [vmem:[%s1 + $0x330] sm:$0xff]
      %v722 = vld [vmem:[%s1 + $0x338] sm:$0xff]
      %v723 = vld [vmem:[%s1 + $0x340] sm:$0xff]
      %v724 = vld [vmem:[%s1 + $0x348] sm:$0xff]
      %v725 = vld [vmem:[%s1 + $0x350] sm:$0xff]
      %v726 = vld [vmem:[%s1 + $0x358] sm:$0xff]
      %v727 = vld [vmem:[%s1 + $0x360] sm:$0xff]
      %v728 = vld [vmem:[%s1 + $0x368] sm:$0xff]
      %v729 = vld [vmem:[%s1 + $0x370] sm:$0xff]
      %v730 = vld [vmem:[%s1 + $0x378] sm:$0xff]
      %v731 = vld [vmem:[%s1 + $0x380] sm:$0xff]
      %v732 = vld [vmem:[%s1 + $0x388] sm:$0xff]
      %v733 = vld [vmem:[%s1 + $0x390] sm:$0xff]
      %v734 = vld [vmem:[%s1 + $0x398] sm:$0xff]
      %v735 = vld [vmem:[%s1 + $0x3a0] sm:$0xff]
      %v736 = vld [vmem:[%s1 + $0x3a8] sm:$0xff]
      %v737 = vld [vmem:[%s1 + $0x3b0] sm:$0xff]
      %v738 = vld [vmem:[%s1 + $0x3b8] sm:$0xff]
      %v739 = vld [vmem:[%s1 + $0x3c0] sm:$0xff]
      %v740 = vld [vmem:[%s1 + $0x3c8] sm:$0xff]
      %v741 = vld [vmem:[%s1 + $0x3d0] sm:$0xff]
      %v742 = vld [vmem:[%s1 + $0x3d8] sm:$0xff]
      %v743 = vld [vmem:[%s1 + $0x3e0] sm:$0xff]
      %v744 = vld [vmem:[%s1 + $0x3e8] sm:$0xff]
      %v745 = vld [vmem:[%s1 + $0x3f0] sm:$0xff]
      %v746 = vld [vmem:[%s1 + $0x3f8] sm:$0xff]
      %v747 = vld [vmem:[%s1 + $0x400] sm:$0xff]
      %v748 = vld [vmem:[%s1 + $0x408] sm:$0xff]
      %v749 = vld [vmem:[%s1 + $0x410] sm:$0xff]
      %v750 = vld [vmem:[%s1 + $0x418] sm:$0xff]
      %v751 = vld [vmem:[%s1 + $0x420] sm:$0xff]
      %v752 = vld [vmem:[%s1 + $0x428] sm:$0xff]
      %v753 = vld [vmem:[%s1 + $0x430] sm:$0xff]
      %v754 = vld [vmem:[%s1 + $0x438] sm:$0xff]
      %v755 = vld [vmem:[%s1 + $0x440] sm:$0xff]
      %v756 = vld [vmem:[%s1 + $0x448] sm:$0xff]
      %v757 = vld [vmem:[%s1 + $0x450] sm:$0xff]
      %v758 = vld [vmem:[%s1 + $0x458] sm:$0xff]
      %v759 = vld [vmem:[%s1 + $0x460] sm:$0xff]
      %v760 = vld [vmem:[%s1 + $0x468] sm:$0xff]
      %v761 = vld [vmem:[%s1 + $0x470] sm:$0xff]
      %v762 = vld [vmem:[%s1 + $0x478] sm:$0xff]
      %v763 = vld [vmem:[%s1 + $0x480] sm:$0xff]
      %v764 = vld [vmem:[%s1 + $0x488] sm:$0xff]
      %v765 = vld [vmem:[%s1 + $0x490] sm:$0xff]
      %v766 = vld [vmem:[%s1 + $0x498] sm:$0xff]
      %v767 = vld [vmem:[%s1 + $0x4a0] sm:$0xff]
      %v768 = vld [vmem:[%s1 + $0x4a8] sm:$0xff]
      %v769 = vld [vmem:[%s1 + $0x4b0] sm:$0xff]
      %v770 = vld [vmem:[%s1 + $0x4b8] sm:$0xff]
      %v771 = vld [vmem:[%s1 + $0x4c0] sm:$0xff]
      %v772 = vld [vmem:[%s1 + $0x4c8] sm:$0xff]
      %v773 = vld [vmem:[%s1 + $0x4d0] sm:$0xff]
      %v774 = vld [vmem:[%s1 + $0x4d8] sm:$0xff]
      %v775 = vld [vmem:[%s1 + $0x4e0] sm:$0xff]
      %v776 = vld [vmem:[%s1 + $0x4e8] sm:$0xff]
      %v777 = vld [vmem:[%s1 + $0x4f0] sm:$0xff]
      %v778 = vld [vmem:[%s1 + $0x4f8] sm:$0xff]
      %v779 = vld [vmem:[%s1 + $0x500] sm:$0xff]
      %v780 = vld [vmem:[%s1 + $0x508] sm:$0xff]
      %v781 = vld [vmem:[%s1 + $0x510] sm:$0xff]
      %v782 = vld [vmem:[%s1 + $0x518] sm:$0xff]
      %v783 = vld [vmem:[%s1 + $0x520] sm:$0xff]
      %v784 = vld [vmem:[%s1 + $0x528] sm:$0xff]
      %v785 = vld [vmem:[%s1 + $0x530] sm:$0xff]
      %v786 = vld [vmem:[%s1 + $0x538] sm:$0xff]
      %v787 = vld [vmem:[%s1 + $0x540] sm:$0xff]
      %v788 = vld [vmem:[%s1 + $0x548] sm:$0xff]
      %v789 = vld [vmem:[%s1 + $0x550] sm:$0xff]
      %v790 = vld [vmem:[%s1 + $0x558] sm:$0xff]
      %v791 = vld [vmem:[%s1 + $0x560] sm:$0xff]
      %v792 = vld [vmem:[%s1 + $0x568] sm:$0xff]
      %v793 = vld [vmem:[%s1 + $0x570] sm:$0xff]
      %v794 = vld [vmem:[%s1 + $0x578] sm:$0xff]
      %v795 = vld [vmem:[%s1 + $0x580] sm:$0xff]
      %v796 = vld [vmem:[%s1 + $0x588] sm:$0xff]
      %v797 = vld [vmem:[%s1 + $0x590] sm:$0xff]
      %v798 = vld [vmem:[%s1 + $0x598] sm:$0xff]
      %v799 = vld [vmem:[%s1 + $0x5a0] sm:$0xff]
      %v800 = vld [vmem:[%s1 + $0x5a8] sm:$0xff]
      %v801 = vld [vmem:[%s1 + $0x5b0] sm:$0xff]
      %v802 = vld [vmem:[%s1 + $0x5b8] sm:$0xff]
      %v803 = vld [vmem:[%s1 + $0x5c0] sm:$0xff]
      %v804 = vld [vmem:[%s1 + $0x5c8] sm:$0xff]
      %v805 = vld [vmem:[%s1 + $0x5d0] sm:$0xff]
      %v806 = vld [vmem:[%s1 + $0x5d8] sm:$0xff]
      %v807 = vld [vmem:[%s1 + $0x5e0] sm:$0xff]
      %v808 = vld [vmem:[%s1 + $0x5e8] sm:$0xff]
      %v809 = vld [vmem:[%s1 + $0x5f0] sm:$0xff]
      %v810 = vld [vmem:[%s1 + $0x5f8] sm:$0xff]
      %v811 = vld [vmem:[%s1 + $0x600] sm:$0xff]
      %v812 = vld [vmem:[%s1 + $0x608] sm:$0xff]
      %v813 = vld [vmem:[%s1 + $0x610] sm:$0xff]
      %v814 = vld [vmem:[%s1 + $0x618] sm:$0xff]
      %v815 = vld [vmem:[%s1 + $0x620] sm:$0xff]
      %v816 = vld [vmem:[%s1 + $0x628] sm:$0xff]
      %v817 = vld [vmem:[%s1 + $0x630] sm:$0xff]
      %v818 = vld [vmem:[%s1 + $0x638] sm:$0xff]
      %v819 = vld [vmem:[%s1 + $0x640] sm:$0xff]
      %v820 = vld [vmem:[%s1 + $0x648] sm:$0xff]
      %v821 = vld [vmem:[%s1 + $0x650] sm:$0xff]
      %v822 = vld [vmem:[%s1 + $0x658] sm:$0xff]
      %v823 = vld [vmem:[%s1 + $0x660] sm:$0xff]
      %v824 = vld [vmem:[%s1 + $0x668] sm:$0xff]
      %v825 = vld [vmem:[%s1 + $0x670] sm:$0xff]
      %v826 = vld [vmem:[%s1 + $0x678] sm:$0xff]
      %v827 = vld [vmem:[%s1 + $0x680] sm:$0xff]
      %v828 = vld [vmem:[%s1 + $0x688] sm:$0xff]
      %v829 = vld [vmem:[%s1 + $0x690] sm:$0xff]
      %v830 = vld [vmem:[%s1 + $0x698] sm:$0xff]
      %v831 = vld [vmem:[%s1 + $0x6a0] sm:$0xff]
      %v832 = vld [vmem:[%s1 + $0x6a8] sm:$0xff]
      %v833 = vld [vmem:[%s1 + $0x6b0] sm:$0xff]
      %v834 = vld [vmem:[%s1 + $0x6b8] sm:$0xff]
      %v835 = vld [vmem:[%s1 + $0x6c0] sm:$0xff]
      %v836 = vld [vmem:[%s1 + $0x6c8] sm:$0xff]
      %v837 = vld [vmem:[%s1 + $0x6d0] sm:$0xff]
      %v838 = vld [vmem:[%s1 + $0x6d8] sm:$0xff]
      %v839 = vld [vmem:[%s1 + $0x6e0] sm:$0xff]
      %v840 = vld [vmem:[%s1 + $0x6e8] sm:$0xff]
      %v841 = vld [vmem:[%s1 + $0x6f0] sm:$0xff]
      %v842 = vld [vmem:[%s1 + $0x6f8] sm:$0xff]
      %v843 = vld [vmem:[%s2] sm:$0xf]
      %v845 = vlaneseq
      %v846 = vshrl.u32 %v845, 7
      %v847 = vsub.s32 0, %v846
      %v848 = vrot.slane %v843, %v847
      %v849 = vlaneseq
      %v850 = vshrl.u32 %v849, 7
      %v851 = vsub.s32 1, %v850
      %v852 = vrot.slane %v843, %v851
      %v853 = vlaneseq
      %v854 = vshrl.u32 %v853, 7
      %v855 = vsub.s32 2, %v854
      %v856 = vrot.slane %v843, %v855
      %v857 = vlaneseq
      %v858 = vshrl.u32 %v857, 7
      %v859 = vsub.s32 3, %v858
      %v860 = vrot.slane %v843, %v859
      %v993 = vunpack.c.l.b16 %v491
      %v994 = vunpack.c.h.b16 %v491
      %v995 = vunpack.c.l.b16 %v492
      %v996 = vunpack.c.h.b16 %v492
      %v997 = vunpack.c.l.b16 %v493
      %v998 = vunpack.c.h.b16 %v493
      %v999 = vunpack.c.l.b16 %v494
      %v1000 = vunpack.c.l.b16 %v495
      %v1001 = vunpack.c.h.b16 %v495
      %v1002 = vunpack.c.l.b16 %v496
      %v1003 = vunpack.c.h.b16 %v496
      %v1004 = vunpack.c.l.b16 %v497
      %v1005 = vunpack.c.h.b16 %v497
      %v1006 = vunpack.c.l.b16 %v498
      %v1007 = vunpack.c.l.b16 %v499
      %v1008 = vunpack.c.h.b16 %v499
      %v1009 = vunpack.c.l.b16 %v500
      %v1010 = vunpack.c.h.b16 %v500
      %v1011 = vunpack.c.l.b16 %v501
      %v1012 = vunpack.c.h.b16 %v501
      %v1013 = vunpack.c.l.b16 %v502
      %v1014 = vunpack.c.l.b16 %v503
      %v1015 = vunpack.c.h.b16 %v503
      %v1016 = vunpack.c.l.b16 %v504
      %v1017 = vunpack.c.h.b16 %v504
      %v1018 = vunpack.c.l.b16 %v505
      %v1019 = vunpack.c.h.b16 %v505
      %v1020 = vunpack.c.l.b16 %v506
      %v1021 = vunpack.c.l.b16 %v507
      %v1022 = vunpack.c.h.b16 %v507
      %v1023 = vunpack.c.l.b16 %v508
      %v1024 = vunpack.c.h.b16 %v508
      %v1025 = vunpack.c.l.b16 %v509
      %v1026 = vunpack.c.h.b16 %v509
      %v1027 = vunpack.c.l.b16 %v510
      %v1028 = vunpack.c.l.b16 %v511
      %v1029 = vunpack.c.h.b16 %v511
      %v1030 = vunpack.c.l.b16 %v512
      %v1031 = vunpack.c.h.b16 %v512
      %v1032 = vunpack.c.l.b16 %v513
      %v1033 = vunpack.c.h.b16 %v513
      %v1034 = vunpack.c.l.b16 %v514
      %v1035 = vunpack.c.l.b16 %v515
      %v1036 = vunpack.c.h.b16 %v515
      %v1037 = vunpack.c.l.b16 %v516
      %v1038 = vunpack.c.h.b16 %v516
      %v1039 = vunpack.c.l.b16 %v517
      %v1040 = vunpack.c.h.b16 %v517
      %v1041 = vunpack.c.l.b16 %v518
      %v1042 = vunpack.c.l.b16 %v519
      %v1043 = vunpack.c.h.b16 %v519
      %v1044 = vunpack.c.l.b16 %v520
      %v1045 = vunpack.c.h.b16 %v520
      %v1046 = vunpack.c.l.b16 %v521
      %v1047 = vunpack.c.h.b16 %v521
      %v1048 = vunpack.c.l.b16 %v522
      %v1049 = vunpack.c.l.b16 %v523
      %v1050 = vunpack.c.h.b16 %v523
      %v1051 = vunpack.c.l.b16 %v524
      %v1052 = vunpack.c.h.b16 %v524
      %v1053 = vunpack.c.l.b16 %v525
      %v1054 = vunpack.c.h.b16 %v525
      %v1055 = vunpack.c.l.b16 %v526
      %v1056 = vunpack.c.l.b16 %v527
      %v1057 = vunpack.c.h.b16 %v527
      %v1058 = vunpack.c.l.b16 %v528
      %v1059 = vunpack.c.h.b16 %v528
      %v1060 = vunpack.c.l.b16 %v529
      %v1061 = vunpack.c.h.b16 %v529
      %v1062 = vunpack.c.l.b16 %v530
      %v1063 = vunpack.c.l.b16 %v531
      %v1064 = vunpack.c.h.b16 %v531
      %v1065 = vunpack.c.l.b16 %v532
      %v1066 = vunpack.c.h.b16 %v532
      %v1067 = vunpack.c.l.b16 %v533
      %v1068 = vunpack.c.h.b16 %v533
      %v1069 = vunpack.c.l.b16 %v534
      %v1070 = vunpack.c.l.b16 %v535
      %v1071 = vunpack.c.h.b16 %v535
      %v1072 = vunpack.c.l.b16 %v536
      %v1073 = vunpack.c.h.b16 %v536
      %v1074 = vunpack.c.l.b16 %v537
      %v1075 = vunpack.c.h.b16 %v537
      %v1076 = vunpack.c.l.b16 %v538
      %v1077 = vunpack.c.l.b16 %v539
      %v1078 = vunpack.c.h.b16 %v539
      %v1079 = vunpack.c.l.b16 %v540
      %v1080 = vunpack.c.h.b16 %v540
      %v1081 = vunpack.c.l.b16 %v541
      %v1082 = vunpack.c.h.b16 %v541
      %v1083 = vunpack.c.l.b16 %v542
      %v1084 = vunpack.c.l.b16 %v543
      %v1085 = vunpack.c.h.b16 %v543
      %v1086 = vunpack.c.l.b16 %v544
      %v1087 = vunpack.c.h.b16 %v544
      %v1088 = vunpack.c.l.b16 %v545
      %v1089 = vunpack.c.h.b16 %v545
      %v1090 = vunpack.c.l.b16 %v546
      %v1091 = vunpack.c.l.b16 %v547
      %v1092 = vunpack.c.h.b16 %v547
      %v1093 = vunpack.c.l.b16 %v548
      %v1094 = vunpack.c.h.b16 %v548
      %v1095 = vunpack.c.l.b16 %v549
      %v1096 = vunpack.c.h.b16 %v549
      %v1097 = vunpack.c.l.b16 %v550
      %v1098 = vunpack.c.l.b16 %v551
      %v1099 = vunpack.c.h.b16 %v551
      %v1100 = vunpack.c.l.b16 %v552
      %v1101 = vunpack.c.h.b16 %v552
      %v1102 = vunpack.c.l.b16 %v553
      %v1103 = vunpack.c.h.b16 %v553
      %v1104 = vunpack.c.l.b16 %v554
      %v1105 = vunpack.c.l.b16 %v555
      %v1106 = vunpack.c.h.b16 %v555
      %v1107 = vunpack.c.l.b16 %v556
      %v1108 = vunpack.c.h.b16 %v556
      %v1109 = vunpack.c.l.b16 %v557
      %v1110 = vunpack.c.h.b16 %v557
      %v1111 = vunpack.c.l.b16 %v558
      %v1112 = vunpack.c.l.b16 %v559
      %v1113 = vunpack.c.h.b16 %v559
      %v1114 = vunpack.c.l.b16 %v560
      %v1115 = vunpack.c.h.b16 %v560
      %v1116 = vunpack.c.l.b16 %v561
      %v1117 = vunpack.c.h.b16 %v561
      %v1118 = vunpack.c.l.b16 %v562
      %v1119 = vunpack.c.l.b16 %v563
      %v1120 = vunpack.c.h.b16 %v563
      %v1121 = vunpack.c.l.b16 %v564
      %v1122 = vunpack.c.h.b16 %v564
      %v1123 = vunpack.c.l.b16 %v565
      %v1124 = vunpack.c.h.b16 %v565
      %v1125 = vunpack.c.l.b16 %v566
      %v1126 = vunpack.c.l.b16 %v567
      %v1127 = vunpack.c.h.b16 %v567
      %v1128 = vunpack.c.l.b16 %v568
      %v1129 = vunpack.c.h.b16 %v568
      %v1130 = vunpack.c.l.b16 %v569
      %v1131 = vunpack.c.h.b16 %v569
      %v1132 = vunpack.c.l.b16 %v570
      %v1133 = vunpack.c.l.b16 %v571
      %v1134 = vunpack.c.h.b16 %v571
      %v1135 = vunpack.c.l.b16 %v572
      %v1136 = vunpack.c.h.b16 %v572
      %v1137 = vunpack.c.l.b16 %v573
      %v1138 = vunpack.c.h.b16 %v573
      %v1139 = vunpack.c.l.b16 %v574
      %v1140 = vunpack.c.l.b16 %v575
      %v1141 = vunpack.c.h.b16 %v575
      %v1142 = vunpack.c.l.b16 %v576
      %v1143 = vunpack.c.h.b16 %v576
      %v1144 = vunpack.c.l.b16 %v577
      %v1145 = vunpack.c.h.b16 %v577
      %v1146 = vunpack.c.l.b16 %v578
      %v1147 = vunpack.c.l.b16 %v579
      %v1148 = vunpack.c.h.b16 %v579
      %v1149 = vunpack.c.l.b16 %v580
      %v1150 = vunpack.c.h.b16 %v580
      %v1151 = vunpack.c.l.b16 %v581
      %v1152 = vunpack.c.h.b16 %v581
      %v1153 = vunpack.c.l.b16 %v582
      %v1154 = vunpack.c.l.b16 %v583
      %v1155 = vunpack.c.h.b16 %v583
      %v1156 = vunpack.c.l.b16 %v584
      %v1157 = vunpack.c.h.b16 %v584
      %v1158 = vunpack.c.l.b16 %v585
      %v1159 = vunpack.c.h.b16 %v585
      %v1160 = vunpack.c.l.b16 %v586
      %v1161 = vunpack.c.l.b16 %v587
      %v1162 = vunpack.c.h.b16 %v587
      %v1163 = vunpack.c.l.b16 %v588
      %v1164 = vunpack.c.h.b16 %v588
      %v1165 = vunpack.c.l.b16 %v589
      %v1166 = vunpack.c.h.b16 %v589
      %v1167 = vunpack.c.l.b16 %v590
      %v1168 = vunpack.c.l.b16 %v591
      %v1169 = vunpack.c.h.b16 %v591
      %v1170 = vunpack.c.l.b16 %v592
      %v1171 = vunpack.c.h.b16 %v592
      %v1172 = vunpack.c.l.b16 %v593
      %v1173 = vunpack.c.h.b16 %v593
      %v1174 = vunpack.c.l.b16 %v594
      %v1175 = vunpack.c.l.b16 %v595
      %v1176 = vunpack.c.h.b16 %v595
      %v1177 = vunpack.c.l.b16 %v596
      %v1178 = vunpack.c.h.b16 %v596
      %v1179 = vunpack.c.l.b16 %v597
      %v1180 = vunpack.c.h.b16 %v597
      %v1181 = vunpack.c.l.b16 %v598
      %v1182 = vunpack.c.l.b16 %v599
      %v1183 = vunpack.c.h.b16 %v599
      %v1184 = vunpack.c.l.b16 %v600
      %v1185 = vunpack.c.h.b16 %v600
      %v1186 = vunpack.c.l.b16 %v601
      %v1187 = vunpack.c.h.b16 %v601
      %v1188 = vunpack.c.l.b16 %v602
      %v1189 = vunpack.c.l.b16 %v603
      %v1190 = vunpack.c.h.b16 %v603
      %v1191 = vunpack.c.l.b16 %v604
      %v1192 = vunpack.c.h.b16 %v604
      %v1193 = vunpack.c.l.b16 %v605
      %v1194 = vunpack.c.h.b16 %v605
      %v1195 = vunpack.c.l.b16 %v606
      %v1196 = vunpack.c.l.b16 %v607
      %v1197 = vunpack.c.h.b16 %v607
      %v1198 = vunpack.c.l.b16 %v608
      %v1199 = vunpack.c.h.b16 %v608
      %v1200 = vunpack.c.l.b16 %v609
      %v1201 = vunpack.c.h.b16 %v609
      %v1202 = vunpack.c.l.b16 %v610
      %v1203 = vunpack.c.l.b16 %v611
      %v1204 = vunpack.c.h.b16 %v611
      %v1205 = vunpack.c.l.b16 %v612
      %v1206 = vunpack.c.h.b16 %v612
      %v1207 = vunpack.c.l.b16 %v613
      %v1208 = vunpack.c.h.b16 %v613
      %v1209 = vunpack.c.l.b16 %v614
      %v1210 = vunpack.c.l.b16 %v615
      %v1211 = vunpack.c.h.b16 %v615
      %v1212 = vunpack.c.l.b16 %v616
      %v1213 = vunpack.c.h.b16 %v616
      %v1214 = vunpack.c.l.b16 %v617
      %v1215 = vunpack.c.h.b16 %v617
      %v1216 = vunpack.c.l.b16 %v618
      %v1217 = vpack.c.b16 %v1000, %v993
      %v1218 = vpack.c.b16 %v1001, %v994
      %v1219 = vpack.c.b16 %v1002, %v995
      %v1220 = vpack.c.b16 %v1003, %v996
      %v1221 = vpack.c.b16 %v1004, %v997
      %v1222 = vpack.c.b16 %v1005, %v998
      %v1223 = vpack.c.b16 %v1006, %v999
      %v1224 = vpack.c.b16 %v1014, %v1007
      %v1225 = vpack.c.b16 %v1015, %v1008
      %v1226 = vpack.c.b16 %v1016, %v1009
      %v1227 = vpack.c.b16 %v1017, %v1010
      %v1228 = vpack.c.b16 %v1018, %v1011
      %v1229 = vpack.c.b16 %v1019, %v1012
      %v1230 = vpack.c.b16 %v1020, %v1013
      %v1231 = vpack.c.b16 %v1028, %v1021
      %v1232 = vpack.c.b16 %v1029, %v1022
      %v1233 = vpack.c.b16 %v1030, %v1023
      %v1234 = vpack.c.b16 %v1031, %v1024
      %v1235 = vpack.c.b16 %v1032, %v1025
      %v1236 = vpack.c.b16 %v1033, %v1026
      %v1237 = vpack.c.b16 %v1034, %v1027
      %v1238 = vpack.c.b16 %v1042, %v1035
      %v1239 = vpack.c.b16 %v1043, %v1036
      %v1240 = vpack.c.b16 %v1044, %v1037
      %v1241 = vpack.c.b16 %v1045, %v1038
      %v1242 = vpack.c.b16 %v1046, %v1039
      %v1243 = vpack.c.b16 %v1047, %v1040
      %v1244 = vpack.c.b16 %v1048, %v1041
      %v1245 = vpack.c.b16 %v1056, %v1049
      %v1246 = vpack.c.b16 %v1057, %v1050
      %v1247 = vpack.c.b16 %v1058, %v1051
      %v1248 = vpack.c.b16 %v1059, %v1052
      %v1249 = vpack.c.b16 %v1060, %v1053
      %v1250 = vpack.c.b16 %v1061, %v1054
      %v1251 = vpack.c.b16 %v1062, %v1055
      %v1252 = vpack.c.b16 %v1070, %v1063
      %v1253 = vpack.c.b16 %v1071, %v1064
      %v1254 = vpack.c.b16 %v1072, %v1065
      %v1255 = vpack.c.b16 %v1073, %v1066
      %v1256 = vpack.c.b16 %v1074, %v1067
      %v1257 = vpack.c.b16 %v1075, %v1068
      %v1258 = vpack.c.b16 %v1076, %v1069
      %v1259 = vpack.c.b16 %v1084, %v1077
      %v1260 = vpack.c.b16 %v1085, %v1078
      %v1261 = vpack.c.b16 %v1086, %v1079
      %v1262 = vpack.c.b16 %v1087, %v1080
      %v1263 = vpack.c.b16 %v1088, %v1081
      %v1264 = vpack.c.b16 %v1089, %v1082
      %v1265 = vpack.c.b16 %v1090, %v1083
      %v1266 = vpack.c.b16 %v1098, %v1091
      %v1267 = vpack.c.b16 %v1099, %v1092
      %v1268 = vpack.c.b16 %v1100, %v1093
      %v1269 = vpack.c.b16 %v1101, %v1094
      %v1270 = vpack.c.b16 %v1102, %v1095
      %v1271 = vpack.c.b16 %v1103, %v1096
      %v1272 = vpack.c.b16 %v1104, %v1097
      %v1273 = vpack.c.b16 %v1112, %v1105
      %v1274 = vpack.c.b16 %v1113, %v1106
      %v1275 = vpack.c.b16 %v1114, %v1107
      %v1276 = vpack.c.b16 %v1115, %v1108
      %v1277 = vpack.c.b16 %v1116, %v1109
      %v1278 = vpack.c.b16 %v1117, %v1110
      %v1279 = vpack.c.b16 %v1118, %v1111
      %v1280 = vpack.c.b16 %v1126, %v1119
      %v1281 = vpack.c.b16 %v1127, %v1120
      %v1282 = vpack.c.b16 %v1128, %v1121
      %v1283 = vpack.c.b16 %v1129, %v1122
      %v1284 = vpack.c.b16 %v1130, %v1123
      %v1285 = vpack.c.b16 %v1131, %v1124
      %v1286 = vpack.c.b16 %v1132, %v1125
      %v1287 = vpack.c.b16 %v1140, %v1133
      %v1288 = vpack.c.b16 %v1141, %v1134
      %v1289 = vpack.c.b16 %v1142, %v1135
      %v1290 = vpack.c.b16 %v1143, %v1136
      %v1291 = vpack.c.b16 %v1144, %v1137
      %v1292 = vpack.c.b16 %v1145, %v1138
      %v1293 = vpack.c.b16 %v1146, %v1139
      %v1294 = vpack.c.b16 %v1154, %v1147
      %v1295 = vpack.c.b16 %v1155, %v1148
      %v1296 = vpack.c.b16 %v1156, %v1149
      %v1297 = vpack.c.b16 %v1157, %v1150
      %v1298 = vpack.c.b16 %v1158, %v1151
      %v1299 = vpack.c.b16 %v1159, %v1152
      %v1300 = vpack.c.b16 %v1160, %v1153
      %v1301 = vpack.c.b16 %v1168, %v1161
      %v1302 = vpack.c.b16 %v1169, %v1162
      %v1303 = vpack.c.b16 %v1170, %v1163
      %v1304 = vpack.c.b16 %v1171, %v1164
      %v1305 = vpack.c.b16 %v1172, %v1165
      %v1306 = vpack.c.b16 %v1173, %v1166
      %v1307 = vpack.c.b16 %v1174, %v1167
      %v1308 = vpack.c.b16 %v1182, %v1175
      %v1309 = vpack.c.b16 %v1183, %v1176
      %v1310 = vpack.c.b16 %v1184, %v1177
      %v1311 = vpack.c.b16 %v1185, %v1178
      %v1312 = vpack.c.b16 %v1186, %v1179
      %v1313 = vpack.c.b16 %v1187, %v1180
      %v1314 = vpack.c.b16 %v1188, %v1181
      %v1315 = vpack.c.b16 %v1196, %v1189
      %v1316 = vpack.c.b16 %v1197, %v1190
      %v1317 = vpack.c.b16 %v1198, %v1191
      %v1318 = vpack.c.b16 %v1199, %v1192
      %v1319 = vpack.c.b16 %v1200, %v1193
      %v1320 = vpack.c.b16 %v1201, %v1194
      %v1321 = vpack.c.b16 %v1202, %v1195
      %v1322 = vpack.c.b16 %v1210, %v1203
      %v1323 = vpack.c.b16 %v1211, %v1204
      %v1324 = vpack.c.b16 %v1212, %v1205
      %v1325 = vpack.c.b16 %v1213, %v1206
      %v1326 = vpack.c.b16 %v1214, %v1207
      %v1327 = vpack.c.b16 %v1215, %v1208
      %v1328 = vpack.c.b16 %v1216, %v1209
      %v1665 = vunpack.c.l.b16 %v619
      %v1666 = vunpack.c.h.b16 %v619
      %v1667 = vunpack.c.l.b16 %v620
      %v1668 = vunpack.c.h.b16 %v620
      %v1669 = vunpack.c.l.b16 %v621
      %v1670 = vunpack.c.h.b16 %v621
      %v1671 = vunpack.c.l.b16 %v622
      %v1672 = vunpack.c.h.b16 %v622
      %v1673 = vunpack.c.l.b16 %v623
      %v1674 = vunpack.c.h.b16 %v623
      %v1675 = vunpack.c.l.b16 %v624
      %v1676 = vunpack.c.h.b16 %v624
      %v1677 = vunpack.c.l.b16 %v625
      %v1678 = vunpack.c.h.b16 %v625
      %v1679 = vunpack.c.l.b16 %v626
      %v1680 = vunpack.c.h.b16 %v626
      %v1681 = vunpack.c.l.b16 %v627
      %v1682 = vunpack.c.h.b16 %v627
      %v1683 = vunpack.c.l.b16 %v628
      %v1684 = vunpack.c.h.b16 %v628
      %v1685 = vunpack.c.l.b16 %v629
      %v1686 = vunpack.c.h.b16 %v629
      %v1687 = vunpack.c.l.b16 %v630
      %v1688 = vunpack.c.h.b16 %v630
      %v1689 = vunpack.c.l.b16 %v631
      %v1690 = vunpack.c.h.b16 %v631
      %v1691 = vunpack.c.l.b16 %v632
      %v1692 = vunpack.c.h.b16 %v632
      %v1693 = vunpack.c.l.b16 %v633
      %v1694 = vunpack.c.h.b16 %v633
      %v1695 = vunpack.c.l.b16 %v634
      %v1696 = vunpack.c.h.b16 %v634
      %v1697 = vunpack.c.l.b16 %v635
      %v1698 = vunpack.c.h.b16 %v635
      %v1699 = vunpack.c.l.b16 %v636
      %v1700 = vunpack.c.h.b16 %v636
      %v1701 = vunpack.c.l.b16 %v637
      %v1702 = vunpack.c.h.b16 %v637
      %v1703 = vunpack.c.l.b16 %v638
      %v1704 = vunpack.c.h.b16 %v638
      %v1705 = vunpack.c.l.b16 %v639
      %v1706 = vunpack.c.h.b16 %v639
      %v1707 = vunpack.c.l.b16 %v640
      %v1708 = vunpack.c.h.b16 %v640
      %v1709 = vunpack.c.l.b16 %v641
      %v1710 = vunpack.c.h.b16 %v641
      %v1711 = vunpack.c.l.b16 %v642
      %v1712 = vunpack.c.h.b16 %v642
      %v1713 = vunpack.c.l.b16 %v643
      %v1714 = vunpack.c.h.b16 %v643
      %v1715 = vunpack.c.l.b16 %v644
      %v1716 = vunpack.c.h.b16 %v644
      %v1717 = vunpack.c.l.b16 %v645
      %v1718 = vunpack.c.h.b16 %v645
      %v1719 = vunpack.c.l.b16 %v646
      %v1720 = vunpack.c.h.b16 %v646
      %v1721 = vunpack.c.l.b16 %v647
      %v1722 = vunpack.c.h.b16 %v647
      %v1723 = vunpack.c.l.b16 %v648
      %v1724 = vunpack.c.h.b16 %v648
      %v1725 = vunpack.c.l.b16 %v649
      %v1726 = vunpack.c.h.b16 %v649
      %v1727 = vunpack.c.l.b16 %v650
      %v1728 = vunpack.c.h.b16 %v650
      %v1729 = vunpack.c.l.b16 %v651
      %v1730 = vunpack.c.h.b16 %v651
      %v1731 = vunpack.c.l.b16 %v652
      %v1732 = vunpack.c.h.b16 %v652
      %v1733 = vunpack.c.l.b16 %v653
      %v1734 = vunpack.c.h.b16 %v653
      %v1735 = vunpack.c.l.b16 %v654
      %v1736 = vunpack.c.h.b16 %v654
      %v1737 = vunpack.c.l.b16 %v655
      %v1738 = vunpack.c.h.b16 %v655
      %v1739 = vunpack.c.l.b16 %v656
      %v1740 = vunpack.c.h.b16 %v656
      %v1741 = vunpack.c.l.b16 %v657
      %v1742 = vunpack.c.h.b16 %v657
      %v1743 = vunpack.c.l.b16 %v658
      %v1744 = vunpack.c.h.b16 %v658
      %v1745 = vunpack.c.l.b16 %v659
      %v1746 = vunpack.c.h.b16 %v659
      %v1747 = vunpack.c.l.b16 %v660
      %v1748 = vunpack.c.h.b16 %v660
      %v1749 = vunpack.c.l.b16 %v661
      %v1750 = vunpack.c.h.b16 %v661
      %v1751 = vunpack.c.l.b16 %v662
      %v1752 = vunpack.c.h.b16 %v662
      %v1753 = vunpack.c.l.b16 %v663
      %v1754 = vunpack.c.h.b16 %v663
      %v1755 = vunpack.c.l.b16 %v664
      %v1756 = vunpack.c.h.b16 %v664
      %v1757 = vunpack.c.l.b16 %v665
      %v1758 = vunpack.c.h.b16 %v665
      %v1759 = vunpack.c.l.b16 %v666
      %v1760 = vunpack.c.h.b16 %v666
      %v1761 = vunpack.c.l.b16 %v667
      %v1762 = vunpack.c.h.b16 %v667
      %v1763 = vunpack.c.l.b16 %v668
      %v1764 = vunpack.c.h.b16 %v668
      %v1765 = vunpack.c.l.b16 %v669
      %v1766 = vunpack.c.h.b16 %v669
      %v1767 = vunpack.c.l.b16 %v670
      %v1768 = vunpack.c.h.b16 %v670
      %v1769 = vunpack.c.l.b16 %v671
      %v1770 = vunpack.c.h.b16 %v671
      %v1771 = vunpack.c.l.b16 %v672
      %v1772 = vunpack.c.h.b16 %v672
      %v1773 = vunpack.c.l.b16 %v673
      %v1774 = vunpack.c.h.b16 %v673
      %v1775 = vunpack.c.l.b16 %v674
      %v1776 = vunpack.c.h.b16 %v674
      %v1777 = vunpack.c.l.b16 %v675
      %v1778 = vunpack.c.h.b16 %v675
      %v1779 = vunpack.c.l.b16 %v676
      %v1780 = vunpack.c.h.b16 %v676
      %v1781 = vunpack.c.l.b16 %v677
      %v1782 = vunpack.c.h.b16 %v677
      %v1783 = vunpack.c.l.b16 %v678
      %v1784 = vunpack.c.h.b16 %v678
      %v1785 = vunpack.c.l.b16 %v679
      %v1786 = vunpack.c.h.b16 %v679
      %v1787 = vunpack.c.l.b16 %v680
      %v1788 = vunpack.c.h.b16 %v680
      %v1789 = vunpack.c.l.b16 %v681
      %v1790 = vunpack.c.h.b16 %v681
      %v1791 = vunpack.c.l.b16 %v682
      %v1792 = vunpack.c.h.b16 %v682
      %v1793 = vunpack.c.l.b16 %v683
      %v1794 = vunpack.c.h.b16 %v683
      %v1795 = vunpack.c.l.b16 %v684
      %v1796 = vunpack.c.h.b16 %v684
      %v1797 = vunpack.c.l.b16 %v685
      %v1798 = vunpack.c.h.b16 %v685
      %v1799 = vunpack.c.l.b16 %v686
      %v1800 = vunpack.c.h.b16 %v686
      %v1801 = vunpack.c.l.b16 %v687
      %v1802 = vunpack.c.h.b16 %v687
      %v1803 = vunpack.c.l.b16 %v688
      %v1804 = vunpack.c.h.b16 %v688
      %v1805 = vunpack.c.l.b16 %v689
      %v1806 = vunpack.c.h.b16 %v689
      %v1807 = vunpack.c.l.b16 %v690
      %v1808 = vunpack.c.h.b16 %v690
      %v1809 = vunpack.c.l.b16 %v691
      %v1810 = vunpack.c.h.b16 %v691
      %v1811 = vunpack.c.l.b16 %v692
      %v1812 = vunpack.c.h.b16 %v692
      %v1813 = vunpack.c.l.b16 %v693
      %v1814 = vunpack.c.h.b16 %v693
      %v1815 = vunpack.c.l.b16 %v694
      %v1816 = vunpack.c.h.b16 %v694
      %v1817 = vunpack.c.l.b16 %v695
      %v1818 = vunpack.c.h.b16 %v695
      %v1819 = vunpack.c.l.b16 %v696
      %v1820 = vunpack.c.h.b16 %v696
      %v1821 = vunpack.c.l.b16 %v697
      %v1822 = vunpack.c.h.b16 %v697
      %v1823 = vunpack.c.l.b16 %v698
      %v1824 = vunpack.c.h.b16 %v698
      %v1825 = vunpack.c.l.b16 %v699
      %v1826 = vunpack.c.h.b16 %v699
      %v1827 = vunpack.c.l.b16 %v700
      %v1828 = vunpack.c.h.b16 %v700
      %v1829 = vunpack.c.l.b16 %v701
      %v1830 = vunpack.c.h.b16 %v701
      %v1831 = vunpack.c.l.b16 %v702
      %v1832 = vunpack.c.h.b16 %v702
      %v1833 = vunpack.c.l.b16 %v703
      %v1834 = vunpack.c.h.b16 %v703
      %v1835 = vunpack.c.l.b16 %v704
      %v1836 = vunpack.c.h.b16 %v704
      %v1837 = vunpack.c.l.b16 %v705
      %v1838 = vunpack.c.h.b16 %v705
      %v1839 = vunpack.c.l.b16 %v706
      %v1840 = vunpack.c.h.b16 %v706
      %v1841 = vunpack.c.l.b16 %v707
      %v1842 = vunpack.c.h.b16 %v707
      %v1843 = vunpack.c.l.b16 %v708
      %v1844 = vunpack.c.h.b16 %v708
      %v1845 = vunpack.c.l.b16 %v709
      %v1846 = vunpack.c.h.b16 %v709
      %v1847 = vunpack.c.l.b16 %v710
      %v1848 = vunpack.c.h.b16 %v710
      %v1849 = vunpack.c.l.b16 %v711
      %v1850 = vunpack.c.h.b16 %v711
      %v1851 = vunpack.c.l.b16 %v712
      %v1852 = vunpack.c.h.b16 %v712
      %v1853 = vunpack.c.l.b16 %v713
      %v1854 = vunpack.c.h.b16 %v713
      %v1855 = vunpack.c.l.b16 %v714
      %v1856 = vunpack.c.h.b16 %v714
      %v1857 = vunpack.c.l.b16 %v715
      %v1858 = vunpack.c.h.b16 %v715
      %v1859 = vunpack.c.l.b16 %v716
      %v1860 = vunpack.c.h.b16 %v716
      %v1861 = vunpack.c.l.b16 %v717
      %v1862 = vunpack.c.h.b16 %v717
      %v1863 = vunpack.c.l.b16 %v718
      %v1864 = vunpack.c.h.b16 %v718
      %v1865 = vunpack.c.l.b16 %v719
      %v1866 = vunpack.c.h.b16 %v719
      %v1867 = vunpack.c.l.b16 %v720
      %v1868 = vunpack.c.h.b16 %v720
      %v1869 = vunpack.c.l.b16 %v721
      %v1870 = vunpack.c.h.b16 %v721
      %v1871 = vunpack.c.l.b16 %v722
      %v1872 = vunpack.c.h.b16 %v722
      %v1873 = vunpack.c.l.b16 %v723
      %v1874 = vunpack.c.h.b16 %v723
      %v1875 = vunpack.c.l.b16 %v724
      %v1876 = vunpack.c.h.b16 %v724
      %v1877 = vunpack.c.l.b16 %v725
      %v1878 = vunpack.c.h.b16 %v725
      %v1879 = vunpack.c.l.b16 %v726
      %v1880 = vunpack.c.h.b16 %v726
      %v1881 = vunpack.c.l.b16 %v727
      %v1882 = vunpack.c.h.b16 %v727
      %v1883 = vunpack.c.l.b16 %v728
      %v1884 = vunpack.c.h.b16 %v728
      %v1885 = vunpack.c.l.b16 %v729
      %v1886 = vunpack.c.h.b16 %v729
      %v1887 = vunpack.c.l.b16 %v730
      %v1888 = vunpack.c.h.b16 %v730
      %v1889 = vunpack.c.l.b16 %v731
      %v1890 = vunpack.c.h.b16 %v731
      %v1891 = vunpack.c.l.b16 %v732
      %v1892 = vunpack.c.h.b16 %v732
      %v1893 = vunpack.c.l.b16 %v733
      %v1894 = vunpack.c.h.b16 %v733
      %v1895 = vunpack.c.l.b16 %v734
      %v1896 = vunpack.c.h.b16 %v734
      %v1897 = vunpack.c.l.b16 %v735
      %v1898 = vunpack.c.h.b16 %v735
      %v1899 = vunpack.c.l.b16 %v736
      %v1900 = vunpack.c.h.b16 %v736
      %v1901 = vunpack.c.l.b16 %v737
      %v1902 = vunpack.c.h.b16 %v737
      %v1903 = vunpack.c.l.b16 %v738
      %v1904 = vunpack.c.h.b16 %v738
      %v1905 = vunpack.c.l.b16 %v739
      %v1906 = vunpack.c.h.b16 %v739
      %v1907 = vunpack.c.l.b16 %v740
      %v1908 = vunpack.c.h.b16 %v740
      %v1909 = vunpack.c.l.b16 %v741
      %v1910 = vunpack.c.h.b16 %v741
      %v1911 = vunpack.c.l.b16 %v742
      %v1912 = vunpack.c.h.b16 %v742
      %v1913 = vunpack.c.l.b16 %v743
      %v1914 = vunpack.c.h.b16 %v743
      %v1915 = vunpack.c.l.b16 %v744
      %v1916 = vunpack.c.h.b16 %v744
      %v1917 = vunpack.c.l.b16 %v745
      %v1918 = vunpack.c.h.b16 %v745
      %v1919 = vunpack.c.l.b16 %v746
      %v1920 = vunpack.c.h.b16 %v746
      %v1921 = vunpack.c.l.b16 %v747
      %v1922 = vunpack.c.h.b16 %v747
      %v1923 = vunpack.c.l.b16 %v748
      %v1924 = vunpack.c.h.b16 %v748
      %v1925 = vunpack.c.l.b16 %v749
      %v1926 = vunpack.c.h.b16 %v749
      %v1927 = vunpack.c.l.b16 %v750
      %v1928 = vunpack.c.h.b16 %v750
      %v1929 = vunpack.c.l.b16 %v751
      %v1930 = vunpack.c.h.b16 %v751
      %v1931 = vunpack.c.l.b16 %v752
      %v1932 = vunpack.c.h.b16 %v752
      %v1933 = vunpack.c.l.b16 %v753
      %v1934 = vunpack.c.h.b16 %v753
      %v1935 = vunpack.c.l.b16 %v754
      %v1936 = vunpack.c.h.b16 %v754
      %v1937 = vunpack.c.l.b16 %v755
      %v1938 = vunpack.c.h.b16 %v755
      %v1939 = vunpack.c.l.b16 %v756
      %v1940 = vunpack.c.h.b16 %v756
      %v1941 = vunpack.c.l.b16 %v757
      %v1942 = vunpack.c.h.b16 %v757
      %v1943 = vunpack.c.l.b16 %v758
      %v1944 = vunpack.c.h.b16 %v758
      %v1945 = vunpack.c.l.b16 %v759
      %v1946 = vunpack.c.h.b16 %v759
      %v1947 = vunpack.c.l.b16 %v760
      %v1948 = vunpack.c.h.b16 %v760
      %v1949 = vunpack.c.l.b16 %v761
      %v1950 = vunpack.c.h.b16 %v761
      %v1951 = vunpack.c.l.b16 %v762
      %v1952 = vunpack.c.h.b16 %v762
      %v1953 = vunpack.c.l.b16 %v763
      %v1954 = vunpack.c.h.b16 %v763
      %v1955 = vunpack.c.l.b16 %v764
      %v1956 = vunpack.c.h.b16 %v764
      %v1957 = vunpack.c.l.b16 %v765
      %v1958 = vunpack.c.h.b16 %v765
      %v1959 = vunpack.c.l.b16 %v766
      %v1960 = vunpack.c.h.b16 %v766
      %v1961 = vunpack.c.l.b16 %v767
      %v1962 = vunpack.c.h.b16 %v767
      %v1963 = vunpack.c.l.b16 %v768
      %v1964 = vunpack.c.h.b16 %v768
      %v1965 = vunpack.c.l.b16 %v769
      %v1966 = vunpack.c.h.b16 %v769
      %v1967 = vunpack.c.l.b16 %v770
      %v1968 = vunpack.c.h.b16 %v770
      %v1969 = vunpack.c.l.b16 %v771
      %v1970 = vunpack.c.h.b16 %v771
      %v1971 = vunpack.c.l.b16 %v772
      %v1972 = vunpack.c.h.b16 %v772
      %v1973 = vunpack.c.l.b16 %v773
      %v1974 = vunpack.c.h.b16 %v773
      %v1975 = vunpack.c.l.b16 %v774
      %v1976 = vunpack.c.h.b16 %v774
      %v1977 = vunpack.c.l.b16 %v775
      %v1978 = vunpack.c.h.b16 %v775
      %v1979 = vunpack.c.l.b16 %v776
      %v1980 = vunpack.c.h.b16 %v776
      %v1981 = vunpack.c.l.b16 %v777
      %v1982 = vunpack.c.h.b16 %v777
      %v1983 = vunpack.c.l.b16 %v778
      %v1984 = vunpack.c.h.b16 %v778
      %v1985 = vunpack.c.l.b16 %v779
      %v1986 = vunpack.c.h.b16 %v779
      %v1987 = vunpack.c.l.b16 %v780
      %v1988 = vunpack.c.h.b16 %v780
      %v1989 = vunpack.c.l.b16 %v781
      %v1990 = vunpack.c.h.b16 %v781
      %v1991 = vunpack.c.l.b16 %v782
      %v1992 = vunpack.c.h.b16 %v782
      %v1993 = vunpack.c.l.b16 %v783
      %v1994 = vunpack.c.h.b16 %v783
      %v1995 = vunpack.c.l.b16 %v784
      %v1996 = vunpack.c.h.b16 %v784
      %v1997 = vunpack.c.l.b16 %v785
      %v1998 = vunpack.c.h.b16 %v785
      %v1999 = vunpack.c.l.b16 %v786
      %v2000 = vunpack.c.h.b16 %v786
      %v2001 = vunpack.c.l.b16 %v787
      %v2002 = vunpack.c.h.b16 %v787
      %v2003 = vunpack.c.l.b16 %v788
      %v2004 = vunpack.c.h.b16 %v788
      %v2005 = vunpack.c.l.b16 %v789
      %v2006 = vunpack.c.h.b16 %v789
      %v2007 = vunpack.c.l.b16 %v790
      %v2008 = vunpack.c.h.b16 %v790
      %v2009 = vunpack.c.l.b16 %v791
      %v2010 = vunpack.c.h.b16 %v791
      %v2011 = vunpack.c.l.b16 %v792
      %v2012 = vunpack.c.h.b16 %v792
      %v2013 = vunpack.c.l.b16 %v793
      %v2014 = vunpack.c.h.b16 %v793
      %v2015 = vunpack.c.l.b16 %v794
      %v2016 = vunpack.c.h.b16 %v794
      %v2017 = vunpack.c.l.b16 %v795
      %v2018 = vunpack.c.h.b16 %v795
      %v2019 = vunpack.c.l.b16 %v796
      %v2020 = vunpack.c.h.b16 %v796
      %v2021 = vunpack.c.l.b16 %v797
      %v2022 = vunpack.c.h.b16 %v797
      %v2023 = vunpack.c.l.b16 %v798
      %v2024 = vunpack.c.h.b16 %v798
      %v2025 = vunpack.c.l.b16 %v799
      %v2026 = vunpack.c.h.b16 %v799
      %v2027 = vunpack.c.l.b16 %v800
      %v2028 = vunpack.c.h.b16 %v800
      %v2029 = vunpack.c.l.b16 %v801
      %v2030 = vunpack.c.h.b16 %v801
      %v2031 = vunpack.c.l.b16 %v802
      %v2032 = vunpack.c.h.b16 %v802
      %v2033 = vunpack.c.l.b16 %v803
      %v2034 = vunpack.c.h.b16 %v803
      %v2035 = vunpack.c.l.b16 %v804
      %v2036 = vunpack.c.h.b16 %v804
      %v2037 = vunpack.c.l.b16 %v805
      %v2038 = vunpack.c.h.b16 %v805
      %v2039 = vunpack.c.l.b16 %v806
      %v2040 = vunpack.c.h.b16 %v806
      %v2041 = vunpack.c.l.b16 %v807
      %v2042 = vunpack.c.h.b16 %v807
      %v2043 = vunpack.c.l.b16 %v808
      %v2044 = vunpack.c.h.b16 %v808
      %v2045 = vunpack.c.l.b16 %v809
      %v2046 = vunpack.c.h.b16 %v809
      %v2047 = vunpack.c.l.b16 %v810
      %v2048 = vunpack.c.h.b16 %v810
      %v2049 = vunpack.c.l.b16 %v811
      %v2050 = vunpack.c.h.b16 %v811
      %v2051 = vunpack.c.l.b16 %v812
      %v2052 = vunpack.c.h.b16 %v812
      %v2053 = vunpack.c.l.b16 %v813
      %v2054 = vunpack.c.h.b16 %v813
      %v2055 = vunpack.c.l.b16 %v814
      %v2056 = vunpack.c.h.b16 %v814
      %v2057 = vunpack.c.l.b16 %v815
      %v2058 = vunpack.c.h.b16 %v815
      %v2059 = vunpack.c.l.b16 %v816
      %v2060 = vunpack.c.h.b16 %v816
      %v2061 = vunpack.c.l.b16 %v817
      %v2062 = vunpack.c.h.b16 %v817
      %v2063 = vunpack.c.l.b16 %v818
      %v2064 = vunpack.c.h.b16 %v818
      %v2065 = vunpack.c.l.b16 %v819
      %v2066 = vunpack.c.h.b16 %v819
      %v2067 = vunpack.c.l.b16 %v820
      %v2068 = vunpack.c.h.b16 %v820
      %v2069 = vunpack.c.l.b16 %v821
      %v2070 = vunpack.c.h.b16 %v821
      %v2071 = vunpack.c.l.b16 %v822
      %v2072 = vunpack.c.h.b16 %v822
      %v2073 = vunpack.c.l.b16 %v823
      %v2074 = vunpack.c.h.b16 %v823
      %v2075 = vunpack.c.l.b16 %v824
      %v2076 = vunpack.c.h.b16 %v824
      %v2077 = vunpack.c.l.b16 %v825
      %v2078 = vunpack.c.h.b16 %v825
      %v2079 = vunpack.c.l.b16 %v826
      %v2080 = vunpack.c.h.b16 %v826
      %v2081 = vunpack.c.l.b16 %v827
      %v2082 = vunpack.c.h.b16 %v827
      %v2083 = vunpack.c.l.b16 %v828
      %v2084 = vunpack.c.h.b16 %v828
      %v2085 = vunpack.c.l.b16 %v829
      %v2086 = vunpack.c.h.b16 %v829
      %v2087 = vunpack.c.l.b16 %v830
      %v2088 = vunpack.c.h.b16 %v830
      %v2089 = vunpack.c.l.b16 %v831
      %v2090 = vunpack.c.h.b16 %v831
      %v2091 = vunpack.c.l.b16 %v832
      %v2092 = vunpack.c.h.b16 %v832
      %v2093 = vunpack.c.l.b16 %v833
      %v2094 = vunpack.c.h.b16 %v833
      %v2095 = vunpack.c.l.b16 %v834
      %v2096 = vunpack.c.h.b16 %v834
      %v2097 = vunpack.c.l.b16 %v835
      %v2098 = vunpack.c.h.b16 %v835
      %v2099 = vunpack.c.l.b16 %v836
      %v2100 = vunpack.c.h.b16 %v836
      %v2101 = vunpack.c.l.b16 %v837
      %v2102 = vunpack.c.h.b16 %v837
      %v2103 = vunpack.c.l.b16 %v838
      %v2104 = vunpack.c.h.b16 %v838
      %v2105 = vunpack.c.l.b16 %v839
      %v2106 = vunpack.c.h.b16 %v839
      %v2107 = vunpack.c.l.b16 %v840
      %v2108 = vunpack.c.h.b16 %v840
      %v2109 = vunpack.c.l.b16 %v841
      %v2110 = vunpack.c.h.b16 %v841
      %v2111 = vunpack.c.l.b16 %v842
      %v2112 = vunpack.c.h.b16 %v842
      %v2113 = vpack.c.b16 %v1669, %v1665
      %v2114 = vpack.c.b16 %v1670, %v1666
      %v2115 = vpack.c.b16 %v1671, %v1667
      %v2116 = vpack.c.b16 %v1672, %v1668
      %v2117 = vpack.c.b16 %v1677, %v1673
      %v2118 = vpack.c.b16 %v1678, %v1674
      %v2119 = vpack.c.b16 %v1679, %v1675
      %v2120 = vpack.c.b16 %v1680, %v1676
      %v2121 = vpack.c.b16 %v1685, %v1681
      %v2122 = vpack.c.b16 %v1686, %v1682
      %v2123 = vpack.c.b16 %v1687, %v1683
      %v2124 = vpack.c.b16 %v1688, %v1684
      %v2125 = vpack.c.b16 %v1693, %v1689
      %v2126 = vpack.c.b16 %v1694, %v1690
      %v2127 = vpack.c.b16 %v1695, %v1691
      %v2128 = vpack.c.b16 %v1696, %v1692
      %v2129 = vpack.c.b16 %v1701, %v1697
      %v2130 = vpack.c.b16 %v1702, %v1698
      %v2131 = vpack.c.b16 %v1703, %v1699
      %v2132 = vpack.c.b16 %v1704, %v1700
      %v2133 = vpack.c.b16 %v1709, %v1705
      %v2134 = vpack.c.b16 %v1710, %v1706
      %v2135 = vpack.c.b16 %v1711, %v1707
      %v2136 = vpack.c.b16 %v1712, %v1708
      %v2137 = vpack.c.b16 %v1717, %v1713
      %v2138 = vpack.c.b16 %v1718, %v1714
      %v2139 = vpack.c.b16 %v1719, %v1715
      %v2140 = vpack.c.b16 %v1720, %v1716
      %v2141 = vpack.c.b16 %v1725, %v1721
      %v2142 = vpack.c.b16 %v1726, %v1722
      %v2143 = vpack.c.b16 %v1727, %v1723
      %v2144 = vpack.c.b16 %v1728, %v1724
      %v2145 = vpack.c.b16 %v1733, %v1729
      %v2146 = vpack.c.b16 %v1734, %v1730
      %v2147 = vpack.c.b16 %v1735, %v1731
      %v2148 = vpack.c.b16 %v1736, %v1732
      %v2149 = vpack.c.b16 %v1741, %v1737
      %v2150 = vpack.c.b16 %v1742, %v1738
      %v2151 = vpack.c.b16 %v1743, %v1739
      %v2152 = vpack.c.b16 %v1744, %v1740
      %v2153 = vpack.c.b16 %v1749, %v1745
      %v2154 = vpack.c.b16 %v1750, %v1746
      %v2155 = vpack.c.b16 %v1751, %v1747
      %v2156 = vpack.c.b16 %v1752, %v1748
      %v2157 = vpack.c.b16 %v1757, %v1753
      %v2158 = vpack.c.b16 %v1758, %v1754
      %v2159 = vpack.c.b16 %v1759, %v1755
      %v2160 = vpack.c.b16 %v1760, %v1756
      %v2161 = vpack.c.b16 %v1765, %v1761
      %v2162 = vpack.c.b16 %v1766, %v1762
      %v2163 = vpack.c.b16 %v1767, %v1763
      %v2164 = vpack.c.b16 %v1768, %v1764
      %v2165 = vpack.c.b16 %v1773, %v1769
      %v2166 = vpack.c.b16 %v1774, %v1770
      %v2167 = vpack.c.b16 %v1775, %v1771
      %v2168 = vpack.c.b16 %v1776, %v1772
      %v2169 = vpack.c.b16 %v1781, %v1777
      %v2170 = vpack.c.b16 %v1782, %v1778
      %v2171 = vpack.c.b16 %v1783, %v1779
      %v2172 = vpack.c.b16 %v1784, %v1780
      %v2173 = vpack.c.b16 %v1789, %v1785
      %v2174 = vpack.c.b16 %v1790, %v1786
      %v2175 = vpack.c.b16 %v1791, %v1787
      %v2176 = vpack.c.b16 %v1792, %v1788
      %v2177 = vpack.c.b16 %v1797, %v1793
      %v2178 = vpack.c.b16 %v1798, %v1794
      %v2179 = vpack.c.b16 %v1799, %v1795
      %v2180 = vpack.c.b16 %v1800, %v1796
      %v2181 = vpack.c.b16 %v1805, %v1801
      %v2182 = vpack.c.b16 %v1806, %v1802
      %v2183 = vpack.c.b16 %v1807, %v1803
      %v2184 = vpack.c.b16 %v1808, %v1804
      %v2185 = vpack.c.b16 %v1813, %v1809
      %v2186 = vpack.c.b16 %v1814, %v1810
      %v2187 = vpack.c.b16 %v1815, %v1811
      %v2188 = vpack.c.b16 %v1816, %v1812
      %v2189 = vpack.c.b16 %v1821, %v1817
      %v2190 = vpack.c.b16 %v1822, %v1818
      %v2191 = vpack.c.b16 %v1823, %v1819
      %v2192 = vpack.c.b16 %v1824, %v1820
      %v2193 = vpack.c.b16 %v1829, %v1825
      %v2194 = vpack.c.b16 %v1830, %v1826
      %v2195 = vpack.c.b16 %v1831, %v1827
      %v2196 = vpack.c.b16 %v1832, %v1828
      %v2197 = vpack.c.b16 %v1837, %v1833
      %v2198 = vpack.c.b16 %v1838, %v1834
      %v2199 = vpack.c.b16 %v1839, %v1835
      %v2200 = vpack.c.b16 %v1840, %v1836
      %v2201 = vpack.c.b16 %v1845, %v1841
      %v2202 = vpack.c.b16 %v1846, %v1842
      %v2203 = vpack.c.b16 %v1847, %v1843
      %v2204 = vpack.c.b16 %v1848, %v1844
      %v2205 = vpack.c.b16 %v1853, %v1849
      %v2206 = vpack.c.b16 %v1854, %v1850
      %v2207 = vpack.c.b16 %v1855, %v1851
      %v2208 = vpack.c.b16 %v1856, %v1852
      %v2209 = vpack.c.b16 %v1861, %v1857
      %v2210 = vpack.c.b16 %v1862, %v1858
      %v2211 = vpack.c.b16 %v1863, %v1859
      %v2212 = vpack.c.b16 %v1864, %v1860
      %v2213 = vpack.c.b16 %v1869, %v1865
      %v2214 = vpack.c.b16 %v1870, %v1866
      %v2215 = vpack.c.b16 %v1871, %v1867
      %v2216 = vpack.c.b16 %v1872, %v1868
      %v2217 = vpack.c.b16 %v1877, %v1873
      %v2218 = vpack.c.b16 %v1878, %v1874
      %v2219 = vpack.c.b16 %v1879, %v1875
      %v2220 = vpack.c.b16 %v1880, %v1876
      %v2221 = vpack.c.b16 %v1885, %v1881
      %v2222 = vpack.c.b16 %v1886, %v1882
      %v2223 = vpack.c.b16 %v1887, %v1883
      %v2224 = vpack.c.b16 %v1888, %v1884
      %v2225 = vpack.c.b16 %v1893, %v1889
      %v2226 = vpack.c.b16 %v1894, %v1890
      %v2227 = vpack.c.b16 %v1895, %v1891
      %v2228 = vpack.c.b16 %v1896, %v1892
      %v2229 = vpack.c.b16 %v1901, %v1897
      %v2230 = vpack.c.b16 %v1902, %v1898
      %v2231 = vpack.c.b16 %v1903, %v1899
      %v2232 = vpack.c.b16 %v1904, %v1900
      %v2233 = vpack.c.b16 %v1909, %v1905
      %v2234 = vpack.c.b16 %v1910, %v1906
      %v2235 = vpack.c.b16 %v1911, %v1907
      %v2236 = vpack.c.b16 %v1912, %v1908
      %v2237 = vpack.c.b16 %v1917, %v1913
      %v2238 = vpack.c.b16 %v1918, %v1914
      %v2239 = vpack.c.b16 %v1919, %v1915
      %v2240 = vpack.c.b16 %v1920, %v1916
      %v2241 = vpack.c.b16 %v1925, %v1921
      %v2242 = vpack.c.b16 %v1926, %v1922
      %v2243 = vpack.c.b16 %v1927, %v1923
      %v2244 = vpack.c.b16 %v1928, %v1924
      %v2245 = vpack.c.b16 %v1933, %v1929
      %v2246 = vpack.c.b16 %v1934, %v1930
      %v2247 = vpack.c.b16 %v1935, %v1931
      %v2248 = vpack.c.b16 %v1936, %v1932
      %v2249 = vpack.c.b16 %v1941, %v1937
      %v2250 = vpack.c.b16 %v1942, %v1938
      %v2251 = vpack.c.b16 %v1943, %v1939
      %v2252 = vpack.c.b16 %v1944, %v1940
      %v2253 = vpack.c.b16 %v1949, %v1945
      %v2254 = vpack.c.b16 %v1950, %v1946
      %v2255 = vpack.c.b16 %v1951, %v1947
      %v2256 = vpack.c.b16 %v1952, %v1948
      %v2257 = vpack.c.b16 %v1957, %v1953
      %v2258 = vpack.c.b16 %v1958, %v1954
      %v2259 = vpack.c.b16 %v1959, %v1955
      %v2260 = vpack.c.b16 %v1960, %v1956
      %v2261 = vpack.c.b16 %v1965, %v1961
      %v2262 = vpack.c.b16 %v1966, %v1962
      %v2263 = vpack.c.b16 %v1967, %v1963
      %v2264 = vpack.c.b16 %v1968, %v1964
      %v2265 = vpack.c.b16 %v1973, %v1969
      %v2266 = vpack.c.b16 %v1974, %v1970
      %v2267 = vpack.c.b16 %v1975, %v1971
      %v2268 = vpack.c.b16 %v1976, %v1972
      %v2269 = vpack.c.b16 %v1981, %v1977
      %v2270 = vpack.c.b16 %v1982, %v1978
      %v2271 = vpack.c.b16 %v1983, %v1979
      %v2272 = vpack.c.b16 %v1984, %v1980
      %v2273 = vpack.c.b16 %v1989, %v1985
      %v2274 = vpack.c.b16 %v1990, %v1986
      %v2275 = vpack.c.b16 %v1991, %v1987
      %v2276 = vpack.c.b16 %v1992, %v1988
      %v2277 = vpack.c.b16 %v1997, %v1993
      %v2278 = vpack.c.b16 %v1998, %v1994
      %v2279 = vpack.c.b16 %v1999, %v1995
      %v2280 = vpack.c.b16 %v2000, %v1996
      %v2281 = vpack.c.b16 %v2005, %v2001
      %v2282 = vpack.c.b16 %v2006, %v2002
      %v2283 = vpack.c.b16 %v2007, %v2003
      %v2284 = vpack.c.b16 %v2008, %v2004
      %v2285 = vpack.c.b16 %v2013, %v2009
      %v2286 = vpack.c.b16 %v2014, %v2010
      %v2287 = vpack.c.b16 %v2015, %v2011
      %v2288 = vpack.c.b16 %v2016, %v2012
      %v2289 = vpack.c.b16 %v2021, %v2017
      %v2290 = vpack.c.b16 %v2022, %v2018
      %v2291 = vpack.c.b16 %v2023, %v2019
      %v2292 = vpack.c.b16 %v2024, %v2020
      %v2293 = vpack.c.b16 %v2029, %v2025
      %v2294 = vpack.c.b16 %v2030, %v2026
      %v2295 = vpack.c.b16 %v2031, %v2027
      %v2296 = vpack.c.b16 %v2032, %v2028
      %v2297 = vpack.c.b16 %v2037, %v2033
      %v2298 = vpack.c.b16 %v2038, %v2034
      %v2299 = vpack.c.b16 %v2039, %v2035
      %v2300 = vpack.c.b16 %v2040, %v2036
      %v2301 = vpack.c.b16 %v2045, %v2041
      %v2302 = vpack.c.b16 %v2046, %v2042
      %v2303 = vpack.c.b16 %v2047, %v2043
      %v2304 = vpack.c.b16 %v2048, %v2044
      %v2305 = vpack.c.b16 %v2053, %v2049
      %v2306 = vpack.c.b16 %v2054, %v2050
      %v2307 = vpack.c.b16 %v2055, %v2051
      %v2308 = vpack.c.b16 %v2056, %v2052
      %v2309 = vpack.c.b16 %v2061, %v2057
      %v2310 = vpack.c.b16 %v2062, %v2058
      %v2311 = vpack.c.b16 %v2063, %v2059
      %v2312 = vpack.c.b16 %v2064, %v2060
      %v2313 = vpack.c.b16 %v2069, %v2065
      %v2314 = vpack.c.b16 %v2070, %v2066
      %v2315 = vpack.c.b16 %v2071, %v2067
      %v2316 = vpack.c.b16 %v2072, %v2068
      %v2317 = vpack.c.b16 %v2077, %v2073
      %v2318 = vpack.c.b16 %v2078, %v2074
      %v2319 = vpack.c.b16 %v2079, %v2075
      %v2320 = vpack.c.b16 %v2080, %v2076
      %v2321 = vpack.c.b16 %v2085, %v2081
      %v2322 = vpack.c.b16 %v2086, %v2082
      %v2323 = vpack.c.b16 %v2087, %v2083
      %v2324 = vpack.c.b16 %v2088, %v2084
      %v2325 = vpack.c.b16 %v2093, %v2089
      %v2326 = vpack.c.b16 %v2094, %v2090
      %v2327 = vpack.c.b16 %v2095, %v2091
      %v2328 = vpack.c.b16 %v2096, %v2092
      %v2329 = vpack.c.b16 %v2101, %v2097
      %v2330 = vpack.c.b16 %v2102, %v2098
      %v2331 = vpack.c.b16 %v2103, %v2099
      %v2332 = vpack.c.b16 %v2104, %v2100
      %v2333 = vpack.c.b16 %v2109, %v2105
      %v2334 = vpack.c.b16 %v2110, %v2106
      %v2335 = vpack.c.b16 %v2111, %v2107
      %v2336 = vpack.c.b16 %v2112, %v2108
      %2561 = vmatprep.subr.bf16.mxu0 %v2142
      %2562 = vmatpush1.bf16.msra.mxu0 %v2141
      %2563 = vmatprep.subr.bf16.mxu0 %v2138
      %2564 = vmatpush1.bf16.msra.mxu0 %v2137
      %2565 = vmatprep.subr.bf16.mxu0 %v2134
      %2566 = vmatpush1.bf16.msra.mxu0 %v2133
      %2567 = vmatprep.subr.bf16.mxu0 %v2130
      %2568 = vmatpush1.bf16.msra.mxu0 %v2129
      %2569 = vmatprep.subr.bf16.mxu0 %v2126
      %2570 = vmatpush1.bf16.msra.mxu0 %v2125
      %2571 = vmatprep.subr.bf16.mxu0 %v2122
      %2572 = vmatpush1.bf16.msra.mxu0 %v2121
      %2573 = vmatprep.subr.bf16.mxu0 %v2118
      %2574 = vmatpush1.bf16.msra.mxu0 %v2117
      %2575 = vmatprep.subr.bf16.mxu0 %v2114
      %2576 = vmatpush1.bf16.msra.mxu0 %v2113
      %2577 = vmatprep.subr.bf16.mxu0 %v2174
      %2578 = vmatpush2.bf16.msra.mxu0 %v2173
      %2579 = vmatprep.subr.bf16.mxu0 %v2170
      %2580 = vmatpush2.bf16.msra.mxu0 %v2169
      %2581 = vmatprep.subr.bf16.mxu0 %v2166
      %2582 = vmatpush2.bf16.msra.mxu0 %v2165
      %2583 = vmatprep.subr.bf16.mxu0 %v2162
      %2584 = vmatpush2.bf16.msra.mxu0 %v2161
      %2585 = vmatprep.subr.bf16.mxu0 %v2158
      %2586 = vmatpush2.bf16.msra.mxu0 %v2157
      %2587 = vmatprep.subr.bf16.mxu0 %v2154
      %2588 = vmatpush2.bf16.msra.mxu0 %v2153
      %2589 = vmatprep.subr.bf16.mxu0 %v2150
      %2590 = vmatpush2.bf16.msra.mxu0 %v2149
      %2591 = vmatprep.subr.bf16.mxu0 %v2146
      %2592 = vmatpush2.bf16.msra.mxu0 %v2145
      %2593 = vmatprep.mubr.bf16.mxu0 %v1218
      %2594 = vmatmul.mubr.bf16.gmra.mxu0 %v1217
      %v2595 = vpop.f32.mrf.mxu0
      %v2596 = vadd.f32 %v848, %v2595
      %v2597 = vpop.f32.mrf.mxu0
      %v2598 = vadd.f32 %v852, %v2597
      %v2599 = vpop.f32.mrf.mxu0
      %v2600 = vadd.f32 %v848, %v2599
      %v2601 = vpop.f32.mrf.mxu0
      %v2602 = vadd.f32 %v852, %v2601
      %2603 = vmatprep.mubr.bf16.mxu0 %v1225
      %2604 = vmatmul.mubr.bf16.gmra.mxu0 %v1224
      %v2605 = vpop.f32.mrf.mxu0
      %v2606 = vadd.f32 %v848, %v2605
      %v2607 = vpop.f32.mrf.mxu0
      %v2608 = vadd.f32 %v852, %v2607
      %v2609 = vpop.f32.mrf.mxu0
      %v2610 = vadd.f32 %v848, %v2609
      %v2611 = vpop.f32.mrf.mxu0
      %v2612 = vadd.f32 %v852, %v2611
      %2613 = vmatprep.mubr.bf16.mxu0 %v1232
      %2614 = vmatmul.mubr.bf16.gmra.mxu0 %v1231
      %v2615 = vpop.f32.mrf.mxu0
      %v2616 = vadd.f32 %v848, %v2615
      %v2617 = vpop.f32.mrf.mxu0
      %v2618 = vadd.f32 %v852, %v2617
      %v2619 = vpop.f32.mrf.mxu0
      %v2620 = vadd.f32 %v848, %v2619
      %v2621 = vpop.f32.mrf.mxu0
      %v2622 = vadd.f32 %v852, %v2621
      %2623 = vmatprep.mubr.bf16.mxu0 %v1239
      %2624 = vmatmul.mubr.bf16.gmra.mxu0 %v1238
      %v2625 = vpop.f32.mrf.mxu0
      %v2626 = vadd.f32 %v848, %v2625
      %v2627 = vpop.f32.mrf.mxu0
      %v2628 = vadd.f32 %v852, %v2627
      %v2629 = vpop.f32.mrf.mxu0
      %v2630 = vadd.f32 %v848, %v2629
      %v2631 = vpop.f32.mrf.mxu0
      %v2632 = vadd.f32 %v852, %v2631
      %2633 = vmatprep.mubr.bf16.mxu0 %v1246
      %2634 = vmatmul.mubr.bf16.gmra.mxu0 %v1245
      %v2635 = vpop.f32.mrf.mxu0
      %v2636 = vadd.f32 %v848, %v2635
      %v2637 = vpop.f32.mrf.mxu0
      %v2638 = vadd.f32 %v852, %v2637
      %v2639 = vpop.f32.mrf.mxu0
      %v2640 = vadd.f32 %v848, %v2639
      %v2641 = vpop.f32.mrf.mxu0
      %v2642 = vadd.f32 %v852, %v2641
      %2643 = vmatprep.mubr.bf16.mxu0 %v1253
      %2644 = vmatmul.mubr.bf16.gmra.mxu0 %v1252
      %v2645 = vpop.f32.mrf.mxu0
      %v2646 = vadd.f32 %v848, %v2645
      %v2647 = vpop.f32.mrf.mxu0
      %v2648 = vadd.f32 %v852, %v2647
      %v2649 = vpop.f32.mrf.mxu0
      %v2650 = vadd.f32 %v848, %v2649
      %v2651 = vpop.f32.mrf.mxu0
      %v2652 = vadd.f32 %v852, %v2651
      %2653 = vmatprep.mubr.bf16.mxu0 %v1260
      %2654 = vmatmul.mubr.bf16.gmra.mxu0 %v1259
      %v2655 = vpop.f32.mrf.mxu0
      %v2656 = vadd.f32 %v848, %v2655
      %v2657 = vpop.f32.mrf.mxu0
      %v2658 = vadd.f32 %v852, %v2657
      %v2659 = vpop.f32.mrf.mxu0
      %v2660 = vadd.f32 %v848, %v2659
      %v2661 = vpop.f32.mrf.mxu0
      %v2662 = vadd.f32 %v852, %v2661
      %2663 = vmatprep.mubr.bf16.mxu0 %v1267
      %2664 = vmatmul.mubr.bf16.gmra.mxu0 %v1266
      %v2665 = vpop.f32.mrf.mxu0
      %v2666 = vadd.f32 %v848, %v2665
      %v2667 = vpop.f32.mrf.mxu0
      %v2668 = vadd.f32 %v852, %v2667
      %v2669 = vpop.f32.mrf.mxu0
      %v2670 = vadd.f32 %v848, %v2669
      %v2671 = vpop.f32.mrf.mxu0
      %v2672 = vadd.f32 %v852, %v2671
      %2673 = vmatprep.mubr.bf16.mxu0 %v1274
      %2674 = vmatmul.mubr.bf16.gmra.mxu0 %v1273
      %v2675 = vpop.f32.mrf.mxu0
      %v2676 = vadd.f32 %v848, %v2675
      %v2677 = vpop.f32.mrf.mxu0
      %v2678 = vadd.f32 %v852, %v2677
      %v2679 = vpop.f32.mrf.mxu0
      %v2680 = vadd.f32 %v848, %v2679
      %v2681 = vpop.f32.mrf.mxu0
      %v2682 = vadd.f32 %v852, %v2681
      %2683 = vmatprep.mubr.bf16.mxu0 %v1281
      %2684 = vmatmul.mubr.bf16.gmra.mxu0 %v1280
      %v2685 = vpop.f32.mrf.mxu0
      %v2686 = vadd.f32 %v848, %v2685
      %v2687 = vpop.f32.mrf.mxu0
      %v2688 = vadd.f32 %v852, %v2687
      %v2689 = vpop.f32.mrf.mxu0
      %v2690 = vadd.f32 %v848, %v2689
      %v2691 = vpop.f32.mrf.mxu0
      %v2692 = vadd.f32 %v852, %v2691
      %2693 = vmatprep.mubr.bf16.mxu0 %v1288
      %2694 = vmatmul.mubr.bf16.gmra.mxu0 %v1287
      %v2695 = vpop.f32.mrf.mxu0
      %v2696 = vadd.f32 %v848, %v2695
      %v2697 = vpop.f32.mrf.mxu0
      %v2698 = vadd.f32 %v852, %v2697
      %v2699 = vpop.f32.mrf.mxu0
      %v2700 = vadd.f32 %v848, %v2699
      %v2701 = vpop.f32.mrf.mxu0
      %v2702 = vadd.f32 %v852, %v2701
      %2703 = vmatprep.mubr.bf16.mxu0 %v1295
      %2704 = vmatmul.mubr.bf16.gmra.mxu0 %v1294
      %v2705 = vpop.f32.mrf.mxu0
      %v2706 = vadd.f32 %v848, %v2705
      %v2707 = vpop.f32.mrf.mxu0
      %v2708 = vadd.f32 %v852, %v2707
      %v2709 = vpop.f32.mrf.mxu0
      %v2710 = vadd.f32 %v848, %v2709
      %v2711 = vpop.f32.mrf.mxu0
      %v2712 = vadd.f32 %v852, %v2711
      %2713 = vmatprep.mubr.bf16.mxu0 %v1302
      %2714 = vmatmul.mubr.bf16.gmra.mxu0 %v1301
      %v2715 = vpop.f32.mrf.mxu0
      %v2716 = vadd.f32 %v848, %v2715
      %v2717 = vpop.f32.mrf.mxu0
      %v2718 = vadd.f32 %v852, %v2717
      %v2719 = vpop.f32.mrf.mxu0
      %v2720 = vadd.f32 %v848, %v2719
      %v2721 = vpop.f32.mrf.mxu0
      %v2722 = vadd.f32 %v852, %v2721
      %2723 = vmatprep.mubr.bf16.mxu0 %v1309
      %2724 = vmatmul.mubr.bf16.gmra.mxu0 %v1308
      %v2725 = vpop.f32.mrf.mxu0
      %v2726 = vadd.f32 %v848, %v2725
      %v2727 = vpop.f32.mrf.mxu0
      %v2728 = vadd.f32 %v852, %v2727
      %v2729 = vpop.f32.mrf.mxu0
      %v2730 = vadd.f32 %v848, %v2729
      %v2731 = vpop.f32.mrf.mxu0
      %v2732 = vadd.f32 %v852, %v2731
      %2733 = vmatprep.mubr.bf16.mxu0 %v1316
      %2734 = vmatmul.mubr.bf16.gmra.mxu0 %v1315
      %v2735 = vpop.f32.mrf.mxu0
      %v2736 = vadd.f32 %v848, %v2735
      %v2737 = vpop.f32.mrf.mxu0
      %v2738 = vadd.f32 %v852, %v2737
      %v2739 = vpop.f32.mrf.mxu0
      %v2740 = vadd.f32 %v848, %v2739
      %v2741 = vpop.f32.mrf.mxu0
      %v2742 = vadd.f32 %v852, %v2741
      %2743 = vmatprep.mubr.bf16.mxu0 %v1323
      %2744 = vmatmul.mubr.bf16.gmra.mxu0 %v1322
      %v2745 = vpop.f32.mrf.mxu0
      %v2746 = vadd.f32 %v848, %v2745
      %v2747 = vpop.f32.mrf.mxu0
      %v2748 = vadd.f32 %v852, %v2747
      %v2749 = vpop.f32.mrf.mxu0
      %v2750 = vadd.f32 %v848, %v2749
      %v2751 = vpop.f32.mrf.mxu0
      %v2752 = vadd.f32 %v852, %v2751
      %2753 = vdwg.mxu0
      %2754 = vmatprep.subr.bf16.mxu0 %v2206
      %2755 = vmatpush1.bf16.msra.mxu0 %v2205
      %2756 = vmatprep.subr.bf16.mxu0 %v2202
      %2757 = vmatpush1.bf16.msra.mxu0 %v2201
      %2758 = vmatprep.subr.bf16.mxu0 %v2198
      %2759 = vmatpush1.bf16.msra.mxu0 %v2197
      %2760 = vmatprep.subr.bf16.mxu0 %v2194
      %2761 = vmatpush1.bf16.msra.mxu0 %v2193
      %2762 = vmatprep.subr.bf16.mxu0 %v2190
      %2763 = vmatpush1.bf16.msra.mxu0 %v2189
      %2764 = vmatprep.subr.bf16.mxu0 %v2186
      %2765 = vmatpush1.bf16.msra.mxu0 %v2185
      %2766 = vmatprep.subr.bf16.mxu0 %v2182
      %2767 = vmatpush1.bf16.msra.mxu0 %v2181
      %2768 = vmatprep.subr.bf16.mxu0 %v2178
      %2769 = vmatpush1.bf16.msra.mxu0 %v2177
      %2770 = vmatprep.subr.bf16.mxu0 %v2238
      %2771 = vmatpush2.bf16.msra.mxu0 %v2237
      %2772 = vmatprep.subr.bf16.mxu0 %v2234
      %2773 = vmatpush2.bf16.msra.mxu0 %v2233
      %2774 = vmatprep.subr.bf16.mxu0 %v2230
      %2775 = vmatpush2.bf16.msra.mxu0 %v2229
      %2776 = vmatprep.subr.bf16.mxu0 %v2226
      %2777 = vmatpush2.bf16.msra.mxu0 %v2225
      %2778 = vmatprep.subr.bf16.mxu0 %v2222
      %2779 = vmatpush2.bf16.msra.mxu0 %v2221
      %2780 = vmatprep.subr.bf16.mxu0 %v2218
      %2781 = vmatpush2.bf16.msra.mxu0 %v2217
      %2782 = vmatprep.subr.bf16.mxu0 %v2214
      %2783 = vmatpush2.bf16.msra.mxu0 %v2213
      %2784 = vmatprep.subr.bf16.mxu0 %v2210
      %2785 = vmatpush2.bf16.msra.mxu0 %v2209
      %2786 = vmatprep.mubr.bf16.mxu0 %v1220
      %2787 = vmatmul.mubr.bf16.gmra.mxu0 %v1219
      %v2788 = vpop.f32.mrf.mxu0
      %v2789 = vadd.f32 %v2596, %v2788
      %v2790 = vpop.f32.mrf.mxu0
      %v2791 = vadd.f32 %v2598, %v2790
      %v2792 = vpop.f32.mrf.mxu0
      %v2793 = vadd.f32 %v2600, %v2792
      %v2794 = vpop.f32.mrf.mxu0
      %v2795 = vadd.f32 %v2602, %v2794
      %2796 = vmatprep.mubr.bf16.mxu0 %v1227
      %2797 = vmatmul.mubr.bf16.gmra.mxu0 %v1226
      %v2798 = vpop.f32.mrf.mxu0
      %v2799 = vadd.f32 %v2606, %v2798
      %v2800 = vpop.f32.mrf.mxu0
      %v2801 = vadd.f32 %v2608, %v2800
      %v2802 = vpop.f32.mrf.mxu0
      %v2803 = vadd.f32 %v2610, %v2802
      %v2804 = vpop.f32.mrf.mxu0
      %v2805 = vadd.f32 %v2612, %v2804
      %2806 = vmatprep.mubr.bf16.mxu0 %v1234
      %2807 = vmatmul.mubr.bf16.gmra.mxu0 %v1233
      %v2808 = vpop.f32.mrf.mxu0
      %v2809 = vadd.f32 %v2616, %v2808
      %v2810 = vpop.f32.mrf.mxu0
      %v2811 = vadd.f32 %v2618, %v2810
      %v2812 = vpop.f32.mrf.mxu0
      %v2813 = vadd.f32 %v2620, %v2812
      %v2814 = vpop.f32.mrf.mxu0
      %v2815 = vadd.f32 %v2622, %v2814
      %2816 = vmatprep.mubr.bf16.mxu0 %v1241
      %2817 = vmatmul.mubr.bf16.gmra.mxu0 %v1240
      %v2818 = vpop.f32.mrf.mxu0
      %v2819 = vadd.f32 %v2626, %v2818
      %v2820 = vpop.f32.mrf.mxu0
      %v2821 = vadd.f32 %v2628, %v2820
      %v2822 = vpop.f32.mrf.mxu0
      %v2823 = vadd.f32 %v2630, %v2822
      %v2824 = vpop.f32.mrf.mxu0
      %v2825 = vadd.f32 %v2632, %v2824
      %2826 = vmatprep.mubr.bf16.mxu0 %v1248
      %2827 = vmatmul.mubr.bf16.gmra.mxu0 %v1247
      %v2828 = vpop.f32.mrf.mxu0
      %v2829 = vadd.f32 %v2636, %v2828
      %v2830 = vpop.f32.mrf.mxu0
      %v2831 = vadd.f32 %v2638, %v2830
      %v2832 = vpop.f32.mrf.mxu0
      %v2833 = vadd.f32 %v2640, %v2832
      %v2834 = vpop.f32.mrf.mxu0
      %v2835 = vadd.f32 %v2642, %v2834
      %2836 = vmatprep.mubr.bf16.mxu0 %v1255
      %2837 = vmatmul.mubr.bf16.gmra.mxu0 %v1254
      %v2838 = vpop.f32.mrf.mxu0
      %v2839 = vadd.f32 %v2646, %v2838
      %v2840 = vpop.f32.mrf.mxu0
      %v2841 = vadd.f32 %v2648, %v2840
      %v2842 = vpop.f32.mrf.mxu0
      %v2843 = vadd.f32 %v2650, %v2842
      %v2844 = vpop.f32.mrf.mxu0
      %v2845 = vadd.f32 %v2652, %v2844
      %2846 = vmatprep.mubr.bf16.mxu0 %v1262
      %2847 = vmatmul.mubr.bf16.gmra.mxu0 %v1261
      %v2848 = vpop.f32.mrf.mxu0
      %v2849 = vadd.f32 %v2656, %v2848
      %v2850 = vpop.f32.mrf.mxu0
      %v2851 = vadd.f32 %v2658, %v2850
      %v2852 = vpop.f32.mrf.mxu0
      %v2853 = vadd.f32 %v2660, %v2852
      %v2854 = vpop.f32.mrf.mxu0
      %v2855 = vadd.f32 %v2662, %v2854
      %2856 = vmatprep.mubr.bf16.mxu0 %v1269
      %2857 = vmatmul.mubr.bf16.gmra.mxu0 %v1268
      %v2858 = vpop.f32.mrf.mxu0
      %v2859 = vadd.f32 %v2666, %v2858
      %v2860 = vpop.f32.mrf.mxu0
      %v2861 = vadd.f32 %v2668, %v2860
      %v2862 = vpop.f32.mrf.mxu0
      %v2863 = vadd.f32 %v2670, %v2862
      %v2864 = vpop.f32.mrf.mxu0
      %v2865 = vadd.f32 %v2672, %v2864
      %2866 = vmatprep.mubr.bf16.mxu0 %v1276
      %2867 = vmatmul.mubr.bf16.gmra.mxu0 %v1275
      %v2868 = vpop.f32.mrf.mxu0
      %v2869 = vadd.f32 %v2676, %v2868
      %v2870 = vpop.f32.mrf.mxu0
      %v2871 = vadd.f32 %v2678, %v2870
      %v2872 = vpop.f32.mrf.mxu0
      %v2873 = vadd.f32 %v2680, %v2872
      %v2874 = vpop.f32.mrf.mxu0
      %v2875 = vadd.f32 %v2682, %v2874
      %2876 = vmatprep.mubr.bf16.mxu0 %v1283
      %2877 = vmatmul.mubr.bf16.gmra.mxu0 %v1282
      %v2878 = vpop.f32.mrf.mxu0
      %v2879 = vadd.f32 %v2686, %v2878
      %v2880 = vpop.f32.mrf.mxu0
      %v2881 = vadd.f32 %v2688, %v2880
      %v2882 = vpop.f32.mrf.mxu0
      %v2883 = vadd.f32 %v2690, %v2882
      %v2884 = vpop.f32.mrf.mxu0
      %v2885 = vadd.f32 %v2692, %v2884
      %2886 = vmatprep.mubr.bf16.mxu0 %v1290
      %2887 = vmatmul.mubr.bf16.gmra.mxu0 %v1289
      %v2888 = vpop.f32.mrf.mxu0
      %v2889 = vadd.f32 %v2696, %v2888
      %v2890 = vpop.f32.mrf.mxu0
      %v2891 = vadd.f32 %v2698, %v2890
      %v2892 = vpop.f32.mrf.mxu0
      %v2893 = vadd.f32 %v2700, %v2892
      %v2894 = vpop.f32.mrf.mxu0
      %v2895 = vadd.f32 %v2702, %v2894
      %2896 = vmatprep.mubr.bf16.mxu0 %v1297
      %2897 = vmatmul.mubr.bf16.gmra.mxu0 %v1296
      %v2898 = vpop.f32.mrf.mxu0
      %v2899 = vadd.f32 %v2706, %v2898
      %v2900 = vpop.f32.mrf.mxu0
      %v2901 = vadd.f32 %v2708, %v2900
      %v2902 = vpop.f32.mrf.mxu0
      %v2903 = vadd.f32 %v2710, %v2902
      %v2904 = vpop.f32.mrf.mxu0
      %v2905 = vadd.f32 %v2712, %v2904
      %2906 = vmatprep.mubr.bf16.mxu0 %v1304
      %2907 = vmatmul.mubr.bf16.gmra.mxu0 %v1303
      %v2908 = vpop.f32.mrf.mxu0
      %v2909 = vadd.f32 %v2716, %v2908
      %v2910 = vpop.f32.mrf.mxu0
      %v2911 = vadd.f32 %v2718, %v2910
      %v2912 = vpop.f32.mrf.mxu0
      %v2913 = vadd.f32 %v2720, %v2912
      %v2914 = vpop.f32.mrf.mxu0
      %v2915 = vadd.f32 %v2722, %v2914
      %2916 = vmatprep.mubr.bf16.mxu0 %v1311
      %2917 = vmatmul.mubr.bf16.gmra.mxu0 %v1310
      %v2918 = vpop.f32.mrf.mxu0
      %v2919 = vadd.f32 %v2726, %v2918
      %v2920 = vpop.f32.mrf.mxu0
      %v2921 = vadd.f32 %v2728, %v2920
      %v2922 = vpop.f32.mrf.mxu0
      %v2923 = vadd.f32 %v2730, %v2922
      %v2924 = vpop.f32.mrf.mxu0
      %v2925 = vadd.f32 %v2732, %v2924
      %2926 = vmatprep.mubr.bf16.mxu0 %v1318
      %2927 = vmatmul.mubr.bf16.gmra.mxu0 %v1317
      %v2928 = vpop.f32.mrf.mxu0
      %v2929 = vadd.f32 %v2736, %v2928
      %v2930 = vpop.f32.mrf.mxu0
      %v2931 = vadd.f32 %v2738, %v2930
      %v2932 = vpop.f32.mrf.mxu0
      %v2933 = vadd.f32 %v2740, %v2932
      %v2934 = vpop.f32.mrf.mxu0
      %v2935 = vadd.f32 %v2742, %v2934
      %2936 = vmatprep.mubr.bf16.mxu0 %v1325
      %2937 = vmatmul.mubr.bf16.gmra.mxu0 %v1324
      %v2938 = vpop.f32.mrf.mxu0
      %v2939 = vadd.f32 %v2746, %v2938
      %v2940 = vpop.f32.mrf.mxu0
      %v2941 = vadd.f32 %v2748, %v2940
      %v2942 = vpop.f32.mrf.mxu0
      %v2943 = vadd.f32 %v2750, %v2942
      %v2944 = vpop.f32.mrf.mxu0
      %v2945 = vadd.f32 %v2752, %v2944
      %2946 = vdwg.mxu0
      %2947 = vmatprep.subr.bf16.mxu0 %v2270
      %2948 = vmatpush1.bf16.msra.mxu0 %v2269
      %2949 = vmatprep.subr.bf16.mxu0 %v2266
      %2950 = vmatpush1.bf16.msra.mxu0 %v2265
      %2951 = vmatprep.subr.bf16.mxu0 %v2262
      %2952 = vmatpush1.bf16.msra.mxu0 %v2261
      %2953 = vmatprep.subr.bf16.mxu0 %v2258
      %2954 = vmatpush1.bf16.msra.mxu0 %v2257
      %2955 = vmatprep.subr.bf16.mxu0 %v2254
      %2956 = vmatpush1.bf16.msra.mxu0 %v2253
      %2957 = vmatprep.subr.bf16.mxu0 %v2250
      %2958 = vmatpush1.bf16.msra.mxu0 %v2249
      %2959 = vmatprep.subr.bf16.mxu0 %v2246
      %2960 = vmatpush1.bf16.msra.mxu0 %v2245
      %2961 = vmatprep.subr.bf16.mxu0 %v2242
      %2962 = vmatpush1.bf16.msra.mxu0 %v2241
      %2963 = vmatprep.subr.bf16.mxu0 %v2302
      %2964 = vmatpush2.bf16.msra.mxu0 %v2301
      %2965 = vmatprep.subr.bf16.mxu0 %v2298
      %2966 = vmatpush2.bf16.msra.mxu0 %v2297
      %2967 = vmatprep.subr.bf16.mxu0 %v2294
      %2968 = vmatpush2.bf16.msra.mxu0 %v2293
      %2969 = vmatprep.subr.bf16.mxu0 %v2290
      %2970 = vmatpush2.bf16.msra.mxu0 %v2289
      %2971 = vmatprep.subr.bf16.mxu0 %v2286
      %2972 = vmatpush2.bf16.msra.mxu0 %v2285
      %2973 = vmatprep.subr.bf16.mxu0 %v2282
      %2974 = vmatpush2.bf16.msra.mxu0 %v2281
      %2975 = vmatprep.subr.bf16.mxu0 %v2278
      %2976 = vmatpush2.bf16.msra.mxu0 %v2277
      %2977 = vmatprep.subr.bf16.mxu0 %v2274
      %2978 = vmatpush2.bf16.msra.mxu0 %v2273
      %2979 = vmatprep.mubr.bf16.mxu0 %v1222
      %2980 = vmatmul.mubr.bf16.gmra.mxu0 %v1221
      %v2981 = vpop.f32.mrf.mxu0
      %v2982 = vadd.f32 %v2789, %v2981
      %v2983 = vpop.f32.mrf.mxu0
      %v2984 = vadd.f32 %v2791, %v2983
      %v2985 = vpop.f32.mrf.mxu0
      %v2986 = vadd.f32 %v2793, %v2985
      %v2987 = vpop.f32.mrf.mxu0
      %v2988 = vadd.f32 %v2795, %v2987
      %2989 = vmatprep.mubr.bf16.mxu0 %v1229
      %2990 = vmatmul.mubr.bf16.gmra.mxu0 %v1228
      %v2991 = vpop.f32.mrf.mxu0
      %v2992 = vadd.f32 %v2799, %v2991
      %v2993 = vpop.f32.mrf.mxu0
      %v2994 = vadd.f32 %v2801, %v2993
      %v2995 = vpop.f32.mrf.mxu0
      %v2996 = vadd.f32 %v2803, %v2995
      %v2997 = vpop.f32.mrf.mxu0
      %v2998 = vadd.f32 %v2805, %v2997
      %2999 = vmatprep.mubr.bf16.mxu0 %v1236
      %3000 = vmatmul.mubr.bf16.gmra.mxu0 %v1235
      %v3001 = vpop.f32.mrf.mxu0
      %v3002 = vadd.f32 %v2809, %v3001
      %v3003 = vpop.f32.mrf.mxu0
      %v3004 = vadd.f32 %v2811, %v3003
      %v3005 = vpop.f32.mrf.mxu0
      %v3006 = vadd.f32 %v2813, %v3005
      %v3007 = vpop.f32.mrf.mxu0
      %v3008 = vadd.f32 %v2815, %v3007
      %3009 = vmatprep.mubr.bf16.mxu0 %v1243
      %3010 = vmatmul.mubr.bf16.gmra.mxu0 %v1242
      %v3011 = vpop.f32.mrf.mxu0
      %v3012 = vadd.f32 %v2819, %v3011
      %v3013 = vpop.f32.mrf.mxu0
      %v3014 = vadd.f32 %v2821, %v3013
      %v3015 = vpop.f32.mrf.mxu0
      %v3016 = vadd.f32 %v2823, %v3015
      %v3017 = vpop.f32.mrf.mxu0
      %v3018 = vadd.f32 %v2825, %v3017
      %3019 = vmatprep.mubr.bf16.mxu0 %v1250
      %3020 = vmatmul.mubr.bf16.gmra.mxu0 %v1249
      %v3021 = vpop.f32.mrf.mxu0
      %v3022 = vadd.f32 %v2829, %v3021
      %v3023 = vpop.f32.mrf.mxu0
      %v3024 = vadd.f32 %v2831, %v3023
      %v3025 = vpop.f32.mrf.mxu0
      %v3026 = vadd.f32 %v2833, %v3025
      %v3027 = vpop.f32.mrf.mxu0
      %v3028 = vadd.f32 %v2835, %v3027
      %3029 = vmatprep.mubr.bf16.mxu0 %v1257
      %3030 = vmatmul.mubr.bf16.gmra.mxu0 %v1256
      %v3031 = vpop.f32.mrf.mxu0
      %v3032 = vadd.f32 %v2839, %v3031
      %v3033 = vpop.f32.mrf.mxu0
      %v3034 = vadd.f32 %v2841, %v3033
      %v3035 = vpop.f32.mrf.mxu0
      %v3036 = vadd.f32 %v2843, %v3035
      %v3037 = vpop.f32.mrf.mxu0
      %v3038 = vadd.f32 %v2845, %v3037
      %3039 = vmatprep.mubr.bf16.mxu0 %v1264
      %3040 = vmatmul.mubr.bf16.gmra.mxu0 %v1263
      %v3041 = vpop.f32.mrf.mxu0
      %v3042 = vadd.f32 %v2849, %v3041
      %v3043 = vpop.f32.mrf.mxu0
      %v3044 = vadd.f32 %v2851, %v3043
      %v3045 = vpop.f32.mrf.mxu0
      %v3046 = vadd.f32 %v2853, %v3045
      %v3047 = vpop.f32.mrf.mxu0
      %v3048 = vadd.f32 %v2855, %v3047
      %3049 = vmatprep.mubr.bf16.mxu0 %v1271
      %3050 = vmatmul.mubr.bf16.gmra.mxu0 %v1270
      %v3051 = vpop.f32.mrf.mxu0
      %v3052 = vadd.f32 %v2859, %v3051
      %v3053 = vpop.f32.mrf.mxu0
      %v3054 = vadd.f32 %v2861, %v3053
      %v3055 = vpop.f32.mrf.mxu0
      %v3056 = vadd.f32 %v2863, %v3055
      %v3057 = vpop.f32.mrf.mxu0
      %v3058 = vadd.f32 %v2865, %v3057
      %3059 = vmatprep.mubr.bf16.mxu0 %v1278
      %3060 = vmatmul.mubr.bf16.gmra.mxu0 %v1277
      %v3061 = vpop.f32.mrf.mxu0
      %v3062 = vadd.f32 %v2869, %v3061
      %v3063 = vpop.f32.mrf.mxu0
      %v3064 = vadd.f32 %v2871, %v3063
      %v3065 = vpop.f32.mrf.mxu0
      %v3066 = vadd.f32 %v2873, %v3065
      %v3067 = vpop.f32.mrf.mxu0
      %v3068 = vadd.f32 %v2875, %v3067
      %3069 = vmatprep.mubr.bf16.mxu0 %v1285
      %3070 = vmatmul.mubr.bf16.gmra.mxu0 %v1284
      %v3071 = vpop.f32.mrf.mxu0
      %v3072 = vadd.f32 %v2879, %v3071
      %v3073 = vpop.f32.mrf.mxu0
      %v3074 = vadd.f32 %v2881, %v3073
      %v3075 = vpop.f32.mrf.mxu0
      %v3076 = vadd.f32 %v2883, %v3075
      %v3077 = vpop.f32.mrf.mxu0
      %v3078 = vadd.f32 %v2885, %v3077
      %3079 = vmatprep.mubr.bf16.mxu0 %v1292
      %3080 = vmatmul.mubr.bf16.gmra.mxu0 %v1291
      %v3081 = vpop.f32.mrf.mxu0
      %v3082 = vadd.f32 %v2889, %v3081
      %v3083 = vpop.f32.mrf.mxu0
      %v3084 = vadd.f32 %v2891, %v3083
      %v3085 = vpop.f32.mrf.mxu0
      %v3086 = vadd.f32 %v2893, %v3085
      %v3087 = vpop.f32.mrf.mxu0
      %v3088 = vadd.f32 %v2895, %v3087
      %3089 = vmatprep.mubr.bf16.mxu0 %v1299
      %3090 = vmatmul.mubr.bf16.gmra.mxu0 %v1298
      %v3091 = vpop.f32.mrf.mxu0
      %v3092 = vadd.f32 %v2899, %v3091
      %v3093 = vpop.f32.mrf.mxu0
      %v3094 = vadd.f32 %v2901, %v3093
      %v3095 = vpop.f32.mrf.mxu0
      %v3096 = vadd.f32 %v2903, %v3095
      %v3097 = vpop.f32.mrf.mxu0
      %v3098 = vadd.f32 %v2905, %v3097
      %3099 = vmatprep.mubr.bf16.mxu0 %v1306
      %3100 = vmatmul.mubr.bf16.gmra.mxu0 %v1305
      %v3101 = vpop.f32.mrf.mxu0
      %v3102 = vadd.f32 %v2909, %v3101
      %v3103 = vpop.f32.mrf.mxu0
      %v3104 = vadd.f32 %v2911, %v3103
      %v3105 = vpop.f32.mrf.mxu0
      %v3106 = vadd.f32 %v2913, %v3105
      %v3107 = vpop.f32.mrf.mxu0
      %v3108 = vadd.f32 %v2915, %v3107
      %3109 = vmatprep.mubr.bf16.mxu0 %v1313
      %3110 = vmatmul.mubr.bf16.gmra.mxu0 %v1312
      %v3111 = vpop.f32.mrf.mxu0
      %v3112 = vadd.f32 %v2919, %v3111
      %v3113 = vpop.f32.mrf.mxu0
      %v3114 = vadd.f32 %v2921, %v3113
      %v3115 = vpop.f32.mrf.mxu0
      %v3116 = vadd.f32 %v2923, %v3115
      %v3117 = vpop.f32.mrf.mxu0
      %v3118 = vadd.f32 %v2925, %v3117
      %3119 = vmatprep.mubr.bf16.mxu0 %v1320
      %3120 = vmatmul.mubr.bf16.gmra.mxu0 %v1319
      %v3121 = vpop.f32.mrf.mxu0
      %v3122 = vadd.f32 %v2929, %v3121
      %v3123 = vpop.f32.mrf.mxu0
      %v3124 = vadd.f32 %v2931, %v3123
      %v3125 = vpop.f32.mrf.mxu0
      %v3126 = vadd.f32 %v2933, %v3125
      %v3127 = vpop.f32.mrf.mxu0
      %v3128 = vadd.f32 %v2935, %v3127
      %3129 = vmatprep.mubr.bf16.mxu0 %v1327
      %3130 = vmatmul.mubr.bf16.gmra.mxu0 %v1326
      %v3131 = vpop.f32.mrf.mxu0
      %v3132 = vadd.f32 %v2939, %v3131
      %v3133 = vpop.f32.mrf.mxu0
      %v3134 = vadd.f32 %v2941, %v3133
      %v3135 = vpop.f32.mrf.mxu0
      %v3136 = vadd.f32 %v2943, %v3135
      %v3137 = vpop.f32.mrf.mxu0
      %v3138 = vadd.f32 %v2945, %v3137
      %3139 = vdwg.mxu0
      %3140 = vmatprep.subr.bf16.mxu0 %v2334
      %3141 = vmatpush1.bf16.msra.mxu0 %v2333
      %3142 = vmatprep.subr.bf16.mxu0 %v2330
      %3143 = vmatpush1.bf16.msra.mxu0 %v2329
      %3144 = vmatprep.subr.bf16.mxu0 %v2326
      %3145 = vmatpush1.bf16.msra.mxu0 %v2325
      %3146 = vmatprep.subr.bf16.mxu0 %v2322
      %3147 = vmatpush1.bf16.msra.mxu0 %v2321
      %3148 = vmatprep.subr.bf16.mxu0 %v2318
      %3149 = vmatpush1.bf16.msra.mxu0 %v2317
      %3150 = vmatprep.subr.bf16.mxu0 %v2314
      %3151 = vmatpush1.bf16.msra.mxu0 %v2313
      %3152 = vmatprep.subr.bf16.mxu0 %v2310
      %3153 = vmatpush1.bf16.msra.mxu0 %v2309
      %3154 = vmatprep.subr.bf16.mxu0 %v2306
      %3155 = vmatpush1.bf16.msra.mxu0 %v2305
      %3156 = vmatprep.subr.bf16.mxu0 0
      %3157 = vmatpush2.bf16.msra.mxu0 0
      %3158 = vmatprep.subr.bf16.mxu0 0
      %3159 = vmatpush2.bf16.msra.mxu0 0
      %3160 = vmatprep.subr.bf16.mxu0 0
      %3161 = vmatpush2.bf16.msra.mxu0 0
      %3162 = vmatprep.subr.bf16.mxu0 0
      %3163 = vmatpush2.bf16.msra.mxu0 0
      %3164 = vmatprep.subr.bf16.mxu0 0
      %3165 = vmatpush2.bf16.msra.mxu0 0
      %3166 = vmatprep.subr.bf16.mxu0 0
      %3167 = vmatpush2.bf16.msra.mxu0 0
      %3168 = vmatprep.subr.bf16.mxu0 0
      %3169 = vmatpush2.bf16.msra.mxu0 0
      %3170 = vmatprep.subr.bf16.mxu0 0
      %3171 = vmatpush2.bf16.msra.mxu0 0
      %3172 = vmatprep.mubr.bf16.mxu0 0
      %3173 = vmatmul.mubr.bf16.gmra.mxu0 %v1223
      %v3174 = vpop.f32.mrf.mxu0
      %v3175 = vadd.f32 %v2982, %v3174
      %v3176 = vpop.f32.mrf.mxu0
      %v3177 = vadd.f32 %v2984, %v3176
      %v3178 = vpop.f32.mrf.mxu0
      %v3179 = vadd.f32 %v2986, %v3178
      %v3180 = vpop.f32.mrf.mxu0
      %v3181 = vadd.f32 %v2988, %v3180
      %3182 = vmatprep.mubr.bf16.mxu0 0
      %3183 = vmatmul.mubr.bf16.gmra.mxu0 %v1230
      %v3184 = vpop.f32.mrf.mxu0
      %v3185 = vadd.f32 %v2992, %v3184
      %v3186 = vpop.f32.mrf.mxu0
      %v3187 = vadd.f32 %v2994, %v3186
      %v3188 = vpop.f32.mrf.mxu0
      %v3189 = vadd.f32 %v2996, %v3188
      %v3190 = vpop.f32.mrf.mxu0
      %v3191 = vadd.f32 %v2998, %v3190
      %3192 = vmatprep.mubr.bf16.mxu0 0
      %3193 = vmatmul.mubr.bf16.gmra.mxu0 %v1237
      %v3194 = vpop.f32.mrf.mxu0
      %v3195 = vadd.f32 %v3002, %v3194
      %v3196 = vpop.f32.mrf.mxu0
      %v3197 = vadd.f32 %v3004, %v3196
      %v3198 = vpop.f32.mrf.mxu0
      %v3199 = vadd.f32 %v3006, %v3198
      %v3200 = vpop.f32.mrf.mxu0
      %v3201 = vadd.f32 %v3008, %v3200
      %3202 = vmatprep.mubr.bf16.mxu0 0
      %3203 = vmatmul.mubr.bf16.gmra.mxu0 %v1244
      %v3204 = vpop.f32.mrf.mxu0
      %v3205 = vadd.f32 %v3012, %v3204
      %v3206 = vpop.f32.mrf.mxu0
      %v3207 = vadd.f32 %v3014, %v3206
      %v3208 = vpop.f32.mrf.mxu0
      %v3209 = vadd.f32 %v3016, %v3208
      %v3210 = vpop.f32.mrf.mxu0
      %v3211 = vadd.f32 %v3018, %v3210
      %3212 = vmatprep.mubr.bf16.mxu0 0
      %3213 = vmatmul.mubr.bf16.gmra.mxu0 %v1251
      %v3214 = vpop.f32.mrf.mxu0
      %v3215 = vadd.f32 %v3022, %v3214
      %v3216 = vpop.f32.mrf.mxu0
      %v3217 = vadd.f32 %v3024, %v3216
      %v3218 = vpop.f32.mrf.mxu0
      %v3219 = vadd.f32 %v3026, %v3218
      %v3220 = vpop.f32.mrf.mxu0
      %v3221 = vadd.f32 %v3028, %v3220
      %3222 = vmatprep.mubr.bf16.mxu0 0
      %3223 = vmatmul.mubr.bf16.gmra.mxu0 %v1258
      %v3224 = vpop.f32.mrf.mxu0
      %v3225 = vadd.f32 %v3032, %v3224
      %v3226 = vpop.f32.mrf.mxu0
      %v3227 = vadd.f32 %v3034, %v3226
      %v3228 = vpop.f32.mrf.mxu0
      %v3229 = vadd.f32 %v3036, %v3228
      %v3230 = vpop.f32.mrf.mxu0
      %v3231 = vadd.f32 %v3038, %v3230
      %3232 = vmatprep.mubr.bf16.mxu0 0
      %3233 = vmatmul.mubr.bf16.gmra.mxu0 %v1265
      %v3234 = vpop.f32.mrf.mxu0
      %v3235 = vadd.f32 %v3042, %v3234
      %v3236 = vpop.f32.mrf.mxu0
      %v3237 = vadd.f32 %v3044, %v3236
      %v3238 = vpop.f32.mrf.mxu0
      %v3239 = vadd.f32 %v3046, %v3238
      %v3240 = vpop.f32.mrf.mxu0
      %v3241 = vadd.f32 %v3048, %v3240
      %3242 = vmatprep.mubr.bf16.mxu0 0
      %3243 = vmatmul.mubr.bf16.gmra.mxu0 %v1272
      %v3244 = vpop.f32.mrf.mxu0
      %v3245 = vadd.f32 %v3052, %v3244
      %v3246 = vpop.f32.mrf.mxu0
      %v3247 = vadd.f32 %v3054, %v3246
      %v3248 = vpop.f32.mrf.mxu0
      %v3249 = vadd.f32 %v3056, %v3248
      %v3250 = vpop.f32.mrf.mxu0
      %v3251 = vadd.f32 %v3058, %v3250
      %3252 = vmatprep.mubr.bf16.mxu0 0
      %3253 = vmatmul.mubr.bf16.gmra.mxu0 %v1279
      %v3254 = vpop.f32.mrf.mxu0
      %v3255 = vadd.f32 %v3062, %v3254
      %v3256 = vpop.f32.mrf.mxu0
      %v3257 = vadd.f32 %v3064, %v3256
      %v3258 = vpop.f32.mrf.mxu0
      %v3259 = vadd.f32 %v3066, %v3258
      %v3260 = vpop.f32.mrf.mxu0
      %v3261 = vadd.f32 %v3068, %v3260
      %3262 = vmatprep.mubr.bf16.mxu0 0
      %3263 = vmatmul.mubr.bf16.gmra.mxu0 %v1286
      %v3264 = vpop.f32.mrf.mxu0
      %v3265 = vadd.f32 %v3072, %v3264
      %v3266 = vpop.f32.mrf.mxu0
      %v3267 = vadd.f32 %v3074, %v3266
      %v3268 = vpop.f32.mrf.mxu0
      %v3269 = vadd.f32 %v3076, %v3268
      %v3270 = vpop.f32.mrf.mxu0
      %v3271 = vadd.f32 %v3078, %v3270
      %3272 = vmatprep.mubr.bf16.mxu0 0
      %3273 = vmatmul.mubr.bf16.gmra.mxu0 %v1293
      %v3274 = vpop.f32.mrf.mxu0
      %v3275 = vadd.f32 %v3082, %v3274
      %v3276 = vpop.f32.mrf.mxu0
      %v3277 = vadd.f32 %v3084, %v3276
      %v3278 = vpop.f32.mrf.mxu0
      %v3279 = vadd.f32 %v3086, %v3278
      %v3280 = vpop.f32.mrf.mxu0
      %v3281 = vadd.f32 %v3088, %v3280
      %3282 = vmatprep.mubr.bf16.mxu0 0
      %3283 = vmatmul.mubr.bf16.gmra.mxu0 %v1300
      %v3284 = vpop.f32.mrf.mxu0
      %v3285 = vadd.f32 %v3092, %v3284
      %v3286 = vpop.f32.mrf.mxu0
      %v3287 = vadd.f32 %v3094, %v3286
      %v3288 = vpop.f32.mrf.mxu0
      %v3289 = vadd.f32 %v3096, %v3288
      %v3290 = vpop.f32.mrf.mxu0
      %v3291 = vadd.f32 %v3098, %v3290
      %3292 = vmatprep.mubr.bf16.mxu0 0
      %3293 = vmatmul.mubr.bf16.gmra.mxu0 %v1307
      %v3294 = vpop.f32.mrf.mxu0
      %v3295 = vadd.f32 %v3102, %v3294
      %v3296 = vpop.f32.mrf.mxu0
      %v3297 = vadd.f32 %v3104, %v3296
      %v3298 = vpop.f32.mrf.mxu0
      %v3299 = vadd.f32 %v3106, %v3298
      %v3300 = vpop.f32.mrf.mxu0
      %v3301 = vadd.f32 %v3108, %v3300
      %3302 = vmatprep.mubr.bf16.mxu0 0
      %3303 = vmatmul.mubr.bf16.gmra.mxu0 %v1314
      %v3304 = vpop.f32.mrf.mxu0
      %v3305 = vadd.f32 %v3112, %v3304
      %v3306 = vpop.f32.mrf.mxu0
      %v3307 = vadd.f32 %v3114, %v3306
      %v3308 = vpop.f32.mrf.mxu0
      %v3309 = vadd.f32 %v3116, %v3308
      %v3310 = vpop.f32.mrf.mxu0
      %v3311 = vadd.f32 %v3118, %v3310
      %3312 = vmatprep.mubr.bf16.mxu0 0
      %3313 = vmatmul.mubr.bf16.gmra.mxu0 %v1321
      %v3314 = vpop.f32.mrf.mxu0
      %v3315 = vadd.f32 %v3122, %v3314
      %v3316 = vpop.f32.mrf.mxu0
      %v3317 = vadd.f32 %v3124, %v3316
      %v3318 = vpop.f32.mrf.mxu0
      %v3319 = vadd.f32 %v3126, %v3318
      %v3320 = vpop.f32.mrf.mxu0
      %v3321 = vadd.f32 %v3128, %v3320
      %3322 = vmatprep.mubr.bf16.mxu0 0
      %3323 = vmatmul.mubr.bf16.gmra.mxu0 %v1328
      %v3324 = vpop.f32.mrf.mxu0
      %v3325 = vadd.f32 %v3132, %v3324
      %v3326 = vpop.f32.mrf.mxu0
      %v3327 = vadd.f32 %v3134, %v3326
      %v3328 = vpop.f32.mrf.mxu0
      %v3329 = vadd.f32 %v3136, %v3328
      %v3330 = vpop.f32.mrf.mxu0
      %v3331 = vadd.f32 %v3138, %v3330
      %3332 = vdwg.mxu0
      %3333 = vmatprep.subr.bf16.mxu0 %v2144
      %3334 = vmatpush1.bf16.msra.mxu0 %v2143
      %3335 = vmatprep.subr.bf16.mxu0 %v2140
      %3336 = vmatpush1.bf16.msra.mxu0 %v2139
      %3337 = vmatprep.subr.bf16.mxu0 %v2136
      %3338 = vmatpush1.bf16.msra.mxu0 %v2135
      %3339 = vmatprep.subr.bf16.mxu0 %v2132
      %3340 = vmatpush1.bf16.msra.mxu0 %v2131
      %3341 = vmatprep.subr.bf16.mxu0 %v2128
      %3342 = vmatpush1.bf16.msra.mxu0 %v2127
      %3343 = vmatprep.subr.bf16.mxu0 %v2124
      %3344 = vmatpush1.bf16.msra.mxu0 %v2123
      %3345 = vmatprep.subr.bf16.mxu0 %v2120
      %3346 = vmatpush1.bf16.msra.mxu0 %v2119
      %3347 = vmatprep.subr.bf16.mxu0 %v2116
      %3348 = vmatpush1.bf16.msra.mxu0 %v2115
      %3349 = vmatprep.subr.bf16.mxu0 %v2176
      %3350 = vmatpush2.bf16.msra.mxu0 %v2175
      %3351 = vmatprep.subr.bf16.mxu0 %v2172
      %3352 = vmatpush2.bf16.msra.mxu0 %v2171
      %3353 = vmatprep.subr.bf16.mxu0 %v2168
      %3354 = vmatpush2.bf16.msra.mxu0 %v2167
      %3355 = vmatprep.subr.bf16.mxu0 %v2164
      %3356 = vmatpush2.bf16.msra.mxu0 %v2163
      %3357 = vmatprep.subr.bf16.mxu0 %v2160
      %3358 = vmatpush2.bf16.msra.mxu0 %v2159
      %3359 = vmatprep.subr.bf16.mxu0 %v2156
      %3360 = vmatpush2.bf16.msra.mxu0 %v2155
      %3361 = vmatprep.subr.bf16.mxu0 %v2152
      %3362 = vmatpush2.bf16.msra.mxu0 %v2151
      %3363 = vmatprep.subr.bf16.mxu0 %v2148
      %3364 = vmatpush2.bf16.msra.mxu0 %v2147
      %3365 = vmatprep.mubr.bf16.mxu0 %v1218
      %3366 = vmatmul.mubr.bf16.gmra.mxu0 %v1217
      %v3367 = vpop.f32.mrf.mxu0
      %v3368 = vadd.f32 %v856, %v3367
      %v3369 = vpop.f32.mrf.mxu0
      %v3370 = vadd.f32 %v860, %v3369
      %v3371 = vpop.f32.mrf.mxu0
      %v3372 = vadd.f32 %v856, %v3371
      %v3373 = vpop.f32.mrf.mxu0
      %v3374 = vadd.f32 %v860, %v3373
      %3375 = vmatprep.mubr.bf16.mxu0 %v1225
      %3376 = vmatmul.mubr.bf16.gmra.mxu0 %v1224
      %v3377 = vpop.f32.mrf.mxu0
      %v3378 = vadd.f32 %v856, %v3377
      %v3379 = vpop.f32.mrf.mxu0
      %v3380 = vadd.f32 %v860, %v3379
      %v3381 = vpop.f32.mrf.mxu0
      %v3382 = vadd.f32 %v856, %v3381
      %v3383 = vpop.f32.mrf.mxu0
      %v3384 = vadd.f32 %v860, %v3383
      %3385 = vmatprep.mubr.bf16.mxu0 %v1232
      %3386 = vmatmul.mubr.bf16.gmra.mxu0 %v1231
      %v3387 = vpop.f32.mrf.mxu0
      %v3388 = vadd.f32 %v856, %v3387
      %v3389 = vpop.f32.mrf.mxu0
      %v3390 = vadd.f32 %v860, %v3389
      %v3391 = vpop.f32.mrf.mxu0
      %v3392 = vadd.f32 %v856, %v3391
      %v3393 = vpop.f32.mrf.mxu0
      %v3394 = vadd.f32 %v860, %v3393
      %3395 = vmatprep.mubr.bf16.mxu0 %v1239
      %3396 = vmatmul.mubr.bf16.gmra.mxu0 %v1238
      %v3397 = vpop.f32.mrf.mxu0
      %v3398 = vadd.f32 %v856, %v3397
      %v3399 = vpop.f32.mrf.mxu0
      %v3400 = vadd.f32 %v860, %v3399
      %v3401 = vpop.f32.mrf.mxu0
      %v3402 = vadd.f32 %v856, %v3401
      %v3403 = vpop.f32.mrf.mxu0
      %v3404 = vadd.f32 %v860, %v3403
      %3405 = vmatprep.mubr.bf16.mxu0 %v1246
      %3406 = vmatmul.mubr.bf16.gmra.mxu0 %v1245
      %v3407 = vpop.f32.mrf.mxu0
      %v3408 = vadd.f32 %v856, %v3407
      %v3409 = vpop.f32.mrf.mxu0
      %v3410 = vadd.f32 %v860, %v3409
      %v3411 = vpop.f32.mrf.mxu0
      %v3412 = vadd.f32 %v856, %v3411
      %v3413 = vpop.f32.mrf.mxu0
      %v3414 = vadd.f32 %v860, %v3413
      %3415 = vmatprep.mubr.bf16.mxu0 %v1253
      %3416 = vmatmul.mubr.bf16.gmra.mxu0 %v1252
      %v3417 = vpop.f32.mrf.mxu0
      %v3418 = vadd.f32 %v856, %v3417
      %v3419 = vpop.f32.mrf.mxu0
      %v3420 = vadd.f32 %v860, %v3419
      %v3421 = vpop.f32.mrf.mxu0
      %v3422 = vadd.f32 %v856, %v3421
      %v3423 = vpop.f32.mrf.mxu0
      %v3424 = vadd.f32 %v860, %v3423
      %3425 = vmatprep.mubr.bf16.mxu0 %v1260
      %3426 = vmatmul.mubr.bf16.gmra.mxu0 %v1259
      %v3427 = vpop.f32.mrf.mxu0
      %v3428 = vadd.f32 %v856, %v3427
      %v3429 = vpop.f32.mrf.mxu0
      %v3430 = vadd.f32 %v860, %v3429
      %v3431 = vpop.f32.mrf.mxu0
      %v3432 = vadd.f32 %v856, %v3431
      %v3433 = vpop.f32.mrf.mxu0
      %v3434 = vadd.f32 %v860, %v3433
      %3435 = vmatprep.mubr.bf16.mxu0 %v1267
      %3436 = vmatmul.mubr.bf16.gmra.mxu0 %v1266
      %v3437 = vpop.f32.mrf.mxu0
      %v3438 = vadd.f32 %v856, %v3437
      %v3439 = vpop.f32.mrf.mxu0
      %v3440 = vadd.f32 %v860, %v3439
      %v3441 = vpop.f32.mrf.mxu0
      %v3442 = vadd.f32 %v856, %v3441
      %v3443 = vpop.f32.mrf.mxu0
      %v3444 = vadd.f32 %v860, %v3443
      %3445 = vmatprep.mubr.bf16.mxu0 %v1274
      %3446 = vmatmul.mubr.bf16.gmra.mxu0 %v1273
      %v3447 = vpop.f32.mrf.mxu0
      %v3448 = vadd.f32 %v856, %v3447
      %v3449 = vpop.f32.mrf.mxu0
      %v3450 = vadd.f32 %v860, %v3449
      %v3451 = vpop.f32.mrf.mxu0
      %v3452 = vadd.f32 %v856, %v3451
      %v3453 = vpop.f32.mrf.mxu0
      %v3454 = vadd.f32 %v860, %v3453
      %3455 = vmatprep.mubr.bf16.mxu0 %v1281
      %3456 = vmatmul.mubr.bf16.gmra.mxu0 %v1280
      %v3457 = vpop.f32.mrf.mxu0
      %v3458 = vadd.f32 %v856, %v3457
      %v3459 = vpop.f32.mrf.mxu0
      %v3460 = vadd.f32 %v860, %v3459
      %v3461 = vpop.f32.mrf.mxu0
      %v3462 = vadd.f32 %v856, %v3461
      %v3463 = vpop.f32.mrf.mxu0
      %v3464 = vadd.f32 %v860, %v3463
      %3465 = vmatprep.mubr.bf16.mxu0 %v1288
      %3466 = vmatmul.mubr.bf16.gmra.mxu0 %v1287
      %v3467 = vpop.f32.mrf.mxu0
      %v3468 = vadd.f32 %v856, %v3467
      %v3469 = vpop.f32.mrf.mxu0
      %v3470 = vadd.f32 %v860, %v3469
      %v3471 = vpop.f32.mrf.mxu0
      %v3472 = vadd.f32 %v856, %v3471
      %v3473 = vpop.f32.mrf.mxu0
      %v3474 = vadd.f32 %v860, %v3473
      %3475 = vmatprep.mubr.bf16.mxu0 %v1295
      %3476 = vmatmul.mubr.bf16.gmra.mxu0 %v1294
      %v3477 = vpop.f32.mrf.mxu0
      %v3478 = vadd.f32 %v856, %v3477
      %v3479 = vpop.f32.mrf.mxu0
      %v3480 = vadd.f32 %v860, %v3479
      %v3481 = vpop.f32.mrf.mxu0
      %v3482 = vadd.f32 %v856, %v3481
      %v3483 = vpop.f32.mrf.mxu0
      %v3484 = vadd.f32 %v860, %v3483
      %3485 = vmatprep.mubr.bf16.mxu0 %v1302
      %3486 = vmatmul.mubr.bf16.gmra.mxu0 %v1301
      %v3487 = vpop.f32.mrf.mxu0
      %v3488 = vadd.f32 %v856, %v3487
      %v3489 = vpop.f32.mrf.mxu0
      %v3490 = vadd.f32 %v860, %v3489
      %v3491 = vpop.f32.mrf.mxu0
      %v3492 = vadd.f32 %v856, %v3491
      %v3493 = vpop.f32.mrf.mxu0
      %v3494 = vadd.f32 %v860, %v3493
      %3495 = vmatprep.mubr.bf16.mxu0 %v1309
      %3496 = vmatmul.mubr.bf16.gmra.mxu0 %v1308
      %v3497 = vpop.f32.mrf.mxu0
      %v3498 = vadd.f32 %v856, %v3497
      %v3499 = vpop.f32.mrf.mxu0
      %v3500 = vadd.f32 %v860, %v3499
      %v3501 = vpop.f32.mrf.mxu0
      %v3502 = vadd.f32 %v856, %v3501
      %v3503 = vpop.f32.mrf.mxu0
      %v3504 = vadd.f32 %v860, %v3503
      %3505 = vmatprep.mubr.bf16.mxu0 %v1316
      %3506 = vmatmul.mubr.bf16.gmra.mxu0 %v1315
      %v3507 = vpop.f32.mrf.mxu0
      %v3508 = vadd.f32 %v856, %v3507
      %v3509 = vpop.f32.mrf.mxu0
      %v3510 = vadd.f32 %v860, %v3509
      %v3511 = vpop.f32.mrf.mxu0
      %v3512 = vadd.f32 %v856, %v3511
      %v3513 = vpop.f32.mrf.mxu0
      %v3514 = vadd.f32 %v860, %v3513
      %3515 = vmatprep.mubr.bf16.mxu0 %v1323
      %3516 = vmatmul.mubr.bf16.gmra.mxu0 %v1322
      %v3517 = vpop.f32.mrf.mxu0
      %v3518 = vadd.f32 %v856, %v3517
      %v3519 = vpop.f32.mrf.mxu0
      %v3520 = vadd.f32 %v860, %v3519
      %v3521 = vpop.f32.mrf.mxu0
      %v3522 = vadd.f32 %v856, %v3521
      %v3523 = vpop.f32.mrf.mxu0
      %v3524 = vadd.f32 %v860, %v3523
      %3525 = vdwg.mxu0
      %3526 = vmatprep.subr.bf16.mxu0 %v2208
      %3527 = vmatpush1.bf16.msra.mxu0 %v2207
      %3528 = vmatprep.subr.bf16.mxu0 %v2204
      %3529 = vmatpush1.bf16.msra.mxu0 %v2203
      %3530 = vmatprep.subr.bf16.mxu0 %v2200
      %3531 = vmatpush1.bf16.msra.mxu0 %v2199
      %3532 = vmatprep.subr.bf16.mxu0 %v2196
      %3533 = vmatpush1.bf16.msra.mxu0 %v2195
      %3534 = vmatprep.subr.bf16.mxu0 %v2192
      %3535 = vmatpush1.bf16.msra.mxu0 %v2191
      %3536 = vmatprep.subr.bf16.mxu0 %v2188
      %3537 = vmatpush1.bf16.msra.mxu0 %v2187
      %3538 = vmatprep.subr.bf16.mxu0 %v2184
      %3539 = vmatpush1.bf16.msra.mxu0 %v2183
      %3540 = vmatprep.subr.bf16.mxu0 %v2180
      %3541 = vmatpush1.bf16.msra.mxu0 %v2179
      %3542 = vmatprep.subr.bf16.mxu0 %v2240
      %3543 = vmatpush2.bf16.msra.mxu0 %v2239
      %3544 = vmatprep.subr.bf16.mxu0 %v2236
      %3545 = vmatpush2.bf16.msra.mxu0 %v2235
      %3546 = vmatprep.subr.bf16.mxu0 %v2232
      %3547 = vmatpush2.bf16.msra.mxu0 %v2231
      %3548 = vmatprep.subr.bf16.mxu0 %v2228
      %3549 = vmatpush2.bf16.msra.mxu0 %v2227
      %3550 = vmatprep.subr.bf16.mxu0 %v2224
      %3551 = vmatpush2.bf16.msra.mxu0 %v2223
      %3552 = vmatprep.subr.bf16.mxu0 %v2220
      %3553 = vmatpush2.bf16.msra.mxu0 %v2219
      %3554 = vmatprep.subr.bf16.mxu0 %v2216
      %3555 = vmatpush2.bf16.msra.mxu0 %v2215
      %3556 = vmatprep.subr.bf16.mxu0 %v2212
      %3557 = vmatpush2.bf16.msra.mxu0 %v2211
      %3558 = vmatprep.mubr.bf16.mxu0 %v1220
      %3559 = vmatmul.mubr.bf16.gmra.mxu0 %v1219
      %v3560 = vpop.f32.mrf.mxu0
      %v3561 = vadd.f32 %v3368, %v3560
      %v3562 = vpop.f32.mrf.mxu0
      %v3563 = vadd.f32 %v3370, %v3562
      %v3564 = vpop.f32.mrf.mxu0
      %v3565 = vadd.f32 %v3372, %v3564
      %v3566 = vpop.f32.mrf.mxu0
      %v3567 = vadd.f32 %v3374, %v3566
      %3568 = vmatprep.mubr.bf16.mxu0 %v1227
      %3569 = vmatmul.mubr.bf16.gmra.mxu0 %v1226
      %v3570 = vpop.f32.mrf.mxu0
      %v3571 = vadd.f32 %v3378, %v3570
      %v3572 = vpop.f32.mrf.mxu0
      %v3573 = vadd.f32 %v3380, %v3572
      %v3574 = vpop.f32.mrf.mxu0
      %v3575 = vadd.f32 %v3382, %v3574
      %v3576 = vpop.f32.mrf.mxu0
      %v3577 = vadd.f32 %v3384, %v3576
      %3578 = vmatprep.mubr.bf16.mxu0 %v1234
      %3579 = vmatmul.mubr.bf16.gmra.mxu0 %v1233
      %v3580 = vpop.f32.mrf.mxu0
      %v3581 = vadd.f32 %v3388, %v3580
      %v3582 = vpop.f32.mrf.mxu0
      %v3583 = vadd.f32 %v3390, %v3582
      %v3584 = vpop.f32.mrf.mxu0
      %v3585 = vadd.f32 %v3392, %v3584
      %v3586 = vpop.f32.mrf.mxu0
      %v3587 = vadd.f32 %v3394, %v3586
      %3588 = vmatprep.mubr.bf16.mxu0 %v1241
      %3589 = vmatmul.mubr.bf16.gmra.mxu0 %v1240
      %v3590 = vpop.f32.mrf.mxu0
      %v3591 = vadd.f32 %v3398, %v3590
      %v3592 = vpop.f32.mrf.mxu0
      %v3593 = vadd.f32 %v3400, %v3592
      %v3594 = vpop.f32.mrf.mxu0
      %v3595 = vadd.f32 %v3402, %v3594
      %v3596 = vpop.f32.mrf.mxu0
      %v3597 = vadd.f32 %v3404, %v3596
      %3598 = vmatprep.mubr.bf16.mxu0 %v1248
      %3599 = vmatmul.mubr.bf16.gmra.mxu0 %v1247
      %v3600 = vpop.f32.mrf.mxu0
      %v3601 = vadd.f32 %v3408, %v3600
      %v3602 = vpop.f32.mrf.mxu0
      %v3603 = vadd.f32 %v3410, %v3602
      %v3604 = vpop.f32.mrf.mxu0
      %v3605 = vadd.f32 %v3412, %v3604
      %v3606 = vpop.f32.mrf.mxu0
      %v3607 = vadd.f32 %v3414, %v3606
      %3608 = vmatprep.mubr.bf16.mxu0 %v1255
      %3609 = vmatmul.mubr.bf16.gmra.mxu0 %v1254
      %v3610 = vpop.f32.mrf.mxu0
      %v3611 = vadd.f32 %v3418, %v3610
      %v3612 = vpop.f32.mrf.mxu0
      %v3613 = vadd.f32 %v3420, %v3612
      %v3614 = vpop.f32.mrf.mxu0
      %v3615 = vadd.f32 %v3422, %v3614
      %v3616 = vpop.f32.mrf.mxu0
      %v3617 = vadd.f32 %v3424, %v3616
      %3618 = vmatprep.mubr.bf16.mxu0 %v1262
      %3619 = vmatmul.mubr.bf16.gmra.mxu0 %v1261
      %v3620 = vpop.f32.mrf.mxu0
      %v3621 = vadd.f32 %v3428, %v3620
      %v3622 = vpop.f32.mrf.mxu0
      %v3623 = vadd.f32 %v3430, %v3622
      %v3624 = vpop.f32.mrf.mxu0
      %v3625 = vadd.f32 %v3432, %v3624
      %v3626 = vpop.f32.mrf.mxu0
      %v3627 = vadd.f32 %v3434, %v3626
      %3628 = vmatprep.mubr.bf16.mxu0 %v1269
      %3629 = vmatmul.mubr.bf16.gmra.mxu0 %v1268
      %v3630 = vpop.f32.mrf.mxu0
      %v3631 = vadd.f32 %v3438, %v3630
      %v3632 = vpop.f32.mrf.mxu0
      %v3633 = vadd.f32 %v3440, %v3632
      %v3634 = vpop.f32.mrf.mxu0
      %v3635 = vadd.f32 %v3442, %v3634
      %v3636 = vpop.f32.mrf.mxu0
      %v3637 = vadd.f32 %v3444, %v3636
      %3638 = vmatprep.mubr.bf16.mxu0 %v1276
      %3639 = vmatmul.mubr.bf16.gmra.mxu0 %v1275
      %v3640 = vpop.f32.mrf.mxu0
      %v3641 = vadd.f32 %v3448, %v3640
      %v3642 = vpop.f32.mrf.mxu0
      %v3643 = vadd.f32 %v3450, %v3642
      %v3644 = vpop.f32.mrf.mxu0
      %v3645 = vadd.f32 %v3452, %v3644
      %v3646 = vpop.f32.mrf.mxu0
      %v3647 = vadd.f32 %v3454, %v3646
      %3648 = vmatprep.mubr.bf16.mxu0 %v1283
      %3649 = vmatmul.mubr.bf16.gmra.mxu0 %v1282
      %v3650 = vpop.f32.mrf.mxu0
      %v3651 = vadd.f32 %v3458, %v3650
      %v3652 = vpop.f32.mrf.mxu0
      %v3653 = vadd.f32 %v3460, %v3652
      %v3654 = vpop.f32.mrf.mxu0
      %v3655 = vadd.f32 %v3462, %v3654
      %v3656 = vpop.f32.mrf.mxu0
      %v3657 = vadd.f32 %v3464, %v3656
      %3658 = vmatprep.mubr.bf16.mxu0 %v1290
      %3659 = vmatmul.mubr.bf16.gmra.mxu0 %v1289
      %v3660 = vpop.f32.mrf.mxu0
      %v3661 = vadd.f32 %v3468, %v3660
      %v3662 = vpop.f32.mrf.mxu0
      %v3663 = vadd.f32 %v3470, %v3662
      %v3664 = vpop.f32.mrf.mxu0
      %v3665 = vadd.f32 %v3472, %v3664
      %v3666 = vpop.f32.mrf.mxu0
      %v3667 = vadd.f32 %v3474, %v3666
      %3668 = vmatprep.mubr.bf16.mxu0 %v1297
      %3669 = vmatmul.mubr.bf16.gmra.mxu0 %v1296
      %v3670 = vpop.f32.mrf.mxu0
      %v3671 = vadd.f32 %v3478, %v3670
      %v3672 = vpop.f32.mrf.mxu0
      %v3673 = vadd.f32 %v3480, %v3672
      %v3674 = vpop.f32.mrf.mxu0
      %v3675 = vadd.f32 %v3482, %v3674
      %v3676 = vpop.f32.mrf.mxu0
      %v3677 = vadd.f32 %v3484, %v3676
      %3678 = vmatprep.mubr.bf16.mxu0 %v1304
      %3679 = vmatmul.mubr.bf16.gmra.mxu0 %v1303
      %v3680 = vpop.f32.mrf.mxu0
      %v3681 = vadd.f32 %v3488, %v3680
      %v3682 = vpop.f32.mrf.mxu0
      %v3683 = vadd.f32 %v3490, %v3682
      %v3684 = vpop.f32.mrf.mxu0
      %v3685 = vadd.f32 %v3492, %v3684
      %v3686 = vpop.f32.mrf.mxu0
      %v3687 = vadd.f32 %v3494, %v3686
      %3688 = vmatprep.mubr.bf16.mxu0 %v1311
      %3689 = vmatmul.mubr.bf16.gmra.mxu0 %v1310
      %v3690 = vpop.f32.mrf.mxu0
      %v3691 = vadd.f32 %v3498, %v3690
      %v3692 = vpop.f32.mrf.mxu0
      %v3693 = vadd.f32 %v3500, %v3692
      %v3694 = vpop.f32.mrf.mxu0
      %v3695 = vadd.f32 %v3502, %v3694
      %v3696 = vpop.f32.mrf.mxu0
      %v3697 = vadd.f32 %v3504, %v3696
      %3698 = vmatprep.mubr.bf16.mxu0 %v1318
      %3699 = vmatmul.mubr.bf16.gmra.mxu0 %v1317
      %v3700 = vpop.f32.mrf.mxu0
      %v3701 = vadd.f32 %v3508, %v3700
      %v3702 = vpop.f32.mrf.mxu0
      %v3703 = vadd.f32 %v3510, %v3702
      %v3704 = vpop.f32.mrf.mxu0
      %v3705 = vadd.f32 %v3512, %v3704
      %v3706 = vpop.f32.mrf.mxu0
      %v3707 = vadd.f32 %v3514, %v3706
      %3708 = vmatprep.mubr.bf16.mxu0 %v1325
      %3709 = vmatmul.mubr.bf16.gmra.mxu0 %v1324
      %v3710 = vpop.f32.mrf.mxu0
      %v3711 = vadd.f32 %v3518, %v3710
      %v3712 = vpop.f32.mrf.mxu0
      %v3713 = vadd.f32 %v3520, %v3712
      %v3714 = vpop.f32.mrf.mxu0
      %v3715 = vadd.f32 %v3522, %v3714
      %v3716 = vpop.f32.mrf.mxu0
      %v3717 = vadd.f32 %v3524, %v3716
      %3718 = vdwg.mxu0
      %3719 = vmatprep.subr.bf16.mxu0 %v2272
      %3720 = vmatpush1.bf16.msra.mxu0 %v2271
      %3721 = vmatprep.subr.bf16.mxu0 %v2268
      %3722 = vmatpush1.bf16.msra.mxu0 %v2267
      %3723 = vmatprep.subr.bf16.mxu0 %v2264
      %3724 = vmatpush1.bf16.msra.mxu0 %v2263
      %3725 = vmatprep.subr.bf16.mxu0 %v2260
      %3726 = vmatpush1.bf16.msra.mxu0 %v2259
      %3727 = vmatprep.subr.bf16.mxu0 %v2256
      %3728 = vmatpush1.bf16.msra.mxu0 %v2255
      %3729 = vmatprep.subr.bf16.mxu0 %v2252
      %3730 = vmatpush1.bf16.msra.mxu0 %v2251
      %3731 = vmatprep.subr.bf16.mxu0 %v2248
      %3732 = vmatpush1.bf16.msra.mxu0 %v2247
      %3733 = vmatprep.subr.bf16.mxu0 %v2244
      %3734 = vmatpush1.bf16.msra.mxu0 %v2243
      %3735 = vmatprep.subr.bf16.mxu0 %v2304
      %3736 = vmatpush2.bf16.msra.mxu0 %v2303
      %3737 = vmatprep.subr.bf16.mxu0 %v2300
      %3738 = vmatpush2.bf16.msra.mxu0 %v2299
      %3739 = vmatprep.subr.bf16.mxu0 %v2296
      %3740 = vmatpush2.bf16.msra.mxu0 %v2295
      %3741 = vmatprep.subr.bf16.mxu0 %v2292
      %3742 = vmatpush2.bf16.msra.mxu0 %v2291
      %3743 = vmatprep.subr.bf16.mxu0 %v2288
      %3744 = vmatpush2.bf16.msra.mxu0 %v2287
      %3745 = vmatprep.subr.bf16.mxu0 %v2284
      %3746 = vmatpush2.bf16.msra.mxu0 %v2283
      %3747 = vmatprep.subr.bf16.mxu0 %v2280
      %3748 = vmatpush2.bf16.msra.mxu0 %v2279
      %3749 = vmatprep.subr.bf16.mxu0 %v2276
      %3750 = vmatpush2.bf16.msra.mxu0 %v2275
      %3751 = vmatprep.mubr.bf16.mxu0 %v1222
      %3752 = vmatmul.mubr.bf16.gmra.mxu0 %v1221
      %v3753 = vpop.f32.mrf.mxu0
      %v3754 = vadd.f32 %v3561, %v3753
      %v3755 = vpop.f32.mrf.mxu0
      %v3756 = vadd.f32 %v3563, %v3755
      %v3757 = vpop.f32.mrf.mxu0
      %v3758 = vadd.f32 %v3565, %v3757
      %v3759 = vpop.f32.mrf.mxu0
      %v3760 = vadd.f32 %v3567, %v3759
      %3761 = vmatprep.mubr.bf16.mxu0 %v1229
      %3762 = vmatmul.mubr.bf16.gmra.mxu0 %v1228
      %v3763 = vpop.f32.mrf.mxu0
      %v3764 = vadd.f32 %v3571, %v3763
      %v3765 = vpop.f32.mrf.mxu0
      %v3766 = vadd.f32 %v3573, %v3765
      %v3767 = vpop.f32.mrf.mxu0
      %v3768 = vadd.f32 %v3575, %v3767
      %v3769 = vpop.f32.mrf.mxu0
      %v3770 = vadd.f32 %v3577, %v3769
      %3771 = vmatprep.mubr.bf16.mxu0 %v1236
      %3772 = vmatmul.mubr.bf16.gmra.mxu0 %v1235
      %v3773 = vpop.f32.mrf.mxu0
      %v3774 = vadd.f32 %v3581, %v3773
      %v3775 = vpop.f32.mrf.mxu0
      %v3776 = vadd.f32 %v3583, %v3775
      %v3777 = vpop.f32.mrf.mxu0
      %v3778 = vadd.f32 %v3585, %v3777
      %v3779 = vpop.f32.mrf.mxu0
      %v3780 = vadd.f32 %v3587, %v3779
      %3781 = vmatprep.mubr.bf16.mxu0 %v1243
      %3782 = vmatmul.mubr.bf16.gmra.mxu0 %v1242
      %v3783 = vpop.f32.mrf.mxu0
      %v3784 = vadd.f32 %v3591, %v3783
      %v3785 = vpop.f32.mrf.mxu0
      %v3786 = vadd.f32 %v3593, %v3785
      %v3787 = vpop.f32.mrf.mxu0
      %v3788 = vadd.f32 %v3595, %v3787
      %v3789 = vpop.f32.mrf.mxu0
      %v3790 = vadd.f32 %v3597, %v3789
      %3791 = vmatprep.mubr.bf16.mxu0 %v1250
      %3792 = vmatmul.mubr.bf16.gmra.mxu0 %v1249
      %v3793 = vpop.f32.mrf.mxu0
      %v3794 = vadd.f32 %v3601, %v3793
      %v3795 = vpop.f32.mrf.mxu0
      %v3796 = vadd.f32 %v3603, %v3795
      %v3797 = vpop.f32.mrf.mxu0
      %v3798 = vadd.f32 %v3605, %v3797
      %v3799 = vpop.f32.mrf.mxu0
      %v3800 = vadd.f32 %v3607, %v3799
      %3801 = vmatprep.mubr.bf16.mxu0 %v1257
      %3802 = vmatmul.mubr.bf16.gmra.mxu0 %v1256
      %v3803 = vpop.f32.mrf.mxu0
      %v3804 = vadd.f32 %v3611, %v3803
      %v3805 = vpop.f32.mrf.mxu0
      %v3806 = vadd.f32 %v3613, %v3805
      %v3807 = vpop.f32.mrf.mxu0
      %v3808 = vadd.f32 %v3615, %v3807
      %v3809 = vpop.f32.mrf.mxu0
      %v3810 = vadd.f32 %v3617, %v3809
      %3811 = vmatprep.mubr.bf16.mxu0 %v1264
      %3812 = vmatmul.mubr.bf16.gmra.mxu0 %v1263
      %v3813 = vpop.f32.mrf.mxu0
      %v3814 = vadd.f32 %v3621, %v3813
      %v3815 = vpop.f32.mrf.mxu0
      %v3816 = vadd.f32 %v3623, %v3815
      %v3817 = vpop.f32.mrf.mxu0
      %v3818 = vadd.f32 %v3625, %v3817
      %v3819 = vpop.f32.mrf.mxu0
      %v3820 = vadd.f32 %v3627, %v3819
      %3821 = vmatprep.mubr.bf16.mxu0 %v1271
      %3822 = vmatmul.mubr.bf16.gmra.mxu0 %v1270
      %v3823 = vpop.f32.mrf.mxu0
      %v3824 = vadd.f32 %v3631, %v3823
      %v3825 = vpop.f32.mrf.mxu0
      %v3826 = vadd.f32 %v3633, %v3825
      %v3827 = vpop.f32.mrf.mxu0
      %v3828 = vadd.f32 %v3635, %v3827
      %v3829 = vpop.f32.mrf.mxu0
      %v3830 = vadd.f32 %v3637, %v3829
      %3831 = vmatprep.mubr.bf16.mxu0 %v1278
      %3832 = vmatmul.mubr.bf16.gmra.mxu0 %v1277
      %v3833 = vpop.f32.mrf.mxu0
      %v3834 = vadd.f32 %v3641, %v3833
      %v3835 = vpop.f32.mrf.mxu0
      %v3836 = vadd.f32 %v3643, %v3835
      %v3837 = vpop.f32.mrf.mxu0
      %v3838 = vadd.f32 %v3645, %v3837
      %v3839 = vpop.f32.mrf.mxu0
      %v3840 = vadd.f32 %v3647, %v3839
      %3841 = vmatprep.mubr.bf16.mxu0 %v1285
      %3842 = vmatmul.mubr.bf16.gmra.mxu0 %v1284
      %v3843 = vpop.f32.mrf.mxu0
      %v3844 = vadd.f32 %v3651, %v3843
      %v3845 = vpop.f32.mrf.mxu0
      %v3846 = vadd.f32 %v3653, %v3845
      %v3847 = vpop.f32.mrf.mxu0
      %v3848 = vadd.f32 %v3655, %v3847
      %v3849 = vpop.f32.mrf.mxu0
      %v3850 = vadd.f32 %v3657, %v3849
      %3851 = vmatprep.mubr.bf16.mxu0 %v1292
      %3852 = vmatmul.mubr.bf16.gmra.mxu0 %v1291
      %v3853 = vpop.f32.mrf.mxu0
      %v3854 = vadd.f32 %v3661, %v3853
      %v3855 = vpop.f32.mrf.mxu0
      %v3856 = vadd.f32 %v3663, %v3855
      %v3857 = vpop.f32.mrf.mxu0
      %v3858 = vadd.f32 %v3665, %v3857
      %v3859 = vpop.f32.mrf.mxu0
      %v3860 = vadd.f32 %v3667, %v3859
      %3861 = vmatprep.mubr.bf16.mxu0 %v1299
      %3862 = vmatmul.mubr.bf16.gmra.mxu0 %v1298
      %v3863 = vpop.f32.mrf.mxu0
      %v3864 = vadd.f32 %v3671, %v3863
      %v3865 = vpop.f32.mrf.mxu0
      %v3866 = vadd.f32 %v3673, %v3865
      %v3867 = vpop.f32.mrf.mxu0
      %v3868 = vadd.f32 %v3675, %v3867
      %v3869 = vpop.f32.mrf.mxu0
      %v3870 = vadd.f32 %v3677, %v3869
      %3871 = vmatprep.mubr.bf16.mxu0 %v1306
      %3872 = vmatmul.mubr.bf16.gmra.mxu0 %v1305
      %v3873 = vpop.f32.mrf.mxu0
      %v3874 = vadd.f32 %v3681, %v3873
      %v3875 = vpop.f32.mrf.mxu0
      %v3876 = vadd.f32 %v3683, %v3875
      %v3877 = vpop.f32.mrf.mxu0
      %v3878 = vadd.f32 %v3685, %v3877
      %v3879 = vpop.f32.mrf.mxu0
      %v3880 = vadd.f32 %v3687, %v3879
      %3881 = vmatprep.mubr.bf16.mxu0 %v1313
      %3882 = vmatmul.mubr.bf16.gmra.mxu0 %v1312
      %v3883 = vpop.f32.mrf.mxu0
      %v3884 = vadd.f32 %v3691, %v3883
      %v3885 = vpop.f32.mrf.mxu0
      %v3886 = vadd.f32 %v3693, %v3885
      %v3887 = vpop.f32.mrf.mxu0
      %v3888 = vadd.f32 %v3695, %v3887
      %v3889 = vpop.f32.mrf.mxu0
      %v3890 = vadd.f32 %v3697, %v3889
      %3891 = vmatprep.mubr.bf16.mxu0 %v1320
      %3892 = vmatmul.mubr.bf16.gmra.mxu0 %v1319
      %v3893 = vpop.f32.mrf.mxu0
      %v3894 = vadd.f32 %v3701, %v3893
      %v3895 = vpop.f32.mrf.mxu0
      %v3896 = vadd.f32 %v3703, %v3895
      %v3897 = vpop.f32.mrf.mxu0
      %v3898 = vadd.f32 %v3705, %v3897
      %v3899 = vpop.f32.mrf.mxu0
      %v3900 = vadd.f32 %v3707, %v3899
      %3901 = vmatprep.mubr.bf16.mxu0 %v1327
      %3902 = vmatmul.mubr.bf16.gmra.mxu0 %v1326
      %v3903 = vpop.f32.mrf.mxu0
      %v3904 = vadd.f32 %v3711, %v3903
      %v3905 = vpop.f32.mrf.mxu0
      %v3906 = vadd.f32 %v3713, %v3905
      %v3907 = vpop.f32.mrf.mxu0
      %v3908 = vadd.f32 %v3715, %v3907
      %v3909 = vpop.f32.mrf.mxu0
      %v3910 = vadd.f32 %v3717, %v3909
      %3911 = vdwg.mxu0
      %3912 = vmatprep.subr.bf16.mxu0 %v2336
      %3913 = vmatpush1.bf16.msra.mxu0 %v2335
      %3914 = vmatprep.subr.bf16.mxu0 %v2332
      %3915 = vmatpush1.bf16.msra.mxu0 %v2331
      %3916 = vmatprep.subr.bf16.mxu0 %v2328
      %3917 = vmatpush1.bf16.msra.mxu0 %v2327
      %3918 = vmatprep.subr.bf16.mxu0 %v2324
      %3919 = vmatpush1.bf16.msra.mxu0 %v2323
      %3920 = vmatprep.subr.bf16.mxu0 %v2320
      %3921 = vmatpush1.bf16.msra.mxu0 %v2319
      %3922 = vmatprep.subr.bf16.mxu0 %v2316
      %3923 = vmatpush1.bf16.msra.mxu0 %v2315
      %3924 = vmatprep.subr.bf16.mxu0 %v2312
      %3925 = vmatpush1.bf16.msra.mxu0 %v2311
      %3926 = vmatprep.subr.bf16.mxu0 %v2308
      %3927 = vmatpush1.bf16.msra.mxu0 %v2307
      %3928 = vmatprep.subr.bf16.mxu0 0
      %3929 = vmatpush2.bf16.msra.mxu0 0
      %3930 = vmatprep.subr.bf16.mxu0 0
      %3931 = vmatpush2.bf16.msra.mxu0 0
      %3932 = vmatprep.subr.bf16.mxu0 0
      %3933 = vmatpush2.bf16.msra.mxu0 0
      %3934 = vmatprep.subr.bf16.mxu0 0
      %3935 = vmatpush2.bf16.msra.mxu0 0
      %3936 = vmatprep.subr.bf16.mxu0 0
      %3937 = vmatpush2.bf16.msra.mxu0 0
      %3938 = vmatprep.subr.bf16.mxu0 0
      %3939 = vmatpush2.bf16.msra.mxu0 0
      %3940 = vmatprep.subr.bf16.mxu0 0
      %3941 = vmatpush2.bf16.msra.mxu0 0
      %3942 = vmatprep.subr.bf16.mxu0 0
      %3943 = vmatpush2.bf16.msra.mxu0 0
      %3944 = vmatprep.mubr.bf16.mxu0 0
      %3945 = vmatmul.mubr.bf16.gmra.mxu0 %v1223
      %v3946 = vpop.f32.mrf.mxu0
      %v3947 = vadd.f32 %v3754, %v3946
      %v3948 = vpop.f32.mrf.mxu0
      %v3949 = vadd.f32 %v3756, %v3948
      %v3950 = vpop.f32.mrf.mxu0
      %v3951 = vadd.f32 %v3758, %v3950
      %v3952 = vpop.f32.mrf.mxu0
      %v3953 = vadd.f32 %v3760, %v3952
      %3954 = vmatprep.mubr.bf16.mxu0 0
      %3955 = vmatmul.mubr.bf16.gmra.mxu0 %v1230
      %v3956 = vpop.f32.mrf.mxu0
      %v3957 = vadd.f32 %v3764, %v3956
      %v3958 = vpop.f32.mrf.mxu0
      %v3959 = vadd.f32 %v3766, %v3958
      %v3960 = vpop.f32.mrf.mxu0
      %v3961 = vadd.f32 %v3768, %v3960
      %v3962 = vpop.f32.mrf.mxu0
      %v3963 = vadd.f32 %v3770, %v3962
      %3964 = vmatprep.mubr.bf16.mxu0 0
      %3965 = vmatmul.mubr.bf16.gmra.mxu0 %v1237
      %v3966 = vpop.f32.mrf.mxu0
      %v3967 = vadd.f32 %v3774, %v3966
      %v3968 = vpop.f32.mrf.mxu0
      %v3969 = vadd.f32 %v3776, %v3968
      %v3970 = vpop.f32.mrf.mxu0
      %v3971 = vadd.f32 %v3778, %v3970
      %v3972 = vpop.f32.mrf.mxu0
      %v3973 = vadd.f32 %v3780, %v3972
      %3974 = vmatprep.mubr.bf16.mxu0 0
      %3975 = vmatmul.mubr.bf16.gmra.mxu0 %v1244
      %v3976 = vpop.f32.mrf.mxu0
      %v3977 = vadd.f32 %v3784, %v3976
      %v3978 = vpop.f32.mrf.mxu0
      %v3979 = vadd.f32 %v3786, %v3978
      %v3980 = vpop.f32.mrf.mxu0
      %v3981 = vadd.f32 %v3788, %v3980
      %v3982 = vpop.f32.mrf.mxu0
      %v3983 = vadd.f32 %v3790, %v3982
      %3984 = vmatprep.mubr.bf16.mxu0 0
      %3985 = vmatmul.mubr.bf16.gmra.mxu0 %v1251
      %v3986 = vpop.f32.mrf.mxu0
      %v3987 = vadd.f32 %v3794, %v3986
      %v3988 = vpop.f32.mrf.mxu0
      %v3989 = vadd.f32 %v3796, %v3988
      %v3990 = vpop.f32.mrf.mxu0
      %v3991 = vadd.f32 %v3798, %v3990
      %v3992 = vpop.f32.mrf.mxu0
      %v3993 = vadd.f32 %v3800, %v3992
      %3994 = vmatprep.mubr.bf16.mxu0 0
      %3995 = vmatmul.mubr.bf16.gmra.mxu0 %v1258
      %v3996 = vpop.f32.mrf.mxu0
      %v3997 = vadd.f32 %v3804, %v3996
      %v3998 = vpop.f32.mrf.mxu0
      %v3999 = vadd.f32 %v3806, %v3998
      %v4000 = vpop.f32.mrf.mxu0
      %v4001 = vadd.f32 %v3808, %v4000
      %v4002 = vpop.f32.mrf.mxu0
      %v4003 = vadd.f32 %v3810, %v4002
      %4004 = vmatprep.mubr.bf16.mxu0 0
      %4005 = vmatmul.mubr.bf16.gmra.mxu0 %v1265
      %v4006 = vpop.f32.mrf.mxu0
      %v4007 = vadd.f32 %v3814, %v4006
      %v4008 = vpop.f32.mrf.mxu0
      %v4009 = vadd.f32 %v3816, %v4008
      %v4010 = vpop.f32.mrf.mxu0
      %v4011 = vadd.f32 %v3818, %v4010
      %v4012 = vpop.f32.mrf.mxu0
      %v4013 = vadd.f32 %v3820, %v4012
      %4014 = vmatprep.mubr.bf16.mxu0 0
      %4015 = vmatmul.mubr.bf16.gmra.mxu0 %v1272
      %v4016 = vpop.f32.mrf.mxu0
      %v4017 = vadd.f32 %v3824, %v4016
      %v4018 = vpop.f32.mrf.mxu0
      %v4019 = vadd.f32 %v3826, %v4018
      %v4020 = vpop.f32.mrf.mxu0
      %v4021 = vadd.f32 %v3828, %v4020
      %v4022 = vpop.f32.mrf.mxu0
      %v4023 = vadd.f32 %v3830, %v4022
      %4024 = vmatprep.mubr.bf16.mxu0 0
      %4025 = vmatmul.mubr.bf16.gmra.mxu0 %v1279
      %v4026 = vpop.f32.mrf.mxu0
      %v4027 = vadd.f32 %v3834, %v4026
      %v4028 = vpop.f32.mrf.mxu0
      %v4029 = vadd.f32 %v3836, %v4028
      %v4030 = vpop.f32.mrf.mxu0
      %v4031 = vadd.f32 %v3838, %v4030
      %v4032 = vpop.f32.mrf.mxu0
      %v4033 = vadd.f32 %v3840, %v4032
      %4034 = vmatprep.mubr.bf16.mxu0 0
      %4035 = vmatmul.mubr.bf16.gmra.mxu0 %v1286
      %v4036 = vpop.f32.mrf.mxu0
      %v4037 = vadd.f32 %v3844, %v4036
      %v4038 = vpop.f32.mrf.mxu0
      %v4039 = vadd.f32 %v3846, %v4038
      %v4040 = vpop.f32.mrf.mxu0
      %v4041 = vadd.f32 %v3848, %v4040
      %v4042 = vpop.f32.mrf.mxu0
      %v4043 = vadd.f32 %v3850, %v4042
      %4044 = vmatprep.mubr.bf16.mxu0 0
      %4045 = vmatmul.mubr.bf16.gmra.mxu0 %v1293
      %v4046 = vpop.f32.mrf.mxu0
      %v4047 = vadd.f32 %v3854, %v4046
      %v4048 = vpop.f32.mrf.mxu0
      %v4049 = vadd.f32 %v3856, %v4048
      %v4050 = vpop.f32.mrf.mxu0
      %v4051 = vadd.f32 %v3858, %v4050
      %v4052 = vpop.f32.mrf.mxu0
      %v4053 = vadd.f32 %v3860, %v4052
      %4054 = vmatprep.mubr.bf16.mxu0 0
      %4055 = vmatmul.mubr.bf16.gmra.mxu0 %v1300
      %v4056 = vpop.f32.mrf.mxu0
      %v4057 = vadd.f32 %v3864, %v4056
      %v4058 = vpop.f32.mrf.mxu0
      %v4059 = vadd.f32 %v3866, %v4058
      %v4060 = vpop.f32.mrf.mxu0
      %v4061 = vadd.f32 %v3868, %v4060
      %v4062 = vpop.f32.mrf.mxu0
      %v4063 = vadd.f32 %v3870, %v4062
      %4064 = vmatprep.mubr.bf16.mxu0 0
      %4065 = vmatmul.mubr.bf16.gmra.mxu0 %v1307
      %v4066 = vpop.f32.mrf.mxu0
      %v4067 = vadd.f32 %v3874, %v4066
      %v4068 = vpop.f32.mrf.mxu0
      %v4069 = vadd.f32 %v3876, %v4068
      %v4070 = vpop.f32.mrf.mxu0
      %v4071 = vadd.f32 %v3878, %v4070
      %v4072 = vpop.f32.mrf.mxu0
      %v4073 = vadd.f32 %v3880, %v4072
      %4074 = vmatprep.mubr.bf16.mxu0 0
      %4075 = vmatmul.mubr.bf16.gmra.mxu0 %v1314
      %v4076 = vpop.f32.mrf.mxu0
      %v4077 = vadd.f32 %v3884, %v4076
      %v4078 = vpop.f32.mrf.mxu0
      %v4079 = vadd.f32 %v3886, %v4078
      %v4080 = vpop.f32.mrf.mxu0
      %v4081 = vadd.f32 %v3888, %v4080
      %v4082 = vpop.f32.mrf.mxu0
      %v4083 = vadd.f32 %v3890, %v4082
      %4084 = vmatprep.mubr.bf16.mxu0 0
      %4085 = vmatmul.mubr.bf16.gmra.mxu0 %v1321
      %v4086 = vpop.f32.mrf.mxu0
      %v4087 = vadd.f32 %v3894, %v4086
      %v4088 = vpop.f32.mrf.mxu0
      %v4089 = vadd.f32 %v3896, %v4088
      %v4090 = vpop.f32.mrf.mxu0
      %v4091 = vadd.f32 %v3898, %v4090
      %v4092 = vpop.f32.mrf.mxu0
      %v4093 = vadd.f32 %v3900, %v4092
      %4094 = vmatprep.mubr.bf16.mxu0 0
      %4095 = vmatmul.mubr.bf16.gmra.mxu0 %v1328
      %v4096 = vpop.f32.mrf.mxu0
      %v4097 = vadd.f32 %v3904, %v4096
      %v4098 = vpop.f32.mrf.mxu0
      %v4099 = vadd.f32 %v3906, %v4098
      %v4100 = vpop.f32.mrf.mxu0
      %v4101 = vadd.f32 %v3908, %v4100
      %v4102 = vpop.f32.mrf.mxu0
      %v4103 = vadd.f32 %v3910, %v4102
      %4104 = vdwg.mxu0
      %v4105 = vmax.f32 %v3175, 0.0
      %v4106 = vmax.f32 %v3177, 0.0
      %v4107 = vmax.f32 %v3947, 0.0
      %v4108 = vmax.f32 %v3949, 0.0
      %v4109 = vmax.f32 %v3179, 0.0
      %v4110 = vmax.f32 %v3181, 0.0
      %v4111 = vmax.f32 %v3951, 0.0
      %v4112 = vmax.f32 %v3953, 0.0
      %v4113 = vmax.f32 %v3185, 0.0
      %v4114 = vmax.f32 %v3187, 0.0
      %v4115 = vmax.f32 %v3957, 0.0
      %v4116 = vmax.f32 %v3959, 0.0
      %v4117 = vmax.f32 %v3189, 0.0
      %v4118 = vmax.f32 %v3191, 0.0
      %v4119 = vmax.f32 %v3961, 0.0
      %v4120 = vmax.f32 %v3963, 0.0
      %v4121 = vmax.f32 %v3195, 0.0
      %v4122 = vmax.f32 %v3197, 0.0
      %v4123 = vmax.f32 %v3967, 0.0
      %v4124 = vmax.f32 %v3969, 0.0
      %v4125 = vmax.f32 %v3199, 0.0
      %v4126 = vmax.f32 %v3201, 0.0
      %v4127 = vmax.f32 %v3971, 0.0
      %v4128 = vmax.f32 %v3973, 0.0
      %v4129 = vmax.f32 %v3205, 0.0
      %v4130 = vmax.f32 %v3207, 0.0
      %v4131 = vmax.f32 %v3977, 0.0
      %v4132 = vmax.f32 %v3979, 0.0
      %v4133 = vmax.f32 %v3209, 0.0
      %v4134 = vmax.f32 %v3211, 0.0
      %v4135 = vmax.f32 %v3981, 0.0
      %v4136 = vmax.f32 %v3983, 0.0
      %v4137 = vmax.f32 %v3215, 0.0
      %v4138 = vmax.f32 %v3217, 0.0
      %v4139 = vmax.f32 %v3987, 0.0
      %v4140 = vmax.f32 %v3989, 0.0
      %v4141 = vmax.f32 %v3219, 0.0
      %v4142 = vmax.f32 %v3221, 0.0
      %v4143 = vmax.f32 %v3991, 0.0
      %v4144 = vmax.f32 %v3993, 0.0
      %v4145 = vmax.f32 %v3225, 0.0
      %v4146 = vmax.f32 %v3227, 0.0
      %v4147 = vmax.f32 %v3997, 0.0
      %v4148 = vmax.f32 %v3999, 0.0
      %v4149 = vmax.f32 %v3229, 0.0
      %v4150 = vmax.f32 %v3231, 0.0
      %v4151 = vmax.f32 %v4001, 0.0
      %v4152 = vmax.f32 %v4003, 0.0
      %v4153 = vmax.f32 %v3235, 0.0
      %v4154 = vmax.f32 %v3237, 0.0
      %v4155 = vmax.f32 %v4007, 0.0
      %v4156 = vmax.f32 %v4009, 0.0
      %v4157 = vmax.f32 %v3239, 0.0
      %v4158 = vmax.f32 %v3241, 0.0
      %v4159 = vmax.f32 %v4011, 0.0
      %v4160 = vmax.f32 %v4013, 0.0
      %v4161 = vmax.f32 %v3245, 0.0
      %v4162 = vmax.f32 %v3247, 0.0
      %v4163 = vmax.f32 %v4017, 0.0
      %v4164 = vmax.f32 %v4019, 0.0
      %v4165 = vmax.f32 %v3249, 0.0
      %v4166 = vmax.f32 %v3251, 0.0
      %v4167 = vmax.f32 %v4021, 0.0
      %v4168 = vmax.f32 %v4023, 0.0
      %v4169 = vmax.f32 %v3255, 0.0
      %v4170 = vmax.f32 %v3257, 0.0
      %v4171 = vmax.f32 %v4027, 0.0
      %v4172 = vmax.f32 %v4029, 0.0
      %v4173 = vmax.f32 %v3259, 0.0
      %v4174 = vmax.f32 %v3261, 0.0
      %v4175 = vmax.f32 %v4031, 0.0
      %v4176 = vmax.f32 %v4033, 0.0
      %v4177 = vmax.f32 %v3265, 0.0
      %v4178 = vmax.f32 %v3267, 0.0
      %v4179 = vmax.f32 %v4037, 0.0
      %v4180 = vmax.f32 %v4039, 0.0
      %v4181 = vmax.f32 %v3269, 0.0
      %v4182 = vmax.f32 %v3271, 0.0
      %v4183 = vmax.f32 %v4041, 0.0
      %v4184 = vmax.f32 %v4043, 0.0
      %v4185 = vmax.f32 %v3275, 0.0
      %v4186 = vmax.f32 %v3277, 0.0
      %v4187 = vmax.f32 %v4047, 0.0
      %v4188 = vmax.f32 %v4049, 0.0
      %v4189 = vmax.f32 %v3279, 0.0
      %v4190 = vmax.f32 %v3281, 0.0
      %v4191 = vmax.f32 %v4051, 0.0
      %v4192 = vmax.f32 %v4053, 0.0
      %v4193 = vmax.f32 %v3285, 0.0
      %v4194 = vmax.f32 %v3287, 0.0
      %v4195 = vmax.f32 %v4057, 0.0
      %v4196 = vmax.f32 %v4059, 0.0
      %v4197 = vmax.f32 %v3289, 0.0
      %v4198 = vmax.f32 %v3291, 0.0
      %v4199 = vmax.f32 %v4061, 0.0
      %v4200 = vmax.f32 %v4063, 0.0
      %v4201 = vmax.f32 %v3295, 0.0
      %v4202 = vmax.f32 %v3297, 0.0
      %v4203 = vmax.f32 %v4067, 0.0
      %v4204 = vmax.f32 %v4069, 0.0
      %v4205 = vmax.f32 %v3299, 0.0
      %v4206 = vmax.f32 %v3301, 0.0
      %v4207 = vmax.f32 %v4071, 0.0
      %v4208 = vmax.f32 %v4073, 0.0
      %v4209 = vmax.f32 %v3305, 0.0
      %v4210 = vmax.f32 %v3307, 0.0
      %v4211 = vmax.f32 %v4077, 0.0
      %v4212 = vmax.f32 %v4079, 0.0
      %v4213 = vmax.f32 %v3309, 0.0
      %v4214 = vmax.f32 %v3311, 0.0
      %v4215 = vmax.f32 %v4081, 0.0
      %v4216 = vmax.f32 %v4083, 0.0
      %v4217 = vmax.f32 %v3315, 0.0
      %v4218 = vmax.f32 %v3317, 0.0
      %v4219 = vmax.f32 %v4087, 0.0
      %v4220 = vmax.f32 %v4089, 0.0
      %v4221 = vmax.f32 %v3319, 0.0
      %v4222 = vmax.f32 %v3321, 0.0
      %v4223 = vmax.f32 %v4091, 0.0
      %v4224 = vmax.f32 %v4093, 0.0
      %v4225 = vmax.f32 %v3325, 0.0
      %v4226 = vmax.f32 %v3327, 0.0
      %v4227 = vmax.f32 %v4097, 0.0
      %v4228 = vmax.f32 %v4099, 0.0
      %v4229 = vmax.f32 %v3329, 0.0
      %v4230 = vmax.f32 %v3331, 0.0
      %v4231 = vmax.f32 %v4101, 0.0
      %v4232 = vmax.f32 %v4103, 0.0
      %v4233 = vpack.c.bf16 %v4109, %v4105
      %v4234 = vpack.c.bf16 %v4110, %v4106
      %v4235 = vpack.c.bf16 %v4111, %v4107
      %v4236 = vpack.c.bf16 %v4112, %v4108
      %v4237 = vpack.c.bf16 %v4117, %v4113
      %v4238 = vpack.c.bf16 %v4118, %v4114
      %v4239 = vpack.c.bf16 %v4119, %v4115
      %v4240 = vpack.c.bf16 %v4120, %v4116
      %v4241 = vpack.c.bf16 %v4125, %v4121
      %v4242 = vpack.c.bf16 %v4126, %v4122
      %v4243 = vpack.c.bf16 %v4127, %v4123
      %v4244 = vpack.c.bf16 %v4128, %v4124
      %v4245 = vpack.c.bf16 %v4133, %v4129
      %v4246 = vpack.c.bf16 %v4134, %v4130
      %v4247 = vpack.c.bf16 %v4135, %v4131
      %v4248 = vpack.c.bf16 %v4136, %v4132
      %v4249 = vpack.c.bf16 %v4141, %v4137
      %v4250 = vpack.c.bf16 %v4142, %v4138
      %v4251 = vpack.c.bf16 %v4143, %v4139
      %v4252 = vpack.c.bf16 %v4144, %v4140
      %v4253 = vpack.c.bf16 %v4149, %v4145
      %v4254 = vpack.c.bf16 %v4150, %v4146
      %v4255 = vpack.c.bf16 %v4151, %v4147
      %v4256 = vpack.c.bf16 %v4152, %v4148
      %v4257 = vpack.c.bf16 %v4157, %v4153
      %v4258 = vpack.c.bf16 %v4158, %v4154
      %v4259 = vpack.c.bf16 %v4159, %v4155
      %v4260 = vpack.c.bf16 %v4160, %v4156
      %v4261 = vpack.c.bf16 %v4165, %v4161
      %v4262 = vpack.c.bf16 %v4166, %v4162
      %v4263 = vpack.c.bf16 %v4167, %v4163
      %v4264 = vpack.c.bf16 %v4168, %v4164
      %v4265 = vpack.c.bf16 %v4173, %v4169
      %v4266 = vpack.c.bf16 %v4174, %v4170
      %v4267 = vpack.c.bf16 %v4175, %v4171
      %v4268 = vpack.c.bf16 %v4176, %v4172
      %v4269 = vpack.c.bf16 %v4181, %v4177
      %v4270 = vpack.c.bf16 %v4182, %v4178
      %v4271 = vpack.c.bf16 %v4183, %v4179
      %v4272 = vpack.c.bf16 %v4184, %v4180
      %v4273 = vpack.c.bf16 %v4189, %v4185
      %v4274 = vpack.c.bf16 %v4190, %v4186
      %v4275 = vpack.c.bf16 %v4191, %v4187
      %v4276 = vpack.c.bf16 %v4192, %v4188
      %v4277 = vpack.c.bf16 %v4197, %v4193
      %v4278 = vpack.c.bf16 %v4198, %v4194
      %v4279 = vpack.c.bf16 %v4199, %v4195
      %v4280 = vpack.c.bf16 %v4200, %v4196
      %v4281 = vpack.c.bf16 %v4205, %v4201
      %v4282 = vpack.c.bf16 %v4206, %v4202
      %v4283 = vpack.c.bf16 %v4207, %v4203
      %v4284 = vpack.c.bf16 %v4208, %v4204
      %v4285 = vpack.c.bf16 %v4213, %v4209
      %v4286 = vpack.c.bf16 %v4214, %v4210
      %v4287 = vpack.c.bf16 %v4215, %v4211
      %v4288 = vpack.c.bf16 %v4216, %v4212
      %v4289 = vpack.c.bf16 %v4221, %v4217
      %v4290 = vpack.c.bf16 %v4222, %v4218
      %v4291 = vpack.c.bf16 %v4223, %v4219
      %v4292 = vpack.c.bf16 %v4224, %v4220
      %v4293 = vpack.c.bf16 %v4229, %v4225
      %v4294 = vpack.c.bf16 %v4230, %v4226
      %v4295 = vpack.c.bf16 %v4231, %v4227
      %v4296 = vpack.c.bf16 %v4232, %v4228
      %v4297 = vld [vmem:[%s3] sm:$0xff]
      %v4298 = vld [vmem:[%s3 + $0x8] sm:$0xff]
      %v4299 = vld [vmem:[%s3 + $0x10] sm:$0xff]
      %v4300 = vld [vmem:[%s3 + $0x18] sm:$0xff]
      %v4301 = vld [vmem:[%s3 + $0x20] sm:$0xff]
      %v4302 = vld [vmem:[%s3 + $0x28] sm:$0xff]
      %v4303 = vld [vmem:[%s3 + $0x30] sm:$0xff]
      %v4304 = vld [vmem:[%s3 + $0x38] sm:$0xff]
      %v4305 = vld [vmem:[%s3 + $0x40] sm:$0xff]
      %v4306 = vld [vmem:[%s3 + $0x48] sm:$0xff]
      %v4307 = vld [vmem:[%s3 + $0x50] sm:$0xff]
      %v4308 = vld [vmem:[%s3 + $0x58] sm:$0xff]
      %v4309 = vld [vmem:[%s3 + $0x60] sm:$0xff]
      %v4310 = vld [vmem:[%s3 + $0x68] sm:$0xff]
      %v4311 = vld [vmem:[%s3 + $0x70] sm:$0xff]
      %v4312 = vld [vmem:[%s3 + $0x78] sm:$0xff]
      %v4313 = vld [vmem:[%s3 + $0x80] sm:$0xff]
      %v4314 = vld [vmem:[%s3 + $0x88] sm:$0xff]
      %v4315 = vld [vmem:[%s3 + $0x90] sm:$0xff]
      %v4316 = vld [vmem:[%s3 + $0x98] sm:$0xff]
      %v4317 = vld [vmem:[%s3 + $0xa0] sm:$0xff]
      %v4318 = vld [vmem:[%s3 + $0xa8] sm:$0xff]
      %v4319 = vld [vmem:[%s3 + $0xb0] sm:$0xff]
      %v4320 = vld [vmem:[%s3 + $0xb8] sm:$0xff]
      %v4321 = vld [vmem:[%s3 + $0xc0] sm:$0xff]
      %v4322 = vld [vmem:[%s3 + $0xc8] sm:$0xff]
      %v4323 = vld [vmem:[%s3 + $0xd0] sm:$0xff]
      %v4324 = vld [vmem:[%s3 + $0xd8] sm:$0xff]
      %v4325 = vld [vmem:[%s3 + $0xe0] sm:$0xff]
      %v4326 = vld [vmem:[%s3 + $0xe8] sm:$0xff]
      %v4327 = vld [vmem:[%s3 + $0xf0] sm:$0xff]
      %v4328 = vld [vmem:[%s3 + $0xf8] sm:$0xff]
      %v4329 = vld [vmem:[%s3 + $0x100] sm:$0xff]
      %v4330 = vld [vmem:[%s3 + $0x108] sm:$0xff]
      %v4331 = vld [vmem:[%s3 + $0x110] sm:$0xff]
      %v4332 = vld [vmem:[%s3 + $0x118] sm:$0xff]
      %v4333 = vld [vmem:[%s3 + $0x120] sm:$0xff]
      %v4334 = vld [vmem:[%s3 + $0x128] sm:$0xff]
      %v4335 = vld [vmem:[%s3 + $0x130] sm:$0xff]
      %v4336 = vld [vmem:[%s3 + $0x138] sm:$0xff]
      %v4337 = vld [vmem:[%s3 + $0x140] sm:$0xff]
      %v4338 = vld [vmem:[%s3 + $0x148] sm:$0xff]
      %v4339 = vld [vmem:[%s3 + $0x150] sm:$0xff]
      %v4340 = vld [vmem:[%s3 + $0x158] sm:$0xff]
      %v4341 = vld [vmem:[%s3 + $0x160] sm:$0xff]
      %v4342 = vld [vmem:[%s3 + $0x168] sm:$0xff]
      %v4343 = vld [vmem:[%s3 + $0x170] sm:$0xff]
      %v4344 = vld [vmem:[%s3 + $0x178] sm:$0xff]
      %v4345 = vld [vmem:[%s3 + $0x180] sm:$0xff]
      %v4346 = vld [vmem:[%s3 + $0x188] sm:$0xff]
      %v4347 = vld [vmem:[%s3 + $0x190] sm:$0xff]
      %v4348 = vld [vmem:[%s3 + $0x198] sm:$0xff]
      %v4349 = vld [vmem:[%s3 + $0x1a0] sm:$0xff]
      %v4350 = vld [vmem:[%s3 + $0x1a8] sm:$0xff]
      %v4351 = vld [vmem:[%s3 + $0x1b0] sm:$0xff]
      %v4352 = vld [vmem:[%s3 + $0x1b8] sm:$0xff]
      %v4353 = vld [vmem:[%s3 + $0x1c0] sm:$0xff]
      %v4354 = vld [vmem:[%s3 + $0x1c8] sm:$0xff]
      %v4355 = vld [vmem:[%s3 + $0x1d0] sm:$0xff]
      %v4356 = vld [vmem:[%s3 + $0x1d8] sm:$0xff]
      %v4357 = vld [vmem:[%s3 + $0x1e0] sm:$0xff]
      %v4358 = vld [vmem:[%s3 + $0x1e8] sm:$0xff]
      %v4359 = vld [vmem:[%s3 + $0x1f0] sm:$0xff]
      %v4360 = vld [vmem:[%s3 + $0x1f8] sm:$0xff]
      %v4361 = vld [vmem:[%s4] sm:$0x3]
      %v4363 = vlaneseq
      %v4364 = vshrl.u32 %v4363, 7
      %v4365 = vsub.s32 0, %v4364
      %v4366 = vrot.slane %v4361, %v4365
      %v4367 = vlaneseq
      %v4368 = vshrl.u32 %v4367, 7
      %v4369 = vsub.s32 1, %v4368
      %v4370 = vrot.slane %v4361, %v4369
      %v4437 = vunpack.c.l.b16 %v4297
      %v4438 = vunpack.c.h.b16 %v4297
      %v4439 = vunpack.c.l.b16 %v4298
      %v4440 = vunpack.c.h.b16 %v4298
      %v4441 = vunpack.c.l.b16 %v4299
      %v4442 = vunpack.c.h.b16 %v4299
      %v4443 = vunpack.c.l.b16 %v4300
      %v4444 = vunpack.c.h.b16 %v4300
      %v4445 = vunpack.c.l.b16 %v4301
      %v4446 = vunpack.c.h.b16 %v4301
      %v4447 = vunpack.c.l.b16 %v4302
      %v4448 = vunpack.c.h.b16 %v4302
      %v4449 = vunpack.c.l.b16 %v4303
      %v4450 = vunpack.c.h.b16 %v4303
      %v4451 = vunpack.c.l.b16 %v4304
      %v4452 = vunpack.c.h.b16 %v4304
      %v4453 = vunpack.c.l.b16 %v4305
      %v4454 = vunpack.c.h.b16 %v4305
      %v4455 = vunpack.c.l.b16 %v4306
      %v4456 = vunpack.c.h.b16 %v4306
      %v4457 = vunpack.c.l.b16 %v4307
      %v4458 = vunpack.c.h.b16 %v4307
      %v4459 = vunpack.c.l.b16 %v4308
      %v4460 = vunpack.c.h.b16 %v4308
      %v4461 = vunpack.c.l.b16 %v4309
      %v4462 = vunpack.c.h.b16 %v4309
      %v4463 = vunpack.c.l.b16 %v4310
      %v4464 = vunpack.c.h.b16 %v4310
      %v4465 = vunpack.c.l.b16 %v4311
      %v4466 = vunpack.c.h.b16 %v4311
      %v4467 = vunpack.c.l.b16 %v4312
      %v4468 = vunpack.c.h.b16 %v4312
      %v4469 = vunpack.c.l.b16 %v4313
      %v4470 = vunpack.c.h.b16 %v4313
      %v4471 = vunpack.c.l.b16 %v4314
      %v4472 = vunpack.c.h.b16 %v4314
      %v4473 = vunpack.c.l.b16 %v4315
      %v4474 = vunpack.c.h.b16 %v4315
      %v4475 = vunpack.c.l.b16 %v4316
      %v4476 = vunpack.c.h.b16 %v4316
      %v4477 = vunpack.c.l.b16 %v4317
      %v4478 = vunpack.c.h.b16 %v4317
      %v4479 = vunpack.c.l.b16 %v4318
      %v4480 = vunpack.c.h.b16 %v4318
      %v4481 = vunpack.c.l.b16 %v4319
      %v4482 = vunpack.c.h.b16 %v4319
      %v4483 = vunpack.c.l.b16 %v4320
      %v4484 = vunpack.c.h.b16 %v4320
      %v4485 = vunpack.c.l.b16 %v4321
      %v4486 = vunpack.c.h.b16 %v4321
      %v4487 = vunpack.c.l.b16 %v4322
      %v4488 = vunpack.c.h.b16 %v4322
      %v4489 = vunpack.c.l.b16 %v4323
      %v4490 = vunpack.c.h.b16 %v4323
      %v4491 = vunpack.c.l.b16 %v4324
      %v4492 = vunpack.c.h.b16 %v4324
      %v4493 = vunpack.c.l.b16 %v4325
      %v4494 = vunpack.c.h.b16 %v4325
      %v4495 = vunpack.c.l.b16 %v4326
      %v4496 = vunpack.c.h.b16 %v4326
      %v4497 = vunpack.c.l.b16 %v4327
      %v4498 = vunpack.c.h.b16 %v4327
      %v4499 = vunpack.c.l.b16 %v4328
      %v4500 = vunpack.c.h.b16 %v4328
      %v4501 = vunpack.c.l.b16 %v4329
      %v4502 = vunpack.c.h.b16 %v4329
      %v4503 = vunpack.c.l.b16 %v4330
      %v4504 = vunpack.c.h.b16 %v4330
      %v4505 = vunpack.c.l.b16 %v4331
      %v4506 = vunpack.c.h.b16 %v4331
      %v4507 = vunpack.c.l.b16 %v4332
      %v4508 = vunpack.c.h.b16 %v4332
      %v4509 = vunpack.c.l.b16 %v4333
      %v4510 = vunpack.c.h.b16 %v4333
      %v4511 = vunpack.c.l.b16 %v4334
      %v4512 = vunpack.c.h.b16 %v4334
      %v4513 = vunpack.c.l.b16 %v4335
      %v4514 = vunpack.c.h.b16 %v4335
      %v4515 = vunpack.c.l.b16 %v4336
      %v4516 = vunpack.c.h.b16 %v4336
      %v4517 = vunpack.c.l.b16 %v4337
      %v4518 = vunpack.c.h.b16 %v4337
      %v4519 = vunpack.c.l.b16 %v4338
      %v4520 = vunpack.c.h.b16 %v4338
      %v4521 = vunpack.c.l.b16 %v4339
      %v4522 = vunpack.c.h.b16 %v4339
      %v4523 = vunpack.c.l.b16 %v4340
      %v4524 = vunpack.c.h.b16 %v4340
      %v4525 = vunpack.c.l.b16 %v4341
      %v4526 = vunpack.c.h.b16 %v4341
      %v4527 = vunpack.c.l.b16 %v4342
      %v4528 = vunpack.c.h.b16 %v4342
      %v4529 = vunpack.c.l.b16 %v4343
      %v4530 = vunpack.c.h.b16 %v4343
      %v4531 = vunpack.c.l.b16 %v4344
      %v4532 = vunpack.c.h.b16 %v4344
      %v4533 = vunpack.c.l.b16 %v4345
      %v4534 = vunpack.c.h.b16 %v4345
      %v4535 = vunpack.c.l.b16 %v4346
      %v4536 = vunpack.c.h.b16 %v4346
      %v4537 = vunpack.c.l.b16 %v4347
      %v4538 = vunpack.c.h.b16 %v4347
      %v4539 = vunpack.c.l.b16 %v4348
      %v4540 = vunpack.c.h.b16 %v4348
      %v4541 = vunpack.c.l.b16 %v4349
      %v4542 = vunpack.c.h.b16 %v4349
      %v4543 = vunpack.c.l.b16 %v4350
      %v4544 = vunpack.c.h.b16 %v4350
      %v4545 = vunpack.c.l.b16 %v4351
      %v4546 = vunpack.c.h.b16 %v4351
      %v4547 = vunpack.c.l.b16 %v4352
      %v4548 = vunpack.c.h.b16 %v4352
      %v4549 = vunpack.c.l.b16 %v4353
      %v4550 = vunpack.c.h.b16 %v4353
      %v4551 = vunpack.c.l.b16 %v4354
      %v4552 = vunpack.c.h.b16 %v4354
      %v4553 = vunpack.c.l.b16 %v4355
      %v4554 = vunpack.c.h.b16 %v4355
      %v4555 = vunpack.c.l.b16 %v4356
      %v4556 = vunpack.c.h.b16 %v4356
      %v4557 = vunpack.c.l.b16 %v4357
      %v4558 = vunpack.c.h.b16 %v4357
      %v4559 = vunpack.c.l.b16 %v4358
      %v4560 = vunpack.c.h.b16 %v4358
      %v4561 = vunpack.c.l.b16 %v4359
      %v4562 = vunpack.c.h.b16 %v4359
      %v4563 = vunpack.c.l.b16 %v4360
      %v4564 = vunpack.c.h.b16 %v4360
      %v4565 = vpack.c.b16 %v4439, %v4437
      %v4566 = vpack.c.b16 %v4440, %v4438
      %v4567 = vpack.c.b16 %v4443, %v4441
      %v4568 = vpack.c.b16 %v4444, %v4442
      %v4569 = vpack.c.b16 %v4447, %v4445
      %v4570 = vpack.c.b16 %v4448, %v4446
      %v4571 = vpack.c.b16 %v4451, %v4449
      %v4572 = vpack.c.b16 %v4452, %v4450
      %v4573 = vpack.c.b16 %v4455, %v4453
      %v4574 = vpack.c.b16 %v4456, %v4454
      %v4575 = vpack.c.b16 %v4459, %v4457
      %v4576 = vpack.c.b16 %v4460, %v4458
      %v4577 = vpack.c.b16 %v4463, %v4461
      %v4578 = vpack.c.b16 %v4464, %v4462
      %v4579 = vpack.c.b16 %v4467, %v4465
      %v4580 = vpack.c.b16 %v4468, %v4466
      %v4581 = vpack.c.b16 %v4471, %v4469
      %v4582 = vpack.c.b16 %v4472, %v4470
      %v4583 = vpack.c.b16 %v4475, %v4473
      %v4584 = vpack.c.b16 %v4476, %v4474
      %v4585 = vpack.c.b16 %v4479, %v4477
      %v4586 = vpack.c.b16 %v4480, %v4478
      %v4587 = vpack.c.b16 %v4483, %v4481
      %v4588 = vpack.c.b16 %v4484, %v4482
      %v4589 = vpack.c.b16 %v4487, %v4485
      %v4590 = vpack.c.b16 %v4488, %v4486
      %v4591 = vpack.c.b16 %v4491, %v4489
      %v4592 = vpack.c.b16 %v4492, %v4490
      %v4593 = vpack.c.b16 %v4495, %v4493
      %v4594 = vpack.c.b16 %v4496, %v4494
      %v4595 = vpack.c.b16 %v4499, %v4497
      %v4596 = vpack.c.b16 %v4500, %v4498
      %v4597 = vpack.c.b16 %v4503, %v4501
      %v4598 = vpack.c.b16 %v4504, %v4502
      %v4599 = vpack.c.b16 %v4507, %v4505
      %v4600 = vpack.c.b16 %v4508, %v4506
      %v4601 = vpack.c.b16 %v4511, %v4509
      %v4602 = vpack.c.b16 %v4512, %v4510
      %v4603 = vpack.c.b16 %v4515, %v4513
      %v4604 = vpack.c.b16 %v4516, %v4514
      %v4605 = vpack.c.b16 %v4519, %v4517
      %v4606 = vpack.c.b16 %v4520, %v4518
      %v4607 = vpack.c.b16 %v4523, %v4521
      %v4608 = vpack.c.b16 %v4524, %v4522
      %v4609 = vpack.c.b16 %v4527, %v4525
      %v4610 = vpack.c.b16 %v4528, %v4526
      %v4611 = vpack.c.b16 %v4531, %v4529
      %v4612 = vpack.c.b16 %v4532, %v4530
      %v4613 = vpack.c.b16 %v4535, %v4533
      %v4614 = vpack.c.b16 %v4536, %v4534
      %v4615 = vpack.c.b16 %v4539, %v4537
      %v4616 = vpack.c.b16 %v4540, %v4538
      %v4617 = vpack.c.b16 %v4543, %v4541
      %v4618 = vpack.c.b16 %v4544, %v4542
      %v4619 = vpack.c.b16 %v4547, %v4545
      %v4620 = vpack.c.b16 %v4548, %v4546
      %v4621 = vpack.c.b16 %v4551, %v4549
      %v4622 = vpack.c.b16 %v4552, %v4550
      %v4623 = vpack.c.b16 %v4555, %v4553
      %v4624 = vpack.c.b16 %v4556, %v4554
      %v4625 = vpack.c.b16 %v4559, %v4557
      %v4626 = vpack.c.b16 %v4560, %v4558
      %v4627 = vpack.c.b16 %v4563, %v4561
      %v4628 = vpack.c.b16 %v4564, %v4562
      %4693 = vmatprep.subr.bf16.mxu0 %v4580
      %4694 = vmatpush1.bf16.msra.mxu0 %v4579
      %4695 = vmatprep.subr.bf16.mxu0 %v4578
      %4696 = vmatpush1.bf16.msra.mxu0 %v4577
      %4697 = vmatprep.subr.bf16.mxu0 %v4576
      %4698 = vmatpush1.bf16.msra.mxu0 %v4575
      %4699 = vmatprep.subr.bf16.mxu0 %v4574
      %4700 = vmatpush1.bf16.msra.mxu0 %v4573
      %4701 = vmatprep.subr.bf16.mxu0 %v4572
      %4702 = vmatpush1.bf16.msra.mxu0 %v4571
      %4703 = vmatprep.subr.bf16.mxu0 %v4570
      %4704 = vmatpush1.bf16.msra.mxu0 %v4569
      %4705 = vmatprep.subr.bf16.mxu0 %v4568
      %4706 = vmatpush1.bf16.msra.mxu0 %v4567
      %4707 = vmatprep.subr.bf16.mxu0 %v4566
      %4708 = vmatpush1.bf16.msra.mxu0 %v4565
      %4709 = vmatprep.subr.bf16.mxu0 %v4596
      %4710 = vmatpush2.bf16.msra.mxu0 %v4595
      %4711 = vmatprep.subr.bf16.mxu0 %v4594
      %4712 = vmatpush2.bf16.msra.mxu0 %v4593
      %4713 = vmatprep.subr.bf16.mxu0 %v4592
      %4714 = vmatpush2.bf16.msra.mxu0 %v4591
      %4715 = vmatprep.subr.bf16.mxu0 %v4590
      %4716 = vmatpush2.bf16.msra.mxu0 %v4589
      %4717 = vmatprep.subr.bf16.mxu0 %v4588
      %4718 = vmatpush2.bf16.msra.mxu0 %v4587
      %4719 = vmatprep.subr.bf16.mxu0 %v4586
      %4720 = vmatpush2.bf16.msra.mxu0 %v4585
      %4721 = vmatprep.subr.bf16.mxu0 %v4584
      %4722 = vmatpush2.bf16.msra.mxu0 %v4583
      %4723 = vmatprep.subr.bf16.mxu0 %v4582
      %4724 = vmatpush2.bf16.msra.mxu0 %v4581
      %4725 = vmatprep.mubr.bf16.mxu0 %v4234
      %4726 = vmatmul.mubr.bf16.gmra.mxu0 %v4233
      %v4727 = vpop.f32.mrf.mxu0
      %v4728 = vadd.f32 %v4366, %v4727
      %v4729 = vpop.f32.mrf.mxu0
      %v4730 = vadd.f32 %v4370, %v4729
      %v4731 = vpop.f32.mrf.mxu0
      %v4732 = vadd.f32 %v4366, %v4731
      %v4733 = vpop.f32.mrf.mxu0
      %v4734 = vadd.f32 %v4370, %v4733
      %4735 = vmatprep.mubr.bf16.mxu0 %v4238
      %4736 = vmatmul.mubr.bf16.gmra.mxu0 %v4237
      %v4737 = vpop.f32.mrf.mxu0
      %v4738 = vadd.f32 %v4366, %v4737
      %v4739 = vpop.f32.mrf.mxu0
      %v4740 = vadd.f32 %v4370, %v4739
      %v4741 = vpop.f32.mrf.mxu0
      %v4742 = vadd.f32 %v4366, %v4741
      %v4743 = vpop.f32.mrf.mxu0
      %v4744 = vadd.f32 %v4370, %v4743
      %4745 = vmatprep.mubr.bf16.mxu0 %v4242
      %4746 = vmatmul.mubr.bf16.gmra.mxu0 %v4241
      %v4747 = vpop.f32.mrf.mxu0
      %v4748 = vadd.f32 %v4366, %v4747
      %v4749 = vpop.f32.mrf.mxu0
      %v4750 = vadd.f32 %v4370, %v4749
      %v4751 = vpop.f32.mrf.mxu0
      %v4752 = vadd.f32 %v4366, %v4751
      %v4753 = vpop.f32.mrf.mxu0
      %v4754 = vadd.f32 %v4370, %v4753
      %4755 = vmatprep.mubr.bf16.mxu0 %v4246
      %4756 = vmatmul.mubr.bf16.gmra.mxu0 %v4245
      %v4757 = vpop.f32.mrf.mxu0
      %v4758 = vadd.f32 %v4366, %v4757
      %v4759 = vpop.f32.mrf.mxu0
      %v4760 = vadd.f32 %v4370, %v4759
      %v4761 = vpop.f32.mrf.mxu0
      %v4762 = vadd.f32 %v4366, %v4761
      %v4763 = vpop.f32.mrf.mxu0
      %v4764 = vadd.f32 %v4370, %v4763
      %4765 = vmatprep.mubr.bf16.mxu0 %v4250
      %4766 = vmatmul.mubr.bf16.gmra.mxu0 %v4249
      %v4767 = vpop.f32.mrf.mxu0
      %v4768 = vadd.f32 %v4366, %v4767
      %v4769 = vpop.f32.mrf.mxu0
      %v4770 = vadd.f32 %v4370, %v4769
      %v4771 = vpop.f32.mrf.mxu0
      %v4772 = vadd.f32 %v4366, %v4771
      %v4773 = vpop.f32.mrf.mxu0
      %v4774 = vadd.f32 %v4370, %v4773
      %4775 = vmatprep.mubr.bf16.mxu0 %v4254
      %4776 = vmatmul.mubr.bf16.gmra.mxu0 %v4253
      %v4777 = vpop.f32.mrf.mxu0
      %v4778 = vadd.f32 %v4366, %v4777
      %v4779 = vpop.f32.mrf.mxu0
      %v4780 = vadd.f32 %v4370, %v4779
      %v4781 = vpop.f32.mrf.mxu0
      %v4782 = vadd.f32 %v4366, %v4781
      %v4783 = vpop.f32.mrf.mxu0
      %v4784 = vadd.f32 %v4370, %v4783
      %4785 = vmatprep.mubr.bf16.mxu0 %v4258
      %4786 = vmatmul.mubr.bf16.gmra.mxu0 %v4257
      %v4787 = vpop.f32.mrf.mxu0
      %v4788 = vadd.f32 %v4366, %v4787
      %v4789 = vpop.f32.mrf.mxu0
      %v4790 = vadd.f32 %v4370, %v4789
      %v4791 = vpop.f32.mrf.mxu0
      %v4792 = vadd.f32 %v4366, %v4791
      %v4793 = vpop.f32.mrf.mxu0
      %v4794 = vadd.f32 %v4370, %v4793
      %4795 = vmatprep.mubr.bf16.mxu0 %v4262
      %4796 = vmatmul.mubr.bf16.gmra.mxu0 %v4261
      %v4797 = vpop.f32.mrf.mxu0
      %v4798 = vadd.f32 %v4366, %v4797
      %v4799 = vpop.f32.mrf.mxu0
      %v4800 = vadd.f32 %v4370, %v4799
      %v4801 = vpop.f32.mrf.mxu0
      %v4802 = vadd.f32 %v4366, %v4801
      %v4803 = vpop.f32.mrf.mxu0
      %v4804 = vadd.f32 %v4370, %v4803
      %4805 = vmatprep.mubr.bf16.mxu0 %v4266
      %4806 = vmatmul.mubr.bf16.gmra.mxu0 %v4265
      %v4807 = vpop.f32.mrf.mxu0
      %v4808 = vadd.f32 %v4366, %v4807
      %v4809 = vpop.f32.mrf.mxu0
      %v4810 = vadd.f32 %v4370, %v4809
      %v4811 = vpop.f32.mrf.mxu0
      %v4812 = vadd.f32 %v4366, %v4811
      %v4813 = vpop.f32.mrf.mxu0
      %v4814 = vadd.f32 %v4370, %v4813
      %4815 = vmatprep.mubr.bf16.mxu0 %v4270
      %4816 = vmatmul.mubr.bf16.gmra.mxu0 %v4269
      %v4817 = vpop.f32.mrf.mxu0
      %v4818 = vadd.f32 %v4366, %v4817
      %v4819 = vpop.f32.mrf.mxu0
      %v4820 = vadd.f32 %v4370, %v4819
      %v4821 = vpop.f32.mrf.mxu0
      %v4822 = vadd.f32 %v4366, %v4821
      %v4823 = vpop.f32.mrf.mxu0
      %v4824 = vadd.f32 %v4370, %v4823
      %4825 = vmatprep.mubr.bf16.mxu0 %v4274
      %4826 = vmatmul.mubr.bf16.gmra.mxu0 %v4273
      %v4827 = vpop.f32.mrf.mxu0
      %v4828 = vadd.f32 %v4366, %v4827
      %v4829 = vpop.f32.mrf.mxu0
      %v4830 = vadd.f32 %v4370, %v4829
      %v4831 = vpop.f32.mrf.mxu0
      %v4832 = vadd.f32 %v4366, %v4831
      %v4833 = vpop.f32.mrf.mxu0
      %v4834 = vadd.f32 %v4370, %v4833
      %4835 = vmatprep.mubr.bf16.mxu0 %v4278
      %4836 = vmatmul.mubr.bf16.gmra.mxu0 %v4277
      %v4837 = vpop.f32.mrf.mxu0
      %v4838 = vadd.f32 %v4366, %v4837
      %v4839 = vpop.f32.mrf.mxu0
      %v4840 = vadd.f32 %v4370, %v4839
      %v4841 = vpop.f32.mrf.mxu0
      %v4842 = vadd.f32 %v4366, %v4841
      %v4843 = vpop.f32.mrf.mxu0
      %v4844 = vadd.f32 %v4370, %v4843
      %4845 = vmatprep.mubr.bf16.mxu0 %v4282
      %4846 = vmatmul.mubr.bf16.gmra.mxu0 %v4281
      %v4847 = vpop.f32.mrf.mxu0
      %v4848 = vadd.f32 %v4366, %v4847
      %v4849 = vpop.f32.mrf.mxu0
      %v4850 = vadd.f32 %v4370, %v4849
      %v4851 = vpop.f32.mrf.mxu0
      %v4852 = vadd.f32 %v4366, %v4851
      %v4853 = vpop.f32.mrf.mxu0
      %v4854 = vadd.f32 %v4370, %v4853
      %4855 = vmatprep.mubr.bf16.mxu0 %v4286
      %4856 = vmatmul.mubr.bf16.gmra.mxu0 %v4285
      %v4857 = vpop.f32.mrf.mxu0
      %v4858 = vadd.f32 %v4366, %v4857
      %v4859 = vpop.f32.mrf.mxu0
      %v4860 = vadd.f32 %v4370, %v4859
      %v4861 = vpop.f32.mrf.mxu0
      %v4862 = vadd.f32 %v4366, %v4861
      %v4863 = vpop.f32.mrf.mxu0
      %v4864 = vadd.f32 %v4370, %v4863
      %4865 = vmatprep.mubr.bf16.mxu0 %v4290
      %4866 = vmatmul.mubr.bf16.gmra.mxu0 %v4289
      %v4867 = vpop.f32.mrf.mxu0
      %v4868 = vadd.f32 %v4366, %v4867
      %v4869 = vpop.f32.mrf.mxu0
      %v4870 = vadd.f32 %v4370, %v4869
      %v4871 = vpop.f32.mrf.mxu0
      %v4872 = vadd.f32 %v4366, %v4871
      %v4873 = vpop.f32.mrf.mxu0
      %v4874 = vadd.f32 %v4370, %v4873
      %4875 = vmatprep.mubr.bf16.mxu0 %v4294
      %4876 = vmatmul.mubr.bf16.gmra.mxu0 %v4293
      %v4877 = vpop.f32.mrf.mxu0
      %v4878 = vadd.f32 %v4366, %v4877
      %v4879 = vpop.f32.mrf.mxu0
      %v4880 = vadd.f32 %v4370, %v4879
      %v4881 = vpop.f32.mrf.mxu0
      %v4882 = vadd.f32 %v4366, %v4881
      %v4883 = vpop.f32.mrf.mxu0
      %v4884 = vadd.f32 %v4370, %v4883
      %4885 = vdwg.mxu0
      %4886 = vmatprep.subr.bf16.mxu0 %v4612
      %4887 = vmatpush1.bf16.msra.mxu0 %v4611
      %4888 = vmatprep.subr.bf16.mxu0 %v4610
      %4889 = vmatpush1.bf16.msra.mxu0 %v4609
      %4890 = vmatprep.subr.bf16.mxu0 %v4608
      %4891 = vmatpush1.bf16.msra.mxu0 %v4607
      %4892 = vmatprep.subr.bf16.mxu0 %v4606
      %4893 = vmatpush1.bf16.msra.mxu0 %v4605
      %4894 = vmatprep.subr.bf16.mxu0 %v4604
      %4895 = vmatpush1.bf16.msra.mxu0 %v4603
      %4896 = vmatprep.subr.bf16.mxu0 %v4602
      %4897 = vmatpush1.bf16.msra.mxu0 %v4601
      %4898 = vmatprep.subr.bf16.mxu0 %v4600
      %4899 = vmatpush1.bf16.msra.mxu0 %v4599
      %4900 = vmatprep.subr.bf16.mxu0 %v4598
      %4901 = vmatpush1.bf16.msra.mxu0 %v4597
      %4902 = vmatprep.subr.bf16.mxu0 %v4628
      %4903 = vmatpush2.bf16.msra.mxu0 %v4627
      %4904 = vmatprep.subr.bf16.mxu0 %v4626
      %4905 = vmatpush2.bf16.msra.mxu0 %v4625
      %4906 = vmatprep.subr.bf16.mxu0 %v4624
      %4907 = vmatpush2.bf16.msra.mxu0 %v4623
      %4908 = vmatprep.subr.bf16.mxu0 %v4622
      %4909 = vmatpush2.bf16.msra.mxu0 %v4621
      %4910 = vmatprep.subr.bf16.mxu0 %v4620
      %4911 = vmatpush2.bf16.msra.mxu0 %v4619
      %4912 = vmatprep.subr.bf16.mxu0 %v4618
      %4913 = vmatpush2.bf16.msra.mxu0 %v4617
      %4914 = vmatprep.subr.bf16.mxu0 %v4616
      %4915 = vmatpush2.bf16.msra.mxu0 %v4615
      %4916 = vmatprep.subr.bf16.mxu0 %v4614
      %4917 = vmatpush2.bf16.msra.mxu0 %v4613
      %4918 = vmatprep.mubr.bf16.mxu0 %v4236
      %4919 = vmatmul.mubr.bf16.gmra.mxu0 %v4235
      %v4920 = vpop.f32.mrf.mxu0
      %v4921 = vadd.f32 %v4728, %v4920
      %v4922 = vpop.f32.mrf.mxu0
      %v4923 = vadd.f32 %v4730, %v4922
      %v4924 = vpop.f32.mrf.mxu0
      %v4925 = vadd.f32 %v4732, %v4924
      %v4926 = vpop.f32.mrf.mxu0
      %v4927 = vadd.f32 %v4734, %v4926
      %4928 = vmatprep.mubr.bf16.mxu0 %v4240
      %4929 = vmatmul.mubr.bf16.gmra.mxu0 %v4239
      %v4930 = vpop.f32.mrf.mxu0
      %v4931 = vadd.f32 %v4738, %v4930
      %v4932 = vpop.f32.mrf.mxu0
      %v4933 = vadd.f32 %v4740, %v4932
      %v4934 = vpop.f32.mrf.mxu0
      %v4935 = vadd.f32 %v4742, %v4934
      %v4936 = vpop.f32.mrf.mxu0
      %v4937 = vadd.f32 %v4744, %v4936
      %4938 = vmatprep.mubr.bf16.mxu0 %v4244
      %4939 = vmatmul.mubr.bf16.gmra.mxu0 %v4243
      %v4940 = vpop.f32.mrf.mxu0
      %v4941 = vadd.f32 %v4748, %v4940
      %v4942 = vpop.f32.mrf.mxu0
      %v4943 = vadd.f32 %v4750, %v4942
      %v4944 = vpop.f32.mrf.mxu0
      %v4945 = vadd.f32 %v4752, %v4944
      %v4946 = vpop.f32.mrf.mxu0
      %v4947 = vadd.f32 %v4754, %v4946
      %4948 = vmatprep.mubr.bf16.mxu0 %v4248
      %4949 = vmatmul.mubr.bf16.gmra.mxu0 %v4247
      %v4950 = vpop.f32.mrf.mxu0
      %v4951 = vadd.f32 %v4758, %v4950
      %v4952 = vpop.f32.mrf.mxu0
      %v4953 = vadd.f32 %v4760, %v4952
      %v4954 = vpop.f32.mrf.mxu0
      %v4955 = vadd.f32 %v4762, %v4954
      %v4956 = vpop.f32.mrf.mxu0
      %v4957 = vadd.f32 %v4764, %v4956
      %4958 = vmatprep.mubr.bf16.mxu0 %v4252
      %4959 = vmatmul.mubr.bf16.gmra.mxu0 %v4251
      %v4960 = vpop.f32.mrf.mxu0
      %v4961 = vadd.f32 %v4768, %v4960
      %v4962 = vpop.f32.mrf.mxu0
      %v4963 = vadd.f32 %v4770, %v4962
      %v4964 = vpop.f32.mrf.mxu0
      %v4965 = vadd.f32 %v4772, %v4964
      %v4966 = vpop.f32.mrf.mxu0
      %v4967 = vadd.f32 %v4774, %v4966
      %4968 = vmatprep.mubr.bf16.mxu0 %v4256
      %4969 = vmatmul.mubr.bf16.gmra.mxu0 %v4255
      %v4970 = vpop.f32.mrf.mxu0
      %v4971 = vadd.f32 %v4778, %v4970
      %v4972 = vpop.f32.mrf.mxu0
      %v4973 = vadd.f32 %v4780, %v4972
      %v4974 = vpop.f32.mrf.mxu0
      %v4975 = vadd.f32 %v4782, %v4974
      %v4976 = vpop.f32.mrf.mxu0
      %v4977 = vadd.f32 %v4784, %v4976
      %4978 = vmatprep.mubr.bf16.mxu0 %v4260
      %4979 = vmatmul.mubr.bf16.gmra.mxu0 %v4259
      %v4980 = vpop.f32.mrf.mxu0
      %v4981 = vadd.f32 %v4788, %v4980
      %v4982 = vpop.f32.mrf.mxu0
      %v4983 = vadd.f32 %v4790, %v4982
      %v4984 = vpop.f32.mrf.mxu0
      %v4985 = vadd.f32 %v4792, %v4984
      %v4986 = vpop.f32.mrf.mxu0
      %v4987 = vadd.f32 %v4794, %v4986
      %4988 = vmatprep.mubr.bf16.mxu0 %v4264
      %4989 = vmatmul.mubr.bf16.gmra.mxu0 %v4263
      %v4990 = vpop.f32.mrf.mxu0
      %v4991 = vadd.f32 %v4798, %v4990
      %v4992 = vpop.f32.mrf.mxu0
      %v4993 = vadd.f32 %v4800, %v4992
      %v4994 = vpop.f32.mrf.mxu0
      %v4995 = vadd.f32 %v4802, %v4994
      %v4996 = vpop.f32.mrf.mxu0
      %v4997 = vadd.f32 %v4804, %v4996
      %4998 = vmatprep.mubr.bf16.mxu0 %v4268
      %4999 = vmatmul.mubr.bf16.gmra.mxu0 %v4267
      %v5000 = vpop.f32.mrf.mxu0
      %v5001 = vadd.f32 %v4808, %v5000
      %v5002 = vpop.f32.mrf.mxu0
      %v5003 = vadd.f32 %v4810, %v5002
      %v5004 = vpop.f32.mrf.mxu0
      %v5005 = vadd.f32 %v4812, %v5004
      %v5006 = vpop.f32.mrf.mxu0
      %v5007 = vadd.f32 %v4814, %v5006
      %5008 = vmatprep.mubr.bf16.mxu0 %v4272
      %5009 = vmatmul.mubr.bf16.gmra.mxu0 %v4271
      %v5010 = vpop.f32.mrf.mxu0
      %v5011 = vadd.f32 %v4818, %v5010
      %v5012 = vpop.f32.mrf.mxu0
      %v5013 = vadd.f32 %v4820, %v5012
      %v5014 = vpop.f32.mrf.mxu0
      %v5015 = vadd.f32 %v4822, %v5014
      %v5016 = vpop.f32.mrf.mxu0
      %v5017 = vadd.f32 %v4824, %v5016
      %5018 = vmatprep.mubr.bf16.mxu0 %v4276
      %5019 = vmatmul.mubr.bf16.gmra.mxu0 %v4275
      %v5020 = vpop.f32.mrf.mxu0
      %v5021 = vadd.f32 %v4828, %v5020
      %v5022 = vpop.f32.mrf.mxu0
      %v5023 = vadd.f32 %v4830, %v5022
      %v5024 = vpop.f32.mrf.mxu0
      %v5025 = vadd.f32 %v4832, %v5024
      %v5026 = vpop.f32.mrf.mxu0
      %v5027 = vadd.f32 %v4834, %v5026
      %5028 = vmatprep.mubr.bf16.mxu0 %v4280
      %5029 = vmatmul.mubr.bf16.gmra.mxu0 %v4279
      %v5030 = vpop.f32.mrf.mxu0
      %v5031 = vadd.f32 %v4838, %v5030
      %v5032 = vpop.f32.mrf.mxu0
      %v5033 = vadd.f32 %v4840, %v5032
      %v5034 = vpop.f32.mrf.mxu0
      %v5035 = vadd.f32 %v4842, %v5034
      %v5036 = vpop.f32.mrf.mxu0
      %v5037 = vadd.f32 %v4844, %v5036
      %5038 = vmatprep.mubr.bf16.mxu0 %v4284
      %5039 = vmatmul.mubr.bf16.gmra.mxu0 %v4283
      %v5040 = vpop.f32.mrf.mxu0
      %v5041 = vadd.f32 %v4848, %v5040
      %v5042 = vpop.f32.mrf.mxu0
      %v5043 = vadd.f32 %v4850, %v5042
      %v5044 = vpop.f32.mrf.mxu0
      %v5045 = vadd.f32 %v4852, %v5044
      %v5046 = vpop.f32.mrf.mxu0
      %v5047 = vadd.f32 %v4854, %v5046
      %5048 = vmatprep.mubr.bf16.mxu0 %v4288
      %5049 = vmatmul.mubr.bf16.gmra.mxu0 %v4287
      %v5050 = vpop.f32.mrf.mxu0
      %v5051 = vadd.f32 %v4858, %v5050
      %v5052 = vpop.f32.mrf.mxu0
      %v5053 = vadd.f32 %v4860, %v5052
      %v5054 = vpop.f32.mrf.mxu0
      %v5055 = vadd.f32 %v4862, %v5054
      %v5056 = vpop.f32.mrf.mxu0
      %v5057 = vadd.f32 %v4864, %v5056
      %5058 = vmatprep.mubr.bf16.mxu0 %v4292
      %5059 = vmatmul.mubr.bf16.gmra.mxu0 %v4291
      %v5060 = vpop.f32.mrf.mxu0
      %v5061 = vadd.f32 %v4868, %v5060
      %v5062 = vpop.f32.mrf.mxu0
      %v5063 = vadd.f32 %v4870, %v5062
      %v5064 = vpop.f32.mrf.mxu0
      %v5065 = vadd.f32 %v4872, %v5064
      %v5066 = vpop.f32.mrf.mxu0
      %v5067 = vadd.f32 %v4874, %v5066
      %5068 = vmatprep.mubr.bf16.mxu0 %v4296
      %5069 = vmatmul.mubr.bf16.gmra.mxu0 %v4295
      %v5070 = vpop.f32.mrf.mxu0
      %v5071 = vadd.f32 %v4878, %v5070
      %v5072 = vpop.f32.mrf.mxu0
      %v5073 = vadd.f32 %v4880, %v5072
      %v5074 = vpop.f32.mrf.mxu0
      %v5075 = vadd.f32 %v4882, %v5074
      %v5076 = vpop.f32.mrf.mxu0
      %v5077 = vadd.f32 %v4884, %v5076
      %5078 = vdwg.mxu0
      %v5079 = vmax.f32 %v4921, 0.0
      %v5080 = vmax.f32 %v4923, 0.0
      %v5081 = vmax.f32 %v4925, 0.0
      %v5082 = vmax.f32 %v4927, 0.0
      %v5083 = vmax.f32 %v4931, 0.0
      %v5084 = vmax.f32 %v4933, 0.0
      %v5085 = vmax.f32 %v4935, 0.0
      %v5086 = vmax.f32 %v4937, 0.0
      %v5087 = vmax.f32 %v4941, 0.0
      %v5088 = vmax.f32 %v4943, 0.0
      %v5089 = vmax.f32 %v4945, 0.0
      %v5090 = vmax.f32 %v4947, 0.0
      %v5091 = vmax.f32 %v4951, 0.0
      %v5092 = vmax.f32 %v4953, 0.0
      %v5093 = vmax.f32 %v4955, 0.0
      %v5094 = vmax.f32 %v4957, 0.0
      %v5095 = vmax.f32 %v4961, 0.0
      %v5096 = vmax.f32 %v4963, 0.0
      %v5097 = vmax.f32 %v4965, 0.0
      %v5098 = vmax.f32 %v4967, 0.0
      %v5099 = vmax.f32 %v4971, 0.0
      %v5100 = vmax.f32 %v4973, 0.0
      %v5101 = vmax.f32 %v4975, 0.0
      %v5102 = vmax.f32 %v4977, 0.0
      %v5103 = vmax.f32 %v4981, 0.0
      %v5104 = vmax.f32 %v4983, 0.0
      %v5105 = vmax.f32 %v4985, 0.0
      %v5106 = vmax.f32 %v4987, 0.0
      %v5107 = vmax.f32 %v4991, 0.0
      %v5108 = vmax.f32 %v4993, 0.0
      %v5109 = vmax.f32 %v4995, 0.0
      %v5110 = vmax.f32 %v4997, 0.0
      %v5111 = vmax.f32 %v5001, 0.0
      %v5112 = vmax.f32 %v5003, 0.0
      %v5113 = vmax.f32 %v5005, 0.0
      %v5114 = vmax.f32 %v5007, 0.0
      %v5115 = vmax.f32 %v5011, 0.0
      %v5116 = vmax.f32 %v5013, 0.0
      %v5117 = vmax.f32 %v5015, 0.0
      %v5118 = vmax.f32 %v5017, 0.0
      %v5119 = vmax.f32 %v5021, 0.0
      %v5120 = vmax.f32 %v5023, 0.0
      %v5121 = vmax.f32 %v5025, 0.0
      %v5122 = vmax.f32 %v5027, 0.0
      %v5123 = vmax.f32 %v5031, 0.0
      %v5124 = vmax.f32 %v5033, 0.0
      %v5125 = vmax.f32 %v5035, 0.0
      %v5126 = vmax.f32 %v5037, 0.0
      %v5127 = vmax.f32 %v5041, 0.0
      %v5128 = vmax.f32 %v5043, 0.0
      %v5129 = vmax.f32 %v5045, 0.0
      %v5130 = vmax.f32 %v5047, 0.0
      %v5131 = vmax.f32 %v5051, 0.0
      %v5132 = vmax.f32 %v5053, 0.0
      %v5133 = vmax.f32 %v5055, 0.0
      %v5134 = vmax.f32 %v5057, 0.0
      %v5135 = vmax.f32 %v5061, 0.0
      %v5136 = vmax.f32 %v5063, 0.0
      %v5137 = vmax.f32 %v5065, 0.0
      %v5138 = vmax.f32 %v5067, 0.0
      %v5139 = vmax.f32 %v5071, 0.0
      %v5140 = vmax.f32 %v5073, 0.0
      %v5141 = vmax.f32 %v5075, 0.0
      %v5142 = vmax.f32 %v5077, 0.0
      %v5143 = vpack.c.bf16 %v5081, %v5079
      %v5144 = vpack.c.bf16 %v5082, %v5080
      %v5145 = vpack.c.bf16 %v5085, %v5083
      %v5146 = vpack.c.bf16 %v5086, %v5084
      %v5147 = vpack.c.bf16 %v5089, %v5087
      %v5148 = vpack.c.bf16 %v5090, %v5088
      %v5149 = vpack.c.bf16 %v5093, %v5091
      %v5150 = vpack.c.bf16 %v5094, %v5092
      %v5151 = vpack.c.bf16 %v5097, %v5095
      %v5152 = vpack.c.bf16 %v5098, %v5096
      %v5153 = vpack.c.bf16 %v5101, %v5099
      %v5154 = vpack.c.bf16 %v5102, %v5100
      %v5155 = vpack.c.bf16 %v5105, %v5103
      %v5156 = vpack.c.bf16 %v5106, %v5104
      %v5157 = vpack.c.bf16 %v5109, %v5107
      %v5158 = vpack.c.bf16 %v5110, %v5108
      %v5159 = vpack.c.bf16 %v5113, %v5111
      %v5160 = vpack.c.bf16 %v5114, %v5112
      %v5161 = vpack.c.bf16 %v5117, %v5115
      %v5162 = vpack.c.bf16 %v5118, %v5116
      %v5163 = vpack.c.bf16 %v5121, %v5119
      %v5164 = vpack.c.bf16 %v5122, %v5120
      %v5165 = vpack.c.bf16 %v5125, %v5123
      %v5166 = vpack.c.bf16 %v5126, %v5124
      %v5167 = vpack.c.bf16 %v5129, %v5127
      %v5168 = vpack.c.bf16 %v5130, %v5128
      %v5169 = vpack.c.bf16 %v5133, %v5131
      %v5170 = vpack.c.bf16 %v5134, %v5132
      %v5171 = vpack.c.bf16 %v5137, %v5135
      %v5172 = vpack.c.bf16 %v5138, %v5136
      %v5173 = vpack.c.bf16 %v5141, %v5139
      %v5174 = vpack.c.bf16 %v5142, %v5140
      %v5175 = vld [vmem:[%s5] sm:$0xf]
      %v5176 = vld [vmem:[%s5 + $0x4] sm:$0xf]
      %v5177 = vld [vmem:[%s5 + $0x8] sm:$0xf]
      %v5178 = vld [vmem:[%s5 + $0xc] sm:$0xf]
      %v5179 = vld [vmem:[%s5 + $0x10] sm:$0xf]
      %v5180 = vld [vmem:[%s5 + $0x14] sm:$0xf]
      %v5181 = vld [vmem:[%s5 + $0x18] sm:$0xf]
      %v5182 = vld [vmem:[%s5 + $0x1c] sm:$0xf]
      %v5183 = vld [vmem:[%s5 + $0x20] sm:$0xf]
      %v5184 = vld [vmem:[%s5 + $0x24] sm:$0xf]
      %v5185 = vld [vmem:[%s5 + $0x28] sm:$0xf]
      %v5186 = vld [vmem:[%s5 + $0x2c] sm:$0xf]
      %v5187 = vld [vmem:[%s5 + $0x30] sm:$0xf]
      %v5188 = vld [vmem:[%s5 + $0x34] sm:$0xf]
      %v5189 = vld [vmem:[%s5 + $0x38] sm:$0xf]
      %v5190 = vld [vmem:[%s5 + $0x3c] sm:$0xf]
      %v5191 = vld [vmem:[%s5 + $0x40] sm:$0xf]
      %v5192 = vld [vmem:[%s5 + $0x44] sm:$0xf]
      %v5193 = vld [vmem:[%s5 + $0x48] sm:$0xf]
      %v5194 = vld [vmem:[%s5 + $0x4c] sm:$0xf]
      %v5195 = vld [vmem:[%s5 + $0x50] sm:$0xf]
      %v5196 = vld [vmem:[%s5 + $0x54] sm:$0xf]
      %v5197 = vld [vmem:[%s5 + $0x58] sm:$0xf]
      %v5198 = vld [vmem:[%s5 + $0x5c] sm:$0xf]
      %v5199 = vld [vmem:[%s5 + $0x60] sm:$0xf]
      %v5200 = vld [vmem:[%s5 + $0x64] sm:$0xf]
      %v5201 = vld [vmem:[%s5 + $0x68] sm:$0xf]
      %v5202 = vld [vmem:[%s5 + $0x6c] sm:$0xf]
      %v5203 = vld [vmem:[%s5 + $0x70] sm:$0xf]
      %v5204 = vld [vmem:[%s5 + $0x74] sm:$0xf]
      %v5205 = vld [vmem:[%s5 + $0x78] sm:$0xf]
      %v5206 = vld [vmem:[%s5 + $0x7c] sm:$0xf]
      %v5207 = vld [vmem:[%s6] sm:$0x1]
      %v5209 = vlaneseq
      %v5210 = vshrl.u32 %v5209, 7
      %v5211 = vsub.s32 0, %v5210
      %v5212 = vrot.slane %v5207, %v5211
      %v5246 = vunpack.c.l.b16 %v5175
      %v5247 = vunpack.c.l.b16 %v5176
      %v5248 = vunpack.c.l.b16 %v5177
      %v5249 = vunpack.c.l.b16 %v5178
      %v5250 = vunpack.c.l.b16 %v5179
      %v5251 = vunpack.c.l.b16 %v5180
      %v5252 = vunpack.c.l.b16 %v5181
      %v5253 = vunpack.c.l.b16 %v5182
      %v5254 = vunpack.c.l.b16 %v5183
      %v5255 = vunpack.c.l.b16 %v5184
      %v5256 = vunpack.c.l.b16 %v5185
      %v5257 = vunpack.c.l.b16 %v5186
      %v5258 = vunpack.c.l.b16 %v5187
      %v5259 = vunpack.c.l.b16 %v5188
      %v5260 = vunpack.c.l.b16 %v5189
      %v5261 = vunpack.c.l.b16 %v5190
      %v5262 = vunpack.c.l.b16 %v5191
      %v5263 = vunpack.c.l.b16 %v5192
      %v5264 = vunpack.c.l.b16 %v5193
      %v5265 = vunpack.c.l.b16 %v5194
      %v5266 = vunpack.c.l.b16 %v5195
      %v5267 = vunpack.c.l.b16 %v5196
      %v5268 = vunpack.c.l.b16 %v5197
      %v5269 = vunpack.c.l.b16 %v5198
      %v5270 = vunpack.c.l.b16 %v5199
      %v5271 = vunpack.c.l.b16 %v5200
      %v5272 = vunpack.c.l.b16 %v5201
      %v5273 = vunpack.c.l.b16 %v5202
      %v5274 = vunpack.c.l.b16 %v5203
      %v5275 = vunpack.c.l.b16 %v5204
      %v5276 = vunpack.c.l.b16 %v5205
      %v5277 = vunpack.c.l.b16 %v5206
      %v5278 = vpack.c.b16 %v5247, %v5246
      %v5279 = vpack.c.b16 %v5249, %v5248
      %v5280 = vpack.c.b16 %v5251, %v5250
      %v5281 = vpack.c.b16 %v5253, %v5252
      %v5282 = vpack.c.b16 %v5255, %v5254
      %v5283 = vpack.c.b16 %v5257, %v5256
      %v5284 = vpack.c.b16 %v5259, %v5258
      %v5285 = vpack.c.b16 %v5261, %v5260
      %v5286 = vpack.c.b16 %v5263, %v5262
      %v5287 = vpack.c.b16 %v5265, %v5264
      %v5288 = vpack.c.b16 %v5267, %v5266
      %v5289 = vpack.c.b16 %v5269, %v5268
      %v5290 = vpack.c.b16 %v5271, %v5270
      %v5291 = vpack.c.b16 %v5273, %v5272
      %v5292 = vpack.c.b16 %v5275, %v5274
      %v5293 = vpack.c.b16 %v5277, %v5276
      %5310 = vmatprep.subr.bf16.mxu0 0
      %5311 = vmatpush1.bf16.msra.mxu0 %v5285
      %5312 = vmatprep.subr.bf16.mxu0 0
      %5313 = vmatpush1.bf16.msra.mxu0 %v5284
      %5314 = vmatprep.subr.bf16.mxu0 0
      %5315 = vmatpush1.bf16.msra.mxu0 %v5283
      %5316 = vmatprep.subr.bf16.mxu0 0
      %5317 = vmatpush1.bf16.msra.mxu0 %v5282
      %5318 = vmatprep.subr.bf16.mxu0 0
      %5319 = vmatpush1.bf16.msra.mxu0 %v5281
      %5320 = vmatprep.subr.bf16.mxu0 0
      %5321 = vmatpush1.bf16.msra.mxu0 %v5280
      %5322 = vmatprep.subr.bf16.mxu0 0
      %5323 = vmatpush1.bf16.msra.mxu0 %v5279
      %5324 = vmatprep.subr.bf16.mxu0 0
      %5325 = vmatpush1.bf16.msra.mxu0 %v5278
      %5326 = vmatprep.subr.bf16.mxu0 0
      %5327 = vmatpush2.bf16.msra.mxu0 %v5293
      %5328 = vmatprep.subr.bf16.mxu0 0
      %5329 = vmatpush2.bf16.msra.mxu0 %v5292
      %5330 = vmatprep.subr.bf16.mxu0 0
      %5331 = vmatpush2.bf16.msra.mxu0 %v5291
      %5332 = vmatprep.subr.bf16.mxu0 0
      %5333 = vmatpush2.bf16.msra.mxu0 %v5290
      %5334 = vmatprep.subr.bf16.mxu0 0
      %5335 = vmatpush2.bf16.msra.mxu0 %v5289
      %5336 = vmatprep.subr.bf16.mxu0 0
      %5337 = vmatpush2.bf16.msra.mxu0 %v5288
      %5338 = vmatprep.subr.bf16.mxu0 0
      %5339 = vmatpush2.bf16.msra.mxu0 %v5287
      %5340 = vmatprep.subr.bf16.mxu0 0
      %5341 = vmatpush2.bf16.msra.mxu0 %v5286
      %5342 = vmatprep.mubr.bf16.mxu0 %v5144
      %5343 = vmatmul.mubr.bf16.gmra.mxu0 %v5143
      %v5344 = vpop.f32.mrf.mxu0
      %v5345 = vadd.f32 %v5212, %v5344
      %v5346 = vpop.f32.mrf.mxu0
      %v5347 = vpop.f32.mrf.mxu0
      %v5348 = vadd.f32 %v5212, %v5347
      %v5349 = vpop.f32.mrf.mxu0
      %5350 = vmatprep.mubr.bf16.mxu0 %v5146
      %5351 = vmatmul.mubr.bf16.gmra.mxu0 %v5145
      %v5352 = vpop.f32.mrf.mxu0
      %v5353 = vadd.f32 %v5212, %v5352
      %v5354 = vpop.f32.mrf.mxu0
      %v5355 = vpop.f32.mrf.mxu0
      %v5356 = vadd.f32 %v5212, %v5355
      %v5357 = vpop.f32.mrf.mxu0
      %5358 = vmatprep.mubr.bf16.mxu0 %v5148
      %5359 = vmatmul.mubr.bf16.gmra.mxu0 %v5147
      %v5360 = vpop.f32.mrf.mxu0
      %v5361 = vadd.f32 %v5212, %v5360
      %v5362 = vpop.f32.mrf.mxu0
      %v5363 = vpop.f32.mrf.mxu0
      %v5364 = vadd.f32 %v5212, %v5363
      %v5365 = vpop.f32.mrf.mxu0
      %5366 = vmatprep.mubr.bf16.mxu0 %v5150
      %5367 = vmatmul.mubr.bf16.gmra.mxu0 %v5149
      %v5368 = vpop.f32.mrf.mxu0
      %v5369 = vadd.f32 %v5212, %v5368
      %v5370 = vpop.f32.mrf.mxu0
      %v5371 = vpop.f32.mrf.mxu0
      %v5372 = vadd.f32 %v5212, %v5371
      %v5373 = vpop.f32.mrf.mxu0
      %5374 = vmatprep.mubr.bf16.mxu0 %v5152
      %5375 = vmatmul.mubr.bf16.gmra.mxu0 %v5151
      %v5376 = vpop.f32.mrf.mxu0
      %v5377 = vadd.f32 %v5212, %v5376
      %v5378 = vpop.f32.mrf.mxu0
      %v5379 = vpop.f32.mrf.mxu0
      %v5380 = vadd.f32 %v5212, %v5379
      %v5381 = vpop.f32.mrf.mxu0
      %5382 = vmatprep.mubr.bf16.mxu0 %v5154
      %5383 = vmatmul.mubr.bf16.gmra.mxu0 %v5153
      %v5384 = vpop.f32.mrf.mxu0
      %v5385 = vadd.f32 %v5212, %v5384
      %v5386 = vpop.f32.mrf.mxu0
      %v5387 = vpop.f32.mrf.mxu0
      %v5388 = vadd.f32 %v5212, %v5387
      %v5389 = vpop.f32.mrf.mxu0
      %5390 = vmatprep.mubr.bf16.mxu0 %v5156
      %5391 = vmatmul.mubr.bf16.gmra.mxu0 %v5155
      %v5392 = vpop.f32.mrf.mxu0
      %v5393 = vadd.f32 %v5212, %v5392
      %v5394 = vpop.f32.mrf.mxu0
      %v5395 = vpop.f32.mrf.mxu0
      %v5396 = vadd.f32 %v5212, %v5395
      %v5397 = vpop.f32.mrf.mxu0
      %5398 = vmatprep.mubr.bf16.mxu0 %v5158
      %5399 = vmatmul.mubr.bf16.gmra.mxu0 %v5157
      %v5400 = vpop.f32.mrf.mxu0
      %v5401 = vadd.f32 %v5212, %v5400
      %v5402 = vpop.f32.mrf.mxu0
      %v5403 = vpop.f32.mrf.mxu0
      %v5404 = vadd.f32 %v5212, %v5403
      %v5405 = vpop.f32.mrf.mxu0
      %5406 = vmatprep.mubr.bf16.mxu0 %v5160
      %5407 = vmatmul.mubr.bf16.gmra.mxu0 %v5159
      %v5408 = vpop.f32.mrf.mxu0
      %v5409 = vadd.f32 %v5212, %v5408
      %v5410 = vpop.f32.mrf.mxu0
      %v5411 = vpop.f32.mrf.mxu0
      %v5412 = vadd.f32 %v5212, %v5411
      %v5413 = vpop.f32.mrf.mxu0
      %5414 = vmatprep.mubr.bf16.mxu0 %v5162
      %5415 = vmatmul.mubr.bf16.gmra.mxu0 %v5161
      %v5416 = vpop.f32.mrf.mxu0
      %v5417 = vadd.f32 %v5212, %v5416
      %v5418 = vpop.f32.mrf.mxu0
      %v5419 = vpop.f32.mrf.mxu0
      %v5420 = vadd.f32 %v5212, %v5419
      %v5421 = vpop.f32.mrf.mxu0
      %5422 = vmatprep.mubr.bf16.mxu0 %v5164
      %5423 = vmatmul.mubr.bf16.gmra.mxu0 %v5163
      %v5424 = vpop.f32.mrf.mxu0
      %v5425 = vadd.f32 %v5212, %v5424
      %v5426 = vpop.f32.mrf.mxu0
      %v5427 = vpop.f32.mrf.mxu0
      %v5428 = vadd.f32 %v5212, %v5427
      %v5429 = vpop.f32.mrf.mxu0
      %5430 = vmatprep.mubr.bf16.mxu0 %v5166
      %5431 = vmatmul.mubr.bf16.gmra.mxu0 %v5165
      %v5432 = vpop.f32.mrf.mxu0
      %v5433 = vadd.f32 %v5212, %v5432
      %v5434 = vpop.f32.mrf.mxu0
      %v5435 = vpop.f32.mrf.mxu0
      %v5436 = vadd.f32 %v5212, %v5435
      %v5437 = vpop.f32.mrf.mxu0
      %5438 = vmatprep.mubr.bf16.mxu0 %v5168
      %5439 = vmatmul.mubr.bf16.gmra.mxu0 %v5167
      %v5440 = vpop.f32.mrf.mxu0
      %v5441 = vadd.f32 %v5212, %v5440
      %v5442 = vpop.f32.mrf.mxu0
      %v5443 = vpop.f32.mrf.mxu0
      %v5444 = vadd.f32 %v5212, %v5443
      %v5445 = vpop.f32.mrf.mxu0
      %5446 = vmatprep.mubr.bf16.mxu0 %v5170
      %5447 = vmatmul.mubr.bf16.gmra.mxu0 %v5169
      %v5448 = vpop.f32.mrf.mxu0
      %v5449 = vadd.f32 %v5212, %v5448
      %v5450 = vpop.f32.mrf.mxu0
      %v5451 = vpop.f32.mrf.mxu0
      %v5452 = vadd.f32 %v5212, %v5451
      %v5453 = vpop.f32.mrf.mxu0
      %5454 = vmatprep.mubr.bf16.mxu0 %v5172
      %5455 = vmatmul.mubr.bf16.gmra.mxu0 %v5171
      %v5456 = vpop.f32.mrf.mxu0
      %v5457 = vadd.f32 %v5212, %v5456
      %v5458 = vpop.f32.mrf.mxu0
      %v5459 = vpop.f32.mrf.mxu0
      %v5460 = vadd.f32 %v5212, %v5459
      %v5461 = vpop.f32.mrf.mxu0
      %5462 = vmatprep.mubr.bf16.mxu0 %v5174
      %5463 = vmatmul.mubr.bf16.gmra.mxu0 %v5173
      %v5464 = vpop.f32.mrf.mxu0
      %v5465 = vadd.f32 %v5212, %v5464
      %v5466 = vpop.f32.mrf.mxu0
      %v5467 = vpop.f32.mrf.mxu0
      %v5468 = vadd.f32 %v5212, %v5467
      %v5469 = vpop.f32.mrf.mxu0
      %5470 = vdwg.mxu0
      %5471 = vst [vmem:[%s481] sm:$0xff] %v5345
      %5472 = vst [vmem:[%s481 + $0x8] sm:$0xff] %v5348
      %5473 = vst [vmem:[%s481 + $0x10] sm:$0xff] %v5353
      %5474 = vst [vmem:[%s481 + $0x18] sm:$0xff] %v5356
      %5475 = vst [vmem:[%s481 + $0x20] sm:$0xff] %v5361
      %5476 = vst [vmem:[%s481 + $0x28] sm:$0xff] %v5364
      %5477 = vst [vmem:[%s481 + $0x30] sm:$0xff] %v5369
      %5478 = vst [vmem:[%s481 + $0x38] sm:$0xff] %v5372
      %5479 = vst [vmem:[%s481 + $0x40] sm:$0xff] %v5377
      %5480 = vst [vmem:[%s481 + $0x48] sm:$0xff] %v5380
      %5481 = vst [vmem:[%s481 + $0x50] sm:$0xff] %v5385
      %5482 = vst [vmem:[%s481 + $0x58] sm:$0xff] %v5388
      %5483 = vst [vmem:[%s481 + $0x60] sm:$0xff] %v5393
      %5484 = vst [vmem:[%s481 + $0x68] sm:$0xff] %v5396
      %5485 = vst [vmem:[%s481 + $0x70] sm:$0xff] %v5401
      %5486 = vst [vmem:[%s481 + $0x78] sm:$0xff] %v5404
      %5487 = vst [vmem:[%s481 + $0x80] sm:$0xff] %v5409
      %5488 = vst [vmem:[%s481 + $0x88] sm:$0xff] %v5412
      %5489 = vst [vmem:[%s481 + $0x90] sm:$0xff] %v5417
      %5490 = vst [vmem:[%s481 + $0x98] sm:$0xff] %v5420
      %5491 = vst [vmem:[%s481 + $0xa0] sm:$0xff] %v5425
      %5492 = vst [vmem:[%s481 + $0xa8] sm:$0xff] %v5428
      %5493 = vst [vmem:[%s481 + $0xb0] sm:$0xff] %v5433
      %5494 = vst [vmem:[%s481 + $0xb8] sm:$0xff] %v5436
      %5495 = vst [vmem:[%s481 + $0xc0] sm:$0xff] %v5441
      %5496 = vst [vmem:[%s481 + $0xc8] sm:$0xff] %v5444
      %5497 = vst [vmem:[%s481 + $0xd0] sm:$0xff] %v5449
      %5498 = vst [vmem:[%s481 + $0xd8] sm:$0xff] %v5452
      %5499 = vst [vmem:[%s481 + $0xe0] sm:$0xff] %v5457
      %5500 = vst [vmem:[%s481 + $0xe8] sm:$0xff] %v5460
      %5501 = vst [vmem:[%s481 + $0xf0] sm:$0xff] %v5465
      %5502 = vst [vmem:[%s481 + $0xf8] sm:$0xff] %v5468
      %v5503 = vpack.c.bf16 %v5348, %v5345
      %v5504 = vpack.c.bf16 %v5356, %v5353
      %v5505 = vpack.c.bf16 %v5364, %v5361
      %v5506 = vpack.c.bf16 %v5372, %v5369
      %v5507 = vpack.c.bf16 %v5380, %v5377
      %v5508 = vpack.c.bf16 %v5388, %v5385
      %v5509 = vpack.c.bf16 %v5396, %v5393
      %v5510 = vpack.c.bf16 %v5404, %v5401
      %v5511 = vpack.c.bf16 %v5412, %v5409
      %v5512 = vpack.c.bf16 %v5420, %v5417
      %v5513 = vpack.c.bf16 %v5428, %v5425
      %v5514 = vpack.c.bf16 %v5436, %v5433
      %v5515 = vpack.c.bf16 %v5444, %v5441
      %v5516 = vpack.c.bf16 %v5452, %v5449
      %v5517 = vpack.c.bf16 %v5460, %v5457
      %v5518 = vpack.c.bf16 %v5468, %v5465
      %v5519 = vld [vmem:[%s7] sm:$0xff]
      %v5520 = vld [vmem:[%s7 + $0x8] sm:$0xff]
      %v5521 = vld [vmem:[%s7 + $0x10] sm:$0xff]
      %v5522 = vld [vmem:[%s7 + $0x18] sm:$0xff]
      %v5523 = vld [vmem:[%s7 + $0x20] sm:$0xff]
      %v5524 = vld [vmem:[%s7 + $0x28] sm:$0xff]
      %v5525 = vld [vmem:[%s7 + $0x30] sm:$0xff]
      %v5526 = vld [vmem:[%s7 + $0x38] sm:$0xff]
      %v5527 = vld [vmem:[%s7 + $0x40] sm:$0xff]
      %v5528 = vld [vmem:[%s7 + $0x48] sm:$0xff]
      %v5529 = vld [vmem:[%s7 + $0x50] sm:$0xff]
      %v5530 = vld [vmem:[%s7 + $0x58] sm:$0xff]
      %v5531 = vld [vmem:[%s7 + $0x60] sm:$0xff]
      %v5532 = vld [vmem:[%s7 + $0x68] sm:$0xff]
      %v5533 = vld [vmem:[%s7 + $0x70] sm:$0xff]
      %v5534 = vld [vmem:[%s7 + $0x78] sm:$0xff]
      %v5535 = vld [vmem:[%s8] sm:$0x3]
      %v5537 = vlaneseq
      %v5538 = vshrl.u32 %v5537, 7
      %v5539 = vsub.s32 0, %v5538
      %v5540 = vrot.slane %v5535, %v5539
      %v5541 = vlaneseq
      %v5542 = vshrl.u32 %v5541, 7
      %v5543 = vsub.s32 1, %v5542
      %v5544 = vrot.slane %v5535, %v5543
      %v5563 = vunpack.c.l.b16 %v5519
      %v5564 = vunpack.c.h.b16 %v5519
      %v5565 = vunpack.c.l.b16 %v5520
      %v5566 = vunpack.c.h.b16 %v5520
      %v5567 = vunpack.c.l.b16 %v5521
      %v5568 = vunpack.c.h.b16 %v5521
      %v5569 = vunpack.c.l.b16 %v5522
      %v5570 = vunpack.c.h.b16 %v5522
      %v5571 = vunpack.c.l.b16 %v5523
      %v5572 = vunpack.c.h.b16 %v5523
      %v5573 = vunpack.c.l.b16 %v5524
      %v5574 = vunpack.c.h.b16 %v5524
      %v5575 = vunpack.c.l.b16 %v5525
      %v5576 = vunpack.c.h.b16 %v5525
      %v5577 = vunpack.c.l.b16 %v5526
      %v5578 = vunpack.c.h.b16 %v5526
      %v5579 = vunpack.c.l.b16 %v5527
      %v5580 = vunpack.c.h.b16 %v5527
      %v5581 = vunpack.c.l.b16 %v5528
      %v5582 = vunpack.c.h.b16 %v5528
      %v5583 = vunpack.c.l.b16 %v5529
      %v5584 = vunpack.c.h.b16 %v5529
      %v5585 = vunpack.c.l.b16 %v5530
      %v5586 = vunpack.c.h.b16 %v5530
      %v5587 = vunpack.c.l.b16 %v5531
      %v5588 = vunpack.c.h.b16 %v5531
      %v5589 = vunpack.c.l.b16 %v5532
      %v5590 = vunpack.c.h.b16 %v5532
      %v5591 = vunpack.c.l.b16 %v5533
      %v5592 = vunpack.c.h.b16 %v5533
      %v5593 = vunpack.c.l.b16 %v5534
      %v5594 = vunpack.c.h.b16 %v5534
      %v5595 = vpack.c.b16 %v5565, %v5563
      %v5596 = vpack.c.b16 %v5566, %v5564
      %v5597 = vpack.c.b16 %v5569, %v5567
      %v5598 = vpack.c.b16 %v5570, %v5568
      %v5599 = vpack.c.b16 %v5573, %v5571
      %v5600 = vpack.c.b16 %v5574, %v5572
      %v5601 = vpack.c.b16 %v5577, %v5575
      %v5602 = vpack.c.b16 %v5578, %v5576
      %v5603 = vpack.c.b16 %v5581, %v5579
      %v5604 = vpack.c.b16 %v5582, %v5580
      %v5605 = vpack.c.b16 %v5585, %v5583
      %v5606 = vpack.c.b16 %v5586, %v5584
      %v5607 = vpack.c.b16 %v5589, %v5587
      %v5608 = vpack.c.b16 %v5590, %v5588
      %v5609 = vpack.c.b16 %v5593, %v5591
      %v5610 = vpack.c.b16 %v5594, %v5592
      %5627 = vmatprep.subr.bf16.mxu0 %v5610
      %5628 = vmatpush1.bf16.msra.mxu0 %v5609
      %5629 = vmatprep.subr.bf16.mxu0 %v5608
      %5630 = vmatpush1.bf16.msra.mxu0 %v5607
      %5631 = vmatprep.subr.bf16.mxu0 %v5606
      %5632 = vmatpush1.bf16.msra.mxu0 %v5605
      %5633 = vmatprep.subr.bf16.mxu0 %v5604
      %5634 = vmatpush1.bf16.msra.mxu0 %v5603
      %5635 = vmatprep.subr.bf16.mxu0 %v5602
      %5636 = vmatpush1.bf16.msra.mxu0 %v5601
      %5637 = vmatprep.subr.bf16.mxu0 %v5600
      %5638 = vmatpush1.bf16.msra.mxu0 %v5599
      %5639 = vmatprep.subr.bf16.mxu0 %v5598
      %5640 = vmatpush1.bf16.msra.mxu0 %v5597
      %5641 = vmatprep.subr.bf16.mxu0 %v5596
      %5642 = vmatpush1.bf16.msra.mxu0 %v5595
      %5643 = vmatprep.subr.bf16.mxu0 0
      %5644 = vmatpush2.bf16.msra.mxu0 0
      %5645 = vmatprep.subr.bf16.mxu0 0
      %5646 = vmatpush2.bf16.msra.mxu0 0
      %5647 = vmatprep.subr.bf16.mxu0 0
      %5648 = vmatpush2.bf16.msra.mxu0 0
      %5649 = vmatprep.subr.bf16.mxu0 0
      %5650 = vmatpush2.bf16.msra.mxu0 0
      %5651 = vmatprep.subr.bf16.mxu0 0
      %5652 = vmatpush2.bf16.msra.mxu0 0
      %5653 = vmatprep.subr.bf16.mxu0 0
      %5654 = vmatpush2.bf16.msra.mxu0 0
      %5655 = vmatprep.subr.bf16.mxu0 0
      %5656 = vmatpush2.bf16.msra.mxu0 0
      %5657 = vmatprep.subr.bf16.mxu0 0
      %5658 = vmatpush2.bf16.msra.mxu0 0
      %5659 = vmatprep.mubr.bf16.mxu0 0
      %5660 = vmatmul.mubr.bf16.gmra.mxu0 %v5503
      %v5661 = vpop.f32.mrf.mxu0
      %v5662 = vadd.f32 %v5540, %v5661
      %v5663 = vpop.f32.mrf.mxu0
      %v5664 = vadd.f32 %v5544, %v5663
      %v5665 = vpop.f32.mrf.mxu0
      %v5666 = vadd.f32 %v5540, %v5665
      %v5667 = vpop.f32.mrf.mxu0
      %v5668 = vadd.f32 %v5544, %v5667
      %5669 = vmatprep.mubr.bf16.mxu0 0
      %5670 = vmatmul.mubr.bf16.gmra.mxu0 %v5504
      %v5671 = vpop.f32.mrf.mxu0
      %v5672 = vadd.f32 %v5540, %v5671
      %v5673 = vpop.f32.mrf.mxu0
      %v5674 = vadd.f32 %v5544, %v5673
      %v5675 = vpop.f32.mrf.mxu0
      %v5676 = vadd.f32 %v5540, %v5675
      %v5677 = vpop.f32.mrf.mxu0
      %v5678 = vadd.f32 %v5544, %v5677
      %5679 = vmatprep.mubr.bf16.mxu0 0
      %5680 = vmatmul.mubr.bf16.gmra.mxu0 %v5505
      %v5681 = vpop.f32.mrf.mxu0
      %v5682 = vadd.f32 %v5540, %v5681
      %v5683 = vpop.f32.mrf.mxu0
      %v5684 = vadd.f32 %v5544, %v5683
      %v5685 = vpop.f32.mrf.mxu0
      %v5686 = vadd.f32 %v5540, %v5685
      %v5687 = vpop.f32.mrf.mxu0
      %v5688 = vadd.f32 %v5544, %v5687
      %5689 = vmatprep.mubr.bf16.mxu0 0
      %5690 = vmatmul.mubr.bf16.gmra.mxu0 %v5506
      %v5691 = vpop.f32.mrf.mxu0
      %v5692 = vadd.f32 %v5540, %v5691
      %v5693 = vpop.f32.mrf.mxu0
      %v5694 = vadd.f32 %v5544, %v5693
      %v5695 = vpop.f32.mrf.mxu0
      %v5696 = vadd.f32 %v5540, %v5695
      %v5697 = vpop.f32.mrf.mxu0
      %v5698 = vadd.f32 %v5544, %v5697
      %5699 = vmatprep.mubr.bf16.mxu0 0
      %5700 = vmatmul.mubr.bf16.gmra.mxu0 %v5507
      %v5701 = vpop.f32.mrf.mxu0
      %v5702 = vadd.f32 %v5540, %v5701
      %v5703 = vpop.f32.mrf.mxu0
      %v5704 = vadd.f32 %v5544, %v5703
      %v5705 = vpop.f32.mrf.mxu0
      %v5706 = vadd.f32 %v5540, %v5705
      %v5707 = vpop.f32.mrf.mxu0
      %v5708 = vadd.f32 %v5544, %v5707
      %5709 = vmatprep.mubr.bf16.mxu0 0
      %5710 = vmatmul.mubr.bf16.gmra.mxu0 %v5508
      %v5711 = vpop.f32.mrf.mxu0
      %v5712 = vadd.f32 %v5540, %v5711
      %v5713 = vpop.f32.mrf.mxu0
      %v5714 = vadd.f32 %v5544, %v5713
      %v5715 = vpop.f32.mrf.mxu0
      %v5716 = vadd.f32 %v5540, %v5715
      %v5717 = vpop.f32.mrf.mxu0
      %v5718 = vadd.f32 %v5544, %v5717
      %5719 = vmatprep.mubr.bf16.mxu0 0
      %5720 = vmatmul.mubr.bf16.gmra.mxu0 %v5509
      %v5721 = vpop.f32.mrf.mxu0
      %v5722 = vadd.f32 %v5540, %v5721
      %v5723 = vpop.f32.mrf.mxu0
      %v5724 = vadd.f32 %v5544, %v5723
      %v5725 = vpop.f32.mrf.mxu0
      %v5726 = vadd.f32 %v5540, %v5725
      %v5727 = vpop.f32.mrf.mxu0
      %v5728 = vadd.f32 %v5544, %v5727
      %5729 = vmatprep.mubr.bf16.mxu0 0
      %5730 = vmatmul.mubr.bf16.gmra.mxu0 %v5510
      %v5731 = vpop.f32.mrf.mxu0
      %v5732 = vadd.f32 %v5540, %v5731
      %v5733 = vpop.f32.mrf.mxu0
      %v5734 = vadd.f32 %v5544, %v5733
      %v5735 = vpop.f32.mrf.mxu0
      %v5736 = vadd.f32 %v5540, %v5735
      %v5737 = vpop.f32.mrf.mxu0
      %v5738 = vadd.f32 %v5544, %v5737
      %5739 = vmatprep.mubr.bf16.mxu0 0
      %5740 = vmatmul.mubr.bf16.gmra.mxu0 %v5511
      %v5741 = vpop.f32.mrf.mxu0
      %v5742 = vadd.f32 %v5540, %v5741
      %v5743 = vpop.f32.mrf.mxu0
      %v5744 = vadd.f32 %v5544, %v5743
      %v5745 = vpop.f32.mrf.mxu0
      %v5746 = vadd.f32 %v5540, %v5745
      %v5747 = vpop.f32.mrf.mxu0
      %v5748 = vadd.f32 %v5544, %v5747
      %5749 = vmatprep.mubr.bf16.mxu0 0
      %5750 = vmatmul.mubr.bf16.gmra.mxu0 %v5512
      %v5751 = vpop.f32.mrf.mxu0
      %v5752 = vadd.f32 %v5540, %v5751
      %v5753 = vpop.f32.mrf.mxu0
      %v5754 = vadd.f32 %v5544, %v5753
      %v5755 = vpop.f32.mrf.mxu0
      %v5756 = vadd.f32 %v5540, %v5755
      %v5757 = vpop.f32.mrf.mxu0
      %v5758 = vadd.f32 %v5544, %v5757
      %5759 = vmatprep.mubr.bf16.mxu0 0
      %5760 = vmatmul.mubr.bf16.gmra.mxu0 %v5513
      %v5761 = vpop.f32.mrf.mxu0
      %v5762 = vadd.f32 %v5540, %v5761
      %v5763 = vpop.f32.mrf.mxu0
      %v5764 = vadd.f32 %v5544, %v5763
      %v5765 = vpop.f32.mrf.mxu0
      %v5766 = vadd.f32 %v5540, %v5765
      %v5767 = vpop.f32.mrf.mxu0
      %v5768 = vadd.f32 %v5544, %v5767
      %5769 = vmatprep.mubr.bf16.mxu0 0
      %5770 = vmatmul.mubr.bf16.gmra.mxu0 %v5514
      %v5771 = vpop.f32.mrf.mxu0
      %v5772 = vadd.f32 %v5540, %v5771
      %v5773 = vpop.f32.mrf.mxu0
      %v5774 = vadd.f32 %v5544, %v5773
      %v5775 = vpop.f32.mrf.mxu0
      %v5776 = vadd.f32 %v5540, %v5775
      %v5777 = vpop.f32.mrf.mxu0
      %v5778 = vadd.f32 %v5544, %v5777
      %5779 = vmatprep.mubr.bf16.mxu0 0
      %5780 = vmatmul.mubr.bf16.gmra.mxu0 %v5515
      %v5781 = vpop.f32.mrf.mxu0
      %v5782 = vadd.f32 %v5540, %v5781
      %v5783 = vpop.f32.mrf.mxu0
      %v5784 = vadd.f32 %v5544, %v5783
      %v5785 = vpop.f32.mrf.mxu0
      %v5786 = vadd.f32 %v5540, %v5785
      %v5787 = vpop.f32.mrf.mxu0
      %v5788 = vadd.f32 %v5544, %v5787
      %5789 = vmatprep.mubr.bf16.mxu0 0
      %5790 = vmatmul.mubr.bf16.gmra.mxu0 %v5516
      %v5791 = vpop.f32.mrf.mxu0
      %v5792 = vadd.f32 %v5540, %v5791
      %v5793 = vpop.f32.mrf.mxu0
      %v5794 = vadd.f32 %v5544, %v5793
      %v5795 = vpop.f32.mrf.mxu0
      %v5796 = vadd.f32 %v5540, %v5795
      %v5797 = vpop.f32.mrf.mxu0
      %v5798 = vadd.f32 %v5544, %v5797
      %5799 = vmatprep.mubr.bf16.mxu0 0
      %5800 = vmatmul.mubr.bf16.gmra.mxu0 %v5517
      %v5801 = vpop.f32.mrf.mxu0
      %v5802 = vadd.f32 %v5540, %v5801
      %v5803 = vpop.f32.mrf.mxu0
      %v5804 = vadd.f32 %v5544, %v5803
      %v5805 = vpop.f32.mrf.mxu0
      %v5806 = vadd.f32 %v5540, %v5805
      %v5807 = vpop.f32.mrf.mxu0
      %v5808 = vadd.f32 %v5544, %v5807
      %5809 = vmatprep.mubr.bf16.mxu0 0
      %5810 = vmatmul.mubr.bf16.gmra.mxu0 %v5518
      %v5811 = vpop.f32.mrf.mxu0
      %v5812 = vadd.f32 %v5540, %v5811
      %v5813 = vpop.f32.mrf.mxu0
      %v5814 = vadd.f32 %v5544, %v5813
      %v5815 = vpop.f32.mrf.mxu0
      %v5816 = vadd.f32 %v5540, %v5815
      %v5817 = vpop.f32.mrf.mxu0
      %v5818 = vadd.f32 %v5544, %v5817
      %5819 = vdwg.mxu0
      %v5820 = vmax.f32 %v5662, 0.0
      %v5821 = vmax.f32 %v5664, 0.0
      %v5822 = vmax.f32 %v5666, 0.0
      %v5823 = vmax.f32 %v5668, 0.0
      %v5824 = vmax.f32 %v5672, 0.0
      %v5825 = vmax.f32 %v5674, 0.0
      %v5826 = vmax.f32 %v5676, 0.0
      %v5827 = vmax.f32 %v5678, 0.0
      %v5828 = vmax.f32 %v5682, 0.0
      %v5829 = vmax.f32 %v5684, 0.0
      %v5830 = vmax.f32 %v5686, 0.0
      %v5831 = vmax.f32 %v5688, 0.0
      %v5832 = vmax.f32 %v5692, 0.0
      %v5833 = vmax.f32 %v5694, 0.0
      %v5834 = vmax.f32 %v5696, 0.0
      %v5835 = vmax.f32 %v5698, 0.0
      %v5836 = vmax.f32 %v5702, 0.0
      %v5837 = vmax.f32 %v5704, 0.0
      %v5838 = vmax.f32 %v5706, 0.0
      %v5839 = vmax.f32 %v5708, 0.0
      %v5840 = vmax.f32 %v5712, 0.0
      %v5841 = vmax.f32 %v5714, 0.0
      %v5842 = vmax.f32 %v5716, 0.0
      %v5843 = vmax.f32 %v5718, 0.0
      %v5844 = vmax.f32 %v5722, 0.0
      %v5845 = vmax.f32 %v5724, 0.0
      %v5846 = vmax.f32 %v5726, 0.0
      %v5847 = vmax.f32 %v5728, 0.0
      %v5848 = vmax.f32 %v5732, 0.0
      %v5849 = vmax.f32 %v5734, 0.0
      %v5850 = vmax.f32 %v5736, 0.0
      %v5851 = vmax.f32 %v5738, 0.0
      %v5852 = vmax.f32 %v5742, 0.0
      %v5853 = vmax.f32 %v5744, 0.0
      %v5854 = vmax.f32 %v5746, 0.0
      %v5855 = vmax.f32 %v5748, 0.0
      %v5856 = vmax.f32 %v5752, 0.0
      %v5857 = vmax.f32 %v5754, 0.0
      %v5858 = vmax.f32 %v5756, 0.0
      %v5859 = vmax.f32 %v5758, 0.0
      %v5860 = vmax.f32 %v5762, 0.0
      %v5861 = vmax.f32 %v5764, 0.0
      %v5862 = vmax.f32 %v5766, 0.0
      %v5863 = vmax.f32 %v5768, 0.0
      %v5864 = vmax.f32 %v5772, 0.0
      %v5865 = vmax.f32 %v5774, 0.0
      %v5866 = vmax.f32 %v5776, 0.0
      %v5867 = vmax.f32 %v5778, 0.0
      %v5868 = vmax.f32 %v5782, 0.0
      %v5869 = vmax.f32 %v5784, 0.0
      %v5870 = vmax.f32 %v5786, 0.0
      %v5871 = vmax.f32 %v5788, 0.0
      %v5872 = vmax.f32 %v5792, 0.0
      %v5873 = vmax.f32 %v5794, 0.0
      %v5874 = vmax.f32 %v5796, 0.0
      %v5875 = vmax.f32 %v5798, 0.0
      %v5876 = vmax.f32 %v5802, 0.0
      %v5877 = vmax.f32 %v5804, 0.0
      %v5878 = vmax.f32 %v5806, 0.0
      %v5879 = vmax.f32 %v5808, 0.0
      %v5880 = vmax.f32 %v5812, 0.0
      %v5881 = vmax.f32 %v5814, 0.0
      %v5882 = vmax.f32 %v5816, 0.0
      %v5883 = vmax.f32 %v5818, 0.0
      %v5884 = vpack.c.bf16 %v5822, %v5820
      %v5885 = vpack.c.bf16 %v5823, %v5821
      %v5886 = vpack.c.bf16 %v5826, %v5824
      %v5887 = vpack.c.bf16 %v5827, %v5825
      %v5888 = vpack.c.bf16 %v5830, %v5828
      %v5889 = vpack.c.bf16 %v5831, %v5829
      %v5890 = vpack.c.bf16 %v5834, %v5832
      %v5891 = vpack.c.bf16 %v5835, %v5833
      %v5892 = vpack.c.bf16 %v5838, %v5836
      %v5893 = vpack.c.bf16 %v5839, %v5837
      %v5894 = vpack.c.bf16 %v5842, %v5840
      %v5895 = vpack.c.bf16 %v5843, %v5841
      %v5896 = vpack.c.bf16 %v5846, %v5844
      %v5897 = vpack.c.bf16 %v5847, %v5845
      %v5898 = vpack.c.bf16 %v5850, %v5848
      %v5899 = vpack.c.bf16 %v5851, %v5849
      %v5900 = vpack.c.bf16 %v5854, %v5852
      %v5901 = vpack.c.bf16 %v5855, %v5853
      %v5902 = vpack.c.bf16 %v5858, %v5856
      %v5903 = vpack.c.bf16 %v5859, %v5857
      %v5904 = vpack.c.bf16 %v5862, %v5860
      %v5905 = vpack.c.bf16 %v5863, %v5861
      %v5906 = vpack.c.bf16 %v5866, %v5864
      %v5907 = vpack.c.bf16 %v5867, %v5865
      %v5908 = vpack.c.bf16 %v5870, %v5868
      %v5909 = vpack.c.bf16 %v5871, %v5869
      %v5910 = vpack.c.bf16 %v5874, %v5872
      %v5911 = vpack.c.bf16 %v5875, %v5873
      %v5912 = vpack.c.bf16 %v5878, %v5876
      %v5913 = vpack.c.bf16 %v5879, %v5877
      %v5914 = vpack.c.bf16 %v5882, %v5880
      %v5915 = vpack.c.bf16 %v5883, %v5881
      %v5916 = vld [vmem:[%s9] sm:$0xff]
      %v5917 = vld [vmem:[%s9 + $0x8] sm:$0xff]
      %v5918 = vld [vmem:[%s9 + $0x10] sm:$0xff]
      %v5919 = vld [vmem:[%s9 + $0x18] sm:$0xff]
      %v5920 = vld [vmem:[%s9 + $0x20] sm:$0xff]
      %v5921 = vld [vmem:[%s9 + $0x28] sm:$0xff]
      %v5922 = vld [vmem:[%s9 + $0x30] sm:$0xff]
      %v5923 = vld [vmem:[%s9 + $0x38] sm:$0xff]
      %v5924 = vld [vmem:[%s9 + $0x40] sm:$0xff]
      %v5925 = vld [vmem:[%s9 + $0x48] sm:$0xff]
      %v5926 = vld [vmem:[%s9 + $0x50] sm:$0xff]
      %v5927 = vld [vmem:[%s9 + $0x58] sm:$0xff]
      %v5928 = vld [vmem:[%s9 + $0x60] sm:$0xff]
      %v5929 = vld [vmem:[%s9 + $0x68] sm:$0xff]
      %v5930 = vld [vmem:[%s9 + $0x70] sm:$0xff]
      %v5931 = vld [vmem:[%s9 + $0x78] sm:$0xff]
      %v5932 = vld [vmem:[%s9 + $0x80] sm:$0xff]
      %v5933 = vld [vmem:[%s9 + $0x88] sm:$0xff]
      %v5934 = vld [vmem:[%s9 + $0x90] sm:$0xff]
      %v5935 = vld [vmem:[%s9 + $0x98] sm:$0xff]
      %v5936 = vld [vmem:[%s9 + $0xa0] sm:$0xff]
      %v5937 = vld [vmem:[%s9 + $0xa8] sm:$0xff]
      %v5938 = vld [vmem:[%s9 + $0xb0] sm:$0xff]
      %v5939 = vld [vmem:[%s9 + $0xb8] sm:$0xff]
      %v5940 = vld [vmem:[%s9 + $0xc0] sm:$0xff]
      %v5941 = vld [vmem:[%s9 + $0xc8] sm:$0xff]
      %v5942 = vld [vmem:[%s9 + $0xd0] sm:$0xff]
      %v5943 = vld [vmem:[%s9 + $0xd8] sm:$0xff]
      %v5944 = vld [vmem:[%s9 + $0xe0] sm:$0xff]
      %v5945 = vld [vmem:[%s9 + $0xe8] sm:$0xff]
      %v5946 = vld [vmem:[%s9 + $0xf0] sm:$0xff]
      %v5947 = vld [vmem:[%s9 + $0xf8] sm:$0xff]
      %v5948 = vld [vmem:[%s9 + $0x100] sm:$0xff]
      %v5949 = vld [vmem:[%s9 + $0x108] sm:$0xff]
      %v5950 = vld [vmem:[%s9 + $0x110] sm:$0xff]
      %v5951 = vld [vmem:[%s9 + $0x118] sm:$0xff]
      %v5952 = vld [vmem:[%s9 + $0x120] sm:$0xff]
      %v5953 = vld [vmem:[%s9 + $0x128] sm:$0xff]
      %v5954 = vld [vmem:[%s9 + $0x130] sm:$0xff]
      %v5955 = vld [vmem:[%s9 + $0x138] sm:$0xff]
      %v5956 = vld [vmem:[%s9 + $0x140] sm:$0xff]
      %v5957 = vld [vmem:[%s9 + $0x148] sm:$0xff]
      %v5958 = vld [vmem:[%s9 + $0x150] sm:$0xff]
      %v5959 = vld [vmem:[%s9 + $0x158] sm:$0xff]
      %v5960 = vld [vmem:[%s9 + $0x160] sm:$0xff]
      %v5961 = vld [vmem:[%s9 + $0x168] sm:$0xff]
      %v5962 = vld [vmem:[%s9 + $0x170] sm:$0xff]
      %v5963 = vld [vmem:[%s9 + $0x178] sm:$0xff]
      %v5964 = vld [vmem:[%s9 + $0x180] sm:$0xff]
      %v5965 = vld [vmem:[%s9 + $0x188] sm:$0xff]
      %v5966 = vld [vmem:[%s9 + $0x190] sm:$0xff]
      %v5967 = vld [vmem:[%s9 + $0x198] sm:$0xff]
      %v5968 = vld [vmem:[%s9 + $0x1a0] sm:$0xff]
      %v5969 = vld [vmem:[%s9 + $0x1a8] sm:$0xff]
      %v5970 = vld [vmem:[%s9 + $0x1b0] sm:$0xff]
      %v5971 = vld [vmem:[%s9 + $0x1b8] sm:$0xff]
      %v5972 = vld [vmem:[%s9 + $0x1c0] sm:$0xff]
      %v5973 = vld [vmem:[%s9 + $0x1c8] sm:$0xff]
      %v5974 = vld [vmem:[%s9 + $0x1d0] sm:$0xff]
      %v5975 = vld [vmem:[%s9 + $0x1d8] sm:$0xff]
      %v5976 = vld [vmem:[%s9 + $0x1e0] sm:$0xff]
      %v5977 = vld [vmem:[%s9 + $0x1e8] sm:$0xff]
      %v5978 = vld [vmem:[%s9 + $0x1f0] sm:$0xff]
      %v5979 = vld [vmem:[%s9 + $0x1f8] sm:$0xff]
      %v5980 = vld [vmem:[%s10] sm:$0xf]
      %v5982 = vlaneseq
      %v5983 = vshrl.u32 %v5982, 7
      %v5984 = vsub.s32 0, %v5983
      %v5985 = vrot.slane %v5980, %v5984
      %v5986 = vlaneseq
      %v5987 = vshrl.u32 %v5986, 7
      %v5988 = vsub.s32 1, %v5987
      %v5989 = vrot.slane %v5980, %v5988
      %v5990 = vlaneseq
      %v5991 = vshrl.u32 %v5990, 7
      %v5992 = vsub.s32 2, %v5991
      %v5993 = vrot.slane %v5980, %v5992
      %v5994 = vlaneseq
      %v5995 = vshrl.u32 %v5994, 7
      %v5996 = vsub.s32 3, %v5995
      %v5997 = vrot.slane %v5980, %v5996
      %v6066 = vunpack.c.l.b16 %v5916
      %v6067 = vunpack.c.h.b16 %v5916
      %v6068 = vunpack.c.l.b16 %v5917
      %v6069 = vunpack.c.h.b16 %v5917
      %v6070 = vunpack.c.l.b16 %v5918
      %v6071 = vunpack.c.h.b16 %v5918
      %v6072 = vunpack.c.l.b16 %v5919
      %v6073 = vunpack.c.h.b16 %v5919
      %v6074 = vunpack.c.l.b16 %v5920
      %v6075 = vunpack.c.h.b16 %v5920
      %v6076 = vunpack.c.l.b16 %v5921
      %v6077 = vunpack.c.h.b16 %v5921
      %v6078 = vunpack.c.l.b16 %v5922
      %v6079 = vunpack.c.h.b16 %v5922
      %v6080 = vunpack.c.l.b16 %v5923
      %v6081 = vunpack.c.h.b16 %v5923
      %v6082 = vunpack.c.l.b16 %v5924
      %v6083 = vunpack.c.h.b16 %v5924
      %v6084 = vunpack.c.l.b16 %v5925
      %v6085 = vunpack.c.h.b16 %v5925
      %v6086 = vunpack.c.l.b16 %v5926
      %v6087 = vunpack.c.h.b16 %v5926
      %v6088 = vunpack.c.l.b16 %v5927
      %v6089 = vunpack.c.h.b16 %v5927
      %v6090 = vunpack.c.l.b16 %v5928
      %v6091 = vunpack.c.h.b16 %v5928
      %v6092 = vunpack.c.l.b16 %v5929
      %v6093 = vunpack.c.h.b16 %v5929
      %v6094 = vunpack.c.l.b16 %v5930
      %v6095 = vunpack.c.h.b16 %v5930
      %v6096 = vunpack.c.l.b16 %v5931
      %v6097 = vunpack.c.h.b16 %v5931
      %v6098 = vunpack.c.l.b16 %v5932
      %v6099 = vunpack.c.h.b16 %v5932
      %v6100 = vunpack.c.l.b16 %v5933
      %v6101 = vunpack.c.h.b16 %v5933
      %v6102 = vunpack.c.l.b16 %v5934
      %v6103 = vunpack.c.h.b16 %v5934
      %v6104 = vunpack.c.l.b16 %v5935
      %v6105 = vunpack.c.h.b16 %v5935
      %v6106 = vunpack.c.l.b16 %v5936
      %v6107 = vunpack.c.h.b16 %v5936
      %v6108 = vunpack.c.l.b16 %v5937
      %v6109 = vunpack.c.h.b16 %v5937
      %v6110 = vunpack.c.l.b16 %v5938
      %v6111 = vunpack.c.h.b16 %v5938
      %v6112 = vunpack.c.l.b16 %v5939
      %v6113 = vunpack.c.h.b16 %v5939
      %v6114 = vunpack.c.l.b16 %v5940
      %v6115 = vunpack.c.h.b16 %v5940
      %v6116 = vunpack.c.l.b16 %v5941
      %v6117 = vunpack.c.h.b16 %v5941
      %v6118 = vunpack.c.l.b16 %v5942
      %v6119 = vunpack.c.h.b16 %v5942
      %v6120 = vunpack.c.l.b16 %v5943
      %v6121 = vunpack.c.h.b16 %v5943
      %v6122 = vunpack.c.l.b16 %v5944
      %v6123 = vunpack.c.h.b16 %v5944
      %v6124 = vunpack.c.l.b16 %v5945
      %v6125 = vunpack.c.h.b16 %v5945
      %v6126 = vunpack.c.l.b16 %v5946
      %v6127 = vunpack.c.h.b16 %v5946
      %v6128 = vunpack.c.l.b16 %v5947
      %v6129 = vunpack.c.h.b16 %v5947
      %v6130 = vunpack.c.l.b16 %v5948
      %v6131 = vunpack.c.h.b16 %v5948
      %v6132 = vunpack.c.l.b16 %v5949
      %v6133 = vunpack.c.h.b16 %v5949
      %v6134 = vunpack.c.l.b16 %v5950
      %v6135 = vunpack.c.h.b16 %v5950
      %v6136 = vunpack.c.l.b16 %v5951
      %v6137 = vunpack.c.h.b16 %v5951
      %v6138 = vunpack.c.l.b16 %v5952
      %v6139 = vunpack.c.h.b16 %v5952
      %v6140 = vunpack.c.l.b16 %v5953
      %v6141 = vunpack.c.h.b16 %v5953
      %v6142 = vunpack.c.l.b16 %v5954
      %v6143 = vunpack.c.h.b16 %v5954
      %v6144 = vunpack.c.l.b16 %v5955
      %v6145 = vunpack.c.h.b16 %v5955
      %v6146 = vunpack.c.l.b16 %v5956
      %v6147 = vunpack.c.h.b16 %v5956
      %v6148 = vunpack.c.l.b16 %v5957
      %v6149 = vunpack.c.h.b16 %v5957
      %v6150 = vunpack.c.l.b16 %v5958
      %v6151 = vunpack.c.h.b16 %v5958
      %v6152 = vunpack.c.l.b16 %v5959
      %v6153 = vunpack.c.h.b16 %v5959
      %v6154 = vunpack.c.l.b16 %v5960
      %v6155 = vunpack.c.h.b16 %v5960
      %v6156 = vunpack.c.l.b16 %v5961
      %v6157 = vunpack.c.h.b16 %v5961
      %v6158 = vunpack.c.l.b16 %v5962
      %v6159 = vunpack.c.h.b16 %v5962
      %v6160 = vunpack.c.l.b16 %v5963
      %v6161 = vunpack.c.h.b16 %v5963
      %v6162 = vunpack.c.l.b16 %v5964
      %v6163 = vunpack.c.h.b16 %v5964
      %v6164 = vunpack.c.l.b16 %v5965
      %v6165 = vunpack.c.h.b16 %v5965
      %v6166 = vunpack.c.l.b16 %v5966
      %v6167 = vunpack.c.h.b16 %v5966
      %v6168 = vunpack.c.l.b16 %v5967
      %v6169 = vunpack.c.h.b16 %v5967
      %v6170 = vunpack.c.l.b16 %v5968
      %v6171 = vunpack.c.h.b16 %v5968
      %v6172 = vunpack.c.l.b16 %v5969
      %v6173 = vunpack.c.h.b16 %v5969
      %v6174 = vunpack.c.l.b16 %v5970
      %v6175 = vunpack.c.h.b16 %v5970
      %v6176 = vunpack.c.l.b16 %v5971
      %v6177 = vunpack.c.h.b16 %v5971
      %v6178 = vunpack.c.l.b16 %v5972
      %v6179 = vunpack.c.h.b16 %v5972
      %v6180 = vunpack.c.l.b16 %v5973
      %v6181 = vunpack.c.h.b16 %v5973
      %v6182 = vunpack.c.l.b16 %v5974
      %v6183 = vunpack.c.h.b16 %v5974
      %v6184 = vunpack.c.l.b16 %v5975
      %v6185 = vunpack.c.h.b16 %v5975
      %v6186 = vunpack.c.l.b16 %v5976
      %v6187 = vunpack.c.h.b16 %v5976
      %v6188 = vunpack.c.l.b16 %v5977
      %v6189 = vunpack.c.h.b16 %v5977
      %v6190 = vunpack.c.l.b16 %v5978
      %v6191 = vunpack.c.h.b16 %v5978
      %v6192 = vunpack.c.l.b16 %v5979
      %v6193 = vunpack.c.h.b16 %v5979
      %v6194 = vpack.c.b16 %v6070, %v6066
      %v6195 = vpack.c.b16 %v6071, %v6067
      %v6196 = vpack.c.b16 %v6072, %v6068
      %v6197 = vpack.c.b16 %v6073, %v6069
      %v6198 = vpack.c.b16 %v6078, %v6074
      %v6199 = vpack.c.b16 %v6079, %v6075
      %v6200 = vpack.c.b16 %v6080, %v6076
      %v6201 = vpack.c.b16 %v6081, %v6077
      %v6202 = vpack.c.b16 %v6086, %v6082
      %v6203 = vpack.c.b16 %v6087, %v6083
      %v6204 = vpack.c.b16 %v6088, %v6084
      %v6205 = vpack.c.b16 %v6089, %v6085
      %v6206 = vpack.c.b16 %v6094, %v6090
      %v6207 = vpack.c.b16 %v6095, %v6091
      %v6208 = vpack.c.b16 %v6096, %v6092
      %v6209 = vpack.c.b16 %v6097, %v6093
      %v6210 = vpack.c.b16 %v6102, %v6098
      %v6211 = vpack.c.b16 %v6103, %v6099
      %v6212 = vpack.c.b16 %v6104, %v6100
      %v6213 = vpack.c.b16 %v6105, %v6101
      %v6214 = vpack.c.b16 %v6110, %v6106
      %v6215 = vpack.c.b16 %v6111, %v6107
      %v6216 = vpack.c.b16 %v6112, %v6108
      %v6217 = vpack.c.b16 %v6113, %v6109
      %v6218 = vpack.c.b16 %v6118, %v6114
      %v6219 = vpack.c.b16 %v6119, %v6115
      %v6220 = vpack.c.b16 %v6120, %v6116
      %v6221 = vpack.c.b16 %v6121, %v6117
      %v6222 = vpack.c.b16 %v6126, %v6122
      %v6223 = vpack.c.b16 %v6127, %v6123
      %v6224 = vpack.c.b16 %v6128, %v6124
      %v6225 = vpack.c.b16 %v6129, %v6125
      %v6226 = vpack.c.b16 %v6134, %v6130
      %v6227 = vpack.c.b16 %v6135, %v6131
      %v6228 = vpack.c.b16 %v6136, %v6132
      %v6229 = vpack.c.b16 %v6137, %v6133
      %v6230 = vpack.c.b16 %v6142, %v6138
      %v6231 = vpack.c.b16 %v6143, %v6139
      %v6232 = vpack.c.b16 %v6144, %v6140
      %v6233 = vpack.c.b16 %v6145, %v6141
      %v6234 = vpack.c.b16 %v6150, %v6146
      %v6235 = vpack.c.b16 %v6151, %v6147
      %v6236 = vpack.c.b16 %v6152, %v6148
      %v6237 = vpack.c.b16 %v6153, %v6149
      %v6238 = vpack.c.b16 %v6158, %v6154
      %v6239 = vpack.c.b16 %v6159, %v6155
      %v6240 = vpack.c.b16 %v6160, %v6156
      %v6241 = vpack.c.b16 %v6161, %v6157
      %v6242 = vpack.c.b16 %v6166, %v6162
      %v6243 = vpack.c.b16 %v6167, %v6163
      %v6244 = vpack.c.b16 %v6168, %v6164
      %v6245 = vpack.c.b16 %v6169, %v6165
      %v6246 = vpack.c.b16 %v6174, %v6170
      %v6247 = vpack.c.b16 %v6175, %v6171
      %v6248 = vpack.c.b16 %v6176, %v6172
      %v6249 = vpack.c.b16 %v6177, %v6173
      %v6250 = vpack.c.b16 %v6182, %v6178
      %v6251 = vpack.c.b16 %v6183, %v6179
      %v6252 = vpack.c.b16 %v6184, %v6180
      %v6253 = vpack.c.b16 %v6185, %v6181
      %v6254 = vpack.c.b16 %v6190, %v6186
      %v6255 = vpack.c.b16 %v6191, %v6187
      %v6256 = vpack.c.b16 %v6192, %v6188
      %v6257 = vpack.c.b16 %v6193, %v6189
      %6322 = vmatprep.subr.bf16.mxu0 %v6223
      %6323 = vmatpush1.bf16.msra.mxu0 %v6222
      %6324 = vmatprep.subr.bf16.mxu0 %v6219
      %6325 = vmatpush1.bf16.msra.mxu0 %v6218
      %6326 = vmatprep.subr.bf16.mxu0 %v6215
      %6327 = vmatpush1.bf16.msra.mxu0 %v6214
      %6328 = vmatprep.subr.bf16.mxu0 %v6211
      %6329 = vmatpush1.bf16.msra.mxu0 %v6210
      %6330 = vmatprep.subr.bf16.mxu0 %v6207
      %6331 = vmatpush1.bf16.msra.mxu0 %v6206
      %6332 = vmatprep.subr.bf16.mxu0 %v6203
      %6333 = vmatpush1.bf16.msra.mxu0 %v6202
      %6334 = vmatprep.subr.bf16.mxu0 %v6199
      %6335 = vmatpush1.bf16.msra.mxu0 %v6198
      %6336 = vmatprep.subr.bf16.mxu0 %v6195
      %6337 = vmatpush1.bf16.msra.mxu0 %v6194
      %6338 = vmatprep.subr.bf16.mxu0 %v6255
      %6339 = vmatpush2.bf16.msra.mxu0 %v6254
      %6340 = vmatprep.subr.bf16.mxu0 %v6251
      %6341 = vmatpush2.bf16.msra.mxu0 %v6250
      %6342 = vmatprep.subr.bf16.mxu0 %v6247
      %6343 = vmatpush2.bf16.msra.mxu0 %v6246
      %6344 = vmatprep.subr.bf16.mxu0 %v6243
      %6345 = vmatpush2.bf16.msra.mxu0 %v6242
      %6346 = vmatprep.subr.bf16.mxu0 %v6239
      %6347 = vmatpush2.bf16.msra.mxu0 %v6238
      %6348 = vmatprep.subr.bf16.mxu0 %v6235
      %6349 = vmatpush2.bf16.msra.mxu0 %v6234
      %6350 = vmatprep.subr.bf16.mxu0 %v6231
      %6351 = vmatpush2.bf16.msra.mxu0 %v6230
      %6352 = vmatprep.subr.bf16.mxu0 %v6227
      %6353 = vmatpush2.bf16.msra.mxu0 %v6226
      %6354 = vmatprep.mubr.bf16.mxu0 %v5885
      %6355 = vmatmul.mubr.bf16.gmra.mxu0 %v5884
      %v6356 = vpop.f32.mrf.mxu0
      %v6357 = vadd.f32 %v5985, %v6356
      %v6358 = vpop.f32.mrf.mxu0
      %v6359 = vadd.f32 %v5989, %v6358
      %v6360 = vpop.f32.mrf.mxu0
      %v6361 = vadd.f32 %v5985, %v6360
      %v6362 = vpop.f32.mrf.mxu0
      %v6363 = vadd.f32 %v5989, %v6362
      %6364 = vmatprep.mubr.bf16.mxu0 %v5887
      %6365 = vmatmul.mubr.bf16.gmra.mxu0 %v5886
      %v6366 = vpop.f32.mrf.mxu0
      %v6367 = vadd.f32 %v5985, %v6366
      %v6368 = vpop.f32.mrf.mxu0
      %v6369 = vadd.f32 %v5989, %v6368
      %v6370 = vpop.f32.mrf.mxu0
      %v6371 = vadd.f32 %v5985, %v6370
      %v6372 = vpop.f32.mrf.mxu0
      %v6373 = vadd.f32 %v5989, %v6372
      %6374 = vmatprep.mubr.bf16.mxu0 %v5889
      %6375 = vmatmul.mubr.bf16.gmra.mxu0 %v5888
      %v6376 = vpop.f32.mrf.mxu0
      %v6377 = vadd.f32 %v5985, %v6376
      %v6378 = vpop.f32.mrf.mxu0
      %v6379 = vadd.f32 %v5989, %v6378
      %v6380 = vpop.f32.mrf.mxu0
      %v6381 = vadd.f32 %v5985, %v6380
      %v6382 = vpop.f32.mrf.mxu0
      %v6383 = vadd.f32 %v5989, %v6382
      %6384 = vmatprep.mubr.bf16.mxu0 %v5891
      %6385 = vmatmul.mubr.bf16.gmra.mxu0 %v5890
      %v6386 = vpop.f32.mrf.mxu0
      %v6387 = vadd.f32 %v5985, %v6386
      %v6388 = vpop.f32.mrf.mxu0
      %v6389 = vadd.f32 %v5989, %v6388
      %v6390 = vpop.f32.mrf.mxu0
      %v6391 = vadd.f32 %v5985, %v6390
      %v6392 = vpop.f32.mrf.mxu0
      %v6393 = vadd.f32 %v5989, %v6392
      %6394 = vmatprep.mubr.bf16.mxu0 %v5893
      %6395 = vmatmul.mubr.bf16.gmra.mxu0 %v5892
      %v6396 = vpop.f32.mrf.mxu0
      %v6397 = vadd.f32 %v5985, %v6396
      %v6398 = vpop.f32.mrf.mxu0
      %v6399 = vadd.f32 %v5989, %v6398
      %v6400 = vpop.f32.mrf.mxu0
      %v6401 = vadd.f32 %v5985, %v6400
      %v6402 = vpop.f32.mrf.mxu0
      %v6403 = vadd.f32 %v5989, %v6402
      %6404 = vmatprep.mubr.bf16.mxu0 %v5895
      %6405 = vmatmul.mubr.bf16.gmra.mxu0 %v5894
      %v6406 = vpop.f32.mrf.mxu0
      %v6407 = vadd.f32 %v5985, %v6406
      %v6408 = vpop.f32.mrf.mxu0
      %v6409 = vadd.f32 %v5989, %v6408
      %v6410 = vpop.f32.mrf.mxu0
      %v6411 = vadd.f32 %v5985, %v6410
      %v6412 = vpop.f32.mrf.mxu0
      %v6413 = vadd.f32 %v5989, %v6412
      %6414 = vmatprep.mubr.bf16.mxu0 %v5897
      %6415 = vmatmul.mubr.bf16.gmra.mxu0 %v5896
      %v6416 = vpop.f32.mrf.mxu0
      %v6417 = vadd.f32 %v5985, %v6416
      %v6418 = vpop.f32.mrf.mxu0
      %v6419 = vadd.f32 %v5989, %v6418
      %v6420 = vpop.f32.mrf.mxu0
      %v6421 = vadd.f32 %v5985, %v6420
      %v6422 = vpop.f32.mrf.mxu0
      %v6423 = vadd.f32 %v5989, %v6422
      %6424 = vmatprep.mubr.bf16.mxu0 %v5899
      %6425 = vmatmul.mubr.bf16.gmra.mxu0 %v5898
      %v6426 = vpop.f32.mrf.mxu0
      %v6427 = vadd.f32 %v5985, %v6426
      %v6428 = vpop.f32.mrf.mxu0
      %v6429 = vadd.f32 %v5989, %v6428
      %v6430 = vpop.f32.mrf.mxu0
      %v6431 = vadd.f32 %v5985, %v6430
      %v6432 = vpop.f32.mrf.mxu0
      %v6433 = vadd.f32 %v5989, %v6432
      %6434 = vmatprep.mubr.bf16.mxu0 %v5901
      %6435 = vmatmul.mubr.bf16.gmra.mxu0 %v5900
      %v6436 = vpop.f32.mrf.mxu0
      %v6437 = vadd.f32 %v5985, %v6436
      %v6438 = vpop.f32.mrf.mxu0
      %v6439 = vadd.f32 %v5989, %v6438
      %v6440 = vpop.f32.mrf.mxu0
      %v6441 = vadd.f32 %v5985, %v6440
      %v6442 = vpop.f32.mrf.mxu0
      %v6443 = vadd.f32 %v5989, %v6442
      %6444 = vmatprep.mubr.bf16.mxu0 %v5903
      %6445 = vmatmul.mubr.bf16.gmra.mxu0 %v5902
      %v6446 = vpop.f32.mrf.mxu0
      %v6447 = vadd.f32 %v5985, %v6446
      %v6448 = vpop.f32.mrf.mxu0
      %v6449 = vadd.f32 %v5989, %v6448
      %v6450 = vpop.f32.mrf.mxu0
      %v6451 = vadd.f32 %v5985, %v6450
      %v6452 = vpop.f32.mrf.mxu0
      %v6453 = vadd.f32 %v5989, %v6452
      %6454 = vmatprep.mubr.bf16.mxu0 %v5905
      %6455 = vmatmul.mubr.bf16.gmra.mxu0 %v5904
      %v6456 = vpop.f32.mrf.mxu0
      %v6457 = vadd.f32 %v5985, %v6456
      %v6458 = vpop.f32.mrf.mxu0
      %v6459 = vadd.f32 %v5989, %v6458
      %v6460 = vpop.f32.mrf.mxu0
      %v6461 = vadd.f32 %v5985, %v6460
      %v6462 = vpop.f32.mrf.mxu0
      %v6463 = vadd.f32 %v5989, %v6462
      %6464 = vmatprep.mubr.bf16.mxu0 %v5907
      %6465 = vmatmul.mubr.bf16.gmra.mxu0 %v5906
      %v6466 = vpop.f32.mrf.mxu0
      %v6467 = vadd.f32 %v5985, %v6466
      %v6468 = vpop.f32.mrf.mxu0
      %v6469 = vadd.f32 %v5989, %v6468
      %v6470 = vpop.f32.mrf.mxu0
      %v6471 = vadd.f32 %v5985, %v6470
      %v6472 = vpop.f32.mrf.mxu0
      %v6473 = vadd.f32 %v5989, %v6472
      %6474 = vmatprep.mubr.bf16.mxu0 %v5909
      %6475 = vmatmul.mubr.bf16.gmra.mxu0 %v5908
      %v6476 = vpop.f32.mrf.mxu0
      %v6477 = vadd.f32 %v5985, %v6476
      %v6478 = vpop.f32.mrf.mxu0
      %v6479 = vadd.f32 %v5989, %v6478
      %v6480 = vpop.f32.mrf.mxu0
      %v6481 = vadd.f32 %v5985, %v6480
      %v6482 = vpop.f32.mrf.mxu0
      %v6483 = vadd.f32 %v5989, %v6482
      %6484 = vmatprep.mubr.bf16.mxu0 %v5911
      %6485 = vmatmul.mubr.bf16.gmra.mxu0 %v5910
      %v6486 = vpop.f32.mrf.mxu0
      %v6487 = vadd.f32 %v5985, %v6486
      %v6488 = vpop.f32.mrf.mxu0
      %v6489 = vadd.f32 %v5989, %v6488
      %v6490 = vpop.f32.mrf.mxu0
      %v6491 = vadd.f32 %v5985, %v6490
      %v6492 = vpop.f32.mrf.mxu0
      %v6493 = vadd.f32 %v5989, %v6492
      %6494 = vmatprep.mubr.bf16.mxu0 %v5913
      %6495 = vmatmul.mubr.bf16.gmra.mxu0 %v5912
      %v6496 = vpop.f32.mrf.mxu0
      %v6497 = vadd.f32 %v5985, %v6496
      %v6498 = vpop.f32.mrf.mxu0
      %v6499 = vadd.f32 %v5989, %v6498
      %v6500 = vpop.f32.mrf.mxu0
      %v6501 = vadd.f32 %v5985, %v6500
      %v6502 = vpop.f32.mrf.mxu0
      %v6503 = vadd.f32 %v5989, %v6502
      %6504 = vmatprep.mubr.bf16.mxu0 %v5915
      %6505 = vmatmul.mubr.bf16.gmra.mxu0 %v5914
      %v6506 = vpop.f32.mrf.mxu0
      %v6507 = vadd.f32 %v5985, %v6506
      %v6508 = vpop.f32.mrf.mxu0
      %v6509 = vadd.f32 %v5989, %v6508
      %v6510 = vpop.f32.mrf.mxu0
      %v6511 = vadd.f32 %v5985, %v6510
      %v6512 = vpop.f32.mrf.mxu0
      %v6513 = vadd.f32 %v5989, %v6512
      %6514 = vdwg.mxu0
      %6515 = vmatprep.subr.bf16.mxu0 %v6225
      %6516 = vmatpush1.bf16.msra.mxu0 %v6224
      %6517 = vmatprep.subr.bf16.mxu0 %v6221
      %6518 = vmatpush1.bf16.msra.mxu0 %v6220
      %6519 = vmatprep.subr.bf16.mxu0 %v6217
      %6520 = vmatpush1.bf16.msra.mxu0 %v6216
      %6521 = vmatprep.subr.bf16.mxu0 %v6213
      %6522 = vmatpush1.bf16.msra.mxu0 %v6212
      %6523 = vmatprep.subr.bf16.mxu0 %v6209
      %6524 = vmatpush1.bf16.msra.mxu0 %v6208
      %6525 = vmatprep.subr.bf16.mxu0 %v6205
      %6526 = vmatpush1.bf16.msra.mxu0 %v6204
      %6527 = vmatprep.subr.bf16.mxu0 %v6201
      %6528 = vmatpush1.bf16.msra.mxu0 %v6200
      %6529 = vmatprep.subr.bf16.mxu0 %v6197
      %6530 = vmatpush1.bf16.msra.mxu0 %v6196
      %6531 = vmatprep.subr.bf16.mxu0 %v6257
      %6532 = vmatpush2.bf16.msra.mxu0 %v6256
      %6533 = vmatprep.subr.bf16.mxu0 %v6253
      %6534 = vmatpush2.bf16.msra.mxu0 %v6252
      %6535 = vmatprep.subr.bf16.mxu0 %v6249
      %6536 = vmatpush2.bf16.msra.mxu0 %v6248
      %6537 = vmatprep.subr.bf16.mxu0 %v6245
      %6538 = vmatpush2.bf16.msra.mxu0 %v6244
      %6539 = vmatprep.subr.bf16.mxu0 %v6241
      %6540 = vmatpush2.bf16.msra.mxu0 %v6240
      %6541 = vmatprep.subr.bf16.mxu0 %v6237
      %6542 = vmatpush2.bf16.msra.mxu0 %v6236
      %6543 = vmatprep.subr.bf16.mxu0 %v6233
      %6544 = vmatpush2.bf16.msra.mxu0 %v6232
      %6545 = vmatprep.subr.bf16.mxu0 %v6229
      %6546 = vmatpush2.bf16.msra.mxu0 %v6228
      %6547 = vmatprep.mubr.bf16.mxu0 %v5885
      %6548 = vmatmul.mubr.bf16.gmra.mxu0 %v5884
      %v6549 = vpop.f32.mrf.mxu0
      %v6550 = vadd.f32 %v5993, %v6549
      %v6551 = vpop.f32.mrf.mxu0
      %v6552 = vadd.f32 %v5997, %v6551
      %v6553 = vpop.f32.mrf.mxu0
      %v6554 = vadd.f32 %v5993, %v6553
      %v6555 = vpop.f32.mrf.mxu0
      %v6556 = vadd.f32 %v5997, %v6555
      %6557 = vmatprep.mubr.bf16.mxu0 %v5887
      %6558 = vmatmul.mubr.bf16.gmra.mxu0 %v5886
      %v6559 = vpop.f32.mrf.mxu0
      %v6560 = vadd.f32 %v5993, %v6559
      %v6561 = vpop.f32.mrf.mxu0
      %v6562 = vadd.f32 %v5997, %v6561
      %v6563 = vpop.f32.mrf.mxu0
      %v6564 = vadd.f32 %v5993, %v6563
      %v6565 = vpop.f32.mrf.mxu0
      %v6566 = vadd.f32 %v5997, %v6565
      %6567 = vmatprep.mubr.bf16.mxu0 %v5889
      %6568 = vmatmul.mubr.bf16.gmra.mxu0 %v5888
      %v6569 = vpop.f32.mrf.mxu0
      %v6570 = vadd.f32 %v5993, %v6569
      %v6571 = vpop.f32.mrf.mxu0
      %v6572 = vadd.f32 %v5997, %v6571
      %v6573 = vpop.f32.mrf.mxu0
      %v6574 = vadd.f32 %v5993, %v6573
      %v6575 = vpop.f32.mrf.mxu0
      %v6576 = vadd.f32 %v5997, %v6575
      %6577 = vmatprep.mubr.bf16.mxu0 %v5891
      %6578 = vmatmul.mubr.bf16.gmra.mxu0 %v5890
      %v6579 = vpop.f32.mrf.mxu0
      %v6580 = vadd.f32 %v5993, %v6579
      %v6581 = vpop.f32.mrf.mxu0
      %v6582 = vadd.f32 %v5997, %v6581
      %v6583 = vpop.f32.mrf.mxu0
      %v6584 = vadd.f32 %v5993, %v6583
      %v6585 = vpop.f32.mrf.mxu0
      %v6586 = vadd.f32 %v5997, %v6585
      %6587 = vmatprep.mubr.bf16.mxu0 %v5893
      %6588 = vmatmul.mubr.bf16.gmra.mxu0 %v5892
      %v6589 = vpop.f32.mrf.mxu0
      %v6590 = vadd.f32 %v5993, %v6589
      %v6591 = vpop.f32.mrf.mxu0
      %v6592 = vadd.f32 %v5997, %v6591
      %v6593 = vpop.f32.mrf.mxu0
      %v6594 = vadd.f32 %v5993, %v6593
      %v6595 = vpop.f32.mrf.mxu0
      %v6596 = vadd.f32 %v5997, %v6595
      %6597 = vmatprep.mubr.bf16.mxu0 %v5895
      %6598 = vmatmul.mubr.bf16.gmra.mxu0 %v5894
      %v6599 = vpop.f32.mrf.mxu0
      %v6600 = vadd.f32 %v5993, %v6599
      %v6601 = vpop.f32.mrf.mxu0
      %v6602 = vadd.f32 %v5997, %v6601
      %v6603 = vpop.f32.mrf.mxu0
      %v6604 = vadd.f32 %v5993, %v6603
      %v6605 = vpop.f32.mrf.mxu0
      %v6606 = vadd.f32 %v5997, %v6605
      %6607 = vmatprep.mubr.bf16.mxu0 %v5897
      %6608 = vmatmul.mubr.bf16.gmra.mxu0 %v5896
      %v6609 = vpop.f32.mrf.mxu0
      %v6610 = vadd.f32 %v5993, %v6609
      %v6611 = vpop.f32.mrf.mxu0
      %v6612 = vadd.f32 %v5997, %v6611
      %v6613 = vpop.f32.mrf.mxu0
      %v6614 = vadd.f32 %v5993, %v6613
      %v6615 = vpop.f32.mrf.mxu0
      %v6616 = vadd.f32 %v5997, %v6615
      %6617 = vmatprep.mubr.bf16.mxu0 %v5899
      %6618 = vmatmul.mubr.bf16.gmra.mxu0 %v5898
      %v6619 = vpop.f32.mrf.mxu0
      %v6620 = vadd.f32 %v5993, %v6619
      %v6621 = vpop.f32.mrf.mxu0
      %v6622 = vadd.f32 %v5997, %v6621
      %v6623 = vpop.f32.mrf.mxu0
      %v6624 = vadd.f32 %v5993, %v6623
      %v6625 = vpop.f32.mrf.mxu0
      %v6626 = vadd.f32 %v5997, %v6625
      %6627 = vmatprep.mubr.bf16.mxu0 %v5901
      %6628 = vmatmul.mubr.bf16.gmra.mxu0 %v5900
      %v6629 = vpop.f32.mrf.mxu0
      %v6630 = vadd.f32 %v5993, %v6629
      %v6631 = vpop.f32.mrf.mxu0
      %v6632 = vadd.f32 %v5997, %v6631
      %v6633 = vpop.f32.mrf.mxu0
      %v6634 = vadd.f32 %v5993, %v6633
      %v6635 = vpop.f32.mrf.mxu0
      %v6636 = vadd.f32 %v5997, %v6635
      %6637 = vmatprep.mubr.bf16.mxu0 %v5903
      %6638 = vmatmul.mubr.bf16.gmra.mxu0 %v5902
      %v6639 = vpop.f32.mrf.mxu0
      %v6640 = vadd.f32 %v5993, %v6639
      %v6641 = vpop.f32.mrf.mxu0
      %v6642 = vadd.f32 %v5997, %v6641
      %v6643 = vpop.f32.mrf.mxu0
      %v6644 = vadd.f32 %v5993, %v6643
      %v6645 = vpop.f32.mrf.mxu0
      %v6646 = vadd.f32 %v5997, %v6645
      %6647 = vmatprep.mubr.bf16.mxu0 %v5905
      %6648 = vmatmul.mubr.bf16.gmra.mxu0 %v5904
      %v6649 = vpop.f32.mrf.mxu0
      %v6650 = vadd.f32 %v5993, %v6649
      %v6651 = vpop.f32.mrf.mxu0
      %v6652 = vadd.f32 %v5997, %v6651
      %v6653 = vpop.f32.mrf.mxu0
      %v6654 = vadd.f32 %v5993, %v6653
      %v6655 = vpop.f32.mrf.mxu0
      %v6656 = vadd.f32 %v5997, %v6655
      %6657 = vmatprep.mubr.bf16.mxu0 %v5907
      %6658 = vmatmul.mubr.bf16.gmra.mxu0 %v5906
      %v6659 = vpop.f32.mrf.mxu0
      %v6660 = vadd.f32 %v5993, %v6659
      %v6661 = vpop.f32.mrf.mxu0
      %v6662 = vadd.f32 %v5997, %v6661
      %v6663 = vpop.f32.mrf.mxu0
      %v6664 = vadd.f32 %v5993, %v6663
      %v6665 = vpop.f32.mrf.mxu0
      %v6666 = vadd.f32 %v5997, %v6665
      %6667 = vmatprep.mubr.bf16.mxu0 %v5909
      %6668 = vmatmul.mubr.bf16.gmra.mxu0 %v5908
      %v6669 = vpop.f32.mrf.mxu0
      %v6670 = vadd.f32 %v5993, %v6669
      %v6671 = vpop.f32.mrf.mxu0
      %v6672 = vadd.f32 %v5997, %v6671
      %v6673 = vpop.f32.mrf.mxu0
      %v6674 = vadd.f32 %v5993, %v6673
      %v6675 = vpop.f32.mrf.mxu0
      %v6676 = vadd.f32 %v5997, %v6675
      %6677 = vmatprep.mubr.bf16.mxu0 %v5911
      %6678 = vmatmul.mubr.bf16.gmra.mxu0 %v5910
      %v6679 = vpop.f32.mrf.mxu0
      %v6680 = vadd.f32 %v5993, %v6679
      %v6681 = vpop.f32.mrf.mxu0
      %v6682 = vadd.f32 %v5997, %v6681
      %v6683 = vpop.f32.mrf.mxu0
      %v6684 = vadd.f32 %v5993, %v6683
      %v6685 = vpop.f32.mrf.mxu0
      %v6686 = vadd.f32 %v5997, %v6685
      %6687 = vmatprep.mubr.bf16.mxu0 %v5913
      %6688 = vmatmul.mubr.bf16.gmra.mxu0 %v5912
      %v6689 = vpop.f32.mrf.mxu0
      %v6690 = vadd.f32 %v5993, %v6689
      %v6691 = vpop.f32.mrf.mxu0
      %v6692 = vadd.f32 %v5997, %v6691
      %v6693 = vpop.f32.mrf.mxu0
      %v6694 = vadd.f32 %v5993, %v6693
      %v6695 = vpop.f32.mrf.mxu0
      %v6696 = vadd.f32 %v5997, %v6695
      %6697 = vmatprep.mubr.bf16.mxu0 %v5915
      %6698 = vmatmul.mubr.bf16.gmra.mxu0 %v5914
      %v6699 = vpop.f32.mrf.mxu0
      %v6700 = vadd.f32 %v5993, %v6699
      %v6701 = vpop.f32.mrf.mxu0
      %v6702 = vadd.f32 %v5997, %v6701
      %v6703 = vpop.f32.mrf.mxu0
      %v6704 = vadd.f32 %v5993, %v6703
      %v6705 = vpop.f32.mrf.mxu0
      %v6706 = vadd.f32 %v5997, %v6705
      %6707 = vdwg.mxu0
      %v6708 = vmax.f32 %v6357, 0.0
      %v6709 = vmax.f32 %v6359, 0.0
      %v6710 = vmax.f32 %v6550, 0.0
      %v6711 = vmax.f32 %v6552, 0.0
      %v6712 = vmax.f32 %v6361, 0.0
      %v6713 = vmax.f32 %v6363, 0.0
      %v6714 = vmax.f32 %v6554, 0.0
      %v6715 = vmax.f32 %v6556, 0.0
      %v6716 = vmax.f32 %v6367, 0.0
      %v6717 = vmax.f32 %v6369, 0.0
      %v6718 = vmax.f32 %v6560, 0.0
      %v6719 = vmax.f32 %v6562, 0.0
      %v6720 = vmax.f32 %v6371, 0.0
      %v6721 = vmax.f32 %v6373, 0.0
      %v6722 = vmax.f32 %v6564, 0.0
      %v6723 = vmax.f32 %v6566, 0.0
      %v6724 = vmax.f32 %v6377, 0.0
      %v6725 = vmax.f32 %v6379, 0.0
      %v6726 = vmax.f32 %v6570, 0.0
      %v6727 = vmax.f32 %v6572, 0.0
      %v6728 = vmax.f32 %v6381, 0.0
      %v6729 = vmax.f32 %v6383, 0.0
      %v6730 = vmax.f32 %v6574, 0.0
      %v6731 = vmax.f32 %v6576, 0.0
      %v6732 = vmax.f32 %v6387, 0.0
      %v6733 = vmax.f32 %v6389, 0.0
      %v6734 = vmax.f32 %v6580, 0.0
      %v6735 = vmax.f32 %v6582, 0.0
      %v6736 = vmax.f32 %v6391, 0.0
      %v6737 = vmax.f32 %v6393, 0.0
      %v6738 = vmax.f32 %v6584, 0.0
      %v6739 = vmax.f32 %v6586, 0.0
      %v6740 = vmax.f32 %v6397, 0.0
      %v6741 = vmax.f32 %v6399, 0.0
      %v6742 = vmax.f32 %v6590, 0.0
      %v6743 = vmax.f32 %v6592, 0.0
      %v6744 = vmax.f32 %v6401, 0.0
      %v6745 = vmax.f32 %v6403, 0.0
      %v6746 = vmax.f32 %v6594, 0.0
      %v6747 = vmax.f32 %v6596, 0.0
      %v6748 = vmax.f32 %v6407, 0.0
      %v6749 = vmax.f32 %v6409, 0.0
      %v6750 = vmax.f32 %v6600, 0.0
      %v6751 = vmax.f32 %v6602, 0.0
      %v6752 = vmax.f32 %v6411, 0.0
      %v6753 = vmax.f32 %v6413, 0.0
      %v6754 = vmax.f32 %v6604, 0.0
      %v6755 = vmax.f32 %v6606, 0.0
      %v6756 = vmax.f32 %v6417, 0.0
      %v6757 = vmax.f32 %v6419, 0.0
      %v6758 = vmax.f32 %v6610, 0.0
      %v6759 = vmax.f32 %v6612, 0.0
      %v6760 = vmax.f32 %v6421, 0.0
      %v6761 = vmax.f32 %v6423, 0.0
      %v6762 = vmax.f32 %v6614, 0.0
      %v6763 = vmax.f32 %v6616, 0.0
      %v6764 = vmax.f32 %v6427, 0.0
      %v6765 = vmax.f32 %v6429, 0.0
      %v6766 = vmax.f32 %v6620, 0.0
      %v6767 = vmax.f32 %v6622, 0.0
      %v6768 = vmax.f32 %v6431, 0.0
      %v6769 = vmax.f32 %v6433, 0.0
      %v6770 = vmax.f32 %v6624, 0.0
      %v6771 = vmax.f32 %v6626, 0.0
      %v6772 = vmax.f32 %v6437, 0.0
      %v6773 = vmax.f32 %v6439, 0.0
      %v6774 = vmax.f32 %v6630, 0.0
      %v6775 = vmax.f32 %v6632, 0.0
      %v6776 = vmax.f32 %v6441, 0.0
      %v6777 = vmax.f32 %v6443, 0.0
      %v6778 = vmax.f32 %v6634, 0.0
      %v6779 = vmax.f32 %v6636, 0.0
      %v6780 = vmax.f32 %v6447, 0.0
      %v6781 = vmax.f32 %v6449, 0.0
      %v6782 = vmax.f32 %v6640, 0.0
      %v6783 = vmax.f32 %v6642, 0.0
      %v6784 = vmax.f32 %v6451, 0.0
      %v6785 = vmax.f32 %v6453, 0.0
      %v6786 = vmax.f32 %v6644, 0.0
      %v6787 = vmax.f32 %v6646, 0.0
      %v6788 = vmax.f32 %v6457, 0.0
      %v6789 = vmax.f32 %v6459, 0.0
      %v6790 = vmax.f32 %v6650, 0.0
      %v6791 = vmax.f32 %v6652, 0.0
      %v6792 = vmax.f32 %v6461, 0.0
      %v6793 = vmax.f32 %v6463, 0.0
      %v6794 = vmax.f32 %v6654, 0.0
      %v6795 = vmax.f32 %v6656, 0.0
      %v6796 = vmax.f32 %v6467, 0.0
      %v6797 = vmax.f32 %v6469, 0.0
      %v6798 = vmax.f32 %v6660, 0.0
      %v6799 = vmax.f32 %v6662, 0.0
      %v6800 = vmax.f32 %v6471, 0.0
      %v6801 = vmax.f32 %v6473, 0.0
      %v6802 = vmax.f32 %v6664, 0.0
      %v6803 = vmax.f32 %v6666, 0.0
      %v6804 = vmax.f32 %v6477, 0.0
      %v6805 = vmax.f32 %v6479, 0.0
      %v6806 = vmax.f32 %v6670, 0.0
      %v6807 = vmax.f32 %v6672, 0.0
      %v6808 = vmax.f32 %v6481, 0.0
      %v6809 = vmax.f32 %v6483, 0.0
      %v6810 = vmax.f32 %v6674, 0.0
      %v6811 = vmax.f32 %v6676, 0.0
      %v6812 = vmax.f32 %v6487, 0.0
      %v6813 = vmax.f32 %v6489, 0.0
      %v6814 = vmax.f32 %v6680, 0.0
      %v6815 = vmax.f32 %v6682, 0.0
      %v6816 = vmax.f32 %v6491, 0.0
      %v6817 = vmax.f32 %v6493, 0.0
      %v6818 = vmax.f32 %v6684, 0.0
      %v6819 = vmax.f32 %v6686, 0.0
      %v6820 = vmax.f32 %v6497, 0.0
      %v6821 = vmax.f32 %v6499, 0.0
      %v6822 = vmax.f32 %v6690, 0.0
      %v6823 = vmax.f32 %v6692, 0.0
      %v6824 = vmax.f32 %v6501, 0.0
      %v6825 = vmax.f32 %v6503, 0.0
      %v6826 = vmax.f32 %v6694, 0.0
      %v6827 = vmax.f32 %v6696, 0.0
      %v6828 = vmax.f32 %v6507, 0.0
      %v6829 = vmax.f32 %v6509, 0.0
      %v6830 = vmax.f32 %v6700, 0.0
      %v6831 = vmax.f32 %v6702, 0.0
      %v6832 = vmax.f32 %v6511, 0.0
      %v6833 = vmax.f32 %v6513, 0.0
      %v6834 = vmax.f32 %v6704, 0.0
      %v6835 = vmax.f32 %v6706, 0.0
      %v6836 = vpack.c.bf16 %v6712, %v6708
      %v6837 = vpack.c.bf16 %v6713, %v6709
      %v6838 = vpack.c.bf16 %v6714, %v6710
      %v6839 = vpack.c.bf16 %v6715, %v6711
      %v6840 = vpack.c.bf16 %v6720, %v6716
      %v6841 = vpack.c.bf16 %v6721, %v6717
      %v6842 = vpack.c.bf16 %v6722, %v6718
      %v6843 = vpack.c.bf16 %v6723, %v6719
      %v6844 = vpack.c.bf16 %v6728, %v6724
      %v6845 = vpack.c.bf16 %v6729, %v6725
      %v6846 = vpack.c.bf16 %v6730, %v6726
      %v6847 = vpack.c.bf16 %v6731, %v6727
      %v6848 = vpack.c.bf16 %v6736, %v6732
      %v6849 = vpack.c.bf16 %v6737, %v6733
      %v6850 = vpack.c.bf16 %v6738, %v6734
      %v6851 = vpack.c.bf16 %v6739, %v6735
      %v6852 = vpack.c.bf16 %v6744, %v6740
      %v6853 = vpack.c.bf16 %v6745, %v6741
      %v6854 = vpack.c.bf16 %v6746, %v6742
      %v6855 = vpack.c.bf16 %v6747, %v6743
      %v6856 = vpack.c.bf16 %v6752, %v6748
      %v6857 = vpack.c.bf16 %v6753, %v6749
      %v6858 = vpack.c.bf16 %v6754, %v6750
      %v6859 = vpack.c.bf16 %v6755, %v6751
      %v6860 = vpack.c.bf16 %v6760, %v6756
      %v6861 = vpack.c.bf16 %v6761, %v6757
      %v6862 = vpack.c.bf16 %v6762, %v6758
      %v6863 = vpack.c.bf16 %v6763, %v6759
      %v6864 = vpack.c.bf16 %v6768, %v6764
      %v6865 = vpack.c.bf16 %v6769, %v6765
      %v6866 = vpack.c.bf16 %v6770, %v6766
      %v6867 = vpack.c.bf16 %v6771, %v6767
      %v6868 = vpack.c.bf16 %v6776, %v6772
      %v6869 = vpack.c.bf16 %v6777, %v6773
      %v6870 = vpack.c.bf16 %v6778, %v6774
      %v6871 = vpack.c.bf16 %v6779, %v6775
      %v6872 = vpack.c.bf16 %v6784, %v6780
      %v6873 = vpack.c.bf16 %v6785, %v6781
      %v6874 = vpack.c.bf16 %v6786, %v6782
      %v6875 = vpack.c.bf16 %v6787, %v6783
      %v6876 = vpack.c.bf16 %v6792, %v6788
      %v6877 = vpack.c.bf16 %v6793, %v6789
      %v6878 = vpack.c.bf16 %v6794, %v6790
      %v6879 = vpack.c.bf16 %v6795, %v6791
      %v6880 = vpack.c.bf16 %v6800, %v6796
      %v6881 = vpack.c.bf16 %v6801, %v6797
      %v6882 = vpack.c.bf16 %v6802, %v6798
      %v6883 = vpack.c.bf16 %v6803, %v6799
      %v6884 = vpack.c.bf16 %v6808, %v6804
      %v6885 = vpack.c.bf16 %v6809, %v6805
      %v6886 = vpack.c.bf16 %v6810, %v6806
      %v6887 = vpack.c.bf16 %v6811, %v6807
      %v6888 = vpack.c.bf16 %v6816, %v6812
      %v6889 = vpack.c.bf16 %v6817, %v6813
      %v6890 = vpack.c.bf16 %v6818, %v6814
      %v6891 = vpack.c.bf16 %v6819, %v6815
      %v6892 = vpack.c.bf16 %v6824, %v6820
      %v6893 = vpack.c.bf16 %v6825, %v6821
      %v6894 = vpack.c.bf16 %v6826, %v6822
      %v6895 = vpack.c.bf16 %v6827, %v6823
      %v6896 = vpack.c.bf16 %v6832, %v6828
      %v6897 = vpack.c.bf16 %v6833, %v6829
      %v6898 = vpack.c.bf16 %v6834, %v6830
      %v6899 = vpack.c.bf16 %v6835, %v6831
      %v6900 = vld [vmem:[%s11] sm:$0xff]
      %v6901 = vld [vmem:[%s11 + $0x8] sm:$0xff]
      %v6902 = vld [vmem:[%s11 + $0x10] sm:$0xff]
      %v6903 = vld [vmem:[%s11 + $0x18] sm:$0xf]
      %v6904 = vld [vmem:[%s11 + $0x1c] sm:$0xff]
      %v6905 = vld [vmem:[%s11 + $0x24] sm:$0xff]
      %v6906 = vld [vmem:[%s11 + $0x2c] sm:$0xff]
      %v6907 = vld [vmem:[%s11 + $0x34] sm:$0xf]
      %v6908 = vld [vmem:[%s11 + $0x38] sm:$0xff]
      %v6909 = vld [vmem:[%s11 + $0x40] sm:$0xff]
      %v6910 = vld [vmem:[%s11 + $0x48] sm:$0xff]
      %v6911 = vld [vmem:[%s11 + $0x50] sm:$0xf]
      %v6912 = vld [vmem:[%s11 + $0x54] sm:$0xff]
      %v6913 = vld [vmem:[%s11 + $0x5c] sm:$0xff]
      %v6914 = vld [vmem:[%s11 + $0x64] sm:$0xff]
      %v6915 = vld [vmem:[%s11 + $0x6c] sm:$0xf]
      %v6916 = vld [vmem:[%s11 + $0x70] sm:$0xff]
      %v6917 = vld [vmem:[%s11 + $0x78] sm:$0xff]
      %v6918 = vld [vmem:[%s11 + $0x80] sm:$0xff]
      %v6919 = vld [vmem:[%s11 + $0x88] sm:$0xf]
      %v6920 = vld [vmem:[%s11 + $0x8c] sm:$0xff]
      %v6921 = vld [vmem:[%s11 + $0x94] sm:$0xff]
      %v6922 = vld [vmem:[%s11 + $0x9c] sm:$0xff]
      %v6923 = vld [vmem:[%s11 + $0xa4] sm:$0xf]
      %v6924 = vld [vmem:[%s11 + $0xa8] sm:$0xff]
      %v6925 = vld [vmem:[%s11 + $0xb0] sm:$0xff]
      %v6926 = vld [vmem:[%s11 + $0xb8] sm:$0xff]
      %v6927 = vld [vmem:[%s11 + $0xc0] sm:$0xf]
      %v6928 = vld [vmem:[%s11 + $0xc4] sm:$0xff]
      %v6929 = vld [vmem:[%s11 + $0xcc] sm:$0xff]
      %v6930 = vld [vmem:[%s11 + $0xd4] sm:$0xff]
      %v6931 = vld [vmem:[%s11 + $0xdc] sm:$0xf]
      %v6932 = vld [vmem:[%s11 + $0xe0] sm:$0xff]
      %v6933 = vld [vmem:[%s11 + $0xe8] sm:$0xff]
      %v6934 = vld [vmem:[%s11 + $0xf0] sm:$0xff]
      %v6935 = vld [vmem:[%s11 + $0xf8] sm:$0xf]
      %v6936 = vld [vmem:[%s11 + $0xfc] sm:$0xff]
      %v6937 = vld [vmem:[%s11 + $0x104] sm:$0xff]
      %v6938 = vld [vmem:[%s11 + $0x10c] sm:$0xff]
      %v6939 = vld [vmem:[%s11 + $0x114] sm:$0xf]
      %v6940 = vld [vmem:[%s11 + $0x118] sm:$0xff]
      %v6941 = vld [vmem:[%s11 + $0x120] sm:$0xff]
      %v6942 = vld [vmem:[%s11 + $0x128] sm:$0xff]
      %v6943 = vld [vmem:[%s11 + $0x130] sm:$0xf]
      %v6944 = vld [vmem:[%s11 + $0x134] sm:$0xff]
      %v6945 = vld [vmem:[%s11 + $0x13c] sm:$0xff]
      %v6946 = vld [vmem:[%s11 + $0x144] sm:$0xff]
      %v6947 = vld [vmem:[%s11 + $0x14c] sm:$0xf]
      %v6948 = vld [vmem:[%s11 + $0x150] sm:$0xff]
      %v6949 = vld [vmem:[%s11 + $0x158] sm:$0xff]
      %v6950 = vld [vmem:[%s11 + $0x160] sm:$0xff]
      %v6951 = vld [vmem:[%s11 + $0x168] sm:$0xf]
      %v6952 = vld [vmem:[%s11 + $0x16c] sm:$0xff]
      %v6953 = vld [vmem:[%s11 + $0x174] sm:$0xff]
      %v6954 = vld [vmem:[%s11 + $0x17c] sm:$0xff]
      %v6955 = vld [vmem:[%s11 + $0x184] sm:$0xf]
      %v6956 = vld [vmem:[%s11 + $0x188] sm:$0xff]
      %v6957 = vld [vmem:[%s11 + $0x190] sm:$0xff]
      %v6958 = vld [vmem:[%s11 + $0x198] sm:$0xff]
      %v6959 = vld [vmem:[%s11 + $0x1a0] sm:$0xf]
      %v6960 = vld [vmem:[%s11 + $0x1a4] sm:$0xff]
      %v6961 = vld [vmem:[%s11 + $0x1ac] sm:$0xff]
      %v6962 = vld [vmem:[%s11 + $0x1b4] sm:$0xff]
      %v6963 = vld [vmem:[%s11 + $0x1bc] sm:$0xf]
      %v6964 = vld [vmem:[%s11 + $0x1c0] sm:$0xff]
      %v6965 = vld [vmem:[%s11 + $0x1c8] sm:$0xff]
      %v6966 = vld [vmem:[%s11 + $0x1d0] sm:$0xff]
      %v6967 = vld [vmem:[%s11 + $0x1d8] sm:$0xf]
      %v6968 = vld [vmem:[%s11 + $0x1dc] sm:$0xff]
      %v6969 = vld [vmem:[%s11 + $0x1e4] sm:$0xff]
      %v6970 = vld [vmem:[%s11 + $0x1ec] sm:$0xff]
      %v6971 = vld [vmem:[%s11 + $0x1f4] sm:$0xf]
      %v6972 = vld [vmem:[%s11 + $0x1f8] sm:$0xff]
      %v6973 = vld [vmem:[%s11 + $0x200] sm:$0xff]
      %v6974 = vld [vmem:[%s11 + $0x208] sm:$0xff]
      %v6975 = vld [vmem:[%s11 + $0x210] sm:$0xf]
      %v6976 = vld [vmem:[%s11 + $0x214] sm:$0xff]
      %v6977 = vld [vmem:[%s11 + $0x21c] sm:$0xff]
      %v6978 = vld [vmem:[%s11 + $0x224] sm:$0xff]
      %v6979 = vld [vmem:[%s11 + $0x22c] sm:$0xf]
      %v6980 = vld [vmem:[%s11 + $0x230] sm:$0xff]
      %v6981 = vld [vmem:[%s11 + $0x238] sm:$0xff]
      %v6982 = vld [vmem:[%s11 + $0x240] sm:$0xff]
      %v6983 = vld [vmem:[%s11 + $0x248] sm:$0xf]
      %v6984 = vld [vmem:[%s11 + $0x24c] sm:$0xff]
      %v6985 = vld [vmem:[%s11 + $0x254] sm:$0xff]
      %v6986 = vld [vmem:[%s11 + $0x25c] sm:$0xff]
      %v6987 = vld [vmem:[%s11 + $0x264] sm:$0xf]
      %v6988 = vld [vmem:[%s11 + $0x268] sm:$0xff]
      %v6989 = vld [vmem:[%s11 + $0x270] sm:$0xff]
      %v6990 = vld [vmem:[%s11 + $0x278] sm:$0xff]
      %v6991 = vld [vmem:[%s11 + $0x280] sm:$0xf]
      %v6992 = vld [vmem:[%s11 + $0x284] sm:$0xff]
      %v6993 = vld [vmem:[%s11 + $0x28c] sm:$0xff]
      %v6994 = vld [vmem:[%s11 + $0x294] sm:$0xff]
      %v6995 = vld [vmem:[%s11 + $0x29c] sm:$0xf]
      %v6996 = vld [vmem:[%s11 + $0x2a0] sm:$0xff]
      %v6997 = vld [vmem:[%s11 + $0x2a8] sm:$0xff]
      %v6998 = vld [vmem:[%s11 + $0x2b0] sm:$0xff]
      %v6999 = vld [vmem:[%s11 + $0x2b8] sm:$0xf]
      %v7000 = vld [vmem:[%s11 + $0x2bc] sm:$0xff]
      %v7001 = vld [vmem:[%s11 + $0x2c4] sm:$0xff]
      %v7002 = vld [vmem:[%s11 + $0x2cc] sm:$0xff]
      %v7003 = vld [vmem:[%s11 + $0x2d4] sm:$0xf]
      %v7004 = vld [vmem:[%s11 + $0x2d8] sm:$0xff]
      %v7005 = vld [vmem:[%s11 + $0x2e0] sm:$0xff]
      %v7006 = vld [vmem:[%s11 + $0x2e8] sm:$0xff]
      %v7007 = vld [vmem:[%s11 + $0x2f0] sm:$0xf]
      %v7008 = vld [vmem:[%s11 + $0x2f4] sm:$0xff]
      %v7009 = vld [vmem:[%s11 + $0x2fc] sm:$0xff]
      %v7010 = vld [vmem:[%s11 + $0x304] sm:$0xff]
      %v7011 = vld [vmem:[%s11 + $0x30c] sm:$0xf]
      %v7012 = vld [vmem:[%s11 + $0x310] sm:$0xff]
      %v7013 = vld [vmem:[%s11 + $0x318] sm:$0xff]
      %v7014 = vld [vmem:[%s11 + $0x320] sm:$0xff]
      %v7015 = vld [vmem:[%s11 + $0x328] sm:$0xf]
      %v7016 = vld [vmem:[%s11 + $0x32c] sm:$0xff]
      %v7017 = vld [vmem:[%s11 + $0x334] sm:$0xff]
      %v7018 = vld [vmem:[%s11 + $0x33c] sm:$0xff]
      %v7019 = vld [vmem:[%s11 + $0x344] sm:$0xf]
      %v7020 = vld [vmem:[%s11 + $0x348] sm:$0xff]
      %v7021 = vld [vmem:[%s11 + $0x350] sm:$0xff]
      %v7022 = vld [vmem:[%s11 + $0x358] sm:$0xff]
      %v7023 = vld [vmem:[%s11 + $0x360] sm:$0xf]
      %v7024 = vld [vmem:[%s11 + $0x364] sm:$0xff]
      %v7025 = vld [vmem:[%s11 + $0x36c] sm:$0xff]
      %v7026 = vld [vmem:[%s11 + $0x374] sm:$0xff]
      %v7027 = vld [vmem:[%s11 + $0x37c] sm:$0xf]
      %v7028 = vld [vmem:[%s11 + $0x380] sm:$0xff]
      %v7029 = vld [vmem:[%s11 + $0x388] sm:$0xff]
      %v7030 = vld [vmem:[%s11 + $0x390] sm:$0xff]
      %v7031 = vld [vmem:[%s11 + $0x398] sm:$0xf]
      %v7032 = vld [vmem:[%s11 + $0x39c] sm:$0xff]
      %v7033 = vld [vmem:[%s11 + $0x3a4] sm:$0xff]
      %v7034 = vld [vmem:[%s11 + $0x3ac] sm:$0xff]
      %v7035 = vld [vmem:[%s11 + $0x3b4] sm:$0xf]
      %v7036 = vld [vmem:[%s11 + $0x3b8] sm:$0xff]
      %v7037 = vld [vmem:[%s11 + $0x3c0] sm:$0xff]
      %v7038 = vld [vmem:[%s11 + $0x3c8] sm:$0xff]
      %v7039 = vld [vmem:[%s11 + $0x3d0] sm:$0xf]
      %v7040 = vld [vmem:[%s11 + $0x3d4] sm:$0xff]
      %v7041 = vld [vmem:[%s11 + $0x3dc] sm:$0xff]
      %v7042 = vld [vmem:[%s11 + $0x3e4] sm:$0xff]
      %v7043 = vld [vmem:[%s11 + $0x3ec] sm:$0xf]
      %v7044 = vld [vmem:[%s11 + $0x3f0] sm:$0xff]
      %v7045 = vld [vmem:[%s11 + $0x3f8] sm:$0xff]
      %v7046 = vld [vmem:[%s11 + $0x400] sm:$0xff]
      %v7047 = vld [vmem:[%s11 + $0x408] sm:$0xf]
      %v7048 = vld [vmem:[%s11 + $0x40c] sm:$0xff]
      %v7049 = vld [vmem:[%s11 + $0x414] sm:$0xff]
      %v7050 = vld [vmem:[%s11 + $0x41c] sm:$0xff]
      %v7051 = vld [vmem:[%s11 + $0x424] sm:$0xf]
      %v7052 = vld [vmem:[%s11 + $0x428] sm:$0xff]
      %v7053 = vld [vmem:[%s11 + $0x430] sm:$0xff]
      %v7054 = vld [vmem:[%s11 + $0x438] sm:$0xff]
      %v7055 = vld [vmem:[%s11 + $0x440] sm:$0xf]
      %v7056 = vld [vmem:[%s11 + $0x444] sm:$0xff]
      %v7057 = vld [vmem:[%s11 + $0x44c] sm:$0xff]
      %v7058 = vld [vmem:[%s11 + $0x454] sm:$0xff]
      %v7059 = vld [vmem:[%s11 + $0x45c] sm:$0xf]
      %v7060 = vld [vmem:[%s11 + $0x460] sm:$0xff]
      %v7061 = vld [vmem:[%s11 + $0x468] sm:$0xff]
      %v7062 = vld [vmem:[%s11 + $0x470] sm:$0xff]
      %v7063 = vld [vmem:[%s11 + $0x478] sm:$0xf]
      %v7064 = vld [vmem:[%s11 + $0x47c] sm:$0xff]
      %v7065 = vld [vmem:[%s11 + $0x484] sm:$0xff]
      %v7066 = vld [vmem:[%s11 + $0x48c] sm:$0xff]
      %v7067 = vld [vmem:[%s11 + $0x494] sm:$0xf]
      %v7068 = vld [vmem:[%s11 + $0x498] sm:$0xff]
      %v7069 = vld [vmem:[%s11 + $0x4a0] sm:$0xff]
      %v7070 = vld [vmem:[%s11 + $0x4a8] sm:$0xff]
      %v7071 = vld [vmem:[%s11 + $0x4b0] sm:$0xf]
      %v7072 = vld [vmem:[%s11 + $0x4b4] sm:$0xff]
      %v7073 = vld [vmem:[%s11 + $0x4bc] sm:$0xff]
      %v7074 = vld [vmem:[%s11 + $0x4c4] sm:$0xff]
      %v7075 = vld [vmem:[%s11 + $0x4cc] sm:$0xf]
      %v7076 = vld [vmem:[%s11 + $0x4d0] sm:$0xff]
      %v7077 = vld [vmem:[%s11 + $0x4d8] sm:$0xff]
      %v7078 = vld [vmem:[%s11 + $0x4e0] sm:$0xff]
      %v7079 = vld [vmem:[%s11 + $0x4e8] sm:$0xf]
      %v7080 = vld [vmem:[%s11 + $0x4ec] sm:$0xff]
      %v7081 = vld [vmem:[%s11 + $0x4f4] sm:$0xff]
      %v7082 = vld [vmem:[%s11 + $0x4fc] sm:$0xff]
      %v7083 = vld [vmem:[%s11 + $0x504] sm:$0xf]
      %v7084 = vld [vmem:[%s11 + $0x508] sm:$0xff]
      %v7085 = vld [vmem:[%s11 + $0x510] sm:$0xff]
      %v7086 = vld [vmem:[%s11 + $0x518] sm:$0xff]
      %v7087 = vld [vmem:[%s11 + $0x520] sm:$0xf]
      %v7088 = vld [vmem:[%s11 + $0x524] sm:$0xff]
      %v7089 = vld [vmem:[%s11 + $0x52c] sm:$0xff]
      %v7090 = vld [vmem:[%s11 + $0x534] sm:$0xff]
      %v7091 = vld [vmem:[%s11 + $0x53c] sm:$0xf]
      %v7092 = vld [vmem:[%s11 + $0x540] sm:$0xff]
      %v7093 = vld [vmem:[%s11 + $0x548] sm:$0xff]
      %v7094 = vld [vmem:[%s11 + $0x550] sm:$0xff]
      %v7095 = vld [vmem:[%s11 + $0x558] sm:$0xf]
      %v7096 = vld [vmem:[%s11 + $0x55c] sm:$0xff]
      %v7097 = vld [vmem:[%s11 + $0x564] sm:$0xff]
      %v7098 = vld [vmem:[%s11 + $0x56c] sm:$0xff]
      %v7099 = vld [vmem:[%s11 + $0x574] sm:$0xf]
      %v7100 = vld [vmem:[%s11 + $0x578] sm:$0xff]
      %v7101 = vld [vmem:[%s11 + $0x580] sm:$0xff]
      %v7102 = vld [vmem:[%s11 + $0x588] sm:$0xff]
      %v7103 = vld [vmem:[%s11 + $0x590] sm:$0xf]
      %v7104 = vld [vmem:[%s11 + $0x594] sm:$0xff]
      %v7105 = vld [vmem:[%s11 + $0x59c] sm:$0xff]
      %v7106 = vld [vmem:[%s11 + $0x5a4] sm:$0xff]
      %v7107 = vld [vmem:[%s11 + $0x5ac] sm:$0xf]
      %v7108 = vld [vmem:[%s11 + $0x5b0] sm:$0xff]
      %v7109 = vld [vmem:[%s11 + $0x5b8] sm:$0xff]
      %v7110 = vld [vmem:[%s11 + $0x5c0] sm:$0xff]
      %v7111 = vld [vmem:[%s11 + $0x5c8] sm:$0xf]
      %v7112 = vld [vmem:[%s11 + $0x5cc] sm:$0xff]
      %v7113 = vld [vmem:[%s11 + $0x5d4] sm:$0xff]
      %v7114 = vld [vmem:[%s11 + $0x5dc] sm:$0xff]
      %v7115 = vld [vmem:[%s11 + $0x5e4] sm:$0xf]
      %v7116 = vld [vmem:[%s11 + $0x5e8] sm:$0xff]
      %v7117 = vld [vmem:[%s11 + $0x5f0] sm:$0xff]
      %v7118 = vld [vmem:[%s11 + $0x5f8] sm:$0xff]
      %v7119 = vld [vmem:[%s11 + $0x600] sm:$0xf]
      %v7120 = vld [vmem:[%s11 + $0x604] sm:$0xff]
      %v7121 = vld [vmem:[%s11 + $0x60c] sm:$0xff]
      %v7122 = vld [vmem:[%s11 + $0x614] sm:$0xff]
      %v7123 = vld [vmem:[%s11 + $0x61c] sm:$0xf]
      %v7124 = vld [vmem:[%s11 + $0x620] sm:$0xff]
      %v7125 = vld [vmem:[%s11 + $0x628] sm:$0xff]
      %v7126 = vld [vmem:[%s11 + $0x630] sm:$0xff]
      %v7127 = vld [vmem:[%s11 + $0x638] sm:$0xf]
      %v7128 = vld [vmem:[%s11 + $0x63c] sm:$0xff]
      %v7129 = vld [vmem:[%s11 + $0x644] sm:$0xff]
      %v7130 = vld [vmem:[%s11 + $0x64c] sm:$0xff]
      %v7131 = vld [vmem:[%s11 + $0x654] sm:$0xf]
      %v7132 = vld [vmem:[%s11 + $0x658] sm:$0xff]
      %v7133 = vld [vmem:[%s11 + $0x660] sm:$0xff]
      %v7134 = vld [vmem:[%s11 + $0x668] sm:$0xff]
      %v7135 = vld [vmem:[%s11 + $0x670] sm:$0xf]
      %v7136 = vld [vmem:[%s11 + $0x674] sm:$0xff]
      %v7137 = vld [vmem:[%s11 + $0x67c] sm:$0xff]
      %v7138 = vld [vmem:[%s11 + $0x684] sm:$0xff]
      %v7139 = vld [vmem:[%s11 + $0x68c] sm:$0xf]
      %v7140 = vld [vmem:[%s11 + $0x690] sm:$0xff]
      %v7141 = vld [vmem:[%s11 + $0x698] sm:$0xff]
      %v7142 = vld [vmem:[%s11 + $0x6a0] sm:$0xff]
      %v7143 = vld [vmem:[%s11 + $0x6a8] sm:$0xf]
      %v7144 = vld [vmem:[%s11 + $0x6ac] sm:$0xff]
      %v7145 = vld [vmem:[%s11 + $0x6b4] sm:$0xff]
      %v7146 = vld [vmem:[%s11 + $0x6bc] sm:$0xff]
      %v7147 = vld [vmem:[%s11 + $0x6c4] sm:$0xf]
      %v7148 = vld [vmem:[%s11 + $0x6c8] sm:$0xff]
      %v7149 = vld [vmem:[%s11 + $0x6d0] sm:$0xff]
      %v7150 = vld [vmem:[%s11 + $0x6d8] sm:$0xff]
      %v7151 = vld [vmem:[%s11 + $0x6e0] sm:$0xf]
      %v7152 = vld [vmem:[%s11 + $0x6e4] sm:$0xff]
      %v7153 = vld [vmem:[%s11 + $0x6ec] sm:$0xff]
      %v7154 = vld [vmem:[%s11 + $0x6f4] sm:$0xff]
      %v7155 = vld [vmem:[%s11 + $0x6fc] sm:$0xf]
      %v7156 = vld [vmem:[%s12] sm:$0xff]
      %v7158 = vlaneseq
      %v7159 = vshrl.u32 %v7158, 7
      %v7160 = vsub.s32 0, %v7159
      %v7161 = vrot.slane %v7156, %v7160
      %v7162 = vlaneseq
      %v7163 = vshrl.u32 %v7162, 7
      %v7164 = vsub.s32 1, %v7163
      %v7165 = vrot.slane %v7156, %v7164
      %v7166 = vlaneseq
      %v7167 = vshrl.u32 %v7166, 7
      %v7168 = vsub.s32 2, %v7167
      %v7169 = vrot.slane %v7156, %v7168
      %v7170 = vlaneseq
      %v7171 = vshrl.u32 %v7170, 7
      %v7172 = vsub.s32 3, %v7171
      %v7173 = vrot.slane %v7156, %v7172
      %v7174 = vlaneseq
      %v7175 = vshrl.u32 %v7174, 7
      %v7176 = vsub.s32 4, %v7175
      %v7177 = vrot.slane %v7156, %v7176
      %v7178 = vlaneseq
      %v7179 = vshrl.u32 %v7178, 7
      %v7180 = vsub.s32 5, %v7179
      %v7181 = vrot.slane %v7156, %v7180
      %v7182 = vlaneseq
      %v7183 = vshrl.u32 %v7182, 7
      %v7184 = vsub.s32 6, %v7183
      %v7185 = vrot.slane %v7156, %v7184
      %v7449 = vunpack.c.l.b16 %v6900
      %v7450 = vunpack.c.h.b16 %v6900
      %v7451 = vunpack.c.l.b16 %v6901
      %v7452 = vunpack.c.h.b16 %v6901
      %v7453 = vunpack.c.l.b16 %v6902
      %v7454 = vunpack.c.h.b16 %v6902
      %v7455 = vunpack.c.l.b16 %v6903
      %v7456 = vunpack.c.l.b16 %v6904
      %v7457 = vunpack.c.h.b16 %v6904
      %v7458 = vunpack.c.l.b16 %v6905
      %v7459 = vunpack.c.h.b16 %v6905
      %v7460 = vunpack.c.l.b16 %v6906
      %v7461 = vunpack.c.h.b16 %v6906
      %v7462 = vunpack.c.l.b16 %v6907
      %v7463 = vunpack.c.l.b16 %v6908
      %v7464 = vunpack.c.h.b16 %v6908
      %v7465 = vunpack.c.l.b16 %v6909
      %v7466 = vunpack.c.h.b16 %v6909
      %v7467 = vunpack.c.l.b16 %v6910
      %v7468 = vunpack.c.h.b16 %v6910
      %v7469 = vunpack.c.l.b16 %v6911
      %v7470 = vunpack.c.l.b16 %v6912
      %v7471 = vunpack.c.h.b16 %v6912
      %v7472 = vunpack.c.l.b16 %v6913
      %v7473 = vunpack.c.h.b16 %v6913
      %v7474 = vunpack.c.l.b16 %v6914
      %v7475 = vunpack.c.h.b16 %v6914
      %v7476 = vunpack.c.l.b16 %v6915
      %v7477 = vunpack.c.l.b16 %v6916
      %v7478 = vunpack.c.h.b16 %v6916
      %v7479 = vunpack.c.l.b16 %v6917
      %v7480 = vunpack.c.h.b16 %v6917
      %v7481 = vunpack.c.l.b16 %v6918
      %v7482 = vunpack.c.h.b16 %v6918
      %v7483 = vunpack.c.l.b16 %v6919
      %v7484 = vunpack.c.l.b16 %v6920
      %v7485 = vunpack.c.h.b16 %v6920
      %v7486 = vunpack.c.l.b16 %v6921
      %v7487 = vunpack.c.h.b16 %v6921
      %v7488 = vunpack.c.l.b16 %v6922
      %v7489 = vunpack.c.h.b16 %v6922
      %v7490 = vunpack.c.l.b16 %v6923
      %v7491 = vunpack.c.l.b16 %v6924
      %v7492 = vunpack.c.h.b16 %v6924
      %v7493 = vunpack.c.l.b16 %v6925
      %v7494 = vunpack.c.h.b16 %v6925
      %v7495 = vunpack.c.l.b16 %v6926
      %v7496 = vunpack.c.h.b16 %v6926
      %v7497 = vunpack.c.l.b16 %v6927
      %v7498 = vunpack.c.l.b16 %v6928
      %v7499 = vunpack.c.h.b16 %v6928
      %v7500 = vunpack.c.l.b16 %v6929
      %v7501 = vunpack.c.h.b16 %v6929
      %v7502 = vunpack.c.l.b16 %v6930
      %v7503 = vunpack.c.h.b16 %v6930
      %v7504 = vunpack.c.l.b16 %v6931
      %v7505 = vunpack.c.l.b16 %v6932
      %v7506 = vunpack.c.h.b16 %v6932
      %v7507 = vunpack.c.l.b16 %v6933
      %v7508 = vunpack.c.h.b16 %v6933
      %v7509 = vunpack.c.l.b16 %v6934
      %v7510 = vunpack.c.h.b16 %v6934
      %v7511 = vunpack.c.l.b16 %v6935
      %v7512 = vunpack.c.l.b16 %v6936
      %v7513 = vunpack.c.h.b16 %v6936
      %v7514 = vunpack.c.l.b16 %v6937
      %v7515 = vunpack.c.h.b16 %v6937
      %v7516 = vunpack.c.l.b16 %v6938
      %v7517 = vunpack.c.h.b16 %v6938
      %v7518 = vunpack.c.l.b16 %v6939
      %v7519 = vunpack.c.l.b16 %v6940
      %v7520 = vunpack.c.h.b16 %v6940
      %v7521 = vunpack.c.l.b16 %v6941
      %v7522 = vunpack.c.h.b16 %v6941
      %v7523 = vunpack.c.l.b16 %v6942
      %v7524 = vunpack.c.h.b16 %v6942
      %v7525 = vunpack.c.l.b16 %v6943
      %v7526 = vunpack.c.l.b16 %v6944
      %v7527 = vunpack.c.h.b16 %v6944
      %v7528 = vunpack.c.l.b16 %v6945
      %v7529 = vunpack.c.h.b16 %v6945
      %v7530 = vunpack.c.l.b16 %v6946
      %v7531 = vunpack.c.h.b16 %v6946
      %v7532 = vunpack.c.l.b16 %v6947
      %v7533 = vunpack.c.l.b16 %v6948
      %v7534 = vunpack.c.h.b16 %v6948
      %v7535 = vunpack.c.l.b16 %v6949
      %v7536 = vunpack.c.h.b16 %v6949
      %v7537 = vunpack.c.l.b16 %v6950
      %v7538 = vunpack.c.h.b16 %v6950
      %v7539 = vunpack.c.l.b16 %v6951
      %v7540 = vunpack.c.l.b16 %v6952
      %v7541 = vunpack.c.h.b16 %v6952
      %v7542 = vunpack.c.l.b16 %v6953
      %v7543 = vunpack.c.h.b16 %v6953
      %v7544 = vunpack.c.l.b16 %v6954
      %v7545 = vunpack.c.h.b16 %v6954
      %v7546 = vunpack.c.l.b16 %v6955
      %v7547 = vunpack.c.l.b16 %v6956
      %v7548 = vunpack.c.h.b16 %v6956
      %v7549 = vunpack.c.l.b16 %v6957
      %v7550 = vunpack.c.h.b16 %v6957
      %v7551 = vunpack.c.l.b16 %v6958
      %v7552 = vunpack.c.h.b16 %v6958
      %v7553 = vunpack.c.l.b16 %v6959
      %v7554 = vunpack.c.l.b16 %v6960
      %v7555 = vunpack.c.h.b16 %v6960
      %v7556 = vunpack.c.l.b16 %v6961
      %v7557 = vunpack.c.h.b16 %v6961
      %v7558 = vunpack.c.l.b16 %v6962
      %v7559 = vunpack.c.h.b16 %v6962
      %v7560 = vunpack.c.l.b16 %v6963
      %v7561 = vunpack.c.l.b16 %v6964
      %v7562 = vunpack.c.h.b16 %v6964
      %v7563 = vunpack.c.l.b16 %v6965
      %v7564 = vunpack.c.h.b16 %v6965
      %v7565 = vunpack.c.l.b16 %v6966
      %v7566 = vunpack.c.h.b16 %v6966
      %v7567 = vunpack.c.l.b16 %v6967
      %v7568 = vunpack.c.l.b16 %v6968
      %v7569 = vunpack.c.h.b16 %v6968
      %v7570 = vunpack.c.l.b16 %v6969
      %v7571 = vunpack.c.h.b16 %v6969
      %v7572 = vunpack.c.l.b16 %v6970
      %v7573 = vunpack.c.h.b16 %v6970
      %v7574 = vunpack.c.l.b16 %v6971
      %v7575 = vunpack.c.l.b16 %v6972
      %v7576 = vunpack.c.h.b16 %v6972
      %v7577 = vunpack.c.l.b16 %v6973
      %v7578 = vunpack.c.h.b16 %v6973
      %v7579 = vunpack.c.l.b16 %v6974
      %v7580 = vunpack.c.h.b16 %v6974
      %v7581 = vunpack.c.l.b16 %v6975
      %v7582 = vunpack.c.l.b16 %v6976
      %v7583 = vunpack.c.h.b16 %v6976
      %v7584 = vunpack.c.l.b16 %v6977
      %v7585 = vunpack.c.h.b16 %v6977
      %v7586 = vunpack.c.l.b16 %v6978
      %v7587 = vunpack.c.h.b16 %v6978
      %v7588 = vunpack.c.l.b16 %v6979
      %v7589 = vunpack.c.l.b16 %v6980
      %v7590 = vunpack.c.h.b16 %v6980
      %v7591 = vunpack.c.l.b16 %v6981
      %v7592 = vunpack.c.h.b16 %v6981
      %v7593 = vunpack.c.l.b16 %v6982
      %v7594 = vunpack.c.h.b16 %v6982
      %v7595 = vunpack.c.l.b16 %v6983
      %v7596 = vunpack.c.l.b16 %v6984
      %v7597 = vunpack.c.h.b16 %v6984
      %v7598 = vunpack.c.l.b16 %v6985
      %v7599 = vunpack.c.h.b16 %v6985
      %v7600 = vunpack.c.l.b16 %v6986
      %v7601 = vunpack.c.h.b16 %v6986
      %v7602 = vunpack.c.l.b16 %v6987
      %v7603 = vunpack.c.l.b16 %v6988
      %v7604 = vunpack.c.h.b16 %v6988
      %v7605 = vunpack.c.l.b16 %v6989
      %v7606 = vunpack.c.h.b16 %v6989
      %v7607 = vunpack.c.l.b16 %v6990
      %v7608 = vunpack.c.h.b16 %v6990
      %v7609 = vunpack.c.l.b16 %v6991
      %v7610 = vunpack.c.l.b16 %v6992
      %v7611 = vunpack.c.h.b16 %v6992
      %v7612 = vunpack.c.l.b16 %v6993
      %v7613 = vunpack.c.h.b16 %v6993
      %v7614 = vunpack.c.l.b16 %v6994
      %v7615 = vunpack.c.h.b16 %v6994
      %v7616 = vunpack.c.l.b16 %v6995
      %v7617 = vunpack.c.l.b16 %v6996
      %v7618 = vunpack.c.h.b16 %v6996
      %v7619 = vunpack.c.l.b16 %v6997
      %v7620 = vunpack.c.h.b16 %v6997
      %v7621 = vunpack.c.l.b16 %v6998
      %v7622 = vunpack.c.h.b16 %v6998
      %v7623 = vunpack.c.l.b16 %v6999
      %v7624 = vunpack.c.l.b16 %v7000
      %v7625 = vunpack.c.h.b16 %v7000
      %v7626 = vunpack.c.l.b16 %v7001
      %v7627 = vunpack.c.h.b16 %v7001
      %v7628 = vunpack.c.l.b16 %v7002
      %v7629 = vunpack.c.h.b16 %v7002
      %v7630 = vunpack.c.l.b16 %v7003
      %v7631 = vunpack.c.l.b16 %v7004
      %v7632 = vunpack.c.h.b16 %v7004
      %v7633 = vunpack.c.l.b16 %v7005
      %v7634 = vunpack.c.h.b16 %v7005
      %v7635 = vunpack.c.l.b16 %v7006
      %v7636 = vunpack.c.h.b16 %v7006
      %v7637 = vunpack.c.l.b16 %v7007
      %v7638 = vunpack.c.l.b16 %v7008
      %v7639 = vunpack.c.h.b16 %v7008
      %v7640 = vunpack.c.l.b16 %v7009
      %v7641 = vunpack.c.h.b16 %v7009
      %v7642 = vunpack.c.l.b16 %v7010
      %v7643 = vunpack.c.h.b16 %v7010
      %v7644 = vunpack.c.l.b16 %v7011
      %v7645 = vunpack.c.l.b16 %v7012
      %v7646 = vunpack.c.h.b16 %v7012
      %v7647 = vunpack.c.l.b16 %v7013
      %v7648 = vunpack.c.h.b16 %v7013
      %v7649 = vunpack.c.l.b16 %v7014
      %v7650 = vunpack.c.h.b16 %v7014
      %v7651 = vunpack.c.l.b16 %v7015
      %v7652 = vunpack.c.l.b16 %v7016
      %v7653 = vunpack.c.h.b16 %v7016
      %v7654 = vunpack.c.l.b16 %v7017
      %v7655 = vunpack.c.h.b16 %v7017
      %v7656 = vunpack.c.l.b16 %v7018
      %v7657 = vunpack.c.h.b16 %v7018
      %v7658 = vunpack.c.l.b16 %v7019
      %v7659 = vunpack.c.l.b16 %v7020
      %v7660 = vunpack.c.h.b16 %v7020
      %v7661 = vunpack.c.l.b16 %v7021
      %v7662 = vunpack.c.h.b16 %v7021
      %v7663 = vunpack.c.l.b16 %v7022
      %v7664 = vunpack.c.h.b16 %v7022
      %v7665 = vunpack.c.l.b16 %v7023
      %v7666 = vunpack.c.l.b16 %v7024
      %v7667 = vunpack.c.h.b16 %v7024
      %v7668 = vunpack.c.l.b16 %v7025
      %v7669 = vunpack.c.h.b16 %v7025
      %v7670 = vunpack.c.l.b16 %v7026
      %v7671 = vunpack.c.h.b16 %v7026
      %v7672 = vunpack.c.l.b16 %v7027
      %v7673 = vunpack.c.l.b16 %v7028
      %v7674 = vunpack.c.h.b16 %v7028
      %v7675 = vunpack.c.l.b16 %v7029
      %v7676 = vunpack.c.h.b16 %v7029
      %v7677 = vunpack.c.l.b16 %v7030
      %v7678 = vunpack.c.h.b16 %v7030
      %v7679 = vunpack.c.l.b16 %v7031
      %v7680 = vunpack.c.l.b16 %v7032
      %v7681 = vunpack.c.h.b16 %v7032
      %v7682 = vunpack.c.l.b16 %v7033
      %v7683 = vunpack.c.h.b16 %v7033
      %v7684 = vunpack.c.l.b16 %v7034
      %v7685 = vunpack.c.h.b16 %v7034
      %v7686 = vunpack.c.l.b16 %v7035
      %v7687 = vunpack.c.l.b16 %v7036
      %v7688 = vunpack.c.h.b16 %v7036
      %v7689 = vunpack.c.l.b16 %v7037
      %v7690 = vunpack.c.h.b16 %v7037
      %v7691 = vunpack.c.l.b16 %v7038
      %v7692 = vunpack.c.h.b16 %v7038
      %v7693 = vunpack.c.l.b16 %v7039
      %v7694 = vunpack.c.l.b16 %v7040
      %v7695 = vunpack.c.h.b16 %v7040
      %v7696 = vunpack.c.l.b16 %v7041
      %v7697 = vunpack.c.h.b16 %v7041
      %v7698 = vunpack.c.l.b16 %v7042
      %v7699 = vunpack.c.h.b16 %v7042
      %v7700 = vunpack.c.l.b16 %v7043
      %v7701 = vunpack.c.l.b16 %v7044
      %v7702 = vunpack.c.h.b16 %v7044
      %v7703 = vunpack.c.l.b16 %v7045
      %v7704 = vunpack.c.h.b16 %v7045
      %v7705 = vunpack.c.l.b16 %v7046
      %v7706 = vunpack.c.h.b16 %v7046
      %v7707 = vunpack.c.l.b16 %v7047
      %v7708 = vunpack.c.l.b16 %v7048
      %v7709 = vunpack.c.h.b16 %v7048
      %v7710 = vunpack.c.l.b16 %v7049
      %v7711 = vunpack.c.h.b16 %v7049
      %v7712 = vunpack.c.l.b16 %v7050
      %v7713 = vunpack.c.h.b16 %v7050
      %v7714 = vunpack.c.l.b16 %v7051
      %v7715 = vunpack.c.l.b16 %v7052
      %v7716 = vunpack.c.h.b16 %v7052
      %v7717 = vunpack.c.l.b16 %v7053
      %v7718 = vunpack.c.h.b16 %v7053
      %v7719 = vunpack.c.l.b16 %v7054
      %v7720 = vunpack.c.h.b16 %v7054
      %v7721 = vunpack.c.l.b16 %v7055
      %v7722 = vunpack.c.l.b16 %v7056
      %v7723 = vunpack.c.h.b16 %v7056
      %v7724 = vunpack.c.l.b16 %v7057
      %v7725 = vunpack.c.h.b16 %v7057
      %v7726 = vunpack.c.l.b16 %v7058
      %v7727 = vunpack.c.h.b16 %v7058
      %v7728 = vunpack.c.l.b16 %v7059
      %v7729 = vunpack.c.l.b16 %v7060
      %v7730 = vunpack.c.h.b16 %v7060
      %v7731 = vunpack.c.l.b16 %v7061
      %v7732 = vunpack.c.h.b16 %v7061
      %v7733 = vunpack.c.l.b16 %v7062
      %v7734 = vunpack.c.h.b16 %v7062
      %v7735 = vunpack.c.l.b16 %v7063
      %v7736 = vunpack.c.l.b16 %v7064
      %v7737 = vunpack.c.h.b16 %v7064
      %v7738 = vunpack.c.l.b16 %v7065
      %v7739 = vunpack.c.h.b16 %v7065
      %v7740 = vunpack.c.l.b16 %v7066
      %v7741 = vunpack.c.h.b16 %v7066
      %v7742 = vunpack.c.l.b16 %v7067
      %v7743 = vunpack.c.l.b16 %v7068
      %v7744 = vunpack.c.h.b16 %v7068
      %v7745 = vunpack.c.l.b16 %v7069
      %v7746 = vunpack.c.h.b16 %v7069
      %v7747 = vunpack.c.l.b16 %v7070
      %v7748 = vunpack.c.h.b16 %v7070
      %v7749 = vunpack.c.l.b16 %v7071
      %v7750 = vunpack.c.l.b16 %v7072
      %v7751 = vunpack.c.h.b16 %v7072
      %v7752 = vunpack.c.l.b16 %v7073
      %v7753 = vunpack.c.h.b16 %v7073
      %v7754 = vunpack.c.l.b16 %v7074
      %v7755 = vunpack.c.h.b16 %v7074
      %v7756 = vunpack.c.l.b16 %v7075
      %v7757 = vunpack.c.l.b16 %v7076
      %v7758 = vunpack.c.h.b16 %v7076
      %v7759 = vunpack.c.l.b16 %v7077
      %v7760 = vunpack.c.h.b16 %v7077
      %v7761 = vunpack.c.l.b16 %v7078
      %v7762 = vunpack.c.h.b16 %v7078
      %v7763 = vunpack.c.l.b16 %v7079
      %v7764 = vunpack.c.l.b16 %v7080
      %v7765 = vunpack.c.h.b16 %v7080
      %v7766 = vunpack.c.l.b16 %v7081
      %v7767 = vunpack.c.h.b16 %v7081
      %v7768 = vunpack.c.l.b16 %v7082
      %v7769 = vunpack.c.h.b16 %v7082
      %v7770 = vunpack.c.l.b16 %v7083
      %v7771 = vunpack.c.l.b16 %v7084
      %v7772 = vunpack.c.h.b16 %v7084
      %v7773 = vunpack.c.l.b16 %v7085
      %v7774 = vunpack.c.h.b16 %v7085
      %v7775 = vunpack.c.l.b16 %v7086
      %v7776 = vunpack.c.h.b16 %v7086
      %v7777 = vunpack.c.l.b16 %v7087
      %v7778 = vunpack.c.l.b16 %v7088
      %v7779 = vunpack.c.h.b16 %v7088
      %v7780 = vunpack.c.l.b16 %v7089
      %v7781 = vunpack.c.h.b16 %v7089
      %v7782 = vunpack.c.l.b16 %v7090
      %v7783 = vunpack.c.h.b16 %v7090
      %v7784 = vunpack.c.l.b16 %v7091
      %v7785 = vunpack.c.l.b16 %v7092
      %v7786 = vunpack.c.h.b16 %v7092
      %v7787 = vunpack.c.l.b16 %v7093
      %v7788 = vunpack.c.h.b16 %v7093
      %v7789 = vunpack.c.l.b16 %v7094
      %v7790 = vunpack.c.h.b16 %v7094
      %v7791 = vunpack.c.l.b16 %v7095
      %v7792 = vunpack.c.l.b16 %v7096
      %v7793 = vunpack.c.h.b16 %v7096
      %v7794 = vunpack.c.l.b16 %v7097
      %v7795 = vunpack.c.h.b16 %v7097
      %v7796 = vunpack.c.l.b16 %v7098
      %v7797 = vunpack.c.h.b16 %v7098
      %v7798 = vunpack.c.l.b16 %v7099
      %v7799 = vunpack.c.l.b16 %v7100
      %v7800 = vunpack.c.h.b16 %v7100
      %v7801 = vunpack.c.l.b16 %v7101
      %v7802 = vunpack.c.h.b16 %v7101
      %v7803 = vunpack.c.l.b16 %v7102
      %v7804 = vunpack.c.h.b16 %v7102
      %v7805 = vunpack.c.l.b16 %v7103
      %v7806 = vunpack.c.l.b16 %v7104
      %v7807 = vunpack.c.h.b16 %v7104
      %v7808 = vunpack.c.l.b16 %v7105
      %v7809 = vunpack.c.h.b16 %v7105
      %v7810 = vunpack.c.l.b16 %v7106
      %v7811 = vunpack.c.h.b16 %v7106
      %v7812 = vunpack.c.l.b16 %v7107
      %v7813 = vunpack.c.l.b16 %v7108
      %v7814 = vunpack.c.h.b16 %v7108
      %v7815 = vunpack.c.l.b16 %v7109
      %v7816 = vunpack.c.h.b16 %v7109
      %v7817 = vunpack.c.l.b16 %v7110
      %v7818 = vunpack.c.h.b16 %v7110
      %v7819 = vunpack.c.l.b16 %v7111
      %v7820 = vunpack.c.l.b16 %v7112
      %v7821 = vunpack.c.h.b16 %v7112
      %v7822 = vunpack.c.l.b16 %v7113
      %v7823 = vunpack.c.h.b16 %v7113
      %v7824 = vunpack.c.l.b16 %v7114
      %v7825 = vunpack.c.h.b16 %v7114
      %v7826 = vunpack.c.l.b16 %v7115
      %v7827 = vunpack.c.l.b16 %v7116
      %v7828 = vunpack.c.h.b16 %v7116
      %v7829 = vunpack.c.l.b16 %v7117
      %v7830 = vunpack.c.h.b16 %v7117
      %v7831 = vunpack.c.l.b16 %v7118
      %v7832 = vunpack.c.h.b16 %v7118
      %v7833 = vunpack.c.l.b16 %v7119
      %v7834 = vunpack.c.l.b16 %v7120
      %v7835 = vunpack.c.h.b16 %v7120
      %v7836 = vunpack.c.l.b16 %v7121
      %v7837 = vunpack.c.h.b16 %v7121
      %v7838 = vunpack.c.l.b16 %v7122
      %v7839 = vunpack.c.h.b16 %v7122
      %v7840 = vunpack.c.l.b16 %v7123
      %v7841 = vunpack.c.l.b16 %v7124
      %v7842 = vunpack.c.h.b16 %v7124
      %v7843 = vunpack.c.l.b16 %v7125
      %v7844 = vunpack.c.h.b16 %v7125
      %v7845 = vunpack.c.l.b16 %v7126
      %v7846 = vunpack.c.h.b16 %v7126
      %v7847 = vunpack.c.l.b16 %v7127
      %v7848 = vunpack.c.l.b16 %v7128
      %v7849 = vunpack.c.h.b16 %v7128
      %v7850 = vunpack.c.l.b16 %v7129
      %v7851 = vunpack.c.h.b16 %v7129
      %v7852 = vunpack.c.l.b16 %v7130
      %v7853 = vunpack.c.h.b16 %v7130
      %v7854 = vunpack.c.l.b16 %v7131
      %v7855 = vunpack.c.l.b16 %v7132
      %v7856 = vunpack.c.h.b16 %v7132
      %v7857 = vunpack.c.l.b16 %v7133
      %v7858 = vunpack.c.h.b16 %v7133
      %v7859 = vunpack.c.l.b16 %v7134
      %v7860 = vunpack.c.h.b16 %v7134
      %v7861 = vunpack.c.l.b16 %v7135
      %v7862 = vunpack.c.l.b16 %v7136
      %v7863 = vunpack.c.h.b16 %v7136
      %v7864 = vunpack.c.l.b16 %v7137
      %v7865 = vunpack.c.h.b16 %v7137
      %v7866 = vunpack.c.l.b16 %v7138
      %v7867 = vunpack.c.h.b16 %v7138
      %v7868 = vunpack.c.l.b16 %v7139
      %v7869 = vunpack.c.l.b16 %v7140
      %v7870 = vunpack.c.h.b16 %v7140
      %v7871 = vunpack.c.l.b16 %v7141
      %v7872 = vunpack.c.h.b16 %v7141
      %v7873 = vunpack.c.l.b16 %v7142
      %v7874 = vunpack.c.h.b16 %v7142
      %v7875 = vunpack.c.l.b16 %v7143
      %v7876 = vunpack.c.l.b16 %v7144
      %v7877 = vunpack.c.h.b16 %v7144
      %v7878 = vunpack.c.l.b16 %v7145
      %v7879 = vunpack.c.h.b16 %v7145
      %v7880 = vunpack.c.l.b16 %v7146
      %v7881 = vunpack.c.h.b16 %v7146
      %v7882 = vunpack.c.l.b16 %v7147
      %v7883 = vunpack.c.l.b16 %v7148
      %v7884 = vunpack.c.h.b16 %v7148
      %v7885 = vunpack.c.l.b16 %v7149
      %v7886 = vunpack.c.h.b16 %v7149
      %v7887 = vunpack.c.l.b16 %v7150
      %v7888 = vunpack.c.h.b16 %v7150
      %v7889 = vunpack.c.l.b16 %v7151
      %v7890 = vunpack.c.l.b16 %v7152
      %v7891 = vunpack.c.h.b16 %v7152
      %v7892 = vunpack.c.l.b16 %v7153
      %v7893 = vunpack.c.h.b16 %v7153
      %v7894 = vunpack.c.l.b16 %v7154
      %v7895 = vunpack.c.h.b16 %v7154
      %v7896 = vunpack.c.l.b16 %v7155
      %v7897 = vpack.c.b16 %v7456, %v7449
      %v7898 = vpack.c.b16 %v7457, %v7450
      %v7899 = vpack.c.b16 %v7458, %v7451
      %v7900 = vpack.c.b16 %v7459, %v7452
      %v7901 = vpack.c.b16 %v7460, %v7453
      %v7902 = vpack.c.b16 %v7461, %v7454
      %v7903 = vpack.c.b16 %v7462, %v7455
      %v7904 = vpack.c.b16 %v7470, %v7463
      %v7905 = vpack.c.b16 %v7471, %v7464
      %v7906 = vpack.c.b16 %v7472, %v7465
      %v7907 = vpack.c.b16 %v7473, %v7466
      %v7908 = vpack.c.b16 %v7474, %v7467
      %v7909 = vpack.c.b16 %v7475, %v7468
      %v7910 = vpack.c.b16 %v7476, %v7469
      %v7911 = vpack.c.b16 %v7484, %v7477
      %v7912 = vpack.c.b16 %v7485, %v7478
      %v7913 = vpack.c.b16 %v7486, %v7479
      %v7914 = vpack.c.b16 %v7487, %v7480
      %v7915 = vpack.c.b16 %v7488, %v7481
      %v7916 = vpack.c.b16 %v7489, %v7482
      %v7917 = vpack.c.b16 %v7490, %v7483
      %v7918 = vpack.c.b16 %v7498, %v7491
      %v7919 = vpack.c.b16 %v7499, %v7492
      %v7920 = vpack.c.b16 %v7500, %v7493
      %v7921 = vpack.c.b16 %v7501, %v7494
      %v7922 = vpack.c.b16 %v7502, %v7495
      %v7923 = vpack.c.b16 %v7503, %v7496
      %v7924 = vpack.c.b16 %v7504, %v7497
      %v7925 = vpack.c.b16 %v7512, %v7505
      %v7926 = vpack.c.b16 %v7513, %v7506
      %v7927 = vpack.c.b16 %v7514, %v7507
      %v7928 = vpack.c.b16 %v7515, %v7508
      %v7929 = vpack.c.b16 %v7516, %v7509
      %v7930 = vpack.c.b16 %v7517, %v7510
      %v7931 = vpack.c.b16 %v7518, %v7511
      %v7932 = vpack.c.b16 %v7526, %v7519
      %v7933 = vpack.c.b16 %v7527, %v7520
      %v7934 = vpack.c.b16 %v7528, %v7521
      %v7935 = vpack.c.b16 %v7529, %v7522
      %v7936 = vpack.c.b16 %v7530, %v7523
      %v7937 = vpack.c.b16 %v7531, %v7524
      %v7938 = vpack.c.b16 %v7532, %v7525
      %v7939 = vpack.c.b16 %v7540, %v7533
      %v7940 = vpack.c.b16 %v7541, %v7534
      %v7941 = vpack.c.b16 %v7542, %v7535
      %v7942 = vpack.c.b16 %v7543, %v7536
      %v7943 = vpack.c.b16 %v7544, %v7537
      %v7944 = vpack.c.b16 %v7545, %v7538
      %v7945 = vpack.c.b16 %v7546, %v7539
      %v7946 = vpack.c.b16 %v7554, %v7547
      %v7947 = vpack.c.b16 %v7555, %v7548
      %v7948 = vpack.c.b16 %v7556, %v7549
      %v7949 = vpack.c.b16 %v7557, %v7550
      %v7950 = vpack.c.b16 %v7558, %v7551
      %v7951 = vpack.c.b16 %v7559, %v7552
      %v7952 = vpack.c.b16 %v7560, %v7553
      %v7953 = vpack.c.b16 %v7568, %v7561
      %v7954 = vpack.c.b16 %v7569, %v7562
      %v7955 = vpack.c.b16 %v7570, %v7563
      %v7956 = vpack.c.b16 %v7571, %v7564
      %v7957 = vpack.c.b16 %v7572, %v7565
      %v7958 = vpack.c.b16 %v7573, %v7566
      %v7959 = vpack.c.b16 %v7574, %v7567
      %v7960 = vpack.c.b16 %v7582, %v7575
      %v7961 = vpack.c.b16 %v7583, %v7576
      %v7962 = vpack.c.b16 %v7584, %v7577
      %v7963 = vpack.c.b16 %v7585, %v7578
      %v7964 = vpack.c.b16 %v7586, %v7579
      %v7965 = vpack.c.b16 %v7587, %v7580
      %v7966 = vpack.c.b16 %v7588, %v7581
      %v7967 = vpack.c.b16 %v7596, %v7589
      %v7968 = vpack.c.b16 %v7597, %v7590
      %v7969 = vpack.c.b16 %v7598, %v7591
      %v7970 = vpack.c.b16 %v7599, %v7592
      %v7971 = vpack.c.b16 %v7600, %v7593
      %v7972 = vpack.c.b16 %v7601, %v7594
      %v7973 = vpack.c.b16 %v7602, %v7595
      %v7974 = vpack.c.b16 %v7610, %v7603
      %v7975 = vpack.c.b16 %v7611, %v7604
      %v7976 = vpack.c.b16 %v7612, %v7605
      %v7977 = vpack.c.b16 %v7613, %v7606
      %v7978 = vpack.c.b16 %v7614, %v7607
      %v7979 = vpack.c.b16 %v7615, %v7608
      %v7980 = vpack.c.b16 %v7616, %v7609
      %v7981 = vpack.c.b16 %v7624, %v7617
      %v7982 = vpack.c.b16 %v7625, %v7618
      %v7983 = vpack.c.b16 %v7626, %v7619
      %v7984 = vpack.c.b16 %v7627, %v7620
      %v7985 = vpack.c.b16 %v7628, %v7621
      %v7986 = vpack.c.b16 %v7629, %v7622
      %v7987 = vpack.c.b16 %v7630, %v7623
      %v7988 = vpack.c.b16 %v7638, %v7631
      %v7989 = vpack.c.b16 %v7639, %v7632
      %v7990 = vpack.c.b16 %v7640, %v7633
      %v7991 = vpack.c.b16 %v7641, %v7634
      %v7992 = vpack.c.b16 %v7642, %v7635
      %v7993 = vpack.c.b16 %v7643, %v7636
      %v7994 = vpack.c.b16 %v7644, %v7637
      %v7995 = vpack.c.b16 %v7652, %v7645
      %v7996 = vpack.c.b16 %v7653, %v7646
      %v7997 = vpack.c.b16 %v7654, %v7647
      %v7998 = vpack.c.b16 %v7655, %v7648
      %v7999 = vpack.c.b16 %v7656, %v7649
      %v8000 = vpack.c.b16 %v7657, %v7650
      %v8001 = vpack.c.b16 %v7658, %v7651
      %v8002 = vpack.c.b16 %v7666, %v7659
      %v8003 = vpack.c.b16 %v7667, %v7660
      %v8004 = vpack.c.b16 %v7668, %v7661
      %v8005 = vpack.c.b16 %v7669, %v7662
      %v8006 = vpack.c.b16 %v7670, %v7663
      %v8007 = vpack.c.b16 %v7671, %v7664
      %v8008 = vpack.c.b16 %v7672, %v7665
      %v8009 = vpack.c.b16 %v7680, %v7673
      %v8010 = vpack.c.b16 %v7681, %v7674
      %v8011 = vpack.c.b16 %v7682, %v7675
      %v8012 = vpack.c.b16 %v7683, %v7676
      %v8013 = vpack.c.b16 %v7684, %v7677
      %v8014 = vpack.c.b16 %v7685, %v7678
      %v8015 = vpack.c.b16 %v7686, %v7679
      %v8016 = vpack.c.b16 %v7694, %v7687
      %v8017 = vpack.c.b16 %v7695, %v7688
      %v8018 = vpack.c.b16 %v7696, %v7689
      %v8019 = vpack.c.b16 %v7697, %v7690
      %v8020 = vpack.c.b16 %v7698, %v7691
      %v8021 = vpack.c.b16 %v7699, %v7692
      %v8022 = vpack.c.b16 %v7700, %v7693
      %v8023 = vpack.c.b16 %v7708, %v7701
      %v8024 = vpack.c.b16 %v7709, %v7702
      %v8025 = vpack.c.b16 %v7710, %v7703
      %v8026 = vpack.c.b16 %v7711, %v7704
      %v8027 = vpack.c.b16 %v7712, %v7705
      %v8028 = vpack.c.b16 %v7713, %v7706
      %v8029 = vpack.c.b16 %v7714, %v7707
      %v8030 = vpack.c.b16 %v7722, %v7715
      %v8031 = vpack.c.b16 %v7723, %v7716
      %v8032 = vpack.c.b16 %v7724, %v7717
      %v8033 = vpack.c.b16 %v7725, %v7718
      %v8034 = vpack.c.b16 %v7726, %v7719
      %v8035 = vpack.c.b16 %v7727, %v7720
      %v8036 = vpack.c.b16 %v7728, %v7721
      %v8037 = vpack.c.b16 %v7736, %v7729
      %v8038 = vpack.c.b16 %v7737, %v7730
      %v8039 = vpack.c.b16 %v7738, %v7731
      %v8040 = vpack.c.b16 %v7739, %v7732
      %v8041 = vpack.c.b16 %v7740, %v7733
      %v8042 = vpack.c.b16 %v7741, %v7734
      %v8043 = vpack.c.b16 %v7742, %v7735
      %v8044 = vpack.c.b16 %v7750, %v7743
      %v8045 = vpack.c.b16 %v7751, %v7744
      %v8046 = vpack.c.b16 %v7752, %v7745
      %v8047 = vpack.c.b16 %v7753, %v7746
      %v8048 = vpack.c.b16 %v7754, %v7747
      %v8049 = vpack.c.b16 %v7755, %v7748
      %v8050 = vpack.c.b16 %v7756, %v7749
      %v8051 = vpack.c.b16 %v7764, %v7757
      %v8052 = vpack.c.b16 %v7765, %v7758
      %v8053 = vpack.c.b16 %v7766, %v7759
      %v8054 = vpack.c.b16 %v7767, %v7760
      %v8055 = vpack.c.b16 %v7768, %v7761
      %v8056 = vpack.c.b16 %v7769, %v7762
      %v8057 = vpack.c.b16 %v7770, %v7763
      %v8058 = vpack.c.b16 %v7778, %v7771
      %v8059 = vpack.c.b16 %v7779, %v7772
      %v8060 = vpack.c.b16 %v7780, %v7773
      %v8061 = vpack.c.b16 %v7781, %v7774
      %v8062 = vpack.c.b16 %v7782, %v7775
      %v8063 = vpack.c.b16 %v7783, %v7776
      %v8064 = vpack.c.b16 %v7784, %v7777
      %v8065 = vpack.c.b16 %v7792, %v7785
      %v8066 = vpack.c.b16 %v7793, %v7786
      %v8067 = vpack.c.b16 %v7794, %v7787
      %v8068 = vpack.c.b16 %v7795, %v7788
      %v8069 = vpack.c.b16 %v7796, %v7789
      %v8070 = vpack.c.b16 %v7797, %v7790
      %v8071 = vpack.c.b16 %v7798, %v7791
      %v8072 = vpack.c.b16 %v7806, %v7799
      %v8073 = vpack.c.b16 %v7807, %v7800
      %v8074 = vpack.c.b16 %v7808, %v7801
      %v8075 = vpack.c.b16 %v7809, %v7802
      %v8076 = vpack.c.b16 %v7810, %v7803
      %v8077 = vpack.c.b16 %v7811, %v7804
      %v8078 = vpack.c.b16 %v7812, %v7805
      %v8079 = vpack.c.b16 %v7820, %v7813
      %v8080 = vpack.c.b16 %v7821, %v7814
      %v8081 = vpack.c.b16 %v7822, %v7815
      %v8082 = vpack.c.b16 %v7823, %v7816
      %v8083 = vpack.c.b16 %v7824, %v7817
      %v8084 = vpack.c.b16 %v7825, %v7818
      %v8085 = vpack.c.b16 %v7826, %v7819
      %v8086 = vpack.c.b16 %v7834, %v7827
      %v8087 = vpack.c.b16 %v7835, %v7828
      %v8088 = vpack.c.b16 %v7836, %v7829
      %v8089 = vpack.c.b16 %v7837, %v7830
      %v8090 = vpack.c.b16 %v7838, %v7831
      %v8091 = vpack.c.b16 %v7839, %v7832
      %v8092 = vpack.c.b16 %v7840, %v7833
      %v8093 = vpack.c.b16 %v7848, %v7841
      %v8094 = vpack.c.b16 %v7849, %v7842
      %v8095 = vpack.c.b16 %v7850, %v7843
      %v8096 = vpack.c.b16 %v7851, %v7844
      %v8097 = vpack.c.b16 %v7852, %v7845
      %v8098 = vpack.c.b16 %v7853, %v7846
      %v8099 = vpack.c.b16 %v7854, %v7847
      %v8100 = vpack.c.b16 %v7862, %v7855
      %v8101 = vpack.c.b16 %v7863, %v7856
      %v8102 = vpack.c.b16 %v7864, %v7857
      %v8103 = vpack.c.b16 %v7865, %v7858
      %v8104 = vpack.c.b16 %v7866, %v7859
      %v8105 = vpack.c.b16 %v7867, %v7860
      %v8106 = vpack.c.b16 %v7868, %v7861
      %v8107 = vpack.c.b16 %v7876, %v7869
      %v8108 = vpack.c.b16 %v7877, %v7870
      %v8109 = vpack.c.b16 %v7878, %v7871
      %v8110 = vpack.c.b16 %v7879, %v7872
      %v8111 = vpack.c.b16 %v7880, %v7873
      %v8112 = vpack.c.b16 %v7881, %v7874
      %v8113 = vpack.c.b16 %v7882, %v7875
      %v8114 = vpack.c.b16 %v7890, %v7883
      %v8115 = vpack.c.b16 %v7891, %v7884
      %v8116 = vpack.c.b16 %v7892, %v7885
      %v8117 = vpack.c.b16 %v7893, %v7886
      %v8118 = vpack.c.b16 %v7894, %v7887
      %v8119 = vpack.c.b16 %v7895, %v7888
      %v8120 = vpack.c.b16 %v7896, %v7889
      %8345 = vmatprep.subr.bf16.mxu0 %v7947
      %8346 = vmatpush1.bf16.msra.mxu0 %v7946
      %8347 = vmatprep.subr.bf16.mxu0 %v7940
      %8348 = vmatpush1.bf16.msra.mxu0 %v7939
      %8349 = vmatprep.subr.bf16.mxu0 %v7933
      %8350 = vmatpush1.bf16.msra.mxu0 %v7932
      %8351 = vmatprep.subr.bf16.mxu0 %v7926
      %8352 = vmatpush1.bf16.msra.mxu0 %v7925
      %8353 = vmatprep.subr.bf16.mxu0 %v7919
      %8354 = vmatpush1.bf16.msra.mxu0 %v7918
      %8355 = vmatprep.subr.bf16.mxu0 %v7912
      %8356 = vmatpush1.bf16.msra.mxu0 %v7911
      %8357 = vmatprep.subr.bf16.mxu0 %v7905
      %8358 = vmatpush1.bf16.msra.mxu0 %v7904
      %8359 = vmatprep.subr.bf16.mxu0 %v7898
      %8360 = vmatpush1.bf16.msra.mxu0 %v7897
      %8361 = vmatprep.subr.bf16.mxu0 %v8003
      %8362 = vmatpush2.bf16.msra.mxu0 %v8002
      %8363 = vmatprep.subr.bf16.mxu0 %v7996
      %8364 = vmatpush2.bf16.msra.mxu0 %v7995
      %8365 = vmatprep.subr.bf16.mxu0 %v7989
      %8366 = vmatpush2.bf16.msra.mxu0 %v7988
      %8367 = vmatprep.subr.bf16.mxu0 %v7982
      %8368 = vmatpush2.bf16.msra.mxu0 %v7981
      %8369 = vmatprep.subr.bf16.mxu0 %v7975
      %8370 = vmatpush2.bf16.msra.mxu0 %v7974
      %8371 = vmatprep.subr.bf16.mxu0 %v7968
      %8372 = vmatpush2.bf16.msra.mxu0 %v7967
      %8373 = vmatprep.subr.bf16.mxu0 %v7961
      %8374 = vmatpush2.bf16.msra.mxu0 %v7960
      %8375 = vmatprep.subr.bf16.mxu0 %v7954
      %8376 = vmatpush2.bf16.msra.mxu0 %v7953
      %8377 = vmatprep.mubr.bf16.mxu0 %v6837
      %8378 = vmatmul.mubr.bf16.gmra.mxu0 %v6836
      %v8379 = vpop.f32.mrf.mxu0
      %v8380 = vadd.f32 %v7161, %v8379
      %v8381 = vpop.f32.mrf.mxu0
      %v8382 = vadd.f32 %v7165, %v8381
      %v8383 = vpop.f32.mrf.mxu0
      %v8384 = vadd.f32 %v7161, %v8383
      %v8385 = vpop.f32.mrf.mxu0
      %v8386 = vadd.f32 %v7165, %v8385
      %8387 = vmatprep.mubr.bf16.mxu0 %v6841
      %8388 = vmatmul.mubr.bf16.gmra.mxu0 %v6840
      %v8389 = vpop.f32.mrf.mxu0
      %v8390 = vadd.f32 %v7161, %v8389
      %v8391 = vpop.f32.mrf.mxu0
      %v8392 = vadd.f32 %v7165, %v8391
      %v8393 = vpop.f32.mrf.mxu0
      %v8394 = vadd.f32 %v7161, %v8393
      %v8395 = vpop.f32.mrf.mxu0
      %v8396 = vadd.f32 %v7165, %v8395
      %8397 = vmatprep.mubr.bf16.mxu0 %v6845
      %8398 = vmatmul.mubr.bf16.gmra.mxu0 %v6844
      %v8399 = vpop.f32.mrf.mxu0
      %v8400 = vadd.f32 %v7161, %v8399
      %v8401 = vpop.f32.mrf.mxu0
      %v8402 = vadd.f32 %v7165, %v8401
      %v8403 = vpop.f32.mrf.mxu0
      %v8404 = vadd.f32 %v7161, %v8403
      %v8405 = vpop.f32.mrf.mxu0
      %v8406 = vadd.f32 %v7165, %v8405
      %8407 = vmatprep.mubr.bf16.mxu0 %v6849
      %8408 = vmatmul.mubr.bf16.gmra.mxu0 %v6848
      %v8409 = vpop.f32.mrf.mxu0
      %v8410 = vadd.f32 %v7161, %v8409
      %v8411 = vpop.f32.mrf.mxu0
      %v8412 = vadd.f32 %v7165, %v8411
      %v8413 = vpop.f32.mrf.mxu0
      %v8414 = vadd.f32 %v7161, %v8413
      %v8415 = vpop.f32.mrf.mxu0
      %v8416 = vadd.f32 %v7165, %v8415
      %8417 = vmatprep.mubr.bf16.mxu0 %v6853
      %8418 = vmatmul.mubr.bf16.gmra.mxu0 %v6852
      %v8419 = vpop.f32.mrf.mxu0
      %v8420 = vadd.f32 %v7161, %v8419
      %v8421 = vpop.f32.mrf.mxu0
      %v8422 = vadd.f32 %v7165, %v8421
      %v8423 = vpop.f32.mrf.mxu0
      %v8424 = vadd.f32 %v7161, %v8423
      %v8425 = vpop.f32.mrf.mxu0
      %v8426 = vadd.f32 %v7165, %v8425
      %8427 = vmatprep.mubr.bf16.mxu0 %v6857
      %8428 = vmatmul.mubr.bf16.gmra.mxu0 %v6856
      %v8429 = vpop.f32.mrf.mxu0
      %v8430 = vadd.f32 %v7161, %v8429
      %v8431 = vpop.f32.mrf.mxu0
      %v8432 = vadd.f32 %v7165, %v8431
      %v8433 = vpop.f32.mrf.mxu0
      %v8434 = vadd.f32 %v7161, %v8433
      %v8435 = vpop.f32.mrf.mxu0
      %v8436 = vadd.f32 %v7165, %v8435
      %8437 = vmatprep.mubr.bf16.mxu0 %v6861
      %8438 = vmatmul.mubr.bf16.gmra.mxu0 %v6860
      %v8439 = vpop.f32.mrf.mxu0
      %v8440 = vadd.f32 %v7161, %v8439
      %v8441 = vpop.f32.mrf.mxu0
      %v8442 = vadd.f32 %v7165, %v8441
      %v8443 = vpop.f32.mrf.mxu0
      %v8444 = vadd.f32 %v7161, %v8443
      %v8445 = vpop.f32.mrf.mxu0
      %v8446 = vadd.f32 %v7165, %v8445
      %8447 = vmatprep.mubr.bf16.mxu0 %v6865
      %8448 = vmatmul.mubr.bf16.gmra.mxu0 %v6864
      %v8449 = vpop.f32.mrf.mxu0
      %v8450 = vadd.f32 %v7161, %v8449
      %v8451 = vpop.f32.mrf.mxu0
      %v8452 = vadd.f32 %v7165, %v8451
      %v8453 = vpop.f32.mrf.mxu0
      %v8454 = vadd.f32 %v7161, %v8453
      %v8455 = vpop.f32.mrf.mxu0
      %v8456 = vadd.f32 %v7165, %v8455
      %8457 = vmatprep.mubr.bf16.mxu0 %v6869
      %8458 = vmatmul.mubr.bf16.gmra.mxu0 %v6868
      %v8459 = vpop.f32.mrf.mxu0
      %v8460 = vadd.f32 %v7161, %v8459
      %v8461 = vpop.f32.mrf.mxu0
      %v8462 = vadd.f32 %v7165, %v8461
      %v8463 = vpop.f32.mrf.mxu0
      %v8464 = vadd.f32 %v7161, %v8463
      %v8465 = vpop.f32.mrf.mxu0
      %v8466 = vadd.f32 %v7165, %v8465
      %8467 = vmatprep.mubr.bf16.mxu0 %v6873
      %8468 = vmatmul.mubr.bf16.gmra.mxu0 %v6872
      %v8469 = vpop.f32.mrf.mxu0
      %v8470 = vadd.f32 %v7161, %v8469
      %v8471 = vpop.f32.mrf.mxu0
      %v8472 = vadd.f32 %v7165, %v8471
      %v8473 = vpop.f32.mrf.mxu0
      %v8474 = vadd.f32 %v7161, %v8473
      %v8475 = vpop.f32.mrf.mxu0
      %v8476 = vadd.f32 %v7165, %v8475
      %8477 = vmatprep.mubr.bf16.mxu0 %v6877
      %8478 = vmatmul.mubr.bf16.gmra.mxu0 %v6876
      %v8479 = vpop.f32.mrf.mxu0
      %v8480 = vadd.f32 %v7161, %v8479
      %v8481 = vpop.f32.mrf.mxu0
      %v8482 = vadd.f32 %v7165, %v8481
      %v8483 = vpop.f32.mrf.mxu0
      %v8484 = vadd.f32 %v7161, %v8483
      %v8485 = vpop.f32.mrf.mxu0
      %v8486 = vadd.f32 %v7165, %v8485
      %8487 = vmatprep.mubr.bf16.mxu0 %v6881
      %8488 = vmatmul.mubr.bf16.gmra.mxu0 %v6880
      %v8489 = vpop.f32.mrf.mxu0
      %v8490 = vadd.f32 %v7161, %v8489
      %v8491 = vpop.f32.mrf.mxu0
      %v8492 = vadd.f32 %v7165, %v8491
      %v8493 = vpop.f32.mrf.mxu0
      %v8494 = vadd.f32 %v7161, %v8493
      %v8495 = vpop.f32.mrf.mxu0
      %v8496 = vadd.f32 %v7165, %v8495
      %8497 = vmatprep.mubr.bf16.mxu0 %v6885
      %8498 = vmatmul.mubr.bf16.gmra.mxu0 %v6884
      %v8499 = vpop.f32.mrf.mxu0
      %v8500 = vadd.f32 %v7161, %v8499
      %v8501 = vpop.f32.mrf.mxu0
      %v8502 = vadd.f32 %v7165, %v8501
      %v8503 = vpop.f32.mrf.mxu0
      %v8504 = vadd.f32 %v7161, %v8503
      %v8505 = vpop.f32.mrf.mxu0
      %v8506 = vadd.f32 %v7165, %v8505
      %8507 = vmatprep.mubr.bf16.mxu0 %v6889
      %8508 = vmatmul.mubr.bf16.gmra.mxu0 %v6888
      %v8509 = vpop.f32.mrf.mxu0
      %v8510 = vadd.f32 %v7161, %v8509
      %v8511 = vpop.f32.mrf.mxu0
      %v8512 = vadd.f32 %v7165, %v8511
      %v8513 = vpop.f32.mrf.mxu0
      %v8514 = vadd.f32 %v7161, %v8513
      %v8515 = vpop.f32.mrf.mxu0
      %v8516 = vadd.f32 %v7165, %v8515
      %8517 = vmatprep.mubr.bf16.mxu0 %v6893
      %8518 = vmatmul.mubr.bf16.gmra.mxu0 %v6892
      %v8519 = vpop.f32.mrf.mxu0
      %v8520 = vadd.f32 %v7161, %v8519
      %v8521 = vpop.f32.mrf.mxu0
      %v8522 = vadd.f32 %v7165, %v8521
      %v8523 = vpop.f32.mrf.mxu0
      %v8524 = vadd.f32 %v7161, %v8523
      %v8525 = vpop.f32.mrf.mxu0
      %v8526 = vadd.f32 %v7165, %v8525
      %8527 = vmatprep.mubr.bf16.mxu0 %v6897
      %8528 = vmatmul.mubr.bf16.gmra.mxu0 %v6896
      %v8529 = vpop.f32.mrf.mxu0
      %v8530 = vadd.f32 %v7161, %v8529
      %v8531 = vpop.f32.mrf.mxu0
      %v8532 = vadd.f32 %v7165, %v8531
      %v8533 = vpop.f32.mrf.mxu0
      %v8534 = vadd.f32 %v7161, %v8533
      %v8535 = vpop.f32.mrf.mxu0
      %v8536 = vadd.f32 %v7165, %v8535
      %8537 = vdwg.mxu0
      %8538 = vmatprep.subr.bf16.mxu0 %v8059
      %8539 = vmatpush1.bf16.msra.mxu0 %v8058
      %8540 = vmatprep.subr.bf16.mxu0 %v8052
      %8541 = vmatpush1.bf16.msra.mxu0 %v8051
      %8542 = vmatprep.subr.bf16.mxu0 %v8045
      %8543 = vmatpush1.bf16.msra.mxu0 %v8044
      %8544 = vmatprep.subr.bf16.mxu0 %v8038
      %8545 = vmatpush1.bf16.msra.mxu0 %v8037
      %8546 = vmatprep.subr.bf16.mxu0 %v8031
      %8547 = vmatpush1.bf16.msra.mxu0 %v8030
      %8548 = vmatprep.subr.bf16.mxu0 %v8024
      %8549 = vmatpush1.bf16.msra.mxu0 %v8023
      %8550 = vmatprep.subr.bf16.mxu0 %v8017
      %8551 = vmatpush1.bf16.msra.mxu0 %v8016
      %8552 = vmatprep.subr.bf16.mxu0 %v8010
      %8553 = vmatpush1.bf16.msra.mxu0 %v8009
      %8554 = vmatprep.subr.bf16.mxu0 %v8115
      %8555 = vmatpush2.bf16.msra.mxu0 %v8114
      %8556 = vmatprep.subr.bf16.mxu0 %v8108
      %8557 = vmatpush2.bf16.msra.mxu0 %v8107
      %8558 = vmatprep.subr.bf16.mxu0 %v8101
      %8559 = vmatpush2.bf16.msra.mxu0 %v8100
      %8560 = vmatprep.subr.bf16.mxu0 %v8094
      %8561 = vmatpush2.bf16.msra.mxu0 %v8093
      %8562 = vmatprep.subr.bf16.mxu0 %v8087
      %8563 = vmatpush2.bf16.msra.mxu0 %v8086
      %8564 = vmatprep.subr.bf16.mxu0 %v8080
      %8565 = vmatpush2.bf16.msra.mxu0 %v8079
      %8566 = vmatprep.subr.bf16.mxu0 %v8073
      %8567 = vmatpush2.bf16.msra.mxu0 %v8072
      %8568 = vmatprep.subr.bf16.mxu0 %v8066
      %8569 = vmatpush2.bf16.msra.mxu0 %v8065
      %8570 = vmatprep.mubr.bf16.mxu0 %v6839
      %8571 = vmatmul.mubr.bf16.gmra.mxu0 %v6838
      %v8572 = vpop.f32.mrf.mxu0
      %v8573 = vadd.f32 %v8380, %v8572
      %v8574 = vpop.f32.mrf.mxu0
      %v8575 = vadd.f32 %v8382, %v8574
      %v8576 = vpop.f32.mrf.mxu0
      %v8577 = vadd.f32 %v8384, %v8576
      %v8578 = vpop.f32.mrf.mxu0
      %v8579 = vadd.f32 %v8386, %v8578
      %8580 = vmatprep.mubr.bf16.mxu0 %v6843
      %8581 = vmatmul.mubr.bf16.gmra.mxu0 %v6842
      %v8582 = vpop.f32.mrf.mxu0
      %v8583 = vadd.f32 %v8390, %v8582
      %v8584 = vpop.f32.mrf.mxu0
      %v8585 = vadd.f32 %v8392, %v8584
      %v8586 = vpop.f32.mrf.mxu0
      %v8587 = vadd.f32 %v8394, %v8586
      %v8588 = vpop.f32.mrf.mxu0
      %v8589 = vadd.f32 %v8396, %v8588
      %8590 = vmatprep.mubr.bf16.mxu0 %v6847
      %8591 = vmatmul.mubr.bf16.gmra.mxu0 %v6846
      %v8592 = vpop.f32.mrf.mxu0
      %v8593 = vadd.f32 %v8400, %v8592
      %v8594 = vpop.f32.mrf.mxu0
      %v8595 = vadd.f32 %v8402, %v8594
      %v8596 = vpop.f32.mrf.mxu0
      %v8597 = vadd.f32 %v8404, %v8596
      %v8598 = vpop.f32.mrf.mxu0
      %v8599 = vadd.f32 %v8406, %v8598
      %8600 = vmatprep.mubr.bf16.mxu0 %v6851
      %8601 = vmatmul.mubr.bf16.gmra.mxu0 %v6850
      %v8602 = vpop.f32.mrf.mxu0
      %v8603 = vadd.f32 %v8410, %v8602
      %v8604 = vpop.f32.mrf.mxu0
      %v8605 = vadd.f32 %v8412, %v8604
      %v8606 = vpop.f32.mrf.mxu0
      %v8607 = vadd.f32 %v8414, %v8606
      %v8608 = vpop.f32.mrf.mxu0
      %v8609 = vadd.f32 %v8416, %v8608
      %8610 = vmatprep.mubr.bf16.mxu0 %v6855
      %8611 = vmatmul.mubr.bf16.gmra.mxu0 %v6854
      %v8612 = vpop.f32.mrf.mxu0
      %v8613 = vadd.f32 %v8420, %v8612
      %v8614 = vpop.f32.mrf.mxu0
      %v8615 = vadd.f32 %v8422, %v8614
      %v8616 = vpop.f32.mrf.mxu0
      %v8617 = vadd.f32 %v8424, %v8616
      %v8618 = vpop.f32.mrf.mxu0
      %v8619 = vadd.f32 %v8426, %v8618
      %8620 = vmatprep.mubr.bf16.mxu0 %v6859
      %8621 = vmatmul.mubr.bf16.gmra.mxu0 %v6858
      %v8622 = vpop.f32.mrf.mxu0
      %v8623 = vadd.f32 %v8430, %v8622
      %v8624 = vpop.f32.mrf.mxu0
      %v8625 = vadd.f32 %v8432, %v8624
      %v8626 = vpop.f32.mrf.mxu0
      %v8627 = vadd.f32 %v8434, %v8626
      %v8628 = vpop.f32.mrf.mxu0
      %v8629 = vadd.f32 %v8436, %v8628
      %8630 = vmatprep.mubr.bf16.mxu0 %v6863
      %8631 = vmatmul.mubr.bf16.gmra.mxu0 %v6862
      %v8632 = vpop.f32.mrf.mxu0
      %v8633 = vadd.f32 %v8440, %v8632
      %v8634 = vpop.f32.mrf.mxu0
      %v8635 = vadd.f32 %v8442, %v8634
      %v8636 = vpop.f32.mrf.mxu0
      %v8637 = vadd.f32 %v8444, %v8636
      %v8638 = vpop.f32.mrf.mxu0
      %v8639 = vadd.f32 %v8446, %v8638
      %8640 = vmatprep.mubr.bf16.mxu0 %v6867
      %8641 = vmatmul.mubr.bf16.gmra.mxu0 %v6866
      %v8642 = vpop.f32.mrf.mxu0
      %v8643 = vadd.f32 %v8450, %v8642
      %v8644 = vpop.f32.mrf.mxu0
      %v8645 = vadd.f32 %v8452, %v8644
      %v8646 = vpop.f32.mrf.mxu0
      %v8647 = vadd.f32 %v8454, %v8646
      %v8648 = vpop.f32.mrf.mxu0
      %v8649 = vadd.f32 %v8456, %v8648
      %8650 = vmatprep.mubr.bf16.mxu0 %v6871
      %8651 = vmatmul.mubr.bf16.gmra.mxu0 %v6870
      %v8652 = vpop.f32.mrf.mxu0
      %v8653 = vadd.f32 %v8460, %v8652
      %v8654 = vpop.f32.mrf.mxu0
      %v8655 = vadd.f32 %v8462, %v8654
      %v8656 = vpop.f32.mrf.mxu0
      %v8657 = vadd.f32 %v8464, %v8656
      %v8658 = vpop.f32.mrf.mxu0
      %v8659 = vadd.f32 %v8466, %v8658
      %8660 = vmatprep.mubr.bf16.mxu0 %v6875
      %8661 = vmatmul.mubr.bf16.gmra.mxu0 %v6874
      %v8662 = vpop.f32.mrf.mxu0
      %v8663 = vadd.f32 %v8470, %v8662
      %v8664 = vpop.f32.mrf.mxu0
      %v8665 = vadd.f32 %v8472, %v8664
      %v8666 = vpop.f32.mrf.mxu0
      %v8667 = vadd.f32 %v8474, %v8666
      %v8668 = vpop.f32.mrf.mxu0
      %v8669 = vadd.f32 %v8476, %v8668
      %8670 = vmatprep.mubr.bf16.mxu0 %v6879
      %8671 = vmatmul.mubr.bf16.gmra.mxu0 %v6878
      %v8672 = vpop.f32.mrf.mxu0
      %v8673 = vadd.f32 %v8480, %v8672
      %v8674 = vpop.f32.mrf.mxu0
      %v8675 = vadd.f32 %v8482, %v8674
      %v8676 = vpop.f32.mrf.mxu0
      %v8677 = vadd.f32 %v8484, %v8676
      %v8678 = vpop.f32.mrf.mxu0
      %v8679 = vadd.f32 %v8486, %v8678
      %8680 = vmatprep.mubr.bf16.mxu0 %v6883
      %8681 = vmatmul.mubr.bf16.gmra.mxu0 %v6882
      %v8682 = vpop.f32.mrf.mxu0
      %v8683 = vadd.f32 %v8490, %v8682
      %v8684 = vpop.f32.mrf.mxu0
      %v8685 = vadd.f32 %v8492, %v8684
      %v8686 = vpop.f32.mrf.mxu0
      %v8687 = vadd.f32 %v8494, %v8686
      %v8688 = vpop.f32.mrf.mxu0
      %v8689 = vadd.f32 %v8496, %v8688
      %8690 = vmatprep.mubr.bf16.mxu0 %v6887
      %8691 = vmatmul.mubr.bf16.gmra.mxu0 %v6886
      %v8692 = vpop.f32.mrf.mxu0
      %v8693 = vadd.f32 %v8500, %v8692
      %v8694 = vpop.f32.mrf.mxu0
      %v8695 = vadd.f32 %v8502, %v8694
      %v8696 = vpop.f32.mrf.mxu0
      %v8697 = vadd.f32 %v8504, %v8696
      %v8698 = vpop.f32.mrf.mxu0
      %v8699 = vadd.f32 %v8506, %v8698
      %8700 = vmatprep.mubr.bf16.mxu0 %v6891
      %8701 = vmatmul.mubr.bf16.gmra.mxu0 %v6890
      %v8702 = vpop.f32.mrf.mxu0
      %v8703 = vadd.f32 %v8510, %v8702
      %v8704 = vpop.f32.mrf.mxu0
      %v8705 = vadd.f32 %v8512, %v8704
      %v8706 = vpop.f32.mrf.mxu0
      %v8707 = vadd.f32 %v8514, %v8706
      %v8708 = vpop.f32.mrf.mxu0
      %v8709 = vadd.f32 %v8516, %v8708
      %8710 = vmatprep.mubr.bf16.mxu0 %v6895
      %8711 = vmatmul.mubr.bf16.gmra.mxu0 %v6894
      %v8712 = vpop.f32.mrf.mxu0
      %v8713 = vadd.f32 %v8520, %v8712
      %v8714 = vpop.f32.mrf.mxu0
      %v8715 = vadd.f32 %v8522, %v8714
      %v8716 = vpop.f32.mrf.mxu0
      %v8717 = vadd.f32 %v8524, %v8716
      %v8718 = vpop.f32.mrf.mxu0
      %v8719 = vadd.f32 %v8526, %v8718
      %8720 = vmatprep.mubr.bf16.mxu0 %v6899
      %8721 = vmatmul.mubr.bf16.gmra.mxu0 %v6898
      %v8722 = vpop.f32.mrf.mxu0
      %v8723 = vadd.f32 %v8530, %v8722
      %v8724 = vpop.f32.mrf.mxu0
      %v8725 = vadd.f32 %v8532, %v8724
      %v8726 = vpop.f32.mrf.mxu0
      %v8727 = vadd.f32 %v8534, %v8726
      %v8728 = vpop.f32.mrf.mxu0
      %v8729 = vadd.f32 %v8536, %v8728
      %8730 = vdwg.mxu0
      %8731 = vmatprep.subr.bf16.mxu0 %v7949
      %8732 = vmatpush1.bf16.msra.mxu0 %v7948
      %8733 = vmatprep.subr.bf16.mxu0 %v7942
      %8734 = vmatpush1.bf16.msra.mxu0 %v7941
      %8735 = vmatprep.subr.bf16.mxu0 %v7935
      %8736 = vmatpush1.bf16.msra.mxu0 %v7934
      %8737 = vmatprep.subr.bf16.mxu0 %v7928
      %8738 = vmatpush1.bf16.msra.mxu0 %v7927
      %8739 = vmatprep.subr.bf16.mxu0 %v7921
      %8740 = vmatpush1.bf16.msra.mxu0 %v7920
      %8741 = vmatprep.subr.bf16.mxu0 %v7914
      %8742 = vmatpush1.bf16.msra.mxu0 %v7913
      %8743 = vmatprep.subr.bf16.mxu0 %v7907
      %8744 = vmatpush1.bf16.msra.mxu0 %v7906
      %8745 = vmatprep.subr.bf16.mxu0 %v7900
      %8746 = vmatpush1.bf16.msra.mxu0 %v7899
      %8747 = vmatprep.subr.bf16.mxu0 %v8005
      %8748 = vmatpush2.bf16.msra.mxu0 %v8004
      %8749 = vmatprep.subr.bf16.mxu0 %v7998
      %8750 = vmatpush2.bf16.msra.mxu0 %v7997
      %8751 = vmatprep.subr.bf16.mxu0 %v7991
      %8752 = vmatpush2.bf16.msra.mxu0 %v7990
      %8753 = vmatprep.subr.bf16.mxu0 %v7984
      %8754 = vmatpush2.bf16.msra.mxu0 %v7983
      %8755 = vmatprep.subr.bf16.mxu0 %v7977
      %8756 = vmatpush2.bf16.msra.mxu0 %v7976
      %8757 = vmatprep.subr.bf16.mxu0 %v7970
      %8758 = vmatpush2.bf16.msra.mxu0 %v7969
      %8759 = vmatprep.subr.bf16.mxu0 %v7963
      %8760 = vmatpush2.bf16.msra.mxu0 %v7962
      %8761 = vmatprep.subr.bf16.mxu0 %v7956
      %8762 = vmatpush2.bf16.msra.mxu0 %v7955
      %8763 = vmatprep.mubr.bf16.mxu0 %v6837
      %8764 = vmatmul.mubr.bf16.gmra.mxu0 %v6836
      %v8765 = vpop.f32.mrf.mxu0
      %v8766 = vadd.f32 %v7169, %v8765
      %v8767 = vpop.f32.mrf.mxu0
      %v8768 = vadd.f32 %v7173, %v8767
      %v8769 = vpop.f32.mrf.mxu0
      %v8770 = vadd.f32 %v7169, %v8769
      %v8771 = vpop.f32.mrf.mxu0
      %v8772 = vadd.f32 %v7173, %v8771
      %8773 = vmatprep.mubr.bf16.mxu0 %v6841
      %8774 = vmatmul.mubr.bf16.gmra.mxu0 %v6840
      %v8775 = vpop.f32.mrf.mxu0
      %v8776 = vadd.f32 %v7169, %v8775
      %v8777 = vpop.f32.mrf.mxu0
      %v8778 = vadd.f32 %v7173, %v8777
      %v8779 = vpop.f32.mrf.mxu0
      %v8780 = vadd.f32 %v7169, %v8779
      %v8781 = vpop.f32.mrf.mxu0
      %v8782 = vadd.f32 %v7173, %v8781
      %8783 = vmatprep.mubr.bf16.mxu0 %v6845
      %8784 = vmatmul.mubr.bf16.gmra.mxu0 %v6844
      %v8785 = vpop.f32.mrf.mxu0
      %v8786 = vadd.f32 %v7169, %v8785
      %v8787 = vpop.f32.mrf.mxu0
      %v8788 = vadd.f32 %v7173, %v8787
      %v8789 = vpop.f32.mrf.mxu0
      %v8790 = vadd.f32 %v7169, %v8789
      %v8791 = vpop.f32.mrf.mxu0
      %v8792 = vadd.f32 %v7173, %v8791
      %8793 = vmatprep.mubr.bf16.mxu0 %v6849
      %8794 = vmatmul.mubr.bf16.gmra.mxu0 %v6848
      %v8795 = vpop.f32.mrf.mxu0
      %v8796 = vadd.f32 %v7169, %v8795
      %v8797 = vpop.f32.mrf.mxu0
      %v8798 = vadd.f32 %v7173, %v8797
      %v8799 = vpop.f32.mrf.mxu0
      %v8800 = vadd.f32 %v7169, %v8799
      %v8801 = vpop.f32.mrf.mxu0
      %v8802 = vadd.f32 %v7173, %v8801
      %8803 = vmatprep.mubr.bf16.mxu0 %v6853
      %8804 = vmatmul.mubr.bf16.gmra.mxu0 %v6852
      %v8805 = vpop.f32.mrf.mxu0
      %v8806 = vadd.f32 %v7169, %v8805
      %v8807 = vpop.f32.mrf.mxu0
      %v8808 = vadd.f32 %v7173, %v8807
      %v8809 = vpop.f32.mrf.mxu0
      %v8810 = vadd.f32 %v7169, %v8809
      %v8811 = vpop.f32.mrf.mxu0
      %v8812 = vadd.f32 %v7173, %v8811
      %8813 = vmatprep.mubr.bf16.mxu0 %v6857
      %8814 = vmatmul.mubr.bf16.gmra.mxu0 %v6856
      %v8815 = vpop.f32.mrf.mxu0
      %v8816 = vadd.f32 %v7169, %v8815
      %v8817 = vpop.f32.mrf.mxu0
      %v8818 = vadd.f32 %v7173, %v8817
      %v8819 = vpop.f32.mrf.mxu0
      %v8820 = vadd.f32 %v7169, %v8819
      %v8821 = vpop.f32.mrf.mxu0
      %v8822 = vadd.f32 %v7173, %v8821
      %8823 = vmatprep.mubr.bf16.mxu0 %v6861
      %8824 = vmatmul.mubr.bf16.gmra.mxu0 %v6860
      %v8825 = vpop.f32.mrf.mxu0
      %v8826 = vadd.f32 %v7169, %v8825
      %v8827 = vpop.f32.mrf.mxu0
      %v8828 = vadd.f32 %v7173, %v8827
      %v8829 = vpop.f32.mrf.mxu0
      %v8830 = vadd.f32 %v7169, %v8829
      %v8831 = vpop.f32.mrf.mxu0
      %v8832 = vadd.f32 %v7173, %v8831
      %8833 = vmatprep.mubr.bf16.mxu0 %v6865
      %8834 = vmatmul.mubr.bf16.gmra.mxu0 %v6864
      %v8835 = vpop.f32.mrf.mxu0
      %v8836 = vadd.f32 %v7169, %v8835
      %v8837 = vpop.f32.mrf.mxu0
      %v8838 = vadd.f32 %v7173, %v8837
      %v8839 = vpop.f32.mrf.mxu0
      %v8840 = vadd.f32 %v7169, %v8839
      %v8841 = vpop.f32.mrf.mxu0
      %v8842 = vadd.f32 %v7173, %v8841
      %8843 = vmatprep.mubr.bf16.mxu0 %v6869
      %8844 = vmatmul.mubr.bf16.gmra.mxu0 %v6868
      %v8845 = vpop.f32.mrf.mxu0
      %v8846 = vadd.f32 %v7169, %v8845
      %v8847 = vpop.f32.mrf.mxu0
      %v8848 = vadd.f32 %v7173, %v8847
      %v8849 = vpop.f32.mrf.mxu0
      %v8850 = vadd.f32 %v7169, %v8849
      %v8851 = vpop.f32.mrf.mxu0
      %v8852 = vadd.f32 %v7173, %v8851
      %8853 = vmatprep.mubr.bf16.mxu0 %v6873
      %8854 = vmatmul.mubr.bf16.gmra.mxu0 %v6872
      %v8855 = vpop.f32.mrf.mxu0
      %v8856 = vadd.f32 %v7169, %v8855
      %v8857 = vpop.f32.mrf.mxu0
      %v8858 = vadd.f32 %v7173, %v8857
      %v8859 = vpop.f32.mrf.mxu0
      %v8860 = vadd.f32 %v7169, %v8859
      %v8861 = vpop.f32.mrf.mxu0
      %v8862 = vadd.f32 %v7173, %v8861
      %8863 = vmatprep.mubr.bf16.mxu0 %v6877
      %8864 = vmatmul.mubr.bf16.gmra.mxu0 %v6876
      %v8865 = vpop.f32.mrf.mxu0
      %v8866 = vadd.f32 %v7169, %v8865
      %v8867 = vpop.f32.mrf.mxu0
      %v8868 = vadd.f32 %v7173, %v8867
      %v8869 = vpop.f32.mrf.mxu0
      %v8870 = vadd.f32 %v7169, %v8869
      %v8871 = vpop.f32.mrf.mxu0
      %v8872 = vadd.f32 %v7173, %v8871
      %8873 = vmatprep.mubr.bf16.mxu0 %v6881
      %8874 = vmatmul.mubr.bf16.gmra.mxu0 %v6880
      %v8875 = vpop.f32.mrf.mxu0
      %v8876 = vadd.f32 %v7169, %v8875
      %v8877 = vpop.f32.mrf.mxu0
      %v8878 = vadd.f32 %v7173, %v8877
      %v8879 = vpop.f32.mrf.mxu0
      %v8880 = vadd.f32 %v7169, %v8879
      %v8881 = vpop.f32.mrf.mxu0
      %v8882 = vadd.f32 %v7173, %v8881
      %8883 = vmatprep.mubr.bf16.mxu0 %v6885
      %8884 = vmatmul.mubr.bf16.gmra.mxu0 %v6884
      %v8885 = vpop.f32.mrf.mxu0
      %v8886 = vadd.f32 %v7169, %v8885
      %v8887 = vpop.f32.mrf.mxu0
      %v8888 = vadd.f32 %v7173, %v8887
      %v8889 = vpop.f32.mrf.mxu0
      %v8890 = vadd.f32 %v7169, %v8889
      %v8891 = vpop.f32.mrf.mxu0
      %v8892 = vadd.f32 %v7173, %v8891
      %8893 = vmatprep.mubr.bf16.mxu0 %v6889
      %8894 = vmatmul.mubr.bf16.gmra.mxu0 %v6888
      %v8895 = vpop.f32.mrf.mxu0
      %v8896 = vadd.f32 %v7169, %v8895
      %v8897 = vpop.f32.mrf.mxu0
      %v8898 = vadd.f32 %v7173, %v8897
      %v8899 = vpop.f32.mrf.mxu0
      %v8900 = vadd.f32 %v7169, %v8899
      %v8901 = vpop.f32.mrf.mxu0
      %v8902 = vadd.f32 %v7173, %v8901
      %8903 = vmatprep.mubr.bf16.mxu0 %v6893
      %8904 = vmatmul.mubr.bf16.gmra.mxu0 %v6892
      %v8905 = vpop.f32.mrf.mxu0
      %v8906 = vadd.f32 %v7169, %v8905
      %v8907 = vpop.f32.mrf.mxu0
      %v8908 = vadd.f32 %v7173, %v8907
      %v8909 = vpop.f32.mrf.mxu0
      %v8910 = vadd.f32 %v7169, %v8909
      %v8911 = vpop.f32.mrf.mxu0
      %v8912 = vadd.f32 %v7173, %v8911
      %8913 = vmatprep.mubr.bf16.mxu0 %v6897
      %8914 = vmatmul.mubr.bf16.gmra.mxu0 %v6896
      %v8915 = vpop.f32.mrf.mxu0
      %v8916 = vadd.f32 %v7169, %v8915
      %v8917 = vpop.f32.mrf.mxu0
      %v8918 = vadd.f32 %v7173, %v8917
      %v8919 = vpop.f32.mrf.mxu0
      %v8920 = vadd.f32 %v7169, %v8919
      %v8921 = vpop.f32.mrf.mxu0
      %v8922 = vadd.f32 %v7173, %v8921
      %8923 = vdwg.mxu0
      %8924 = vmatprep.subr.bf16.mxu0 %v8061
      %8925 = vmatpush1.bf16.msra.mxu0 %v8060
      %8926 = vmatprep.subr.bf16.mxu0 %v8054
      %8927 = vmatpush1.bf16.msra.mxu0 %v8053
      %8928 = vmatprep.subr.bf16.mxu0 %v8047
      %8929 = vmatpush1.bf16.msra.mxu0 %v8046
      %8930 = vmatprep.subr.bf16.mxu0 %v8040
      %8931 = vmatpush1.bf16.msra.mxu0 %v8039
      %8932 = vmatprep.subr.bf16.mxu0 %v8033
      %8933 = vmatpush1.bf16.msra.mxu0 %v8032
      %8934 = vmatprep.subr.bf16.mxu0 %v8026
      %8935 = vmatpush1.bf16.msra.mxu0 %v8025
      %8936 = vmatprep.subr.bf16.mxu0 %v8019
      %8937 = vmatpush1.bf16.msra.mxu0 %v8018
      %8938 = vmatprep.subr.bf16.mxu0 %v8012
      %8939 = vmatpush1.bf16.msra.mxu0 %v8011
      %8940 = vmatprep.subr.bf16.mxu0 %v8117
      %8941 = vmatpush2.bf16.msra.mxu0 %v8116
      %8942 = vmatprep.subr.bf16.mxu0 %v8110
      %8943 = vmatpush2.bf16.msra.mxu0 %v8109
      %8944 = vmatprep.subr.bf16.mxu0 %v8103
      %8945 = vmatpush2.bf16.msra.mxu0 %v8102
      %8946 = vmatprep.subr.bf16.mxu0 %v8096
      %8947 = vmatpush2.bf16.msra.mxu0 %v8095
      %8948 = vmatprep.subr.bf16.mxu0 %v8089
      %8949 = vmatpush2.bf16.msra.mxu0 %v8088
      %8950 = vmatprep.subr.bf16.mxu0 %v8082
      %8951 = vmatpush2.bf16.msra.mxu0 %v8081
      %8952 = vmatprep.subr.bf16.mxu0 %v8075
      %8953 = vmatpush2.bf16.msra.mxu0 %v8074
      %8954 = vmatprep.subr.bf16.mxu0 %v8068
      %8955 = vmatpush2.bf16.msra.mxu0 %v8067
      %8956 = vmatprep.mubr.bf16.mxu0 %v6839
      %8957 = vmatmul.mubr.bf16.gmra.mxu0 %v6838
      %v8958 = vpop.f32.mrf.mxu0
      %v8959 = vadd.f32 %v8766, %v8958
      %v8960 = vpop.f32.mrf.mxu0
      %v8961 = vadd.f32 %v8768, %v8960
      %v8962 = vpop.f32.mrf.mxu0
      %v8963 = vadd.f32 %v8770, %v8962
      %v8964 = vpop.f32.mrf.mxu0
      %v8965 = vadd.f32 %v8772, %v8964
      %8966 = vmatprep.mubr.bf16.mxu0 %v6843
      %8967 = vmatmul.mubr.bf16.gmra.mxu0 %v6842
      %v8968 = vpop.f32.mrf.mxu0
      %v8969 = vadd.f32 %v8776, %v8968
      %v8970 = vpop.f32.mrf.mxu0
      %v8971 = vadd.f32 %v8778, %v8970
      %v8972 = vpop.f32.mrf.mxu0
      %v8973 = vadd.f32 %v8780, %v8972
      %v8974 = vpop.f32.mrf.mxu0
      %v8975 = vadd.f32 %v8782, %v8974
      %8976 = vmatprep.mubr.bf16.mxu0 %v6847
      %8977 = vmatmul.mubr.bf16.gmra.mxu0 %v6846
      %v8978 = vpop.f32.mrf.mxu0
      %v8979 = vadd.f32 %v8786, %v8978
      %v8980 = vpop.f32.mrf.mxu0
      %v8981 = vadd.f32 %v8788, %v8980
      %v8982 = vpop.f32.mrf.mxu0
      %v8983 = vadd.f32 %v8790, %v8982
      %v8984 = vpop.f32.mrf.mxu0
      %v8985 = vadd.f32 %v8792, %v8984
      %8986 = vmatprep.mubr.bf16.mxu0 %v6851
      %8987 = vmatmul.mubr.bf16.gmra.mxu0 %v6850
      %v8988 = vpop.f32.mrf.mxu0
      %v8989 = vadd.f32 %v8796, %v8988
      %v8990 = vpop.f32.mrf.mxu0
      %v8991 = vadd.f32 %v8798, %v8990
      %v8992 = vpop.f32.mrf.mxu0
      %v8993 = vadd.f32 %v8800, %v8992
      %v8994 = vpop.f32.mrf.mxu0
      %v8995 = vadd.f32 %v8802, %v8994
      %8996 = vmatprep.mubr.bf16.mxu0 %v6855
      %8997 = vmatmul.mubr.bf16.gmra.mxu0 %v6854
      %v8998 = vpop.f32.mrf.mxu0
      %v8999 = vadd.f32 %v8806, %v8998
      %v9000 = vpop.f32.mrf.mxu0
      %v9001 = vadd.f32 %v8808, %v9000
      %v9002 = vpop.f32.mrf.mxu0
      %v9003 = vadd.f32 %v8810, %v9002
      %v9004 = vpop.f32.mrf.mxu0
      %v9005 = vadd.f32 %v8812, %v9004
      %9006 = vmatprep.mubr.bf16.mxu0 %v6859
      %9007 = vmatmul.mubr.bf16.gmra.mxu0 %v6858
      %v9008 = vpop.f32.mrf.mxu0
      %v9009 = vadd.f32 %v8816, %v9008
      %v9010 = vpop.f32.mrf.mxu0
      %v9011 = vadd.f32 %v8818, %v9010
      %v9012 = vpop.f32.mrf.mxu0
      %v9013 = vadd.f32 %v8820, %v9012
      %v9014 = vpop.f32.mrf.mxu0
      %v9015 = vadd.f32 %v8822, %v9014
      %9016 = vmatprep.mubr.bf16.mxu0 %v6863
      %9017 = vmatmul.mubr.bf16.gmra.mxu0 %v6862
      %v9018 = vpop.f32.mrf.mxu0
      %v9019 = vadd.f32 %v8826, %v9018
      %v9020 = vpop.f32.mrf.mxu0
      %v9021 = vadd.f32 %v8828, %v9020
      %v9022 = vpop.f32.mrf.mxu0
      %v9023 = vadd.f32 %v8830, %v9022
      %v9024 = vpop.f32.mrf.mxu0
      %v9025 = vadd.f32 %v8832, %v9024
      %9026 = vmatprep.mubr.bf16.mxu0 %v6867
      %9027 = vmatmul.mubr.bf16.gmra.mxu0 %v6866
      %v9028 = vpop.f32.mrf.mxu0
      %v9029 = vadd.f32 %v8836, %v9028
      %v9030 = vpop.f32.mrf.mxu0
      %v9031 = vadd.f32 %v8838, %v9030
      %v9032 = vpop.f32.mrf.mxu0
      %v9033 = vadd.f32 %v8840, %v9032
      %v9034 = vpop.f32.mrf.mxu0
      %v9035 = vadd.f32 %v8842, %v9034
      %9036 = vmatprep.mubr.bf16.mxu0 %v6871
      %9037 = vmatmul.mubr.bf16.gmra.mxu0 %v6870
      %v9038 = vpop.f32.mrf.mxu0
      %v9039 = vadd.f32 %v8846, %v9038
      %v9040 = vpop.f32.mrf.mxu0
      %v9041 = vadd.f32 %v8848, %v9040
      %v9042 = vpop.f32.mrf.mxu0
      %v9043 = vadd.f32 %v8850, %v9042
      %v9044 = vpop.f32.mrf.mxu0
      %v9045 = vadd.f32 %v8852, %v9044
      %9046 = vmatprep.mubr.bf16.mxu0 %v6875
      %9047 = vmatmul.mubr.bf16.gmra.mxu0 %v6874
      %v9048 = vpop.f32.mrf.mxu0
      %v9049 = vadd.f32 %v8856, %v9048
      %v9050 = vpop.f32.mrf.mxu0
      %v9051 = vadd.f32 %v8858, %v9050
      %v9052 = vpop.f32.mrf.mxu0
      %v9053 = vadd.f32 %v8860, %v9052
      %v9054 = vpop.f32.mrf.mxu0
      %v9055 = vadd.f32 %v8862, %v9054
      %9056 = vmatprep.mubr.bf16.mxu0 %v6879
      %9057 = vmatmul.mubr.bf16.gmra.mxu0 %v6878
      %v9058 = vpop.f32.mrf.mxu0
      %v9059 = vadd.f32 %v8866, %v9058
      %v9060 = vpop.f32.mrf.mxu0
      %v9061 = vadd.f32 %v8868, %v9060
      %v9062 = vpop.f32.mrf.mxu0
      %v9063 = vadd.f32 %v8870, %v9062
      %v9064 = vpop.f32.mrf.mxu0
      %v9065 = vadd.f32 %v8872, %v9064
      %9066 = vmatprep.mubr.bf16.mxu0 %v6883
      %9067 = vmatmul.mubr.bf16.gmra.mxu0 %v6882
      %v9068 = vpop.f32.mrf.mxu0
      %v9069 = vadd.f32 %v8876, %v9068
      %v9070 = vpop.f32.mrf.mxu0
      %v9071 = vadd.f32 %v8878, %v9070
      %v9072 = vpop.f32.mrf.mxu0
      %v9073 = vadd.f32 %v8880, %v9072
      %v9074 = vpop.f32.mrf.mxu0
      %v9075 = vadd.f32 %v8882, %v9074
      %9076 = vmatprep.mubr.bf16.mxu0 %v6887
      %9077 = vmatmul.mubr.bf16.gmra.mxu0 %v6886
      %v9078 = vpop.f32.mrf.mxu0
      %v9079 = vadd.f32 %v8886, %v9078
      %v9080 = vpop.f32.mrf.mxu0
      %v9081 = vadd.f32 %v8888, %v9080
      %v9082 = vpop.f32.mrf.mxu0
      %v9083 = vadd.f32 %v8890, %v9082
      %v9084 = vpop.f32.mrf.mxu0
      %v9085 = vadd.f32 %v8892, %v9084
      %9086 = vmatprep.mubr.bf16.mxu0 %v6891
      %9087 = vmatmul.mubr.bf16.gmra.mxu0 %v6890
      %v9088 = vpop.f32.mrf.mxu0
      %v9089 = vadd.f32 %v8896, %v9088
      %v9090 = vpop.f32.mrf.mxu0
      %v9091 = vadd.f32 %v8898, %v9090
      %v9092 = vpop.f32.mrf.mxu0
      %v9093 = vadd.f32 %v8900, %v9092
      %v9094 = vpop.f32.mrf.mxu0
      %v9095 = vadd.f32 %v8902, %v9094
      %9096 = vmatprep.mubr.bf16.mxu0 %v6895
      %9097 = vmatmul.mubr.bf16.gmra.mxu0 %v6894
      %v9098 = vpop.f32.mrf.mxu0
      %v9099 = vadd.f32 %v8906, %v9098
      %v9100 = vpop.f32.mrf.mxu0
      %v9101 = vadd.f32 %v8908, %v9100
      %v9102 = vpop.f32.mrf.mxu0
      %v9103 = vadd.f32 %v8910, %v9102
      %v9104 = vpop.f32.mrf.mxu0
      %v9105 = vadd.f32 %v8912, %v9104
      %9106 = vmatprep.mubr.bf16.mxu0 %v6899
      %9107 = vmatmul.mubr.bf16.gmra.mxu0 %v6898
      %v9108 = vpop.f32.mrf.mxu0
      %v9109 = vadd.f32 %v8916, %v9108
      %v9110 = vpop.f32.mrf.mxu0
      %v9111 = vadd.f32 %v8918, %v9110
      %v9112 = vpop.f32.mrf.mxu0
      %v9113 = vadd.f32 %v8920, %v9112
      %v9114 = vpop.f32.mrf.mxu0
      %v9115 = vadd.f32 %v8922, %v9114
      %9116 = vdwg.mxu0
      %9117 = vmatprep.subr.bf16.mxu0 %v7951
      %9118 = vmatpush1.bf16.msra.mxu0 %v7950
      %9119 = vmatprep.subr.bf16.mxu0 %v7944
      %9120 = vmatpush1.bf16.msra.mxu0 %v7943
      %9121 = vmatprep.subr.bf16.mxu0 %v7937
      %9122 = vmatpush1.bf16.msra.mxu0 %v7936
      %9123 = vmatprep.subr.bf16.mxu0 %v7930
      %9124 = vmatpush1.bf16.msra.mxu0 %v7929
      %9125 = vmatprep.subr.bf16.mxu0 %v7923
      %9126 = vmatpush1.bf16.msra.mxu0 %v7922
      %9127 = vmatprep.subr.bf16.mxu0 %v7916
      %9128 = vmatpush1.bf16.msra.mxu0 %v7915
      %9129 = vmatprep.subr.bf16.mxu0 %v7909
      %9130 = vmatpush1.bf16.msra.mxu0 %v7908
      %9131 = vmatprep.subr.bf16.mxu0 %v7902
      %9132 = vmatpush1.bf16.msra.mxu0 %v7901
      %9133 = vmatprep.subr.bf16.mxu0 %v8007
      %9134 = vmatpush2.bf16.msra.mxu0 %v8006
      %9135 = vmatprep.subr.bf16.mxu0 %v8000
      %9136 = vmatpush2.bf16.msra.mxu0 %v7999
      %9137 = vmatprep.subr.bf16.mxu0 %v7993
      %9138 = vmatpush2.bf16.msra.mxu0 %v7992
      %9139 = vmatprep.subr.bf16.mxu0 %v7986
      %9140 = vmatpush2.bf16.msra.mxu0 %v7985
      %9141 = vmatprep.subr.bf16.mxu0 %v7979
      %9142 = vmatpush2.bf16.msra.mxu0 %v7978
      %9143 = vmatprep.subr.bf16.mxu0 %v7972
      %9144 = vmatpush2.bf16.msra.mxu0 %v7971
      %9145 = vmatprep.subr.bf16.mxu0 %v7965
      %9146 = vmatpush2.bf16.msra.mxu0 %v7964
      %9147 = vmatprep.subr.bf16.mxu0 %v7958
      %9148 = vmatpush2.bf16.msra.mxu0 %v7957
      %9149 = vmatprep.mubr.bf16.mxu0 %v6837
      %9150 = vmatmul.mubr.bf16.gmra.mxu0 %v6836
      %v9151 = vpop.f32.mrf.mxu0
      %v9152 = vadd.f32 %v7177, %v9151
      %v9153 = vpop.f32.mrf.mxu0
      %v9154 = vadd.f32 %v7181, %v9153
      %v9155 = vpop.f32.mrf.mxu0
      %v9156 = vadd.f32 %v7177, %v9155
      %v9157 = vpop.f32.mrf.mxu0
      %v9158 = vadd.f32 %v7181, %v9157
      %9159 = vmatprep.mubr.bf16.mxu0 %v6841
      %9160 = vmatmul.mubr.bf16.gmra.mxu0 %v6840
      %v9161 = vpop.f32.mrf.mxu0
      %v9162 = vadd.f32 %v7177, %v9161
      %v9163 = vpop.f32.mrf.mxu0
      %v9164 = vadd.f32 %v7181, %v9163
      %v9165 = vpop.f32.mrf.mxu0
      %v9166 = vadd.f32 %v7177, %v9165
      %v9167 = vpop.f32.mrf.mxu0
      %v9168 = vadd.f32 %v7181, %v9167
      %9169 = vmatprep.mubr.bf16.mxu0 %v6845
      %9170 = vmatmul.mubr.bf16.gmra.mxu0 %v6844
      %v9171 = vpop.f32.mrf.mxu0
      %v9172 = vadd.f32 %v7177, %v9171
      %v9173 = vpop.f32.mrf.mxu0
      %v9174 = vadd.f32 %v7181, %v9173
      %v9175 = vpop.f32.mrf.mxu0
      %v9176 = vadd.f32 %v7177, %v9175
      %v9177 = vpop.f32.mrf.mxu0
      %v9178 = vadd.f32 %v7181, %v9177
      %9179 = vmatprep.mubr.bf16.mxu0 %v6849
      %9180 = vmatmul.mubr.bf16.gmra.mxu0 %v6848
      %v9181 = vpop.f32.mrf.mxu0
      %v9182 = vadd.f32 %v7177, %v9181
      %v9183 = vpop.f32.mrf.mxu0
      %v9184 = vadd.f32 %v7181, %v9183
      %v9185 = vpop.f32.mrf.mxu0
      %v9186 = vadd.f32 %v7177, %v9185
      %v9187 = vpop.f32.mrf.mxu0
      %v9188 = vadd.f32 %v7181, %v9187
      %9189 = vmatprep.mubr.bf16.mxu0 %v6853
      %9190 = vmatmul.mubr.bf16.gmra.mxu0 %v6852
      %v9191 = vpop.f32.mrf.mxu0
      %v9192 = vadd.f32 %v7177, %v9191
      %v9193 = vpop.f32.mrf.mxu0
      %v9194 = vadd.f32 %v7181, %v9193
      %v9195 = vpop.f32.mrf.mxu0
      %v9196 = vadd.f32 %v7177, %v9195
      %v9197 = vpop.f32.mrf.mxu0
      %v9198 = vadd.f32 %v7181, %v9197
      %9199 = vmatprep.mubr.bf16.mxu0 %v6857
      %9200 = vmatmul.mubr.bf16.gmra.mxu0 %v6856
      %v9201 = vpop.f32.mrf.mxu0
      %v9202 = vadd.f32 %v7177, %v9201
      %v9203 = vpop.f32.mrf.mxu0
      %v9204 = vadd.f32 %v7181, %v9203
      %v9205 = vpop.f32.mrf.mxu0
      %v9206 = vadd.f32 %v7177, %v9205
      %v9207 = vpop.f32.mrf.mxu0
      %v9208 = vadd.f32 %v7181, %v9207
      %9209 = vmatprep.mubr.bf16.mxu0 %v6861
      %9210 = vmatmul.mubr.bf16.gmra.mxu0 %v6860
      %v9211 = vpop.f32.mrf.mxu0
      %v9212 = vadd.f32 %v7177, %v9211
      %v9213 = vpop.f32.mrf.mxu0
      %v9214 = vadd.f32 %v7181, %v9213
      %v9215 = vpop.f32.mrf.mxu0
      %v9216 = vadd.f32 %v7177, %v9215
      %v9217 = vpop.f32.mrf.mxu0
      %v9218 = vadd.f32 %v7181, %v9217
      %9219 = vmatprep.mubr.bf16.mxu0 %v6865
      %9220 = vmatmul.mubr.bf16.gmra.mxu0 %v6864
      %v9221 = vpop.f32.mrf.mxu0
      %v9222 = vadd.f32 %v7177, %v9221
      %v9223 = vpop.f32.mrf.mxu0
      %v9224 = vadd.f32 %v7181, %v9223
      %v9225 = vpop.f32.mrf.mxu0
      %v9226 = vadd.f32 %v7177, %v9225
      %v9227 = vpop.f32.mrf.mxu0
      %v9228 = vadd.f32 %v7181, %v9227
      %9229 = vmatprep.mubr.bf16.mxu0 %v6869
      %9230 = vmatmul.mubr.bf16.gmra.mxu0 %v6868
      %v9231 = vpop.f32.mrf.mxu0
      %v9232 = vadd.f32 %v7177, %v9231
      %v9233 = vpop.f32.mrf.mxu0
      %v9234 = vadd.f32 %v7181, %v9233
      %v9235 = vpop.f32.mrf.mxu0
      %v9236 = vadd.f32 %v7177, %v9235
      %v9237 = vpop.f32.mrf.mxu0
      %v9238 = vadd.f32 %v7181, %v9237
      %9239 = vmatprep.mubr.bf16.mxu0 %v6873
      %9240 = vmatmul.mubr.bf16.gmra.mxu0 %v6872
      %v9241 = vpop.f32.mrf.mxu0
      %v9242 = vadd.f32 %v7177, %v9241
      %v9243 = vpop.f32.mrf.mxu0
      %v9244 = vadd.f32 %v7181, %v9243
      %v9245 = vpop.f32.mrf.mxu0
      %v9246 = vadd.f32 %v7177, %v9245
      %v9247 = vpop.f32.mrf.mxu0
      %v9248 = vadd.f32 %v7181, %v9247
      %9249 = vmatprep.mubr.bf16.mxu0 %v6877
      %9250 = vmatmul.mubr.bf16.gmra.mxu0 %v6876
      %v9251 = vpop.f32.mrf.mxu0
      %v9252 = vadd.f32 %v7177, %v9251
      %v9253 = vpop.f32.mrf.mxu0
      %v9254 = vadd.f32 %v7181, %v9253
      %v9255 = vpop.f32.mrf.mxu0
      %v9256 = vadd.f32 %v7177, %v9255
      %v9257 = vpop.f32.mrf.mxu0
      %v9258 = vadd.f32 %v7181, %v9257
      %9259 = vmatprep.mubr.bf16.mxu0 %v6881
      %9260 = vmatmul.mubr.bf16.gmra.mxu0 %v6880
      %v9261 = vpop.f32.mrf.mxu0
      %v9262 = vadd.f32 %v7177, %v9261
      %v9263 = vpop.f32.mrf.mxu0
      %v9264 = vadd.f32 %v7181, %v9263
      %v9265 = vpop.f32.mrf.mxu0
      %v9266 = vadd.f32 %v7177, %v9265
      %v9267 = vpop.f32.mrf.mxu0
      %v9268 = vadd.f32 %v7181, %v9267
      %9269 = vmatprep.mubr.bf16.mxu0 %v6885
      %9270 = vmatmul.mubr.bf16.gmra.mxu0 %v6884
      %v9271 = vpop.f32.mrf.mxu0
      %v9272 = vadd.f32 %v7177, %v9271
      %v9273 = vpop.f32.mrf.mxu0
      %v9274 = vadd.f32 %v7181, %v9273
      %v9275 = vpop.f32.mrf.mxu0
      %v9276 = vadd.f32 %v7177, %v9275
      %v9277 = vpop.f32.mrf.mxu0
      %v9278 = vadd.f32 %v7181, %v9277
      %9279 = vmatprep.mubr.bf16.mxu0 %v6889
      %9280 = vmatmul.mubr.bf16.gmra.mxu0 %v6888
      %v9281 = vpop.f32.mrf.mxu0
      %v9282 = vadd.f32 %v7177, %v9281
      %v9283 = vpop.f32.mrf.mxu0
      %v9284 = vadd.f32 %v7181, %v9283
      %v9285 = vpop.f32.mrf.mxu0
      %v9286 = vadd.f32 %v7177, %v9285
      %v9287 = vpop.f32.mrf.mxu0
      %v9288 = vadd.f32 %v7181, %v9287
      %9289 = vmatprep.mubr.bf16.mxu0 %v6893
      %9290 = vmatmul.mubr.bf16.gmra.mxu0 %v6892
      %v9291 = vpop.f32.mrf.mxu0
      %v9292 = vadd.f32 %v7177, %v9291
      %v9293 = vpop.f32.mrf.mxu0
      %v9294 = vadd.f32 %v7181, %v9293
      %v9295 = vpop.f32.mrf.mxu0
      %v9296 = vadd.f32 %v7177, %v9295
      %v9297 = vpop.f32.mrf.mxu0
      %v9298 = vadd.f32 %v7181, %v9297
      %9299 = vmatprep.mubr.bf16.mxu0 %v6897
      %9300 = vmatmul.mubr.bf16.gmra.mxu0 %v6896
      %v9301 = vpop.f32.mrf.mxu0
      %v9302 = vadd.f32 %v7177, %v9301
      %v9303 = vpop.f32.mrf.mxu0
      %v9304 = vadd.f32 %v7181, %v9303
      %v9305 = vpop.f32.mrf.mxu0
      %v9306 = vadd.f32 %v7177, %v9305
      %v9307 = vpop.f32.mrf.mxu0
      %v9308 = vadd.f32 %v7181, %v9307
      %9309 = vdwg.mxu0
      %9310 = vmatprep.subr.bf16.mxu0 %v8063
      %9311 = vmatpush1.bf16.msra.mxu0 %v8062
      %9312 = vmatprep.subr.bf16.mxu0 %v8056
      %9313 = vmatpush1.bf16.msra.mxu0 %v8055
      %9314 = vmatprep.subr.bf16.mxu0 %v8049
      %9315 = vmatpush1.bf16.msra.mxu0 %v8048
      %9316 = vmatprep.subr.bf16.mxu0 %v8042
      %9317 = vmatpush1.bf16.msra.mxu0 %v8041
      %9318 = vmatprep.subr.bf16.mxu0 %v8035
      %9319 = vmatpush1.bf16.msra.mxu0 %v8034
      %9320 = vmatprep.subr.bf16.mxu0 %v8028
      %9321 = vmatpush1.bf16.msra.mxu0 %v8027
      %9322 = vmatprep.subr.bf16.mxu0 %v8021
      %9323 = vmatpush1.bf16.msra.mxu0 %v8020
      %9324 = vmatprep.subr.bf16.mxu0 %v8014
      %9325 = vmatpush1.bf16.msra.mxu0 %v8013
      %9326 = vmatprep.subr.bf16.mxu0 %v8119
      %9327 = vmatpush2.bf16.msra.mxu0 %v8118
      %9328 = vmatprep.subr.bf16.mxu0 %v8112
      %9329 = vmatpush2.bf16.msra.mxu0 %v8111
      %9330 = vmatprep.subr.bf16.mxu0 %v8105
      %9331 = vmatpush2.bf16.msra.mxu0 %v8104
      %9332 = vmatprep.subr.bf16.mxu0 %v8098
      %9333 = vmatpush2.bf16.msra.mxu0 %v8097
      %9334 = vmatprep.subr.bf16.mxu0 %v8091
      %9335 = vmatpush2.bf16.msra.mxu0 %v8090
      %9336 = vmatprep.subr.bf16.mxu0 %v8084
      %9337 = vmatpush2.bf16.msra.mxu0 %v8083
      %9338 = vmatprep.subr.bf16.mxu0 %v8077
      %9339 = vmatpush2.bf16.msra.mxu0 %v8076
      %9340 = vmatprep.subr.bf16.mxu0 %v8070
      %9341 = vmatpush2.bf16.msra.mxu0 %v8069
      %9342 = vmatprep.mubr.bf16.mxu0 %v6839
      %9343 = vmatmul.mubr.bf16.gmra.mxu0 %v6838
      %v9344 = vpop.f32.mrf.mxu0
      %v9345 = vadd.f32 %v9152, %v9344
      %v9346 = vpop.f32.mrf.mxu0
      %v9347 = vadd.f32 %v9154, %v9346
      %v9348 = vpop.f32.mrf.mxu0
      %v9349 = vadd.f32 %v9156, %v9348
      %v9350 = vpop.f32.mrf.mxu0
      %v9351 = vadd.f32 %v9158, %v9350
      %9352 = vmatprep.mubr.bf16.mxu0 %v6843
      %9353 = vmatmul.mubr.bf16.gmra.mxu0 %v6842
      %v9354 = vpop.f32.mrf.mxu0
      %v9355 = vadd.f32 %v9162, %v9354
      %v9356 = vpop.f32.mrf.mxu0
      %v9357 = vadd.f32 %v9164, %v9356
      %v9358 = vpop.f32.mrf.mxu0
      %v9359 = vadd.f32 %v9166, %v9358
      %v9360 = vpop.f32.mrf.mxu0
      %v9361 = vadd.f32 %v9168, %v9360
      %9362 = vmatprep.mubr.bf16.mxu0 %v6847
      %9363 = vmatmul.mubr.bf16.gmra.mxu0 %v6846
      %v9364 = vpop.f32.mrf.mxu0
      %v9365 = vadd.f32 %v9172, %v9364
      %v9366 = vpop.f32.mrf.mxu0
      %v9367 = vadd.f32 %v9174, %v9366
      %v9368 = vpop.f32.mrf.mxu0
      %v9369 = vadd.f32 %v9176, %v9368
      %v9370 = vpop.f32.mrf.mxu0
      %v9371 = vadd.f32 %v9178, %v9370
      %9372 = vmatprep.mubr.bf16.mxu0 %v6851
      %9373 = vmatmul.mubr.bf16.gmra.mxu0 %v6850
      %v9374 = vpop.f32.mrf.mxu0
      %v9375 = vadd.f32 %v9182, %v9374
      %v9376 = vpop.f32.mrf.mxu0
      %v9377 = vadd.f32 %v9184, %v9376
      %v9378 = vpop.f32.mrf.mxu0
      %v9379 = vadd.f32 %v9186, %v9378
      %v9380 = vpop.f32.mrf.mxu0
      %v9381 = vadd.f32 %v9188, %v9380
      %9382 = vmatprep.mubr.bf16.mxu0 %v6855
      %9383 = vmatmul.mubr.bf16.gmra.mxu0 %v6854
      %v9384 = vpop.f32.mrf.mxu0
      %v9385 = vadd.f32 %v9192, %v9384
      %v9386 = vpop.f32.mrf.mxu0
      %v9387 = vadd.f32 %v9194, %v9386
      %v9388 = vpop.f32.mrf.mxu0
      %v9389 = vadd.f32 %v9196, %v9388
      %v9390 = vpop.f32.mrf.mxu0
      %v9391 = vadd.f32 %v9198, %v9390
      %9392 = vmatprep.mubr.bf16.mxu0 %v6859
      %9393 = vmatmul.mubr.bf16.gmra.mxu0 %v6858
      %v9394 = vpop.f32.mrf.mxu0
      %v9395 = vadd.f32 %v9202, %v9394
      %v9396 = vpop.f32.mrf.mxu0
      %v9397 = vadd.f32 %v9204, %v9396
      %v9398 = vpop.f32.mrf.mxu0
      %v9399 = vadd.f32 %v9206, %v9398
      %v9400 = vpop.f32.mrf.mxu0
      %v9401 = vadd.f32 %v9208, %v9400
      %9402 = vmatprep.mubr.bf16.mxu0 %v6863
      %9403 = vmatmul.mubr.bf16.gmra.mxu0 %v6862
      %v9404 = vpop.f32.mrf.mxu0
      %v9405 = vadd.f32 %v9212, %v9404
      %v9406 = vpop.f32.mrf.mxu0
      %v9407 = vadd.f32 %v9214, %v9406
      %v9408 = vpop.f32.mrf.mxu0
      %v9409 = vadd.f32 %v9216, %v9408
      %v9410 = vpop.f32.mrf.mxu0
      %v9411 = vadd.f32 %v9218, %v9410
      %9412 = vmatprep.mubr.bf16.mxu0 %v6867
      %9413 = vmatmul.mubr.bf16.gmra.mxu0 %v6866
      %v9414 = vpop.f32.mrf.mxu0
      %v9415 = vadd.f32 %v9222, %v9414
      %v9416 = vpop.f32.mrf.mxu0
      %v9417 = vadd.f32 %v9224, %v9416
      %v9418 = vpop.f32.mrf.mxu0
      %v9419 = vadd.f32 %v9226, %v9418
      %v9420 = vpop.f32.mrf.mxu0
      %v9421 = vadd.f32 %v9228, %v9420
      %9422 = vmatprep.mubr.bf16.mxu0 %v6871
      %9423 = vmatmul.mubr.bf16.gmra.mxu0 %v6870
      %v9424 = vpop.f32.mrf.mxu0
      %v9425 = vadd.f32 %v9232, %v9424
      %v9426 = vpop.f32.mrf.mxu0
      %v9427 = vadd.f32 %v9234, %v9426
      %v9428 = vpop.f32.mrf.mxu0
      %v9429 = vadd.f32 %v9236, %v9428
      %v9430 = vpop.f32.mrf.mxu0
      %v9431 = vadd.f32 %v9238, %v9430
      %9432 = vmatprep.mubr.bf16.mxu0 %v6875
      %9433 = vmatmul.mubr.bf16.gmra.mxu0 %v6874
      %v9434 = vpop.f32.mrf.mxu0
      %v9435 = vadd.f32 %v9242, %v9434
      %v9436 = vpop.f32.mrf.mxu0
      %v9437 = vadd.f32 %v9244, %v9436
      %v9438 = vpop.f32.mrf.mxu0
      %v9439 = vadd.f32 %v9246, %v9438
      %v9440 = vpop.f32.mrf.mxu0
      %v9441 = vadd.f32 %v9248, %v9440
      %9442 = vmatprep.mubr.bf16.mxu0 %v6879
      %9443 = vmatmul.mubr.bf16.gmra.mxu0 %v6878
      %v9444 = vpop.f32.mrf.mxu0
      %v9445 = vadd.f32 %v9252, %v9444
      %v9446 = vpop.f32.mrf.mxu0
      %v9447 = vadd.f32 %v9254, %v9446
      %v9448 = vpop.f32.mrf.mxu0
      %v9449 = vadd.f32 %v9256, %v9448
      %v9450 = vpop.f32.mrf.mxu0
      %v9451 = vadd.f32 %v9258, %v9450
      %9452 = vmatprep.mubr.bf16.mxu0 %v6883
      %9453 = vmatmul.mubr.bf16.gmra.mxu0 %v6882
      %v9454 = vpop.f32.mrf.mxu0
      %v9455 = vadd.f32 %v9262, %v9454
      %v9456 = vpop.f32.mrf.mxu0
      %v9457 = vadd.f32 %v9264, %v9456
      %v9458 = vpop.f32.mrf.mxu0
      %v9459 = vadd.f32 %v9266, %v9458
      %v9460 = vpop.f32.mrf.mxu0
      %v9461 = vadd.f32 %v9268, %v9460
      %9462 = vmatprep.mubr.bf16.mxu0 %v6887
      %9463 = vmatmul.mubr.bf16.gmra.mxu0 %v6886
      %v9464 = vpop.f32.mrf.mxu0
      %v9465 = vadd.f32 %v9272, %v9464
      %v9466 = vpop.f32.mrf.mxu0
      %v9467 = vadd.f32 %v9274, %v9466
      %v9468 = vpop.f32.mrf.mxu0
      %v9469 = vadd.f32 %v9276, %v9468
      %v9470 = vpop.f32.mrf.mxu0
      %v9471 = vadd.f32 %v9278, %v9470
      %9472 = vmatprep.mubr.bf16.mxu0 %v6891
      %9473 = vmatmul.mubr.bf16.gmra.mxu0 %v6890
      %v9474 = vpop.f32.mrf.mxu0
      %v9475 = vadd.f32 %v9282, %v9474
      %v9476 = vpop.f32.mrf.mxu0
      %v9477 = vadd.f32 %v9284, %v9476
      %v9478 = vpop.f32.mrf.mxu0
      %v9479 = vadd.f32 %v9286, %v9478
      %v9480 = vpop.f32.mrf.mxu0
      %v9481 = vadd.f32 %v9288, %v9480
      %9482 = vmatprep.mubr.bf16.mxu0 %v6895
      %9483 = vmatmul.mubr.bf16.gmra.mxu0 %v6894
      %v9484 = vpop.f32.mrf.mxu0
      %v9485 = vadd.f32 %v9292, %v9484
      %v9486 = vpop.f32.mrf.mxu0
      %v9487 = vadd.f32 %v9294, %v9486
      %v9488 = vpop.f32.mrf.mxu0
      %v9489 = vadd.f32 %v9296, %v9488
      %v9490 = vpop.f32.mrf.mxu0
      %v9491 = vadd.f32 %v9298, %v9490
      %9492 = vmatprep.mubr.bf16.mxu0 %v6899
      %9493 = vmatmul.mubr.bf16.gmra.mxu0 %v6898
      %v9494 = vpop.f32.mrf.mxu0
      %v9495 = vadd.f32 %v9302, %v9494
      %v9496 = vpop.f32.mrf.mxu0
      %v9497 = vadd.f32 %v9304, %v9496
      %v9498 = vpop.f32.mrf.mxu0
      %v9499 = vadd.f32 %v9306, %v9498
      %v9500 = vpop.f32.mrf.mxu0
      %v9501 = vadd.f32 %v9308, %v9500
      %9502 = vdwg.mxu0
      %9503 = vmatprep.subr.bf16.mxu0 0
      %9504 = vmatpush1.bf16.msra.mxu0 %v7952
      %9505 = vmatprep.subr.bf16.mxu0 0
      %9506 = vmatpush1.bf16.msra.mxu0 %v7945
      %9507 = vmatprep.subr.bf16.mxu0 0
      %9508 = vmatpush1.bf16.msra.mxu0 %v7938
      %9509 = vmatprep.subr.bf16.mxu0 0
      %9510 = vmatpush1.bf16.msra.mxu0 %v7931
      %9511 = vmatprep.subr.bf16.mxu0 0
      %9512 = vmatpush1.bf16.msra.mxu0 %v7924
      %9513 = vmatprep.subr.bf16.mxu0 0
      %9514 = vmatpush1.bf16.msra.mxu0 %v7917
      %9515 = vmatprep.subr.bf16.mxu0 0
      %9516 = vmatpush1.bf16.msra.mxu0 %v7910
      %9517 = vmatprep.subr.bf16.mxu0 0
      %9518 = vmatpush1.bf16.msra.mxu0 %v7903
      %9519 = vmatprep.subr.bf16.mxu0 0
      %9520 = vmatpush2.bf16.msra.mxu0 %v8008
      %9521 = vmatprep.subr.bf16.mxu0 0
      %9522 = vmatpush2.bf16.msra.mxu0 %v8001
      %9523 = vmatprep.subr.bf16.mxu0 0
      %9524 = vmatpush2.bf16.msra.mxu0 %v7994
      %9525 = vmatprep.subr.bf16.mxu0 0
      %9526 = vmatpush2.bf16.msra.mxu0 %v7987
      %9527 = vmatprep.subr.bf16.mxu0 0
      %9528 = vmatpush2.bf16.msra.mxu0 %v7980
      %9529 = vmatprep.subr.bf16.mxu0 0
      %9530 = vmatpush2.bf16.msra.mxu0 %v7973
      %9531 = vmatprep.subr.bf16.mxu0 0
      %9532 = vmatpush2.bf16.msra.mxu0 %v7966
      %9533 = vmatprep.subr.bf16.mxu0 0
      %9534 = vmatpush2.bf16.msra.mxu0 %v7959
      %9535 = vmatprep.mubr.bf16.mxu0 %v6837
      %9536 = vmatmul.mubr.bf16.gmra.mxu0 %v6836
      %v9537 = vpop.f32.mrf.mxu0
      %v9538 = vadd.f32 %v7185, %v9537
      %v9539 = vpop.f32.mrf.mxu0
      %v9540 = vpop.f32.mrf.mxu0
      %v9541 = vadd.f32 %v7185, %v9540
      %v9542 = vpop.f32.mrf.mxu0
      %9543 = vmatprep.mubr.bf16.mxu0 %v6841
      %9544 = vmatmul.mubr.bf16.gmra.mxu0 %v6840
      %v9545 = vpop.f32.mrf.mxu0
      %v9546 = vadd.f32 %v7185, %v9545
      %v9547 = vpop.f32.mrf.mxu0
      %v9548 = vpop.f32.mrf.mxu0
      %v9549 = vadd.f32 %v7185, %v9548
      %v9550 = vpop.f32.mrf.mxu0
      %9551 = vmatprep.mubr.bf16.mxu0 %v6845
      %9552 = vmatmul.mubr.bf16.gmra.mxu0 %v6844
      %v9553 = vpop.f32.mrf.mxu0
      %v9554 = vadd.f32 %v7185, %v9553
      %v9555 = vpop.f32.mrf.mxu0
      %v9556 = vpop.f32.mrf.mxu0
      %v9557 = vadd.f32 %v7185, %v9556
      %v9558 = vpop.f32.mrf.mxu0
      %9559 = vmatprep.mubr.bf16.mxu0 %v6849
      %9560 = vmatmul.mubr.bf16.gmra.mxu0 %v6848
      %v9561 = vpop.f32.mrf.mxu0
      %v9562 = vadd.f32 %v7185, %v9561
      %v9563 = vpop.f32.mrf.mxu0
      %v9564 = vpop.f32.mrf.mxu0
      %v9565 = vadd.f32 %v7185, %v9564
      %v9566 = vpop.f32.mrf.mxu0
      %9567 = vmatprep.mubr.bf16.mxu0 %v6853
      %9568 = vmatmul.mubr.bf16.gmra.mxu0 %v6852
      %v9569 = vpop.f32.mrf.mxu0
      %v9570 = vadd.f32 %v7185, %v9569
      %v9571 = vpop.f32.mrf.mxu0
      %v9572 = vpop.f32.mrf.mxu0
      %v9573 = vadd.f32 %v7185, %v9572
      %v9574 = vpop.f32.mrf.mxu0
      %9575 = vmatprep.mubr.bf16.mxu0 %v6857
      %9576 = vmatmul.mubr.bf16.gmra.mxu0 %v6856
      %v9577 = vpop.f32.mrf.mxu0
      %v9578 = vadd.f32 %v7185, %v9577
      %v9579 = vpop.f32.mrf.mxu0
      %v9580 = vpop.f32.mrf.mxu0
      %v9581 = vadd.f32 %v7185, %v9580
      %v9582 = vpop.f32.mrf.mxu0
      %9583 = vmatprep.mubr.bf16.mxu0 %v6861
      %9584 = vmatmul.mubr.bf16.gmra.mxu0 %v6860
      %v9585 = vpop.f32.mrf.mxu0
      %v9586 = vadd.f32 %v7185, %v9585
      %v9587 = vpop.f32.mrf.mxu0
      %v9588 = vpop.f32.mrf.mxu0
      %v9589 = vadd.f32 %v7185, %v9588
      %v9590 = vpop.f32.mrf.mxu0
      %9591 = vmatprep.mubr.bf16.mxu0 %v6865
      %9592 = vmatmul.mubr.bf16.gmra.mxu0 %v6864
      %v9593 = vpop.f32.mrf.mxu0
      %v9594 = vadd.f32 %v7185, %v9593
      %v9595 = vpop.f32.mrf.mxu0
      %v9596 = vpop.f32.mrf.mxu0
      %v9597 = vadd.f32 %v7185, %v9596
      %v9598 = vpop.f32.mrf.mxu0
      %9599 = vmatprep.mubr.bf16.mxu0 %v6869
      %9600 = vmatmul.mubr.bf16.gmra.mxu0 %v6868
      %v9601 = vpop.f32.mrf.mxu0
      %v9602 = vadd.f32 %v7185, %v9601
      %v9603 = vpop.f32.mrf.mxu0
      %v9604 = vpop.f32.mrf.mxu0
      %v9605 = vadd.f32 %v7185, %v9604
      %v9606 = vpop.f32.mrf.mxu0
      %9607 = vmatprep.mubr.bf16.mxu0 %v6873
      %9608 = vmatmul.mubr.bf16.gmra.mxu0 %v6872
      %v9609 = vpop.f32.mrf.mxu0
      %v9610 = vadd.f32 %v7185, %v9609
      %v9611 = vpop.f32.mrf.mxu0
      %v9612 = vpop.f32.mrf.mxu0
      %v9613 = vadd.f32 %v7185, %v9612
      %v9614 = vpop.f32.mrf.mxu0
      %9615 = vmatprep.mubr.bf16.mxu0 %v6877
      %9616 = vmatmul.mubr.bf16.gmra.mxu0 %v6876
      %v9617 = vpop.f32.mrf.mxu0
      %v9618 = vadd.f32 %v7185, %v9617
      %v9619 = vpop.f32.mrf.mxu0
      %v9620 = vpop.f32.mrf.mxu0
      %v9621 = vadd.f32 %v7185, %v9620
      %v9622 = vpop.f32.mrf.mxu0
      %9623 = vmatprep.mubr.bf16.mxu0 %v6881
      %9624 = vmatmul.mubr.bf16.gmra.mxu0 %v6880
      %v9625 = vpop.f32.mrf.mxu0
      %v9626 = vadd.f32 %v7185, %v9625
      %v9627 = vpop.f32.mrf.mxu0
      %v9628 = vpop.f32.mrf.mxu0
      %v9629 = vadd.f32 %v7185, %v9628
      %v9630 = vpop.f32.mrf.mxu0
      %9631 = vmatprep.mubr.bf16.mxu0 %v6885
      %9632 = vmatmul.mubr.bf16.gmra.mxu0 %v6884
      %v9633 = vpop.f32.mrf.mxu0
      %v9634 = vadd.f32 %v7185, %v9633
      %v9635 = vpop.f32.mrf.mxu0
      %v9636 = vpop.f32.mrf.mxu0
      %v9637 = vadd.f32 %v7185, %v9636
      %v9638 = vpop.f32.mrf.mxu0
      %9639 = vmatprep.mubr.bf16.mxu0 %v6889
      %9640 = vmatmul.mubr.bf16.gmra.mxu0 %v6888
      %v9641 = vpop.f32.mrf.mxu0
      %v9642 = vadd.f32 %v7185, %v9641
      %v9643 = vpop.f32.mrf.mxu0
      %v9644 = vpop.f32.mrf.mxu0
      %v9645 = vadd.f32 %v7185, %v9644
      %v9646 = vpop.f32.mrf.mxu0
      %9647 = vmatprep.mubr.bf16.mxu0 %v6893
      %9648 = vmatmul.mubr.bf16.gmra.mxu0 %v6892
      %v9649 = vpop.f32.mrf.mxu0
      %v9650 = vadd.f32 %v7185, %v9649
      %v9651 = vpop.f32.mrf.mxu0
      %v9652 = vpop.f32.mrf.mxu0
      %v9653 = vadd.f32 %v7185, %v9652
      %v9654 = vpop.f32.mrf.mxu0
      %9655 = vmatprep.mubr.bf16.mxu0 %v6897
      %9656 = vmatmul.mubr.bf16.gmra.mxu0 %v6896
      %v9657 = vpop.f32.mrf.mxu0
      %v9658 = vadd.f32 %v7185, %v9657
      %v9659 = vpop.f32.mrf.mxu0
      %v9660 = vpop.f32.mrf.mxu0
      %v9661 = vadd.f32 %v7185, %v9660
      %v9662 = vpop.f32.mrf.mxu0
      %9663 = vdwg.mxu0
      %9664 = vmatprep.subr.bf16.mxu0 0
      %9665 = vmatpush1.bf16.msra.mxu0 %v8064
      %9666 = vmatprep.subr.bf16.mxu0 0
      %9667 = vmatpush1.bf16.msra.mxu0 %v8057
      %9668 = vmatprep.subr.bf16.mxu0 0
      %9669 = vmatpush1.bf16.msra.mxu0 %v8050
      %9670 = vmatprep.subr.bf16.mxu0 0
      %9671 = vmatpush1.bf16.msra.mxu0 %v8043
      %9672 = vmatprep.subr.bf16.mxu0 0
      %9673 = vmatpush1.bf16.msra.mxu0 %v8036
      %9674 = vmatprep.subr.bf16.mxu0 0
      %9675 = vmatpush1.bf16.msra.mxu0 %v8029
      %9676 = vmatprep.subr.bf16.mxu0 0
      %9677 = vmatpush1.bf16.msra.mxu0 %v8022
      %9678 = vmatprep.subr.bf16.mxu0 0
      %9679 = vmatpush1.bf16.msra.mxu0 %v8015
      %9680 = vmatprep.subr.bf16.mxu0 0
      %9681 = vmatpush2.bf16.msra.mxu0 %v8120
      %9682 = vmatprep.subr.bf16.mxu0 0
      %9683 = vmatpush2.bf16.msra.mxu0 %v8113
      %9684 = vmatprep.subr.bf16.mxu0 0
      %9685 = vmatpush2.bf16.msra.mxu0 %v8106
      %9686 = vmatprep.subr.bf16.mxu0 0
      %9687 = vmatpush2.bf16.msra.mxu0 %v8099
      %9688 = vmatprep.subr.bf16.mxu0 0
      %9689 = vmatpush2.bf16.msra.mxu0 %v8092
      %9690 = vmatprep.subr.bf16.mxu0 0
      %9691 = vmatpush2.bf16.msra.mxu0 %v8085
      %9692 = vmatprep.subr.bf16.mxu0 0
      %9693 = vmatpush2.bf16.msra.mxu0 %v8078
      %9694 = vmatprep.subr.bf16.mxu0 0
      %9695 = vmatpush2.bf16.msra.mxu0 %v8071
      %9696 = vmatprep.mubr.bf16.mxu0 %v6839
      %9697 = vmatmul.mubr.bf16.gmra.mxu0 %v6838
      %v9698 = vpop.f32.mrf.mxu0
      %v9699 = vadd.f32 %v9538, %v9698
      %v9700 = vpop.f32.mrf.mxu0
      %v9701 = vpop.f32.mrf.mxu0
      %v9702 = vadd.f32 %v9541, %v9701
      %v9703 = vpop.f32.mrf.mxu0
      %9704 = vmatprep.mubr.bf16.mxu0 %v6843
      %9705 = vmatmul.mubr.bf16.gmra.mxu0 %v6842
      %v9706 = vpop.f32.mrf.mxu0
      %v9707 = vadd.f32 %v9546, %v9706
      %v9708 = vpop.f32.mrf.mxu0
      %v9709 = vpop.f32.mrf.mxu0
      %v9710 = vadd.f32 %v9549, %v9709
      %v9711 = vpop.f32.mrf.mxu0
      %9712 = vmatprep.mubr.bf16.mxu0 %v6847
      %9713 = vmatmul.mubr.bf16.gmra.mxu0 %v6846
      %v9714 = vpop.f32.mrf.mxu0
      %v9715 = vadd.f32 %v9554, %v9714
      %v9716 = vpop.f32.mrf.mxu0
      %v9717 = vpop.f32.mrf.mxu0
      %v9718 = vadd.f32 %v9557, %v9717
      %v9719 = vpop.f32.mrf.mxu0
      %9720 = vmatprep.mubr.bf16.mxu0 %v6851
      %9721 = vmatmul.mubr.bf16.gmra.mxu0 %v6850
      %v9722 = vpop.f32.mrf.mxu0
      %v9723 = vadd.f32 %v9562, %v9722
      %v9724 = vpop.f32.mrf.mxu0
      %v9725 = vpop.f32.mrf.mxu0
      %v9726 = vadd.f32 %v9565, %v9725
      %v9727 = vpop.f32.mrf.mxu0
      %9728 = vmatprep.mubr.bf16.mxu0 %v6855
      %9729 = vmatmul.mubr.bf16.gmra.mxu0 %v6854
      %v9730 = vpop.f32.mrf.mxu0
      %v9731 = vadd.f32 %v9570, %v9730
      %v9732 = vpop.f32.mrf.mxu0
      %v9733 = vpop.f32.mrf.mxu0
      %v9734 = vadd.f32 %v9573, %v9733
      %v9735 = vpop.f32.mrf.mxu0
      %9736 = vmatprep.mubr.bf16.mxu0 %v6859
      %9737 = vmatmul.mubr.bf16.gmra.mxu0 %v6858
      %v9738 = vpop.f32.mrf.mxu0
      %v9739 = vadd.f32 %v9578, %v9738
      %v9740 = vpop.f32.mrf.mxu0
      %v9741 = vpop.f32.mrf.mxu0
      %v9742 = vadd.f32 %v9581, %v9741
      %v9743 = vpop.f32.mrf.mxu0
      %9744 = vmatprep.mubr.bf16.mxu0 %v6863
      %9745 = vmatmul.mubr.bf16.gmra.mxu0 %v6862
      %v9746 = vpop.f32.mrf.mxu0
      %v9747 = vadd.f32 %v9586, %v9746
      %v9748 = vpop.f32.mrf.mxu0
      %v9749 = vpop.f32.mrf.mxu0
      %v9750 = vadd.f32 %v9589, %v9749
      %v9751 = vpop.f32.mrf.mxu0
      %9752 = vmatprep.mubr.bf16.mxu0 %v6867
      %9753 = vmatmul.mubr.bf16.gmra.mxu0 %v6866
      %v9754 = vpop.f32.mrf.mxu0
      %v9755 = vadd.f32 %v9594, %v9754
      %v9756 = vpop.f32.mrf.mxu0
      %v9757 = vpop.f32.mrf.mxu0
      %v9758 = vadd.f32 %v9597, %v9757
      %v9759 = vpop.f32.mrf.mxu0
      %9760 = vmatprep.mubr.bf16.mxu0 %v6871
      %9761 = vmatmul.mubr.bf16.gmra.mxu0 %v6870
      %v9762 = vpop.f32.mrf.mxu0
      %v9763 = vadd.f32 %v9602, %v9762
      %v9764 = vpop.f32.mrf.mxu0
      %v9765 = vpop.f32.mrf.mxu0
      %v9766 = vadd.f32 %v9605, %v9765
      %v9767 = vpop.f32.mrf.mxu0
      %9768 = vmatprep.mubr.bf16.mxu0 %v6875
      %9769 = vmatmul.mubr.bf16.gmra.mxu0 %v6874
      %v9770 = vpop.f32.mrf.mxu0
      %v9771 = vadd.f32 %v9610, %v9770
      %v9772 = vpop.f32.mrf.mxu0
      %v9773 = vpop.f32.mrf.mxu0
      %v9774 = vadd.f32 %v9613, %v9773
      %v9775 = vpop.f32.mrf.mxu0
      %9776 = vmatprep.mubr.bf16.mxu0 %v6879
      %9777 = vmatmul.mubr.bf16.gmra.mxu0 %v6878
      %v9778 = vpop.f32.mrf.mxu0
      %v9779 = vadd.f32 %v9618, %v9778
      %v9780 = vpop.f32.mrf.mxu0
      %v9781 = vpop.f32.mrf.mxu0
      %v9782 = vadd.f32 %v9621, %v9781
      %v9783 = vpop.f32.mrf.mxu0
      %9784 = vmatprep.mubr.bf16.mxu0 %v6883
      %9785 = vmatmul.mubr.bf16.gmra.mxu0 %v6882
      %v9786 = vpop.f32.mrf.mxu0
      %v9787 = vadd.f32 %v9626, %v9786
      %v9788 = vpop.f32.mrf.mxu0
      %v9789 = vpop.f32.mrf.mxu0
      %v9790 = vadd.f32 %v9629, %v9789
      %v9791 = vpop.f32.mrf.mxu0
      %9792 = vmatprep.mubr.bf16.mxu0 %v6887
      %9793 = vmatmul.mubr.bf16.gmra.mxu0 %v6886
      %v9794 = vpop.f32.mrf.mxu0
      %v9795 = vadd.f32 %v9634, %v9794
      %v9796 = vpop.f32.mrf.mxu0
      %v9797 = vpop.f32.mrf.mxu0
      %v9798 = vadd.f32 %v9637, %v9797
      %v9799 = vpop.f32.mrf.mxu0
      %9800 = vmatprep.mubr.bf16.mxu0 %v6891
      %9801 = vmatmul.mubr.bf16.gmra.mxu0 %v6890
      %v9802 = vpop.f32.mrf.mxu0
      %v9803 = vadd.f32 %v9642, %v9802
      %v9804 = vpop.f32.mrf.mxu0
      %v9805 = vpop.f32.mrf.mxu0
      %v9806 = vadd.f32 %v9645, %v9805
      %v9807 = vpop.f32.mrf.mxu0
      %9808 = vmatprep.mubr.bf16.mxu0 %v6895
      %9809 = vmatmul.mubr.bf16.gmra.mxu0 %v6894
      %v9810 = vpop.f32.mrf.mxu0
      %v9811 = vadd.f32 %v9650, %v9810
      %v9812 = vpop.f32.mrf.mxu0
      %v9813 = vpop.f32.mrf.mxu0
      %v9814 = vadd.f32 %v9653, %v9813
      %v9815 = vpop.f32.mrf.mxu0
      %9816 = vmatprep.mubr.bf16.mxu0 %v6899
      %9817 = vmatmul.mubr.bf16.gmra.mxu0 %v6898
      %v9818 = vpop.f32.mrf.mxu0
      %v9819 = vadd.f32 %v9658, %v9818
      %v9820 = vpop.f32.mrf.mxu0
      %v9821 = vpop.f32.mrf.mxu0
      %v9822 = vadd.f32 %v9661, %v9821
      %v9823 = vpop.f32.mrf.mxu0
      %9824 = vdwg.mxu0
      %9825 = vst [vmem:[%s488] sm:$0xff] %v8573
      %9826 = vst [vmem:[%s488 + $0x8] sm:$0xff] %v8575
      %9827 = vst [vmem:[%s488 + $0x10] sm:$0xff] %v8959
      %9828 = vst [vmem:[%s488 + $0x18] sm:$0xff] %v8961
      %9829 = vst [vmem:[%s488 + $0x20] sm:$0xff] %v9345
      %9830 = vst [vmem:[%s488 + $0x28] sm:$0xff] %v9347
      %9831 = vst [vmem:[%s488 + $0x30] sm:$0xff] %v9699
      %9832 = vst [vmem:[%s488 + $0x38] sm:$0xff] %v8577
      %9833 = vst [vmem:[%s488 + $0x40] sm:$0xff] %v8579
      %9834 = vst [vmem:[%s488 + $0x48] sm:$0xff] %v8963
      %9835 = vst [vmem:[%s488 + $0x50] sm:$0xff] %v8965
      %9836 = vst [vmem:[%s488 + $0x58] sm:$0xff] %v9349
      %9837 = vst [vmem:[%s488 + $0x60] sm:$0xff] %v9351
      %9838 = vst [vmem:[%s488 + $0x68] sm:$0xff] %v9702
      %9839 = vst [vmem:[%s488 + $0x70] sm:$0xff] %v8583
      %9840 = vst [vmem:[%s488 + $0x78] sm:$0xff] %v8585
      %9841 = vst [vmem:[%s488 + $0x80] sm:$0xff] %v8969
      %9842 = vst [vmem:[%s488 + $0x88] sm:$0xff] %v8971
      %9843 = vst [vmem:[%s488 + $0x90] sm:$0xff] %v9355
      %9844 = vst [vmem:[%s488 + $0x98] sm:$0xff] %v9357
      %9845 = vst [vmem:[%s488 + $0xa0] sm:$0xff] %v9707
      %9846 = vst [vmem:[%s488 + $0xa8] sm:$0xff] %v8587
      %9847 = vst [vmem:[%s488 + $0xb0] sm:$0xff] %v8589
      %9848 = vst [vmem:[%s488 + $0xb8] sm:$0xff] %v8973
      %9849 = vst [vmem:[%s488 + $0xc0] sm:$0xff] %v8975
      %9850 = vst [vmem:[%s488 + $0xc8] sm:$0xff] %v9359
      %9851 = vst [vmem:[%s488 + $0xd0] sm:$0xff] %v9361
      %9852 = vst [vmem:[%s488 + $0xd8] sm:$0xff] %v9710
      %9853 = vst [vmem:[%s488 + $0xe0] sm:$0xff] %v8593
      %9854 = vst [vmem:[%s488 + $0xe8] sm:$0xff] %v8595
      %9855 = vst [vmem:[%s488 + $0xf0] sm:$0xff] %v8979
      %9856 = vst [vmem:[%s488 + $0xf8] sm:$0xff] %v8981
      %9857 = vst [vmem:[%s488 + $0x100] sm:$0xff] %v9365
      %9858 = vst [vmem:[%s488 + $0x108] sm:$0xff] %v9367
      %9859 = vst [vmem:[%s488 + $0x110] sm:$0xff] %v9715
      %9860 = vst [vmem:[%s488 + $0x118] sm:$0xff] %v8597
      %9861 = vst [vmem:[%s488 + $0x120] sm:$0xff] %v8599
      %9862 = vst [vmem:[%s488 + $0x128] sm:$0xff] %v8983
      %9863 = vst [vmem:[%s488 + $0x130] sm:$0xff] %v8985
      %9864 = vst [vmem:[%s488 + $0x138] sm:$0xff] %v9369
      %9865 = vst [vmem:[%s488 + $0x140] sm:$0xff] %v9371
      %9866 = vst [vmem:[%s488 + $0x148] sm:$0xff] %v9718
      %9867 = vst [vmem:[%s488 + $0x150] sm:$0xff] %v8603
      %9868 = vst [vmem:[%s488 + $0x158] sm:$0xff] %v8605
      %9869 = vst [vmem:[%s488 + $0x160] sm:$0xff] %v8989
      %9870 = vst [vmem:[%s488 + $0x168] sm:$0xff] %v8991
      %9871 = vst [vmem:[%s488 + $0x170] sm:$0xff] %v9375
      %9872 = vst [vmem:[%s488 + $0x178] sm:$0xff] %v9377
      %9873 = vst [vmem:[%s488 + $0x180] sm:$0xff] %v9723
      %9874 = vst [vmem:[%s488 + $0x188] sm:$0xff] %v8607
      %9875 = vst [vmem:[%s488 + $0x190] sm:$0xff] %v8609
      %9876 = vst [vmem:[%s488 + $0x198] sm:$0xff] %v8993
      %9877 = vst [vmem:[%s488 + $0x1a0] sm:$0xff] %v8995
      %9878 = vst [vmem:[%s488 + $0x1a8] sm:$0xff] %v9379
      %9879 = vst [vmem:[%s488 + $0x1b0] sm:$0xff] %v9381
      %9880 = vst [vmem:[%s488 + $0x1b8] sm:$0xff] %v9726
      %9881 = vst [vmem:[%s488 + $0x1c0] sm:$0xff] %v8613
      %9882 = vst [vmem:[%s488 + $0x1c8] sm:$0xff] %v8615
      %9883 = vst [vmem:[%s488 + $0x1d0] sm:$0xff] %v8999
      %9884 = vst [vmem:[%s488 + $0x1d8] sm:$0xff] %v9001
      %9885 = vst [vmem:[%s488 + $0x1e0] sm:$0xff] %v9385
      %9886 = vst [vmem:[%s488 + $0x1e8] sm:$0xff] %v9387
      %9887 = vst [vmem:[%s488 + $0x1f0] sm:$0xff] %v9731
      %9888 = vst [vmem:[%s488 + $0x1f8] sm:$0xff] %v8617
      %9889 = vst [vmem:[%s488 + $0x200] sm:$0xff] %v8619
      %9890 = vst [vmem:[%s488 + $0x208] sm:$0xff] %v9003
      %9891 = vst [vmem:[%s488 + $0x210] sm:$0xff] %v9005
      %9892 = vst [vmem:[%s488 + $0x218] sm:$0xff] %v9389
      %9893 = vst [vmem:[%s488 + $0x220] sm:$0xff] %v9391
      %9894 = vst [vmem:[%s488 + $0x228] sm:$0xff] %v9734
      %9895 = vst [vmem:[%s488 + $0x230] sm:$0xff] %v8623
      %9896 = vst [vmem:[%s488 + $0x238] sm:$0xff] %v8625
      %9897 = vst [vmem:[%s488 + $0x240] sm:$0xff] %v9009
      %9898 = vst [vmem:[%s488 + $0x248] sm:$0xff] %v9011
      %9899 = vst [vmem:[%s488 + $0x250] sm:$0xff] %v9395
      %9900 = vst [vmem:[%s488 + $0x258] sm:$0xff] %v9397
      %9901 = vst [vmem:[%s488 + $0x260] sm:$0xff] %v9739
      %9902 = vst [vmem:[%s488 + $0x268] sm:$0xff] %v8627
      %9903 = vst [vmem:[%s488 + $0x270] sm:$0xff] %v8629
      %9904 = vst [vmem:[%s488 + $0x278] sm:$0xff] %v9013
      %9905 = vst [vmem:[%s488 + $0x280] sm:$0xff] %v9015
      %9906 = vst [vmem:[%s488 + $0x288] sm:$0xff] %v9399
      %9907 = vst [vmem:[%s488 + $0x290] sm:$0xff] %v9401
      %9908 = vst [vmem:[%s488 + $0x298] sm:$0xff] %v9742
      %9909 = vst [vmem:[%s488 + $0x2a0] sm:$0xff] %v8633
      %9910 = vst [vmem:[%s488 + $0x2a8] sm:$0xff] %v8635
      %9911 = vst [vmem:[%s488 + $0x2b0] sm:$0xff] %v9019
      %9912 = vst [vmem:[%s488 + $0x2b8] sm:$0xff] %v9021
      %9913 = vst [vmem:[%s488 + $0x2c0] sm:$0xff] %v9405
      %9914 = vst [vmem:[%s488 + $0x2c8] sm:$0xff] %v9407
      %9915 = vst [vmem:[%s488 + $0x2d0] sm:$0xff] %v9747
      %9916 = vst [vmem:[%s488 + $0x2d8] sm:$0xff] %v8637
      %9917 = vst [vmem:[%s488 + $0x2e0] sm:$0xff] %v8639
      %9918 = vst [vmem:[%s488 + $0x2e8] sm:$0xff] %v9023
      %9919 = vst [vmem:[%s488 + $0x2f0] sm:$0xff] %v9025
      %9920 = vst [vmem:[%s488 + $0x2f8] sm:$0xff] %v9409
      %9921 = vst [vmem:[%s488 + $0x300] sm:$0xff] %v9411
      %9922 = vst [vmem:[%s488 + $0x308] sm:$0xff] %v9750
      %9923 = vst [vmem:[%s488 + $0x310] sm:$0xff] %v8643
      %9924 = vst [vmem:[%s488 + $0x318] sm:$0xff] %v8645
      %9925 = vst [vmem:[%s488 + $0x320] sm:$0xff] %v9029
      %9926 = vst [vmem:[%s488 + $0x328] sm:$0xff] %v9031
      %9927 = vst [vmem:[%s488 + $0x330] sm:$0xff] %v9415
      %9928 = vst [vmem:[%s488 + $0x338] sm:$0xff] %v9417
      %9929 = vst [vmem:[%s488 + $0x340] sm:$0xff] %v9755
      %9930 = vst [vmem:[%s488 + $0x348] sm:$0xff] %v8647
      %9931 = vst [vmem:[%s488 + $0x350] sm:$0xff] %v8649
      %9932 = vst [vmem:[%s488 + $0x358] sm:$0xff] %v9033
      %9933 = vst [vmem:[%s488 + $0x360] sm:$0xff] %v9035
      %9934 = vst [vmem:[%s488 + $0x368] sm:$0xff] %v9419
      %9935 = vst [vmem:[%s488 + $0x370] sm:$0xff] %v9421
      %9936 = vst [vmem:[%s488 + $0x378] sm:$0xff] %v9758
      %9937 = vst [vmem:[%s488 + $0x380] sm:$0xff] %v8653
      %9938 = vst [vmem:[%s488 + $0x388] sm:$0xff] %v8655
      %9939 = vst [vmem:[%s488 + $0x390] sm:$0xff] %v9039
      %9940 = vst [vmem:[%s488 + $0x398] sm:$0xff] %v9041
      %9941 = vst [vmem:[%s488 + $0x3a0] sm:$0xff] %v9425
      %9942 = vst [vmem:[%s488 + $0x3a8] sm:$0xff] %v9427
      %9943 = vst [vmem:[%s488 + $0x3b0] sm:$0xff] %v9763
      %9944 = vst [vmem:[%s488 + $0x3b8] sm:$0xff] %v8657
      %9945 = vst [vmem:[%s488 + $0x3c0] sm:$0xff] %v8659
      %9946 = vst [vmem:[%s488 + $0x3c8] sm:$0xff] %v9043
      %9947 = vst [vmem:[%s488 + $0x3d0] sm:$0xff] %v9045
      %9948 = vst [vmem:[%s488 + $0x3d8] sm:$0xff] %v9429
      %9949 = vst [vmem:[%s488 + $0x3e0] sm:$0xff] %v9431
      %9950 = vst [vmem:[%s488 + $0x3e8] sm:$0xff] %v9766
      %9951 = vst [vmem:[%s488 + $0x3f0] sm:$0xff] %v8663
      %9952 = vst [vmem:[%s488 + $0x3f8] sm:$0xff] %v8665
      %9953 = vst [vmem:[%s488 + $0x400] sm:$0xff] %v9049
      %9954 = vst [vmem:[%s488 + $0x408] sm:$0xff] %v9051
      %9955 = vst [vmem:[%s488 + $0x410] sm:$0xff] %v9435
      %9956 = vst [vmem:[%s488 + $0x418] sm:$0xff] %v9437
      %9957 = vst [vmem:[%s488 + $0x420] sm:$0xff] %v9771
      %9958 = vst [vmem:[%s488 + $0x428] sm:$0xff] %v8667
      %9959 = vst [vmem:[%s488 + $0x430] sm:$0xff] %v8669
      %9960 = vst [vmem:[%s488 + $0x438] sm:$0xff] %v9053
      %9961 = vst [vmem:[%s488 + $0x440] sm:$0xff] %v9055
      %9962 = vst [vmem:[%s488 + $0x448] sm:$0xff] %v9439
      %9963 = vst [vmem:[%s488 + $0x450] sm:$0xff] %v9441
      %9964 = vst [vmem:[%s488 + $0x458] sm:$0xff] %v9774
      %9965 = vst [vmem:[%s488 + $0x460] sm:$0xff] %v8673
      %9966 = vst [vmem:[%s488 + $0x468] sm:$0xff] %v8675
      %9967 = vst [vmem:[%s488 + $0x470] sm:$0xff] %v9059
      %9968 = vst [vmem:[%s488 + $0x478] sm:$0xff] %v9061
      %9969 = vst [vmem:[%s488 + $0x480] sm:$0xff] %v9445
      %9970 = vst [vmem:[%s488 + $0x488] sm:$0xff] %v9447
      %9971 = vst [vmem:[%s488 + $0x490] sm:$0xff] %v9779
      %9972 = vst [vmem:[%s488 + $0x498] sm:$0xff] %v8677
      %9973 = vst [vmem:[%s488 + $0x4a0] sm:$0xff] %v8679
      %9974 = vst [vmem:[%s488 + $0x4a8] sm:$0xff] %v9063
      %9975 = vst [vmem:[%s488 + $0x4b0] sm:$0xff] %v9065
      %9976 = vst [vmem:[%s488 + $0x4b8] sm:$0xff] %v9449
      %9977 = vst [vmem:[%s488 + $0x4c0] sm:$0xff] %v9451
      %9978 = vst [vmem:[%s488 + $0x4c8] sm:$0xff] %v9782
      %9979 = vst [vmem:[%s488 + $0x4d0] sm:$0xff] %v8683
      %9980 = vst [vmem:[%s488 + $0x4d8] sm:$0xff] %v8685
      %9981 = vst [vmem:[%s488 + $0x4e0] sm:$0xff] %v9069
      %9982 = vst [vmem:[%s488 + $0x4e8] sm:$0xff] %v9071
      %9983 = vst [vmem:[%s488 + $0x4f0] sm:$0xff] %v9455
      %9984 = vst [vmem:[%s488 + $0x4f8] sm:$0xff] %v9457
      %9985 = vst [vmem:[%s488 + $0x500] sm:$0xff] %v9787
      %9986 = vst [vmem:[%s488 + $0x508] sm:$0xff] %v8687
      %9987 = vst [vmem:[%s488 + $0x510] sm:$0xff] %v8689
      %9988 = vst [vmem:[%s488 + $0x518] sm:$0xff] %v9073
      %9989 = vst [vmem:[%s488 + $0x520] sm:$0xff] %v9075
      %9990 = vst [vmem:[%s488 + $0x528] sm:$0xff] %v9459
      %9991 = vst [vmem:[%s488 + $0x530] sm:$0xff] %v9461
      %9992 = vst [vmem:[%s488 + $0x538] sm:$0xff] %v9790
      %9993 = vst [vmem:[%s488 + $0x540] sm:$0xff] %v8693
      %9994 = vst [vmem:[%s488 + $0x548] sm:$0xff] %v8695
      %9995 = vst [vmem:[%s488 + $0x550] sm:$0xff] %v9079
      %9996 = vst [vmem:[%s488 + $0x558] sm:$0xff] %v9081
      %9997 = vst [vmem:[%s488 + $0x560] sm:$0xff] %v9465
      %9998 = vst [vmem:[%s488 + $0x568] sm:$0xff] %v9467
      %9999 = vst [vmem:[%s488 + $0x570] sm:$0xff] %v9795
      %10000 = vst [vmem:[%s488 + $0x578] sm:$0xff] %v8697
      %10001 = vst [vmem:[%s488 + $0x580] sm:$0xff] %v8699
      %10002 = vst [vmem:[%s488 + $0x588] sm:$0xff] %v9083
      %10003 = vst [vmem:[%s488 + $0x590] sm:$0xff] %v9085
      %10004 = vst [vmem:[%s488 + $0x598] sm:$0xff] %v9469
      %10005 = vst [vmem:[%s488 + $0x5a0] sm:$0xff] %v9471
      %10006 = vst [vmem:[%s488 + $0x5a8] sm:$0xff] %v9798
      %10007 = vst [vmem:[%s488 + $0x5b0] sm:$0xff] %v8703
      %10008 = vst [vmem:[%s488 + $0x5b8] sm:$0xff] %v8705
      %10009 = vst [vmem:[%s488 + $0x5c0] sm:$0xff] %v9089
      %10010 = vst [vmem:[%s488 + $0x5c8] sm:$0xff] %v9091
      %10011 = vst [vmem:[%s488 + $0x5d0] sm:$0xff] %v9475
      %10012 = vst [vmem:[%s488 + $0x5d8] sm:$0xff] %v9477
      %10013 = vst [vmem:[%s488 + $0x5e0] sm:$0xff] %v9803
      %10014 = vst [vmem:[%s488 + $0x5e8] sm:$0xff] %v8707
      %10015 = vst [vmem:[%s488 + $0x5f0] sm:$0xff] %v8709
      %10016 = vst [vmem:[%s488 + $0x5f8] sm:$0xff] %v9093
      %10017 = vst [vmem:[%s488 + $0x600] sm:$0xff] %v9095
      %10018 = vst [vmem:[%s488 + $0x608] sm:$0xff] %v9479
      %10019 = vst [vmem:[%s488 + $0x610] sm:$0xff] %v9481
      %10020 = vst [vmem:[%s488 + $0x618] sm:$0xff] %v9806
      %10021 = vst [vmem:[%s488 + $0x620] sm:$0xff] %v8713
      %10022 = vst [vmem:[%s488 + $0x628] sm:$0xff] %v8715
      %10023 = vst [vmem:[%s488 + $0x630] sm:$0xff] %v9099
      %10024 = vst [vmem:[%s488 + $0x638] sm:$0xff] %v9101
      %10025 = vst [vmem:[%s488 + $0x640] sm:$0xff] %v9485
      %10026 = vst [vmem:[%s488 + $0x648] sm:$0xff] %v9487
      %10027 = vst [vmem:[%s488 + $0x650] sm:$0xff] %v9811
      %10028 = vst [vmem:[%s488 + $0x658] sm:$0xff] %v8717
      %10029 = vst [vmem:[%s488 + $0x660] sm:$0xff] %v8719
      %10030 = vst [vmem:[%s488 + $0x668] sm:$0xff] %v9103
      %10031 = vst [vmem:[%s488 + $0x670] sm:$0xff] %v9105
      %10032 = vst [vmem:[%s488 + $0x678] sm:$0xff] %v9489
      %10033 = vst [vmem:[%s488 + $0x680] sm:$0xff] %v9491
      %10034 = vst [vmem:[%s488 + $0x688] sm:$0xff] %v9814
      %10035 = vst [vmem:[%s488 + $0x690] sm:$0xff] %v8723
      %10036 = vst [vmem:[%s488 + $0x698] sm:$0xff] %v8725
      %10037 = vst [vmem:[%s488 + $0x6a0] sm:$0xff] %v9109
      %10038 = vst [vmem:[%s488 + $0x6a8] sm:$0xff] %v9111
      %10039 = vst [vmem:[%s488 + $0x6b0] sm:$0xff] %v9495
      %10040 = vst [vmem:[%s488 + $0x6b8] sm:$0xff] %v9497
      %10041 = vst [vmem:[%s488 + $0x6c0] sm:$0xff] %v9819
      %10042 = vst [vmem:[%s488 + $0x6c8] sm:$0xff] %v8727
      %10043 = vst [vmem:[%s488 + $0x6d0] sm:$0xff] %v8729
      %10044 = vst [vmem:[%s488 + $0x6d8] sm:$0xff] %v9113
      %10045 = vst [vmem:[%s488 + $0x6e0] sm:$0xff] %v9115
      %10046 = vst [vmem:[%s488 + $0x6e8] sm:$0xff] %v9499
      %10047 = vst [vmem:[%s488 + $0x6f0] sm:$0xff] %v9501
      %10048 = vst [vmem:[%s488 + $0x6f8] sm:$0xff] %v9822
      %s10049 = smul.u32 32, %s26
      %p10050 = scmp.lt.s32.totalorder %s10049, 63
      %s10051 = scalar_select %p10050, %s10049, 63
      %s10052 = smul.addr %s10051, 8
      %s10053 = scalar_lea.vmem %s13, %s10052
      %s10054 = smul.u32 32, %s26
      %p10055 = scmp.lt.s32.totalorder %s10054, 63
      %s10056 = scalar_select %p10055, %s10054, 63
      %s10057 = smul.addr %s10056, 7
      %s10058 = smul.addr %s10057, 8
      %s10059 = scalar_lea.vmem %s14, %s10058
      // Predicated region
      $region73: #{ae_forward.1} parent=71 // pred_check
        %p10060 = pneg %p322
      $region74: #{ae_forward.1} parent=71 // pred_check_branch
        %10062 = sbr.rel (%p10060) target = $region76
      $region75: #{ae_forward.1} parent=71 // pred_region
        %s10063 = smul.u32 32, %s26
      $region76: #{ae_forward.1} parent=71 // pred_fallthru
        _
      // Predicated region
      $region77: #{ae_forward.1} parent=71 // pred_check
        %p10064 = pneg %p348
      $region78: #{ae_forward.1} parent=71 // pred_check_branch
        %10066 = sbr.rel (%p10064) target = $region80
      $region79: #{ae_forward.1} parent=71 // pred_region
        %s10067 = smul.u32 32, %s26
      $region80: #{ae_forward.1} parent=71 // pred_fallthru
        _
    $region72: #{ae_forward.1} parent=5 // pred_fallthru
      _
    %p10068 = scmp.le.s32.totalorder 2, %s21
    // Predicated region
    $region81: #{ae_forward.1} parent=5 // pred_check
      %p10069 = pneg %p10068
    $region82: #{ae_forward.1} parent=5 // pred_check_branch
      %10071 = sbr.rel (%p10069) target = $region84
    $region83: #{ae_forward.1} parent=5 // pred_region
      %s10072 = ssub.s32 %s21, 2
      // Predicated region
      $region85: #{ae_forward.1} parent=83 // pred_check
        %p10073 = pneg %p328
      $region86: #{ae_forward.1} parent=83 // pred_check_branch
        %10075 = sbr.rel (%p10073) target = $region88
      $region87: #{ae_forward.1} parent=83 // pred_region
        %s10076 = smul.u32 32, %s27
        %p10077 = scmp.lt.s32.totalorder %s10076, 63
        %s10078 = scalar_select %p10077, %s10076, 63
        %s10079 = smul.addr %s10078, 8
        %s10080 = scalar_lea.vmem %s13, %s10079
      $region88: #{ae_forward.1} parent=83 // pred_fallthru
        _
      // Predicated region
      $region89: #{ae_forward.1} parent=83 // pred_check
        %p10081 = pneg %p354
      $region90: #{ae_forward.1} parent=83 // pred_check_branch
        %10083 = sbr.rel (%p10081) target = $region92
      $region91: #{ae_forward.1} parent=83 // pred_region
        %s10084 = smul.u32 32, %s27
        %p10085 = scmp.lt.s32.totalorder %s10084, 63
        %s10086 = scalar_select %p10085, %s10084, 63
        %s10087 = smul.addr %s10086, 7
        %s10088 = smul.addr %s10087, 8
        %s10089 = scalar_lea.vmem %s14, %s10088
      $region92: #{ae_forward.1} parent=83 // pred_fallthru
        _
    $region84: #{ae_forward.1} parent=5 // pred_fallthru
      _
  $region6: #{ae_forward.1} parent=0 // loop_footer
    %s25 = sadd.s32 1, %s21
  $region7: #{ae_forward.1} parent=0 // loop_footer_branch
    %20 = sbr.rel target = $region3
  $region8: #{ae_forward.1} parent=0 // loop_exit
    _

</llo_original>
